<compile_context>
chip_gen: v7x
topology: tpu7x:2x2x1
jax: 0.10.0
libtpu: 0.0.40
codegen_flags: <defaults>
</compile_context>

<pallas_src>
import math

import jax
import jax.numpy as jnp
from jax.experimental import pallas as pl
from jax.experimental.pallas import tpu as pltpu

# ----------------------------------------------------------------------------
# Model hyper-parameters (PyTorch module defaults).
# ----------------------------------------------------------------------------
FEATURE_EMBED_DIM = 32
NUM_CHANNELS = [4, 8, 16, 32]
KERNEL_SIZE = 4
ATTENTION_HIDDEN_DIM = 32
NUM_LAYERS = len(NUM_CHANNELS)

_SLAB_LANES = 128
VMEM_SPEC = pl.BlockSpec(memory_space=pltpu.MemorySpace.VMEM)


# ----------------------------------------------------------------------------
# Static parameter layout: one (rows, 128) f32 slab, 8-row aligned blocks.
# ----------------------------------------------------------------------------
def _param_specs():
    """(name, rows, cols, fan_in) for every parameter, in slab order."""
    E, K, HA = FEATURE_EMBED_DIM, KERNEL_SIZE, ATTENTION_HIDDEN_DIM
    specs = [("embed_w", 1, E, 1), ("embed_b", 1, E, 1)]
    for i, cout in enumerate(NUM_CHANNELS):
        cin = E if i == 0 else NUM_CHANNELS[i - 1]
        specs += [
            # causal conv taps stacked on the LANE axis: w[:, j*cout:(j+1)*cout] = tap j
            (f"w1_{i}", cin, K * cout, K * cin),
            (f"b1_{i}", 1, cout, K * cin),
            (f"w2_{i}", cout, K * cout, K * cout),
            (f"b2_{i}", 1, cout, K * cout),
            # 1x1 residual downsample (cin != cout for every layer here)
            (f"wd_{i}", cin, cout, cin),
            (f"bd_{i}", 1, cout, cin),
            # GRU gates fused on the LANE axis in (r | z | n) order
            (f"wih_{i}", cout, 3 * cout, cout),
            (f"bih_{i}", 1, 3 * cout, cout),
            (f"whh_{i}", cout, 3 * cout, cout),
            (f"bhh_{i}", 1, 3 * cout, cout),
            # attention projections
            (f"wq_{i}", cout, HA, cout),
            (f"bq_{i}", 1, HA, cout),
            (f"wk_{i}", cout, HA, cout),
            (f"bk_{i}", 1, HA, cout),
            (f"wo_{i}", cout, cout, cout),
            (f"bo_{i}", 1, cout, cout),
        ]
    return specs


_PARAM_SPECS = _param_specs()


def _build_layout():
    layout, off = {}, 0
    for name, r, c, _ in _PARAM_SPECS:
        layout[name] = (off, r, c)
        off += ((r + 7) // 8) * 8          # keep every block sublane(8)-aligned
    return layout, off


_LAYOUT, _SLAB_ROWS = _build_layout()      # 784 rows x 128 lanes (f32) ~ 392 KB


# ----------------------------------------------------------------------------
# In-kernel building blocks (everything VMEM / vreg resident).
# ----------------------------------------------------------------------------
def _slice_param(slab_ref, name):
    off, r, c = _LAYOUT[name]
    return slab_ref[off:off + r, 0:c]      # static slice of the VMEM slab


def _causal_conv(x2, w, b, B, T, cout):
    """Conv1d(k, padding=k-1) + Chomp1d(k-1) as ONE matmul with taps on lanes.

    out[b, t] = bias + sum_j x[b, t-(K-1)+j] @ w_j   (zero where the index < 0).
    """
    K = KERNEL_SIZE
    z = jnp.dot(x2, w, preferred_element_type=jnp.float32).reshape(B, T, K * cout)
    acc = z[:, :, (K - 1) * cout:]                     # tap K-1: no time shift
    for j in range(K - 1):
        s = K - 1 - j                                  # causal shift of tap j
        zj = z[:, :T - s, j * cout:(j + 1) * cout]
        # TODO(synk): on real HW pltpu.roll + a hoisted time mask avoids this tiny
        # concat copy; the concat form is kept for interpret-mode portability.
        acc = acc + jnp.concatenate(
            [jnp.zeros((B, s, cout), jnp.float32), zj], axis=1)
    return acc.reshape(B * T, cout) + b                # (B*T, cout), bias broadcast


def _temporal_block(x2, lidx, slab_ref, B, T, cout):
    """conv1 -> ReLU -> conv2 -> ReLU, plus 1x1 residual downsample, final ReLU."""
    p = lambda n: _slice_param(slab_ref, f"{n}_{lidx}")
    y = jnp.maximum(_causal_conv(x2, p("w1"), p("b1"), B, T, cout), 0.0)
    y = jnp.maximum(_causal_conv(y, p("w2"), p("b2"), B, T, cout), 0.0)
    res = jnp.dot(x2, p("wd"), preferred_element_type=jnp.float32) + p("bd")
    return jnp.maximum(y + res, 0.0)                   # (B*T, cout)


# ----------------------------------------------------------------------------
# Single fused kernel: whole forward pass.
# ----------------------------------------------------------------------------
def _fused_forward_kernel(x_ref, km_ref, valid_ref, slab_ref,
                          embed_out_ref, attn_out_ref):
    B, T = km_ref.shape
    key_mask = km_ref[...]                             # (B, T) {0,1}, 1 = masked
    valid = valid_ref[...]                             # (B, T) {0,1}, t < lens[b]
    p = lambda name: _slice_param(slab_ref, name)

    # --- feature_embed: Linear(1, E) == broadcast outer product ---------------
    h2 = x_ref[...] * p("embed_w") + p("embed_b")      # (B*T, E)
    # TODO(synk): PositionalEncoding is built in __init__ but never used in forward.

    # --- TCN stack first (sequential chain); GRU / attention afterwards -------
    conv_outs = []
    for i, cout in enumerate(NUM_CHANNELS):
        h2 = _temporal_block(h2, i, slab_ref, B, T, cout)
        conv_outs.append(h2)                           # (B*T, cout)

    # --- GRU: hoisted input projections, fused gates, interleaved layers ------
    gis, whhs, bhhs = [], [], []
    for i, c in enumerate(NUM_CHANNELS):
        gi = (jnp.dot(conv_outs[i], p(f"wih_{i}"),
                      preferred_element_type=jnp.float32) + p(f"bih_{i}"))
        gis.append(gi.reshape(B, T, 3 * c))            # (B, T, 3c) in (r | z | n)
        whhs.append(p(f"whh_{i}"))
        bhhs.append(p(f"bhh_{i}"))

    hs = [jnp.zeros((B, c), jnp.float32) for c in NUM_CHANNELS]
    for t in range(T):                                 # static unroll (T == 8)
        v = valid[:, t:t + 1]                          # (B, 1) in {0, 1}
        for i, c in enumerate(NUM_CHANNELS):           # 4 independent recurrences
            gh = (jnp.dot(hs[i], whhs[i],
                          preferred_element_type=jnp.float32) + bhhs[i])   # (B, 3c)
            gi_t = gis[i][:, t, :]                                         # (B, 3c)
            r = jax.nn.sigmoid(gi_t[:, 0:c] + gh[:, 0:c])
            zg = jax.nn.sigmoid(gi_t[:, c:2 * c] + gh[:, c:2 * c])
            n = jnp.tanh(gi_t[:, 2 * c:3 * c] + r * gh[:, 2 * c:3 * c])
            h_new = (1.0 - zg) * n + zg * hs[i]
            hs[i] = v * h_new + (1.0 - v) * hs[i]      # freeze when t >= lens[b]

    # --- multiplicative (Luong) attention, masked softmax over time ----------
    inv_sqrt_ha = 1.0 / math.sqrt(float(ATTENTION_HIDDEN_DIM))
    ctxs, attns = [], []
    for i, c in enumerate(NUM_CHANNELS):
        x2 = conv_outs[i]                              # (B*T, c)
        x3 = x2.reshape(B, T, c)
        qp = (jnp.dot(hs[i], p(f"wq_{i}"),
                      preferred_element_type=jnp.float32) + p(f"bq_{i}"))  # (B, Ha)
        kp = ((jnp.dot(x2, p(f"wk_{i}"),
                       preferred_element_type=jnp.float32) + p(f"bk_{i}"))
              .reshape(B, T, ATTENTION_HIDDEN_DIM))
        scores = jnp.sum(qp[:, None, :] * kp, axis=-1) * inv_sqrt_ha       # (B, T)
        scores = jnp.where(key_mask > 0.5, jnp.float32(-1e9), scores)
        m = jnp.max(scores, axis=-1, keepdims=True)
        e = jnp.exp(scores - m)
        attn = e / jnp.sum(e, axis=-1, keepdims=True)  # exact divide (fidelity)
        ctx = jnp.sum(attn[:, :, None] * x3, axis=1)   # (B, c)
        out = (jnp.dot(ctx, p(f"wo_{i}"),
                       preferred_element_type=jnp.float32) + p(f"bo_{i}"))
        ctxs.append(out)
        attns.append(attn)

    # Lane-dense single stores for both outputs.
    embed_out_ref[...] = jnp.concatenate(ctxs, axis=-1)    # (B, sum(NUM_CHANNELS))
    attn_out_ref[...] = jnp.concatenate(attns, axis=-1)    # (B, L*T)


# ----------------------------------------------------------------------------
# Parameter init, slab packing, forward wrapper.
# ----------------------------------------------------------------------------
def init_params(key):
    keys = jax.random.split(key, len(_PARAM_SPECS))
    params = {}
    for k, (name, r, c, fan_in) in zip(keys, _PARAM_SPECS):
        params[name] = (jax.random.normal(k, (r, c), dtype=jnp.float32)
                        / jnp.sqrt(jnp.float32(fan_in)))
    return params


def pack_params(params):
    """Pack every parameter into one (rows, 128) f32 slab -> a single input DMA."""
    blocks = []
    for name, r, c, _ in _PARAM_SPECS:
        rpad = ((r + 7) // 8) * 8
        a = jnp.asarray(params[name], jnp.float32)
        blocks.append(jnp.pad(a, ((0, rpad - r), (0, _SLAB_LANES - c))))
    slab = jnp.concatenate(blocks, axis=0)
    assert slab.shape == (_SLAB_ROWS, _SLAB_LANES), slab.shape
    return slab


def conv_gru_attn_forward(param_slab, x, lens):
    # x: (B, T) or (B, T, 1);  lens: (B,) int32 (must be >= 1, as in PyTorch).
    if x.ndim == 2:
        x = x[..., None]
    B, T, _ = x.shape
    L = NUM_LAYERS
    pos = jnp.arange(T)
    # gen_key_padding_mask quirk: mask[i][l:-1] = True (last step never masked)
    key_mask = ((pos[None, :] >= lens[:, None])
                & (pos[None, :] < T - 1)).astype(jnp.float32)
    # packed-sequence semantics: h is updated only while t < lens[b]
    valid = (pos[None, :] < lens[:, None]).astype(jnp.float32)
    x2 = x.reshape(B * T, 1).astype(jnp.float32)

    out_shapes = (jax.ShapeDtypeStruct((B, sum(NUM_CHANNELS)), jnp.float32),
                  jax.ShapeDtypeStruct((B, L * T), jnp.float32))

    # TODO(synk): for large production batches, add a leading batch grid axis with
    # dimension_semantics=("parallel",) so v7x's second TensorCore is also used.
    embed_out, attn_flat = pl.pallas_call(
        _fused_forward_kernel,
        out_shape=out_shapes,
        in_specs=[VMEM_SPEC] * 4,
        out_specs=(VMEM_SPEC, VMEM_SPEC),
    )(x2, key_mask, valid, param_slab)

    return embed_out, attn_flat.reshape(B, L, T)


if __name__ == "__main__":
    B, T = 2, 8
    key = jax.random.PRNGKey(0)
    k_param, k_data = jax.random.split(key)
    params = init_params(k_param)
    slab = pack_params(params)                         # packed once, outside the jit
    x = jax.random.normal(k_data, (B, T), dtype=jnp.float32)   # 2D path (unsqueezed inside)
    lens = jnp.array([8, 5], dtype=jnp.int32)

    fwd = jax.jit(conv_gru_attn_forward)
    embeded_output, attns = fwd(slab, x, lens)
    jax.block_until_ready((embeded_output, attns))

    assert embeded_output.shape == (B, sum(NUM_CHANNELS)), embeded_output.shape
    assert attns.shape == (B, NUM_LAYERS, T), attns.shape
    assert bool(jnp.all(jnp.isfinite(embeded_output)))
    assert bool(jnp.all(jnp.isfinite(attns)))
    # attention rows are a masked softmax -> must sum to 1 (exact divide now)
    assert bool(jnp.all(jnp.abs(jnp.sum(attns, axis=-1) - 1.0) < 1e-4))
    print("KERNEL_OK")
</pallas_src>

<mosaic_0001>
module attributes {stable_mosaic.version = 11 : i64} {
  func.func @_fused_forward_kernel(%arg0: memref<16x1xf32, #tpu.memory_space<vmem>>, %arg1: memref<2x8xf32, #tpu.memory_space<vmem>>, %arg2: memref<2x8xf32, #tpu.memory_space<vmem>>, %arg3: memref<784x128xf32, #tpu.memory_space<vmem>>, %arg4: memref<2x60xf32, #tpu.memory_space<vmem>>, %arg5: memref<2x32xf32, #tpu.memory_space<vmem>>) attributes {dimension_semantics = [], scalar_prefetch = 0 : i64, scratch_operands = 0 : i64, tpu.core_type = #tpu.core_type<tc>} {
    %c0 = arith.constant 0 : index
    %c0_0 = arith.constant 0 : index
    %0 = vector.load %arg1[%c0, %c0_0] : memref<2x8xf32, #tpu.memory_space<vmem>>, vector<2x8xf32>
    %c0_1 = arith.constant 0 : index
    %c0_2 = arith.constant 0 : index
    %1 = vector.load %arg2[%c0_1, %c0_2] : memref<2x8xf32, #tpu.memory_space<vmem>>, vector<2x8xf32>
    %c0_3 = arith.constant 0 : index
    %c0_4 = arith.constant 0 : index
    %2 = vector.load %arg0[%c0_3, %c0_4] : memref<16x1xf32, #tpu.memory_space<vmem>>, vector<16x1xf32>
    %c0_5 = arith.constant 0 : index
    %c0_6 = arith.constant 0 : index
    %3 = vector.load %arg3[%c0_5, %c0_6] : memref<784x128xf32, #tpu.memory_space<vmem>>, vector<1x32xf32>
    %4 = vector.broadcast %2 : vector<16x1xf32> to vector<16x32xf32>
    %5 = vector.broadcast %3 : vector<1x32xf32> to vector<16x32xf32>
    %6 = arith.mulf %4, %5 : vector<16x32xf32>
    %c8 = arith.constant 8 : index
    %c0_7 = arith.constant 0 : index
    %7 = vector.load %arg3[%c8, %c0_7] : memref<784x128xf32, #tpu.memory_space<vmem>>, vector<1x32xf32>
    %8 = vector.broadcast %7 : vector<1x32xf32> to vector<16x32xf32>
    %9 = arith.addf %6, %8 : vector<16x32xf32>
    %c16 = arith.constant 16 : index
    %c0_8 = arith.constant 0 : index
    %10 = vector.load %arg3[%c16, %c0_8] : memref<784x128xf32, #tpu.memory_space<vmem>>, vector<32x16xf32>
    %c48 = arith.constant 48 : index
    %c0_9 = arith.constant 0 : index
    %11 = vector.load %arg3[%c48, %c0_9] : memref<784x128xf32, #tpu.memory_space<vmem>>, vector<1x4xf32>
    %cst = arith.constant dense<0.000000e+00> : vector<16x16xf32>
    %12 = tpu.matmul %9, %10, %cst {dimension_numbers = #tpu.dot_dimension_numbers<[1], [0], [0], [1], [0, 0, 1, 1], [], []>} : vector<16x32xf32>, vector<32x16xf32>, vector<16x16xf32> -> vector<16x16xf32>
    %13 = vector.shape_cast %12 : vector<16x16xf32> to vector<2x8x16xf32>
    %14 = vector.extract_strided_slice %13 {offsets = [0, 0, 12], sizes = [2, 8, 4], strides = [1, 1, 1]} : vector<2x8x16xf32> to vector<2x8x4xf32>
    %15 = vector.extract_strided_slice %13 {offsets = [0, 0, 0], sizes = [2, 5, 4], strides = [1, 1, 1]} : vector<2x8x16xf32> to vector<2x5x4xf32>
    %cst_10 = arith.constant 0.000000e+00 : f32
    %16 = vector.broadcast %cst_10 : f32 to vector<2x3x4xf32>
    %17 = tpu.concatenate %16, %15 in 1 : vector<2x3x4xf32>, vector<2x5x4xf32> -> vector<2x8x4xf32>
    %18 = arith.addf %14, %17 : vector<2x8x4xf32>
    %19 = vector.extract_strided_slice %13 {offsets = [0, 0, 4], sizes = [2, 6, 4], strides = [1, 1, 1]} : vector<2x8x16xf32> to vector<2x6x4xf32>
    %cst_11 = arith.constant 0.000000e+00 : f32
    %20 = vector.broadcast %cst_11 : f32 to vector<2x2x4xf32>
    %21 = tpu.concatenate %20, %19 in 1 : vector<2x2x4xf32>, vector<2x6x4xf32> -> vector<2x8x4xf32>
    %22 = arith.addf %18, %21 : vector<2x8x4xf32>
    %23 = vector.extract_strided_slice %13 {offsets = [0, 0, 8], sizes = [2, 7, 4], strides = [1, 1, 1]} : vector<2x8x16xf32> to vector<2x7x4xf32>
    %cst_12 = arith.constant 0.000000e+00 : f32
    %24 = vector.broadcast %cst_12 : f32 to vector<2x1x4xf32>
    %25 = tpu.concatenate %24, %23 in 1 : vector<2x1x4xf32>, vector<2x7x4xf32> -> vector<2x8x4xf32>
    %26 = arith.addf %22, %25 : vector<2x8x4xf32>
    %27 = vector.shape_cast %26 : vector<2x8x4xf32> to vector<16x4xf32>
    %28 = vector.broadcast %11 : vector<1x4xf32> to vector<16x4xf32>
    %29 = arith.addf %27, %28 : vector<16x4xf32>
    %cst_13 = arith.constant 0.000000e+00 : f32
    %30 = vector.broadcast %cst_13 : f32 to vector<16x4xf32>
    %31 = arith.maximumf %29, %30 : vector<16x4xf32>
    %c56 = arith.constant 56 : index
    %c0_14 = arith.constant 0 : index
    %32 = vector.load %arg3[%c56, %c0_14] : memref<784x128xf32, #tpu.memory_space<vmem>>, vector<4x16xf32>
    %c64 = arith.constant 64 : index
    %c0_15 = arith.constant 0 : index
    %33 = vector.load %arg3[%c64, %c0_15] : memref<784x128xf32, #tpu.memory_space<vmem>>, vector<1x4xf32>
    %cst_16 = arith.constant dense<0.000000e+00> : vector<16x16xf32>
    %34 = tpu.matmul %31, %32, %cst_16 {dimension_numbers = #tpu.dot_dimension_numbers<[1], [0], [0], [1], [0, 0, 1, 1], [], []>} : vector<16x4xf32>, vector<4x16xf32>, vector<16x16xf32> -> vector<16x16xf32>
    %35 = vector.shape_cast %34 : vector<16x16xf32> to vector<2x8x16xf32>
    %36 = vector.extract_strided_slice %35 {offsets = [0, 0, 12], sizes = [2, 8, 4], strides = [1, 1, 1]} : vector<2x8x16xf32> to vector<2x8x4xf32>
    %37 = vector.extract_strided_slice %35 {offsets = [0, 0, 0], sizes = [2, 5, 4], strides = [1, 1, 1]} : vector<2x8x16xf32> to vector<2x5x4xf32>
    %cst_17 = arith.constant 0.000000e+00 : f32
    %38 = vector.broadcast %cst_17 : f32 to vector<2x3x4xf32>
    %39 = tpu.concatenate %38, %37 in 1 : vector<2x3x4xf32>, vector<2x5x4xf32> -> vector<2x8x4xf32>
    %40 = arith.addf %36, %39 : vector<2x8x4xf32>
    %41 = vector.extract_strided_slice %35 {offsets = [0, 0, 4], sizes = [2, 6, 4], strides = [1, 1, 1]} : vector<2x8x16xf32> to vector<2x6x4xf32>
    %cst_18 = arith.constant 0.000000e+00 : f32
    %42 = vector.broadcast %cst_18 : f32 to vector<2x2x4xf32>
    %43 = tpu.concatenate %42, %41 in 1 : vector<2x2x4xf32>, vector<2x6x4xf32> -> vector<2x8x4xf32>
    %44 = arith.addf %40, %43 : vector<2x8x4xf32>
    %45 = vector.extract_strided_slice %35 {offsets = [0, 0, 8], sizes = [2, 7, 4], strides = [1, 1, 1]} : vector<2x8x16xf32> to vector<2x7x4xf32>
    %cst_19 = arith.constant 0.000000e+00 : f32
    %46 = vector.broadcast %cst_19 : f32 to vector<2x1x4xf32>
    %47 = tpu.concatenate %46, %45 in 1 : vector<2x1x4xf32>, vector<2x7x4xf32> -> vector<2x8x4xf32>
    %48 = arith.addf %44, %47 : vector<2x8x4xf32>
    %49 = vector.shape_cast %48 : vector<2x8x4xf32> to vector<16x4xf32>
    %50 = vector.broadcast %33 : vector<1x4xf32> to vector<16x4xf32>
    %51 = arith.addf %49, %50 : vector<16x4xf32>
    %cst_20 = arith.constant 0.000000e+00 : f32
    %52 = vector.broadcast %cst_20 : f32 to vector<16x4xf32>
    %53 = arith.maximumf %51, %52 : vector<16x4xf32>
    %c72 = arith.constant 72 : index
    %c0_21 = arith.constant 0 : index
    %54 = vector.load %arg3[%c72, %c0_21] : memref<784x128xf32, #tpu.memory_space<vmem>>, vector<32x4xf32>
    %cst_22 = arith.constant dense<0.000000e+00> : vector<16x4xf32>
    %55 = tpu.matmul %9, %54, %cst_22 {dimension_numbers = #tpu.dot_dimension_numbers<[1], [0], [0], [1], [0, 0, 1, 1], [], []>} : vector<16x32xf32>, vector<32x4xf32>, vector<16x4xf32> -> vector<16x4xf32>
    %c104 = arith.constant 104 : index
    %c0_23 = arith.constant 0 : index
    %56 = vector.load %arg3[%c104, %c0_23] : memref<784x128xf32, #tpu.memory_space<vmem>>, vector<1x4xf32>
    %57 = vector.broadcast %56 : vector<1x4xf32> to vector<16x4xf32>
    %58 = arith.addf %55, %57 : vector<16x4xf32>
    %59 = arith.addf %53, %58 : vector<16x4xf32>
    %cst_24 = arith.constant 0.000000e+00 : f32
    %60 = vector.broadcast %cst_24 : f32 to vector<16x4xf32>
    %61 = arith.maximumf %59, %60 : vector<16x4xf32>
    %c192 = arith.constant 192 : index
    %c0_25 = arith.constant 0 : index
    %62 = vector.load %arg3[%c192, %c0_25] : memref<784x128xf32, #tpu.memory_space<vmem>>, vector<4x32xf32>
    %c200 = arith.constant 200 : index
    %c0_26 = arith.constant 0 : index
    %63 = vector.load %arg3[%c200, %c0_26] : memref<784x128xf32, #tpu.memory_space<vmem>>, vector<1x8xf32>
    %cst_27 = arith.constant dense<0.000000e+00> : vector<16x32xf32>
    %64 = tpu.matmul %61, %62, %cst_27 {dimension_numbers = #tpu.dot_dimension_numbers<[1], [0], [0], [1], [0, 0, 1, 1], [], []>} : vector<16x4xf32>, vector<4x32xf32>, vector<16x32xf32> -> vector<16x32xf32>
    %65 = vector.shape_cast %64 : vector<16x32xf32> to vector<2x8x32xf32>
    %66 = vector.extract_strided_slice %65 {offsets = [0, 0, 24], sizes = [2, 8, 8], strides = [1, 1, 1]} : vector<2x8x32xf32> to vector<2x8x8xf32>
    %67 = vector.extract_strided_slice %65 {offsets = [0, 0, 0], sizes = [2, 5, 8], strides = [1, 1, 1]} : vector<2x8x32xf32> to vector<2x5x8xf32>
    %cst_28 = arith.constant 0.000000e+00 : f32
    %68 = vector.broadcast %cst_28 : f32 to vector<2x3x8xf32>
    %69 = tpu.concatenate %68, %67 in 1 : vector<2x3x8xf32>, vector<2x5x8xf32> -> vector<2x8x8xf32>
    %70 = arith.addf %66, %69 : vector<2x8x8xf32>
    %71 = vector.extract_strided_slice %65 {offsets = [0, 0, 8], sizes = [2, 6, 8], strides = [1, 1, 1]} : vector<2x8x32xf32> to vector<2x6x8xf32>
    %cst_29 = arith.constant 0.000000e+00 : f32
    %72 = vector.broadcast %cst_29 : f32 to vector<2x2x8xf32>
    %73 = tpu.concatenate %72, %71 in 1 : vector<2x2x8xf32>, vector<2x6x8xf32> -> vector<2x8x8xf32>
    %74 = arith.addf %70, %73 : vector<2x8x8xf32>
    %75 = vector.extract_strided_slice %65 {offsets = [0, 0, 16], sizes = [2, 7, 8], strides = [1, 1, 1]} : vector<2x8x32xf32> to vector<2x7x8xf32>
    %cst_30 = arith.constant 0.000000e+00 : f32
    %76 = vector.broadcast %cst_30 : f32 to vector<2x1x8xf32>
    %77 = tpu.concatenate %76, %75 in 1 : vector<2x1x8xf32>, vector<2x7x8xf32> -> vector<2x8x8xf32>
    %78 = arith.addf %74, %77 : vector<2x8x8xf32>
    %79 = vector.shape_cast %78 : vector<2x8x8xf32> to vector<16x8xf32>
    %80 = vector.broadcast %63 : vector<1x8xf32> to vector<16x8xf32>
    %81 = arith.addf %79, %80 : vector<16x8xf32>
    %cst_31 = arith.constant 0.000000e+00 : f32
    %82 = vector.broadcast %cst_31 : f32 to vector<16x8xf32>
    %83 = arith.maximumf %81, %82 : vector<16x8xf32>
    %c208 = arith.constant 208 : index
    %c0_32 = arith.constant 0 : index
    %84 = vector.load %arg3[%c208, %c0_32] : memref<784x128xf32, #tpu.memory_space<vmem>>, vector<8x32xf32>
    %c216 = arith.constant 216 : index
    %c0_33 = arith.constant 0 : index
    %85 = vector.load %arg3[%c216, %c0_33] : memref<784x128xf32, #tpu.memory_space<vmem>>, vector<1x8xf32>
    %cst_34 = arith.constant dense<0.000000e+00> : vector<16x32xf32>
    %86 = tpu.matmul %83, %84, %cst_34 {dimension_numbers = #tpu.dot_dimension_numbers<[1], [0], [0], [1], [0, 0, 1, 1], [], []>} : vector<16x8xf32>, vector<8x32xf32>, vector<16x32xf32> -> vector<16x32xf32>
    %87 = vector.shape_cast %86 : vector<16x32xf32> to vector<2x8x32xf32>
    %88 = vector.extract_strided_slice %87 {offsets = [0, 0, 24], sizes = [2, 8, 8], strides = [1, 1, 1]} : vector<2x8x32xf32> to vector<2x8x8xf32>
    %89 = vector.extract_strided_slice %87 {offsets = [0, 0, 0], sizes = [2, 5, 8], strides = [1, 1, 1]} : vector<2x8x32xf32> to vector<2x5x8xf32>
    %cst_35 = arith.constant 0.000000e+00 : f32
    %90 = vector.broadcast %cst_35 : f32 to vector<2x3x8xf32>
    %91 = tpu.concatenate %90, %89 in 1 : vector<2x3x8xf32>, vector<2x5x8xf32> -> vector<2x8x8xf32>
    %92 = arith.addf %88, %91 : vector<2x8x8xf32>
    %93 = vector.extract_strided_slice %87 {offsets = [0, 0, 8], sizes = [2, 6, 8], strides = [1, 1, 1]} : vector<2x8x32xf32> to vector<2x6x8xf32>
    %cst_36 = arith.constant 0.000000e+00 : f32
    %94 = vector.broadcast %cst_36 : f32 to vector<2x2x8xf32>
    %95 = tpu.concatenate %94, %93 in 1 : vector<2x2x8xf32>, vector<2x6x8xf32> -> vector<2x8x8xf32>
    %96 = arith.addf %92, %95 : vector<2x8x8xf32>
    %97 = vector.extract_strided_slice %87 {offsets = [0, 0, 16], sizes = [2, 7, 8], strides = [1, 1, 1]} : vector<2x8x32xf32> to vector<2x7x8xf32>
    %cst_37 = arith.constant 0.000000e+00 : f32
    %98 = vector.broadcast %cst_37 : f32 to vector<2x1x8xf32>
    %99 = tpu.concatenate %98, %97 in 1 : vector<2x1x8xf32>, vector<2x7x8xf32> -> vector<2x8x8xf32>
    %100 = arith.addf %96, %99 : vector<2x8x8xf32>
    %101 = vector.shape_cast %100 : vector<2x8x8xf32> to vector<16x8xf32>
    %102 = vector.broadcast %85 : vector<1x8xf32> to vector<16x8xf32>
    %103 = arith.addf %101, %102 : vector<16x8xf32>
    %cst_38 = arith.constant 0.000000e+00 : f32
    %104 = vector.broadcast %cst_38 : f32 to vector<16x8xf32>
    %105 = arith.maximumf %103, %104 : vector<16x8xf32>
    %c224 = arith.constant 224 : index
    %c0_39 = arith.constant 0 : index
    %106 = vector.load %arg3[%c224, %c0_39] : memref<784x128xf32, #tpu.memory_space<vmem>>, vector<4x8xf32>
    %cst_40 = arith.constant dense<0.000000e+00> : vector<16x8xf32>
    %107 = tpu.matmul %61, %106, %cst_40 {dimension_numbers = #tpu.dot_dimension_numbers<[1], [0], [0], [1], [0, 0, 1, 1], [], []>} : vector<16x4xf32>, vector<4x8xf32>, vector<16x8xf32> -> vector<16x8xf32>
    %c232 = arith.constant 232 : index
    %c0_41 = arith.constant 0 : index
    %108 = vector.load %arg3[%c232, %c0_41] : memref<784x128xf32, #tpu.memory_space<vmem>>, vector<1x8xf32>
    %109 = vector.broadcast %108 : vector<1x8xf32> to vector<16x8xf32>
    %110 = arith.addf %107, %109 : vector<16x8xf32>
    %111 = arith.addf %105, %110 : vector<16x8xf32>
    %cst_42 = arith.constant 0.000000e+00 : f32
    %112 = vector.broadcast %cst_42 : f32 to vector<16x8xf32>
    %113 = arith.maximumf %111, %112 : vector<16x8xf32>
    %c320 = arith.constant 320 : index
    %c0_43 = arith.constant 0 : index
    %114 = vector.load %arg3[%c320, %c0_43] : memref<784x128xf32, #tpu.memory_space<vmem>>, vector<8x64xf32>
    %c328 = arith.constant 328 : index
    %c0_44 = arith.constant 0 : index
    %115 = vector.load %arg3[%c328, %c0_44] : memref<784x128xf32, #tpu.memory_space<vmem>>, vector<1x16xf32>
    %cst_45 = arith.constant dense<0.000000e+00> : vector<16x64xf32>
    %116 = tpu.matmul %113, %114, %cst_45 {dimension_numbers = #tpu.dot_dimension_numbers<[1], [0], [0], [1], [0, 0, 1, 1], [], []>} : vector<16x8xf32>, vector<8x64xf32>, vector<16x64xf32> -> vector<16x64xf32>
    %117 = vector.shape_cast %116 : vector<16x64xf32> to vector<2x8x64xf32>
    %118 = vector.extract_strided_slice %117 {offsets = [0, 0, 48], sizes = [2, 8, 16], strides = [1, 1, 1]} : vector<2x8x64xf32> to vector<2x8x16xf32>
    %119 = vector.extract_strided_slice %117 {offsets = [0, 0, 0], sizes = [2, 5, 16], strides = [1, 1, 1]} : vector<2x8x64xf32> to vector<2x5x16xf32>
    %cst_46 = arith.constant 0.000000e+00 : f32
    %120 = vector.broadcast %cst_46 : f32 to vector<2x3x16xf32>
    %121 = tpu.concatenate %120, %119 in 1 : vector<2x3x16xf32>, vector<2x5x16xf32> -> vector<2x8x16xf32>
    %122 = arith.addf %118, %121 : vector<2x8x16xf32>
    %123 = vector.extract_strided_slice %117 {offsets = [0, 0, 16], sizes = [2, 6, 16], strides = [1, 1, 1]} : vector<2x8x64xf32> to vector<2x6x16xf32>
    %cst_47 = arith.constant 0.000000e+00 : f32
    %124 = vector.broadcast %cst_47 : f32 to vector<2x2x16xf32>
    %125 = tpu.concatenate %124, %123 in 1 : vector<2x2x16xf32>, vector<2x6x16xf32> -> vector<2x8x16xf32>
    %126 = arith.addf %122, %125 : vector<2x8x16xf32>
    %127 = vector.extract_strided_slice %117 {offsets = [0, 0, 32], sizes = [2, 7, 16], strides = [1, 1, 1]} : vector<2x8x64xf32> to vector<2x7x16xf32>
    %cst_48 = arith.constant 0.000000e+00 : f32
    %128 = vector.broadcast %cst_48 : f32 to vector<2x1x16xf32>
    %129 = tpu.concatenate %128, %127 in 1 : vector<2x1x16xf32>, vector<2x7x16xf32> -> vector<2x8x16xf32>
    %130 = arith.addf %126, %129 : vector<2x8x16xf32>
    %131 = vector.shape_cast %130 : vector<2x8x16xf32> to vector<16x16xf32>
    %132 = vector.broadcast %115 : vector<1x16xf32> to vector<16x16xf32>
    %133 = arith.addf %131, %132 : vector<16x16xf32>
    %cst_49 = arith.constant 0.000000e+00 : f32
    %134 = vector.broadcast %cst_49 : f32 to vector<16x16xf32>
    %135 = arith.maximumf %133, %134 : vector<16x16xf32>
    %c336 = arith.constant 336 : index
    %c0_50 = arith.constant 0 : index
    %136 = vector.load %arg3[%c336, %c0_50] : memref<784x128xf32, #tpu.memory_space<vmem>>, vector<16x64xf32>
    %c352 = arith.constant 352 : index
    %c0_51 = arith.constant 0 : index
    %137 = vector.load %arg3[%c352, %c0_51] : memref<784x128xf32, #tpu.memory_space<vmem>>, vector<1x16xf32>
    %cst_52 = arith.constant dense<0.000000e+00> : vector<16x64xf32>
    %138 = tpu.matmul %135, %136, %cst_52 {dimension_numbers = #tpu.dot_dimension_numbers<[1], [0], [0], [1], [0, 0, 1, 1], [], []>} : vector<16x16xf32>, vector<16x64xf32>, vector<16x64xf32> -> vector<16x64xf32>
    %139 = vector.shape_cast %138 : vector<16x64xf32> to vector<2x8x64xf32>
    %140 = vector.extract_strided_slice %139 {offsets = [0, 0, 48], sizes = [2, 8, 16], strides = [1, 1, 1]} : vector<2x8x64xf32> to vector<2x8x16xf32>
    %141 = vector.extract_strided_slice %139 {offsets = [0, 0, 0], sizes = [2, 5, 16], strides = [1, 1, 1]} : vector<2x8x64xf32> to vector<2x5x16xf32>
    %cst_53 = arith.constant 0.000000e+00 : f32
    %142 = vector.broadcast %cst_53 : f32 to vector<2x3x16xf32>
    %143 = tpu.concatenate %142, %141 in 1 : vector<2x3x16xf32>, vector<2x5x16xf32> -> vector<2x8x16xf32>
    %144 = arith.addf %140, %143 : vector<2x8x16xf32>
    %145 = vector.extract_strided_slice %139 {offsets = [0, 0, 16], sizes = [2, 6, 16], strides = [1, 1, 1]} : vector<2x8x64xf32> to vector<2x6x16xf32>
    %cst_54 = arith.constant 0.000000e+00 : f32
    %146 = vector.broadcast %cst_54 : f32 to vector<2x2x16xf32>
    %147 = tpu.concatenate %146, %145 in 1 : vector<2x2x16xf32>, vector<2x6x16xf32> -> vector<2x8x16xf32>
    %148 = arith.addf %144, %147 : vector<2x8x16xf32>
    %149 = vector.extract_strided_slice %139 {offsets = [0, 0, 32], sizes = [2, 7, 16], strides = [1, 1, 1]} : vector<2x8x64xf32> to vector<2x7x16xf32>
    %cst_55 = arith.constant 0.000000e+00 : f32
    %150 = vector.broadcast %cst_55 : f32 to vector<2x1x16xf32>
    %151 = tpu.concatenate %150, %149 in 1 : vector<2x1x16xf32>, vector<2x7x16xf32> -> vector<2x8x16xf32>
    %152 = arith.addf %148, %151 : vector<2x8x16xf32>
    %153 = vector.shape_cast %152 : vector<2x8x16xf32> to vector<16x16xf32>
    %154 = vector.broadcast %137 : vector<1x16xf32> to vector<16x16xf32>
    %155 = arith.addf %153, %154 : vector<16x16xf32>
    %cst_56 = arith.constant 0.000000e+00 : f32
    %156 = vector.broadcast %cst_56 : f32 to vector<16x16xf32>
    %157 = arith.maximumf %155, %156 : vector<16x16xf32>
    %c360 = arith.constant 360 : index
    %c0_57 = arith.constant 0 : index
    %158 = vector.load %arg3[%c360, %c0_57] : memref<784x128xf32, #tpu.memory_space<vmem>>, vector<8x16xf32>
    %cst_58 = arith.constant dense<0.000000e+00> : vector<16x16xf32>
    %159 = tpu.matmul %113, %158, %cst_58 {dimension_numbers = #tpu.dot_dimension_numbers<[1], [0], [0], [1], [0, 0, 1, 1], [], []>} : vector<16x8xf32>, vector<8x16xf32>, vector<16x16xf32> -> vector<16x16xf32>
    %c368 = arith.constant 368 : index
    %c0_59 = arith.constant 0 : index
    %160 = vector.load %arg3[%c368, %c0_59] : memref<784x128xf32, #tpu.memory_space<vmem>>, vector<1x16xf32>
    %161 = vector.broadcast %160 : vector<1x16xf32> to vector<16x16xf32>
    %162 = arith.addf %159, %161 : vector<16x16xf32>
    %163 = arith.addf %157, %162 : vector<16x16xf32>
    %cst_60 = arith.constant 0.000000e+00 : f32
    %164 = vector.broadcast %cst_60 : f32 to vector<16x16xf32>
    %165 = arith.maximumf %163, %164 : vector<16x16xf32>
    %c496 = arith.constant 496 : index
    %c0_61 = arith.constant 0 : index
    %166 = vector.load %arg3[%c496, %c0_61] : memref<784x128xf32, #tpu.memory_space<vmem>>, vector<16x128xf32>
    %c512 = arith.constant 512 : index
    %c0_62 = arith.constant 0 : index
    %167 = vector.load %arg3[%c512, %c0_62] : memref<784x128xf32, #tpu.memory_space<vmem>>, vector<1x32xf32>
    %cst_63 = arith.constant dense<0.000000e+00> : vector<16x128xf32>
    %168 = tpu.matmul %165, %166, %cst_63 {dimension_numbers = #tpu.dot_dimension_numbers<[1], [0], [0], [1], [0, 0, 1, 1], [], []>} : vector<16x16xf32>, vector<16x128xf32>, vector<16x128xf32> -> vector<16x128xf32>
    %169 = vector.shape_cast %168 : vector<16x128xf32> to vector<2x8x128xf32>
    %170 = vector.extract_strided_slice %169 {offsets = [0, 0, 96], sizes = [2, 8, 32], strides = [1, 1, 1]} : vector<2x8x128xf32> to vector<2x8x32xf32>
    %171 = vector.extract_strided_slice %169 {offsets = [0, 0, 0], sizes = [2, 5, 32], strides = [1, 1, 1]} : vector<2x8x128xf32> to vector<2x5x32xf32>
    %cst_64 = arith.constant 0.000000e+00 : f32
    %172 = vector.broadcast %cst_64 : f32 to vector<2x3x32xf32>
    %173 = tpu.concatenate %172, %171 in 1 : vector<2x3x32xf32>, vector<2x5x32xf32> -> vector<2x8x32xf32>
    %174 = arith.addf %170, %173 : vector<2x8x32xf32>
    %175 = vector.extract_strided_slice %169 {offsets = [0, 0, 32], sizes = [2, 6, 32], strides = [1, 1, 1]} : vector<2x8x128xf32> to vector<2x6x32xf32>
    %cst_65 = arith.constant 0.000000e+00 : f32
    %176 = vector.broadcast %cst_65 : f32 to vector<2x2x32xf32>
    %177 = tpu.concatenate %176, %175 in 1 : vector<2x2x32xf32>, vector<2x6x32xf32> -> vector<2x8x32xf32>
    %178 = arith.addf %174, %177 : vector<2x8x32xf32>
    %179 = vector.extract_strided_slice %169 {offsets = [0, 0, 64], sizes = [2, 7, 32], strides = [1, 1, 1]} : vector<2x8x128xf32> to vector<2x7x32xf32>
    %cst_66 = arith.constant 0.000000e+00 : f32
    %180 = vector.broadcast %cst_66 : f32 to vector<2x1x32xf32>
    %181 = tpu.concatenate %180, %179 in 1 : vector<2x1x32xf32>, vector<2x7x32xf32> -> vector<2x8x32xf32>
    %182 = arith.addf %178, %181 : vector<2x8x32xf32>
    %183 = vector.shape_cast %182 : vector<2x8x32xf32> to vector<16x32xf32>
    %184 = vector.broadcast %167 : vector<1x32xf32> to vector<16x32xf32>
    %185 = arith.addf %183, %184 : vector<16x32xf32>
    %cst_67 = arith.constant 0.000000e+00 : f32
    %186 = vector.broadcast %cst_67 : f32 to vector<16x32xf32>
    %187 = arith.maximumf %185, %186 : vector<16x32xf32>
    %c520 = arith.constant 520 : index
    %c0_68 = arith.constant 0 : index
    %188 = vector.load %arg3[%c520, %c0_68] : memref<784x128xf32, #tpu.memory_space<vmem>>, vector<32x128xf32>
    %c552 = arith.constant 552 : index
    %c0_69 = arith.constant 0 : index
    %189 = vector.load %arg3[%c552, %c0_69] : memref<784x128xf32, #tpu.memory_space<vmem>>, vector<1x32xf32>
    %cst_70 = arith.constant dense<0.000000e+00> : vector<16x128xf32>
    %190 = tpu.matmul %187, %188, %cst_70 {dimension_numbers = #tpu.dot_dimension_numbers<[1], [0], [0], [1], [0, 0, 1, 1], [], []>} : vector<16x32xf32>, vector<32x128xf32>, vector<16x128xf32> -> vector<16x128xf32>
    %191 = vector.shape_cast %190 : vector<16x128xf32> to vector<2x8x128xf32>
    %192 = vector.extract_strided_slice %191 {offsets = [0, 0, 96], sizes = [2, 8, 32], strides = [1, 1, 1]} : vector<2x8x128xf32> to vector<2x8x32xf32>
    %193 = vector.extract_strided_slice %191 {offsets = [0, 0, 0], sizes = [2, 5, 32], strides = [1, 1, 1]} : vector<2x8x128xf32> to vector<2x5x32xf32>
    %cst_71 = arith.constant 0.000000e+00 : f32
    %194 = vector.broadcast %cst_71 : f32 to vector<2x3x32xf32>
    %195 = tpu.concatenate %194, %193 in 1 : vector<2x3x32xf32>, vector<2x5x32xf32> -> vector<2x8x32xf32>
    %196 = arith.addf %192, %195 : vector<2x8x32xf32>
    %197 = vector.extract_strided_slice %191 {offsets = [0, 0, 32], sizes = [2, 6, 32], strides = [1, 1, 1]} : vector<2x8x128xf32> to vector<2x6x32xf32>
    %cst_72 = arith.constant 0.000000e+00 : f32
    %198 = vector.broadcast %cst_72 : f32 to vector<2x2x32xf32>
    %199 = tpu.concatenate %198, %197 in 1 : vector<2x2x32xf32>, vector<2x6x32xf32> -> vector<2x8x32xf32>
    %200 = arith.addf %196, %199 : vector<2x8x32xf32>
    %201 = vector.extract_strided_slice %191 {offsets = [0, 0, 64], sizes = [2, 7, 32], strides = [1, 1, 1]} : vector<2x8x128xf32> to vector<2x7x32xf32>
    %cst_73 = arith.constant 0.000000e+00 : f32
    %202 = vector.broadcast %cst_73 : f32 to vector<2x1x32xf32>
    %203 = tpu.concatenate %202, %201 in 1 : vector<2x1x32xf32>, vector<2x7x32xf32> -> vector<2x8x32xf32>
    %204 = arith.addf %200, %203 : vector<2x8x32xf32>
    %205 = vector.shape_cast %204 : vector<2x8x32xf32> to vector<16x32xf32>
    %206 = vector.broadcast %189 : vector<1x32xf32> to vector<16x32xf32>
    %207 = arith.addf %205, %206 : vector<16x32xf32>
    %cst_74 = arith.constant 0.000000e+00 : f32
    %208 = vector.broadcast %cst_74 : f32 to vector<16x32xf32>
    %209 = arith.maximumf %207, %208 : vector<16x32xf32>
    %c560 = arith.constant 560 : index
    %c0_75 = arith.constant 0 : index
    %210 = vector.load %arg3[%c560, %c0_75] : memref<784x128xf32, #tpu.memory_space<vmem>>, vector<16x32xf32>
    %cst_76 = arith.constant dense<0.000000e+00> : vector<16x32xf32>
    %211 = tpu.matmul %165, %210, %cst_76 {dimension_numbers = #tpu.dot_dimension_numbers<[1], [0], [0], [1], [0, 0, 1, 1], [], []>} : vector<16x16xf32>, vector<16x32xf32>, vector<16x32xf32> -> vector<16x32xf32>
    %c576 = arith.constant 576 : index
    %c0_77 = arith.constant 0 : index
    %212 = vector.load %arg3[%c576, %c0_77] : memref<784x128xf32, #tpu.memory_space<vmem>>, vector<1x32xf32>
    %213 = vector.broadcast %212 : vector<1x32xf32> to vector<16x32xf32>
    %214 = arith.addf %211, %213 : vector<16x32xf32>
    %215 = arith.addf %209, %214 : vector<16x32xf32>
    %cst_78 = arith.constant 0.000000e+00 : f32
    %216 = vector.broadcast %cst_78 : f32 to vector<16x32xf32>
    %217 = arith.maximumf %215, %216 : vector<16x32xf32>
    %c112 = arith.constant 112 : index
    %c0_79 = arith.constant 0 : index
    %218 = vector.load %arg3[%c112, %c0_79] : memref<784x128xf32, #tpu.memory_space<vmem>>, vector<4x12xf32>
    %cst_80 = arith.constant dense<0.000000e+00> : vector<16x12xf32>
    %219 = tpu.matmul %61, %218, %cst_80 {dimension_numbers = #tpu.dot_dimension_numbers<[1], [0], [0], [1], [0, 0, 1, 1], [], []>} : vector<16x4xf32>, vector<4x12xf32>, vector<16x12xf32> -> vector<16x12xf32>
    %c120 = arith.constant 120 : index
    %c0_81 = arith.constant 0 : index
    %220 = vector.load %arg3[%c120, %c0_81] : memref<784x128xf32, #tpu.memory_space<vmem>>, vector<1x12xf32>
    %221 = vector.broadcast %220 : vector<1x12xf32> to vector<16x12xf32>
    %222 = arith.addf %219, %221 : vector<16x12xf32>
    %223 = vector.shape_cast %222 : vector<16x12xf32> to vector<2x8x12xf32>
    %c128 = arith.constant 128 : index
    %c0_82 = arith.constant 0 : index
    %224 = vector.load %arg3[%c128, %c0_82] : memref<784x128xf32, #tpu.memory_space<vmem>>, vector<4x12xf32>
    %c136 = arith.constant 136 : index
    %c0_83 = arith.constant 0 : index
    %225 = vector.load %arg3[%c136, %c0_83] : memref<784x128xf32, #tpu.memory_space<vmem>>, vector<1x12xf32>
    %c240 = arith.constant 240 : index
    %c0_84 = arith.constant 0 : index
    %226 = vector.load %arg3[%c240, %c0_84] : memref<784x128xf32, #tpu.memory_space<vmem>>, vector<8x24xf32>
    %cst_85 = arith.constant dense<0.000000e+00> : vector<16x24xf32>
    %227 = tpu.matmul %113, %226, %cst_85 {dimension_numbers = #tpu.dot_dimension_numbers<[1], [0], [0], [1], [0, 0, 1, 1], [], []>} : vector<16x8xf32>, vector<8x24xf32>, vector<16x24xf32> -> vector<16x24xf32>
    %c248 = arith.constant 248 : index
    %c0_86 = arith.constant 0 : index
    %228 = vector.load %arg3[%c248, %c0_86] : memref<784x128xf32, #tpu.memory_space<vmem>>, vector<1x24xf32>
    %229 = vector.broadcast %228 : vector<1x24xf32> to vector<16x24xf32>
    %230 = arith.addf %227, %229 : vector<16x24xf32>
    %231 = vector.shape_cast %230 : vector<16x24xf32> to vector<2x8x24xf32>
    %c256 = arith.constant 256 : index
    %c0_87 = arith.constant 0 : index
    %232 = vector.load %arg3[%c256, %c0_87] : memref<784x128xf32, #tpu.memory_space<vmem>>, vector<8x24xf32>
    %c264 = arith.constant 264 : index
    %c0_88 = arith.constant 0 : index
    %233 = vector.load %arg3[%c264, %c0_88] : memref<784x128xf32, #tpu.memory_space<vmem>>, vector<1x24xf32>
    %c376 = arith.constant 376 : index
    %c0_89 = arith.constant 0 : index
    %234 = vector.load %arg3[%c376, %c0_89] : memref<784x128xf32, #tpu.memory_space<vmem>>, vector<16x48xf32>
    %cst_90 = arith.constant dense<0.000000e+00> : vector<16x48xf32>
    %235 = tpu.matmul %165, %234, %cst_90 {dimension_numbers = #tpu.dot_dimension_numbers<[1], [0], [0], [1], [0, 0, 1, 1], [], []>} : vector<16x16xf32>, vector<16x48xf32>, vector<16x48xf32> -> vector<16x48xf32>
    %c392 = arith.constant 392 : index
    %c0_91 = arith.constant 0 : index
    %236 = vector.load %arg3[%c392, %c0_91] : memref<784x128xf32, #tpu.memory_space<vmem>>, vector<1x48xf32>
    %237 = vector.broadcast %236 : vector<1x48xf32> to vector<16x48xf32>
    %238 = arith.addf %235, %237 : vector<16x48xf32>
    %239 = vector.shape_cast %238 : vector<16x48xf32> to vector<2x8x48xf32>
    %c400 = arith.constant 400 : index
    %c0_92 = arith.constant 0 : index
    %240 = vector.load %arg3[%c400, %c0_92] : memref<784x128xf32, #tpu.memory_space<vmem>>, vector<16x48xf32>
    %c416 = arith.constant 416 : index
    %c0_93 = arith.constant 0 : index
    %241 = vector.load %arg3[%c416, %c0_93] : memref<784x128xf32, #tpu.memory_space<vmem>>, vector<1x48xf32>
    %c584 = arith.constant 584 : index
    %c0_94 = arith.constant 0 : index
    %242 = vector.load %arg3[%c584, %c0_94] : memref<784x128xf32, #tpu.memory_space<vmem>>, vector<32x96xf32>
    %cst_95 = arith.constant dense<0.000000e+00> : vector<16x96xf32>
    %243 = tpu.matmul %217, %242, %cst_95 {dimension_numbers = #tpu.dot_dimension_numbers<[1], [0], [0], [1], [0, 0, 1, 1], [], []>} : vector<16x32xf32>, vector<32x96xf32>, vector<16x96xf32> -> vector<16x96xf32>
    %c616 = arith.constant 616 : index
    %c0_96 = arith.constant 0 : index
    %244 = vector.load %arg3[%c616, %c0_96] : memref<784x128xf32, #tpu.memory_space<vmem>>, vector<1x96xf32>
    %245 = vector.broadcast %244 : vector<1x96xf32> to vector<16x96xf32>
    %246 = arith.addf %243, %245 : vector<16x96xf32>
    %247 = vector.shape_cast %246 : vector<16x96xf32> to vector<2x8x96xf32>
    %c624 = arith.constant 624 : index
    %c0_97 = arith.constant 0 : index
    %248 = vector.load %arg3[%c624, %c0_97] : memref<784x128xf32, #tpu.memory_space<vmem>>, vector<32x96xf32>
    %c656 = arith.constant 656 : index
    %c0_98 = arith.constant 0 : index
    %249 = vector.load %arg3[%c656, %c0_98] : memref<784x128xf32, #tpu.memory_space<vmem>>, vector<1x96xf32>
    %cst_99 = arith.constant 0.000000e+00 : f32
    %250 = vector.broadcast %cst_99 : f32 to vector<2x4xf32>
    %cst_100 = arith.constant 0.000000e+00 : f32
    %251 = vector.broadcast %cst_100 : f32 to vector<2x8xf32>
    %cst_101 = arith.constant 0.000000e+00 : f32
    %252 = vector.broadcast %cst_101 : f32 to vector<2x16xf32>
    %cst_102 = arith.constant 0.000000e+00 : f32
    %253 = vector.broadcast %cst_102 : f32 to vector<2x32xf32>
    %254 = vector.extract_strided_slice %1 {offsets = [0, 0], sizes = [2, 1], strides = [1, 1]} : vector<2x8xf32> to vector<2x1xf32>
    %cst_103 = arith.constant dense<0.000000e+00> : vector<2x12xf32>
    %255 = tpu.matmul %250, %224, %cst_103 {dimension_numbers = #tpu.dot_dimension_numbers<[1], [0], [0], [1], [0, 0, 1, 1], [], []>} : vector<2x4xf32>, vector<4x12xf32>, vector<2x12xf32> -> vector<2x12xf32>
    %256 = vector.broadcast %225 : vector<1x12xf32> to vector<2x12xf32>
    %257 = arith.addf %255, %256 : vector<2x12xf32>
    %258 = vector.extract_strided_slice %223 {offsets = [0, 0, 0], sizes = [2, 1, 12], strides = [1, 1, 1]} : vector<2x8x12xf32> to vector<2x1x12xf32>
    %259 = vector.shape_cast %258 : vector<2x1x12xf32> to vector<2x12xf32>
    %260 = vector.extract_strided_slice %259 {offsets = [0, 0], sizes = [2, 4], strides = [1, 1]} : vector<2x12xf32> to vector<2x4xf32>
    %261 = vector.extract_strided_slice %257 {offsets = [0, 0], sizes = [2, 4], strides = [1, 1]} : vector<2x12xf32> to vector<2x4xf32>
    %262 = arith.addf %260, %261 : vector<2x4xf32>
    %263 = arith.negf %262 : vector<2x4xf32>
    %264 = math.exp %263 : vector<2x4xf32>
    %cst_104 = arith.constant 1.000000e+00 : f32
    %265 = vector.broadcast %cst_104 : f32 to vector<2x4xf32>
    %266 = arith.addf %265, %264 : vector<2x4xf32>
    %267 = arith.divf %265, %266 : vector<2x4xf32>
    %268 = vector.extract_strided_slice %259 {offsets = [0, 4], sizes = [2, 4], strides = [1, 1]} : vector<2x12xf32> to vector<2x4xf32>
    %269 = vector.extract_strided_slice %257 {offsets = [0, 4], sizes = [2, 4], strides = [1, 1]} : vector<2x12xf32> to vector<2x4xf32>
    %270 = arith.addf %268, %269 : vector<2x4xf32>
    %271 = arith.negf %270 : vector<2x4xf32>
    %272 = math.exp %271 : vector<2x4xf32>
    %cst_105 = arith.constant 1.000000e+00 : f32
    %273 = vector.broadcast %cst_105 : f32 to vector<2x4xf32>
    %274 = arith.addf %273, %272 : vector<2x4xf32>
    %275 = arith.divf %273, %274 : vector<2x4xf32>
    %276 = vector.extract_strided_slice %259 {offsets = [0, 8], sizes = [2, 4], strides = [1, 1]} : vector<2x12xf32> to vector<2x4xf32>
    %277 = vector.extract_strided_slice %257 {offsets = [0, 8], sizes = [2, 4], strides = [1, 1]} : vector<2x12xf32> to vector<2x4xf32>
    %278 = arith.mulf %267, %277 : vector<2x4xf32>
    %279 = arith.addf %276, %278 : vector<2x4xf32>
    %280 = math.tanh %279 : vector<2x4xf32>
    %cst_106 = arith.constant 1.000000e+00 : f32
    %281 = vector.broadcast %cst_106 : f32 to vector<2x4xf32>
    %282 = arith.subf %281, %275 : vector<2x4xf32>
    %283 = arith.mulf %282, %280 : vector<2x4xf32>
    %284 = arith.mulf %275, %250 : vector<2x4xf32>
    %285 = arith.addf %283, %284 : vector<2x4xf32>
    %286 = vector.broadcast %254 : vector<2x1xf32> to vector<2x4xf32>
    %287 = arith.mulf %286, %285 : vector<2x4xf32>
    %cst_107 = arith.constant 1.000000e+00 : f32
    %288 = vector.broadcast %cst_107 : f32 to vector<2x1xf32>
    %289 = arith.subf %288, %254 : vector<2x1xf32>
    %290 = vector.broadcast %289 : vector<2x1xf32> to vector<2x4xf32>
    %291 = arith.mulf %290, %250 : vector<2x4xf32>
    %292 = arith.addf %287, %291 : vector<2x4xf32>
    %cst_108 = arith.constant dense<0.000000e+00> : vector<2x24xf32>
    %293 = tpu.matmul %251, %232, %cst_108 {dimension_numbers = #tpu.dot_dimension_numbers<[1], [0], [0], [1], [0, 0, 1, 1], [], []>} : vector<2x8xf32>, vector<8x24xf32>, vector<2x24xf32> -> vector<2x24xf32>
    %294 = vector.broadcast %233 : vector<1x24xf32> to vector<2x24xf32>
    %295 = arith.addf %293, %294 : vector<2x24xf32>
    %296 = vector.extract_strided_slice %231 {offsets = [0, 0, 0], sizes = [2, 1, 24], strides = [1, 1, 1]} : vector<2x8x24xf32> to vector<2x1x24xf32>
    %297 = vector.shape_cast %296 : vector<2x1x24xf32> to vector<2x24xf32>
    %298 = vector.extract_strided_slice %297 {offsets = [0, 0], sizes = [2, 8], strides = [1, 1]} : vector<2x24xf32> to vector<2x8xf32>
    %299 = vector.extract_strided_slice %295 {offsets = [0, 0], sizes = [2, 8], strides = [1, 1]} : vector<2x24xf32> to vector<2x8xf32>
    %300 = arith.addf %298, %299 : vector<2x8xf32>
    %301 = arith.negf %300 : vector<2x8xf32>
    %302 = math.exp %301 : vector<2x8xf32>
    %cst_109 = arith.constant 1.000000e+00 : f32
    %303 = vector.broadcast %cst_109 : f32 to vector<2x8xf32>
    %304 = arith.addf %303, %302 : vector<2x8xf32>
    %305 = arith.divf %303, %304 : vector<2x8xf32>
    %306 = vector.extract_strided_slice %297 {offsets = [0, 8], sizes = [2, 8], strides = [1, 1]} : vector<2x24xf32> to vector<2x8xf32>
    %307 = vector.extract_strided_slice %295 {offsets = [0, 8], sizes = [2, 8], strides = [1, 1]} : vector<2x24xf32> to vector<2x8xf32>
    %308 = arith.addf %306, %307 : vector<2x8xf32>
    %309 = arith.negf %308 : vector<2x8xf32>
    %310 = math.exp %309 : vector<2x8xf32>
    %cst_110 = arith.constant 1.000000e+00 : f32
    %311 = vector.broadcast %cst_110 : f32 to vector<2x8xf32>
    %312 = arith.addf %311, %310 : vector<2x8xf32>
    %313 = arith.divf %311, %312 : vector<2x8xf32>
    %314 = vector.extract_strided_slice %297 {offsets = [0, 16], sizes = [2, 8], strides = [1, 1]} : vector<2x24xf32> to vector<2x8xf32>
    %315 = vector.extract_strided_slice %295 {offsets = [0, 16], sizes = [2, 8], strides = [1, 1]} : vector<2x24xf32> to vector<2x8xf32>
    %316 = arith.mulf %305, %315 : vector<2x8xf32>
    %317 = arith.addf %314, %316 : vector<2x8xf32>
    %318 = math.tanh %317 : vector<2x8xf32>
    %cst_111 = arith.constant 1.000000e+00 : f32
    %319 = vector.broadcast %cst_111 : f32 to vector<2x8xf32>
    %320 = arith.subf %319, %313 : vector<2x8xf32>
    %321 = arith.mulf %320, %318 : vector<2x8xf32>
    %322 = arith.mulf %313, %251 : vector<2x8xf32>
    %323 = arith.addf %321, %322 : vector<2x8xf32>
    %324 = vector.broadcast %254 : vector<2x1xf32> to vector<2x8xf32>
    %325 = arith.mulf %324, %323 : vector<2x8xf32>
    %cst_112 = arith.constant 1.000000e+00 : f32
    %326 = vector.broadcast %cst_112 : f32 to vector<2x1xf32>
    %327 = arith.subf %326, %254 : vector<2x1xf32>
    %328 = vector.broadcast %327 : vector<2x1xf32> to vector<2x8xf32>
    %329 = arith.mulf %328, %251 : vector<2x8xf32>
    %330 = arith.addf %325, %329 : vector<2x8xf32>
    %cst_113 = arith.constant dense<0.000000e+00> : vector<2x48xf32>
    %331 = tpu.matmul %252, %240, %cst_113 {dimension_numbers = #tpu.dot_dimension_numbers<[1], [0], [0], [1], [0, 0, 1, 1], [], []>} : vector<2x16xf32>, vector<16x48xf32>, vector<2x48xf32> -> vector<2x48xf32>
    %332 = vector.broadcast %241 : vector<1x48xf32> to vector<2x48xf32>
    %333 = arith.addf %331, %332 : vector<2x48xf32>
    %334 = vector.extract_strided_slice %239 {offsets = [0, 0, 0], sizes = [2, 1, 48], strides = [1, 1, 1]} : vector<2x8x48xf32> to vector<2x1x48xf32>
    %335 = vector.shape_cast %334 : vector<2x1x48xf32> to vector<2x48xf32>
    %336 = vector.extract_strided_slice %335 {offsets = [0, 0], sizes = [2, 16], strides = [1, 1]} : vector<2x48xf32> to vector<2x16xf32>
    %337 = vector.extract_strided_slice %333 {offsets = [0, 0], sizes = [2, 16], strides = [1, 1]} : vector<2x48xf32> to vector<2x16xf32>
    %338 = arith.addf %336, %337 : vector<2x16xf32>
    %339 = arith.negf %338 : vector<2x16xf32>
    %340 = math.exp %339 : vector<2x16xf32>
    %cst_114 = arith.constant 1.000000e+00 : f32
    %341 = vector.broadcast %cst_114 : f32 to vector<2x16xf32>
    %342 = arith.addf %341, %340 : vector<2x16xf32>
    %343 = arith.divf %341, %342 : vector<2x16xf32>
    %344 = vector.extract_strided_slice %335 {offsets = [0, 16], sizes = [2, 16], strides = [1, 1]} : vector<2x48xf32> to vector<2x16xf32>
    %345 = vector.extract_strided_slice %333 {offsets = [0, 16], sizes = [2, 16], strides = [1, 1]} : vector<2x48xf32> to vector<2x16xf32>
    %346 = arith.addf %344, %345 : vector<2x16xf32>
    %347 = arith.negf %346 : vector<2x16xf32>
    %348 = math.exp %347 : vector<2x16xf32>
    %cst_115 = arith.constant 1.000000e+00 : f32
    %349 = vector.broadcast %cst_115 : f32 to vector<2x16xf32>
    %350 = arith.addf %349, %348 : vector<2x16xf32>
    %351 = arith.divf %349, %350 : vector<2x16xf32>
    %352 = vector.extract_strided_slice %335 {offsets = [0, 32], sizes = [2, 16], strides = [1, 1]} : vector<2x48xf32> to vector<2x16xf32>
    %353 = vector.extract_strided_slice %333 {offsets = [0, 32], sizes = [2, 16], strides = [1, 1]} : vector<2x48xf32> to vector<2x16xf32>
    %354 = arith.mulf %343, %353 : vector<2x16xf32>
    %355 = arith.addf %352, %354 : vector<2x16xf32>
    %356 = math.tanh %355 : vector<2x16xf32>
    %cst_116 = arith.constant 1.000000e+00 : f32
    %357 = vector.broadcast %cst_116 : f32 to vector<2x16xf32>
    %358 = arith.subf %357, %351 : vector<2x16xf32>
    %359 = arith.mulf %358, %356 : vector<2x16xf32>
    %360 = arith.mulf %351, %252 : vector<2x16xf32>
    %361 = arith.addf %359, %360 : vector<2x16xf32>
    %362 = vector.broadcast %254 : vector<2x1xf32> to vector<2x16xf32>
    %363 = arith.mulf %362, %361 : vector<2x16xf32>
    %cst_117 = arith.constant 1.000000e+00 : f32
    %364 = vector.broadcast %cst_117 : f32 to vector<2x1xf32>
    %365 = arith.subf %364, %254 : vector<2x1xf32>
    %366 = vector.broadcast %365 : vector<2x1xf32> to vector<2x16xf32>
    %367 = arith.mulf %366, %252 : vector<2x16xf32>
    %368 = arith.addf %363, %367 : vector<2x16xf32>
    %cst_118 = arith.constant dense<0.000000e+00> : vector<2x96xf32>
    %369 = tpu.matmul %253, %248, %cst_118 {dimension_numbers = #tpu.dot_dimension_numbers<[1], [0], [0], [1], [0, 0, 1, 1], [], []>} : vector<2x32xf32>, vector<32x96xf32>, vector<2x96xf32> -> vector<2x96xf32>
    %370 = vector.broadcast %249 : vector<1x96xf32> to vector<2x96xf32>
    %371 = arith.addf %369, %370 : vector<2x96xf32>
    %372 = vector.extract_strided_slice %247 {offsets = [0, 0, 0], sizes = [2, 1, 96], strides = [1, 1, 1]} : vector<2x8x96xf32> to vector<2x1x96xf32>
    %373 = vector.shape_cast %372 : vector<2x1x96xf32> to vector<2x96xf32>
    %374 = vector.extract_strided_slice %373 {offsets = [0, 0], sizes = [2, 32], strides = [1, 1]} : vector<2x96xf32> to vector<2x32xf32>
    %375 = vector.extract_strided_slice %371 {offsets = [0, 0], sizes = [2, 32], strides = [1, 1]} : vector<2x96xf32> to vector<2x32xf32>
    %376 = arith.addf %374, %375 : vector<2x32xf32>
    %377 = arith.negf %376 : vector<2x32xf32>
    %378 = math.exp %377 : vector<2x32xf32>
    %cst_119 = arith.constant 1.000000e+00 : f32
    %379 = vector.broadcast %cst_119 : f32 to vector<2x32xf32>
    %380 = arith.addf %379, %378 : vector<2x32xf32>
    %381 = arith.divf %379, %380 : vector<2x32xf32>
    %382 = vector.extract_strided_slice %373 {offsets = [0, 32], sizes = [2, 32], strides = [1, 1]} : vector<2x96xf32> to vector<2x32xf32>
    %383 = vector.extract_strided_slice %371 {offsets = [0, 32], sizes = [2, 32], strides = [1, 1]} : vector<2x96xf32> to vector<2x32xf32>
    %384 = arith.addf %382, %383 : vector<2x32xf32>
    %385 = arith.negf %384 : vector<2x32xf32>
    %386 = math.exp %385 : vector<2x32xf32>
    %cst_120 = arith.constant 1.000000e+00 : f32
    %387 = vector.broadcast %cst_120 : f32 to vector<2x32xf32>
    %388 = arith.addf %387, %386 : vector<2x32xf32>
    %389 = arith.divf %387, %388 : vector<2x32xf32>
    %390 = vector.extract_strided_slice %373 {offsets = [0, 64], sizes = [2, 32], strides = [1, 1]} : vector<2x96xf32> to vector<2x32xf32>
    %391 = vector.extract_strided_slice %371 {offsets = [0, 64], sizes = [2, 32], strides = [1, 1]} : vector<2x96xf32> to vector<2x32xf32>
    %392 = arith.mulf %381, %391 : vector<2x32xf32>
    %393 = arith.addf %390, %392 : vector<2x32xf32>
    %394 = math.tanh %393 : vector<2x32xf32>
    %cst_121 = arith.constant 1.000000e+00 : f32
    %395 = vector.broadcast %cst_121 : f32 to vector<2x32xf32>
    %396 = arith.subf %395, %389 : vector<2x32xf32>
    %397 = arith.mulf %396, %394 : vector<2x32xf32>
    %398 = arith.mulf %389, %253 : vector<2x32xf32>
    %399 = arith.addf %397, %398 : vector<2x32xf32>
    %400 = vector.broadcast %254 : vector<2x1xf32> to vector<2x32xf32>
    %401 = arith.mulf %400, %399 : vector<2x32xf32>
    %cst_122 = arith.constant 1.000000e+00 : f32
    %402 = vector.broadcast %cst_122 : f32 to vector<2x1xf32>
    %403 = arith.subf %402, %254 : vector<2x1xf32>
    %404 = vector.broadcast %403 : vector<2x1xf32> to vector<2x32xf32>
    %405 = arith.mulf %404, %253 : vector<2x32xf32>
    %406 = arith.addf %401, %405 : vector<2x32xf32>
    %407 = vector.extract_strided_slice %1 {offsets = [0, 1], sizes = [2, 1], strides = [1, 1]} : vector<2x8xf32> to vector<2x1xf32>
    %cst_123 = arith.constant dense<0.000000e+00> : vector<2x12xf32>
    %408 = tpu.matmul %292, %224, %cst_123 {dimension_numbers = #tpu.dot_dimension_numbers<[1], [0], [0], [1], [0, 0, 1, 1], [], []>} : vector<2x4xf32>, vector<4x12xf32>, vector<2x12xf32> -> vector<2x12xf32>
    %409 = vector.broadcast %225 : vector<1x12xf32> to vector<2x12xf32>
    %410 = arith.addf %408, %409 : vector<2x12xf32>
    %411 = vector.extract_strided_slice %223 {offsets = [0, 1, 0], sizes = [2, 1, 12], strides = [1, 1, 1]} : vector<2x8x12xf32> to vector<2x1x12xf32>
    %412 = vector.shape_cast %411 : vector<2x1x12xf32> to vector<2x12xf32>
    %413 = vector.extract_strided_slice %412 {offsets = [0, 0], sizes = [2, 4], strides = [1, 1]} : vector<2x12xf32> to vector<2x4xf32>
    %414 = vector.extract_strided_slice %410 {offsets = [0, 0], sizes = [2, 4], strides = [1, 1]} : vector<2x12xf32> to vector<2x4xf32>
    %415 = arith.addf %413, %414 : vector<2x4xf32>
    %416 = arith.negf %415 : vector<2x4xf32>
    %417 = math.exp %416 : vector<2x4xf32>
    %cst_124 = arith.constant 1.000000e+00 : f32
    %418 = vector.broadcast %cst_124 : f32 to vector<2x4xf32>
    %419 = arith.addf %418, %417 : vector<2x4xf32>
    %420 = arith.divf %418, %419 : vector<2x4xf32>
    %421 = vector.extract_strided_slice %412 {offsets = [0, 4], sizes = [2, 4], strides = [1, 1]} : vector<2x12xf32> to vector<2x4xf32>
    %422 = vector.extract_strided_slice %410 {offsets = [0, 4], sizes = [2, 4], strides = [1, 1]} : vector<2x12xf32> to vector<2x4xf32>
    %423 = arith.addf %421, %422 : vector<2x4xf32>
    %424 = arith.negf %423 : vector<2x4xf32>
    %425 = math.exp %424 : vector<2x4xf32>
    %cst_125 = arith.constant 1.000000e+00 : f32
    %426 = vector.broadcast %cst_125 : f32 to vector<2x4xf32>
    %427 = arith.addf %426, %425 : vector<2x4xf32>
    %428 = arith.divf %426, %427 : vector<2x4xf32>
    %429 = vector.extract_strided_slice %412 {offsets = [0, 8], sizes = [2, 4], strides = [1, 1]} : vector<2x12xf32> to vector<2x4xf32>
    %430 = vector.extract_strided_slice %410 {offsets = [0, 8], sizes = [2, 4], strides = [1, 1]} : vector<2x12xf32> to vector<2x4xf32>
    %431 = arith.mulf %420, %430 : vector<2x4xf32>
    %432 = arith.addf %429, %431 : vector<2x4xf32>
    %433 = math.tanh %432 : vector<2x4xf32>
    %cst_126 = arith.constant 1.000000e+00 : f32
    %434 = vector.broadcast %cst_126 : f32 to vector<2x4xf32>
    %435 = arith.subf %434, %428 : vector<2x4xf32>
    %436 = arith.mulf %435, %433 : vector<2x4xf32>
    %437 = arith.mulf %428, %292 : vector<2x4xf32>
    %438 = arith.addf %436, %437 : vector<2x4xf32>
    %439 = vector.broadcast %407 : vector<2x1xf32> to vector<2x4xf32>
    %440 = arith.mulf %439, %438 : vector<2x4xf32>
    %cst_127 = arith.constant 1.000000e+00 : f32
    %441 = vector.broadcast %cst_127 : f32 to vector<2x1xf32>
    %442 = arith.subf %441, %407 : vector<2x1xf32>
    %443 = vector.broadcast %442 : vector<2x1xf32> to vector<2x4xf32>
    %444 = arith.mulf %443, %292 : vector<2x4xf32>
    %445 = arith.addf %440, %444 : vector<2x4xf32>
    %cst_128 = arith.constant dense<0.000000e+00> : vector<2x24xf32>
    %446 = tpu.matmul %330, %232, %cst_128 {dimension_numbers = #tpu.dot_dimension_numbers<[1], [0], [0], [1], [0, 0, 1, 1], [], []>} : vector<2x8xf32>, vector<8x24xf32>, vector<2x24xf32> -> vector<2x24xf32>
    %447 = vector.broadcast %233 : vector<1x24xf32> to vector<2x24xf32>
    %448 = arith.addf %446, %447 : vector<2x24xf32>
    %449 = vector.extract_strided_slice %231 {offsets = [0, 1, 0], sizes = [2, 1, 24], strides = [1, 1, 1]} : vector<2x8x24xf32> to vector<2x1x24xf32>
    %450 = vector.shape_cast %449 : vector<2x1x24xf32> to vector<2x24xf32>
    %451 = vector.extract_strided_slice %450 {offsets = [0, 0], sizes = [2, 8], strides = [1, 1]} : vector<2x24xf32> to vector<2x8xf32>
    %452 = vector.extract_strided_slice %448 {offsets = [0, 0], sizes = [2, 8], strides = [1, 1]} : vector<2x24xf32> to vector<2x8xf32>
    %453 = arith.addf %451, %452 : vector<2x8xf32>
    %454 = arith.negf %453 : vector<2x8xf32>
    %455 = math.exp %454 : vector<2x8xf32>
    %cst_129 = arith.constant 1.000000e+00 : f32
    %456 = vector.broadcast %cst_129 : f32 to vector<2x8xf32>
    %457 = arith.addf %456, %455 : vector<2x8xf32>
    %458 = arith.divf %456, %457 : vector<2x8xf32>
    %459 = vector.extract_strided_slice %450 {offsets = [0, 8], sizes = [2, 8], strides = [1, 1]} : vector<2x24xf32> to vector<2x8xf32>
    %460 = vector.extract_strided_slice %448 {offsets = [0, 8], sizes = [2, 8], strides = [1, 1]} : vector<2x24xf32> to vector<2x8xf32>
    %461 = arith.addf %459, %460 : vector<2x8xf32>
    %462 = arith.negf %461 : vector<2x8xf32>
    %463 = math.exp %462 : vector<2x8xf32>
    %cst_130 = arith.constant 1.000000e+00 : f32
    %464 = vector.broadcast %cst_130 : f32 to vector<2x8xf32>
    %465 = arith.addf %464, %463 : vector<2x8xf32>
    %466 = arith.divf %464, %465 : vector<2x8xf32>
    %467 = vector.extract_strided_slice %450 {offsets = [0, 16], sizes = [2, 8], strides = [1, 1]} : vector<2x24xf32> to vector<2x8xf32>
    %468 = vector.extract_strided_slice %448 {offsets = [0, 16], sizes = [2, 8], strides = [1, 1]} : vector<2x24xf32> to vector<2x8xf32>
    %469 = arith.mulf %458, %468 : vector<2x8xf32>
    %470 = arith.addf %467, %469 : vector<2x8xf32>
    %471 = math.tanh %470 : vector<2x8xf32>
    %cst_131 = arith.constant 1.000000e+00 : f32
    %472 = vector.broadcast %cst_131 : f32 to vector<2x8xf32>
    %473 = arith.subf %472, %466 : vector<2x8xf32>
    %474 = arith.mulf %473, %471 : vector<2x8xf32>
    %475 = arith.mulf %466, %330 : vector<2x8xf32>
    %476 = arith.addf %474, %475 : vector<2x8xf32>
    %477 = vector.broadcast %407 : vector<2x1xf32> to vector<2x8xf32>
    %478 = arith.mulf %477, %476 : vector<2x8xf32>
    %cst_132 = arith.constant 1.000000e+00 : f32
    %479 = vector.broadcast %cst_132 : f32 to vector<2x1xf32>
    %480 = arith.subf %479, %407 : vector<2x1xf32>
    %481 = vector.broadcast %480 : vector<2x1xf32> to vector<2x8xf32>
    %482 = arith.mulf %481, %330 : vector<2x8xf32>
    %483 = arith.addf %478, %482 : vector<2x8xf32>
    %cst_133 = arith.constant dense<0.000000e+00> : vector<2x48xf32>
    %484 = tpu.matmul %368, %240, %cst_133 {dimension_numbers = #tpu.dot_dimension_numbers<[1], [0], [0], [1], [0, 0, 1, 1], [], []>} : vector<2x16xf32>, vector<16x48xf32>, vector<2x48xf32> -> vector<2x48xf32>
    %485 = vector.broadcast %241 : vector<1x48xf32> to vector<2x48xf32>
    %486 = arith.addf %484, %485 : vector<2x48xf32>
    %487 = vector.extract_strided_slice %239 {offsets = [0, 1, 0], sizes = [2, 1, 48], strides = [1, 1, 1]} : vector<2x8x48xf32> to vector<2x1x48xf32>
    %488 = vector.shape_cast %487 : vector<2x1x48xf32> to vector<2x48xf32>
    %489 = vector.extract_strided_slice %488 {offsets = [0, 0], sizes = [2, 16], strides = [1, 1]} : vector<2x48xf32> to vector<2x16xf32>
    %490 = vector.extract_strided_slice %486 {offsets = [0, 0], sizes = [2, 16], strides = [1, 1]} : vector<2x48xf32> to vector<2x16xf32>
    %491 = arith.addf %489, %490 : vector<2x16xf32>
    %492 = arith.negf %491 : vector<2x16xf32>
    %493 = math.exp %492 : vector<2x16xf32>
    %cst_134 = arith.constant 1.000000e+00 : f32
    %494 = vector.broadcast %cst_134 : f32 to vector<2x16xf32>
    %495 = arith.addf %494, %493 : vector<2x16xf32>
    %496 = arith.divf %494, %495 : vector<2x16xf32>
    %497 = vector.extract_strided_slice %488 {offsets = [0, 16], sizes = [2, 16], strides = [1, 1]} : vector<2x48xf32> to vector<2x16xf32>
    %498 = vector.extract_strided_slice %486 {offsets = [0, 16], sizes = [2, 16], strides = [1, 1]} : vector<2x48xf32> to vector<2x16xf32>
    %499 = arith.addf %497, %498 : vector<2x16xf32>
    %500 = arith.negf %499 : vector<2x16xf32>
    %501 = math.exp %500 : vector<2x16xf32>
    %cst_135 = arith.constant 1.000000e+00 : f32
    %502 = vector.broadcast %cst_135 : f32 to vector<2x16xf32>
    %503 = arith.addf %502, %501 : vector<2x16xf32>
    %504 = arith.divf %502, %503 : vector<2x16xf32>
    %505 = vector.extract_strided_slice %488 {offsets = [0, 32], sizes = [2, 16], strides = [1, 1]} : vector<2x48xf32> to vector<2x16xf32>
    %506 = vector.extract_strided_slice %486 {offsets = [0, 32], sizes = [2, 16], strides = [1, 1]} : vector<2x48xf32> to vector<2x16xf32>
    %507 = arith.mulf %496, %506 : vector<2x16xf32>
    %508 = arith.addf %505, %507 : vector<2x16xf32>
    %509 = math.tanh %508 : vector<2x16xf32>
    %cst_136 = arith.constant 1.000000e+00 : f32
    %510 = vector.broadcast %cst_136 : f32 to vector<2x16xf32>
    %511 = arith.subf %510, %504 : vector<2x16xf32>
    %512 = arith.mulf %511, %509 : vector<2x16xf32>
    %513 = arith.mulf %504, %368 : vector<2x16xf32>
    %514 = arith.addf %512, %513 : vector<2x16xf32>
    %515 = vector.broadcast %407 : vector<2x1xf32> to vector<2x16xf32>
    %516 = arith.mulf %515, %514 : vector<2x16xf32>
    %cst_137 = arith.constant 1.000000e+00 : f32
    %517 = vector.broadcast %cst_137 : f32 to vector<2x1xf32>
    %518 = arith.subf %517, %407 : vector<2x1xf32>
    %519 = vector.broadcast %518 : vector<2x1xf32> to vector<2x16xf32>
    %520 = arith.mulf %519, %368 : vector<2x16xf32>
    %521 = arith.addf %516, %520 : vector<2x16xf32>
    %cst_138 = arith.constant dense<0.000000e+00> : vector<2x96xf32>
    %522 = tpu.matmul %406, %248, %cst_138 {dimension_numbers = #tpu.dot_dimension_numbers<[1], [0], [0], [1], [0, 0, 1, 1], [], []>} : vector<2x32xf32>, vector<32x96xf32>, vector<2x96xf32> -> vector<2x96xf32>
    %523 = vector.broadcast %249 : vector<1x96xf32> to vector<2x96xf32>
    %524 = arith.addf %522, %523 : vector<2x96xf32>
    %525 = vector.extract_strided_slice %247 {offsets = [0, 1, 0], sizes = [2, 1, 96], strides = [1, 1, 1]} : vector<2x8x96xf32> to vector<2x1x96xf32>
    %526 = vector.shape_cast %525 : vector<2x1x96xf32> to vector<2x96xf32>
    %527 = vector.extract_strided_slice %526 {offsets = [0, 0], sizes = [2, 32], strides = [1, 1]} : vector<2x96xf32> to vector<2x32xf32>
    %528 = vector.extract_strided_slice %524 {offsets = [0, 0], sizes = [2, 32], strides = [1, 1]} : vector<2x96xf32> to vector<2x32xf32>
    %529 = arith.addf %527, %528 : vector<2x32xf32>
    %530 = arith.negf %529 : vector<2x32xf32>
    %531 = math.exp %530 : vector<2x32xf32>
    %cst_139 = arith.constant 1.000000e+00 : f32
    %532 = vector.broadcast %cst_139 : f32 to vector<2x32xf32>
    %533 = arith.addf %532, %531 : vector<2x32xf32>
    %534 = arith.divf %532, %533 : vector<2x32xf32>
    %535 = vector.extract_strided_slice %526 {offsets = [0, 32], sizes = [2, 32], strides = [1, 1]} : vector<2x96xf32> to vector<2x32xf32>
    %536 = vector.extract_strided_slice %524 {offsets = [0, 32], sizes = [2, 32], strides = [1, 1]} : vector<2x96xf32> to vector<2x32xf32>
    %537 = arith.addf %535, %536 : vector<2x32xf32>
    %538 = arith.negf %537 : vector<2x32xf32>
    %539 = math.exp %538 : vector<2x32xf32>
    %cst_140 = arith.constant 1.000000e+00 : f32
    %540 = vector.broadcast %cst_140 : f32 to vector<2x32xf32>
    %541 = arith.addf %540, %539 : vector<2x32xf32>
    %542 = arith.divf %540, %541 : vector<2x32xf32>
    %543 = vector.extract_strided_slice %526 {offsets = [0, 64], sizes = [2, 32], strides = [1, 1]} : vector<2x96xf32> to vector<2x32xf32>
    %544 = vector.extract_strided_slice %524 {offsets = [0, 64], sizes = [2, 32], strides = [1, 1]} : vector<2x96xf32> to vector<2x32xf32>
    %545 = arith.mulf %534, %544 : vector<2x32xf32>
    %546 = arith.addf %543, %545 : vector<2x32xf32>
    %547 = math.tanh %546 : vector<2x32xf32>
    %cst_141 = arith.constant 1.000000e+00 : f32
    %548 = vector.broadcast %cst_141 : f32 to vector<2x32xf32>
    %549 = arith.subf %548, %542 : vector<2x32xf32>
    %550 = arith.mulf %549, %547 : vector<2x32xf32>
    %551 = arith.mulf %542, %406 : vector<2x32xf32>
    %552 = arith.addf %550, %551 : vector<2x32xf32>
    %553 = vector.broadcast %407 : vector<2x1xf32> to vector<2x32xf32>
    %554 = arith.mulf %553, %552 : vector<2x32xf32>
    %cst_142 = arith.constant 1.000000e+00 : f32
    %555 = vector.broadcast %cst_142 : f32 to vector<2x1xf32>
    %556 = arith.subf %555, %407 : vector<2x1xf32>
    %557 = vector.broadcast %556 : vector<2x1xf32> to vector<2x32xf32>
    %558 = arith.mulf %557, %406 : vector<2x32xf32>
    %559 = arith.addf %554, %558 : vector<2x32xf32>
    %560 = vector.extract_strided_slice %1 {offsets = [0, 2], sizes = [2, 1], strides = [1, 1]} : vector<2x8xf32> to vector<2x1xf32>
    %cst_143 = arith.constant dense<0.000000e+00> : vector<2x12xf32>
    %561 = tpu.matmul %445, %224, %cst_143 {dimension_numbers = #tpu.dot_dimension_numbers<[1], [0], [0], [1], [0, 0, 1, 1], [], []>} : vector<2x4xf32>, vector<4x12xf32>, vector<2x12xf32> -> vector<2x12xf32>
    %562 = vector.broadcast %225 : vector<1x12xf32> to vector<2x12xf32>
    %563 = arith.addf %561, %562 : vector<2x12xf32>
    %564 = vector.extract_strided_slice %223 {offsets = [0, 2, 0], sizes = [2, 1, 12], strides = [1, 1, 1]} : vector<2x8x12xf32> to vector<2x1x12xf32>
    %565 = vector.shape_cast %564 : vector<2x1x12xf32> to vector<2x12xf32>
    %566 = vector.extract_strided_slice %565 {offsets = [0, 0], sizes = [2, 4], strides = [1, 1]} : vector<2x12xf32> to vector<2x4xf32>
    %567 = vector.extract_strided_slice %563 {offsets = [0, 0], sizes = [2, 4], strides = [1, 1]} : vector<2x12xf32> to vector<2x4xf32>
    %568 = arith.addf %566, %567 : vector<2x4xf32>
    %569 = arith.negf %568 : vector<2x4xf32>
    %570 = math.exp %569 : vector<2x4xf32>
    %cst_144 = arith.constant 1.000000e+00 : f32
    %571 = vector.broadcast %cst_144 : f32 to vector<2x4xf32>
    %572 = arith.addf %571, %570 : vector<2x4xf32>
    %573 = arith.divf %571, %572 : vector<2x4xf32>
    %574 = vector.extract_strided_slice %565 {offsets = [0, 4], sizes = [2, 4], strides = [1, 1]} : vector<2x12xf32> to vector<2x4xf32>
    %575 = vector.extract_strided_slice %563 {offsets = [0, 4], sizes = [2, 4], strides = [1, 1]} : vector<2x12xf32> to vector<2x4xf32>
    %576 = arith.addf %574, %575 : vector<2x4xf32>
    %577 = arith.negf %576 : vector<2x4xf32>
    %578 = math.exp %577 : vector<2x4xf32>
    %cst_145 = arith.constant 1.000000e+00 : f32
    %579 = vector.broadcast %cst_145 : f32 to vector<2x4xf32>
    %580 = arith.addf %579, %578 : vector<2x4xf32>
    %581 = arith.divf %579, %580 : vector<2x4xf32>
    %582 = vector.extract_strided_slice %565 {offsets = [0, 8], sizes = [2, 4], strides = [1, 1]} : vector<2x12xf32> to vector<2x4xf32>
    %583 = vector.extract_strided_slice %563 {offsets = [0, 8], sizes = [2, 4], strides = [1, 1]} : vector<2x12xf32> to vector<2x4xf32>
    %584 = arith.mulf %573, %583 : vector<2x4xf32>
    %585 = arith.addf %582, %584 : vector<2x4xf32>
    %586 = math.tanh %585 : vector<2x4xf32>
    %cst_146 = arith.constant 1.000000e+00 : f32
    %587 = vector.broadcast %cst_146 : f32 to vector<2x4xf32>
    %588 = arith.subf %587, %581 : vector<2x4xf32>
    %589 = arith.mulf %588, %586 : vector<2x4xf32>
    %590 = arith.mulf %581, %445 : vector<2x4xf32>
    %591 = arith.addf %589, %590 : vector<2x4xf32>
    %592 = vector.broadcast %560 : vector<2x1xf32> to vector<2x4xf32>
    %593 = arith.mulf %592, %591 : vector<2x4xf32>
    %cst_147 = arith.constant 1.000000e+00 : f32
    %594 = vector.broadcast %cst_147 : f32 to vector<2x1xf32>
    %595 = arith.subf %594, %560 : vector<2x1xf32>
    %596 = vector.broadcast %595 : vector<2x1xf32> to vector<2x4xf32>
    %597 = arith.mulf %596, %445 : vector<2x4xf32>
    %598 = arith.addf %593, %597 : vector<2x4xf32>
    %cst_148 = arith.constant dense<0.000000e+00> : vector<2x24xf32>
    %599 = tpu.matmul %483, %232, %cst_148 {dimension_numbers = #tpu.dot_dimension_numbers<[1], [0], [0], [1], [0, 0, 1, 1], [], []>} : vector<2x8xf32>, vector<8x24xf32>, vector<2x24xf32> -> vector<2x24xf32>
    %600 = vector.broadcast %233 : vector<1x24xf32> to vector<2x24xf32>
    %601 = arith.addf %599, %600 : vector<2x24xf32>
    %602 = vector.extract_strided_slice %231 {offsets = [0, 2, 0], sizes = [2, 1, 24], strides = [1, 1, 1]} : vector<2x8x24xf32> to vector<2x1x24xf32>
    %603 = vector.shape_cast %602 : vector<2x1x24xf32> to vector<2x24xf32>
    %604 = vector.extract_strided_slice %603 {offsets = [0, 0], sizes = [2, 8], strides = [1, 1]} : vector<2x24xf32> to vector<2x8xf32>
    %605 = vector.extract_strided_slice %601 {offsets = [0, 0], sizes = [2, 8], strides = [1, 1]} : vector<2x24xf32> to vector<2x8xf32>
    %606 = arith.addf %604, %605 : vector<2x8xf32>
    %607 = arith.negf %606 : vector<2x8xf32>
    %608 = math.exp %607 : vector<2x8xf32>
    %cst_149 = arith.constant 1.000000e+00 : f32
    %609 = vector.broadcast %cst_149 : f32 to vector<2x8xf32>
    %610 = arith.addf %609, %608 : vector<2x8xf32>
    %611 = arith.divf %609, %610 : vector<2x8xf32>
    %612 = vector.extract_strided_slice %603 {offsets = [0, 8], sizes = [2, 8], strides = [1, 1]} : vector<2x24xf32> to vector<2x8xf32>
    %613 = vector.extract_strided_slice %601 {offsets = [0, 8], sizes = [2, 8], strides = [1, 1]} : vector<2x24xf32> to vector<2x8xf32>
    %614 = arith.addf %612, %613 : vector<2x8xf32>
    %615 = arith.negf %614 : vector<2x8xf32>
    %616 = math.exp %615 : vector<2x8xf32>
    %cst_150 = arith.constant 1.000000e+00 : f32
    %617 = vector.broadcast %cst_150 : f32 to vector<2x8xf32>
    %618 = arith.addf %617, %616 : vector<2x8xf32>
    %619 = arith.divf %617, %618 : vector<2x8xf32>
    %620 = vector.extract_strided_slice %603 {offsets = [0, 16], sizes = [2, 8], strides = [1, 1]} : vector<2x24xf32> to vector<2x8xf32>
    %621 = vector.extract_strided_slice %601 {offsets = [0, 16], sizes = [2, 8], strides = [1, 1]} : vector<2x24xf32> to vector<2x8xf32>
    %622 = arith.mulf %611, %621 : vector<2x8xf32>
    %623 = arith.addf %620, %622 : vector<2x8xf32>
    %624 = math.tanh %623 : vector<2x8xf32>
    %cst_151 = arith.constant 1.000000e+00 : f32
    %625 = vector.broadcast %cst_151 : f32 to vector<2x8xf32>
    %626 = arith.subf %625, %619 : vector<2x8xf32>
    %627 = arith.mulf %626, %624 : vector<2x8xf32>
    %628 = arith.mulf %619, %483 : vector<2x8xf32>
    %629 = arith.addf %627, %628 : vector<2x8xf32>
    %630 = vector.broadcast %560 : vector<2x1xf32> to vector<2x8xf32>
    %631 = arith.mulf %630, %629 : vector<2x8xf32>
    %cst_152 = arith.constant 1.000000e+00 : f32
    %632 = vector.broadcast %cst_152 : f32 to vector<2x1xf32>
    %633 = arith.subf %632, %560 : vector<2x1xf32>
    %634 = vector.broadcast %633 : vector<2x1xf32> to vector<2x8xf32>
    %635 = arith.mulf %634, %483 : vector<2x8xf32>
    %636 = arith.addf %631, %635 : vector<2x8xf32>
    %cst_153 = arith.constant dense<0.000000e+00> : vector<2x48xf32>
    %637 = tpu.matmul %521, %240, %cst_153 {dimension_numbers = #tpu.dot_dimension_numbers<[1], [0], [0], [1], [0, 0, 1, 1], [], []>} : vector<2x16xf32>, vector<16x48xf32>, vector<2x48xf32> -> vector<2x48xf32>
    %638 = vector.broadcast %241 : vector<1x48xf32> to vector<2x48xf32>
    %639 = arith.addf %637, %638 : vector<2x48xf32>
    %640 = vector.extract_strided_slice %239 {offsets = [0, 2, 0], sizes = [2, 1, 48], strides = [1, 1, 1]} : vector<2x8x48xf32> to vector<2x1x48xf32>
    %641 = vector.shape_cast %640 : vector<2x1x48xf32> to vector<2x48xf32>
    %642 = vector.extract_strided_slice %641 {offsets = [0, 0], sizes = [2, 16], strides = [1, 1]} : vector<2x48xf32> to vector<2x16xf32>
    %643 = vector.extract_strided_slice %639 {offsets = [0, 0], sizes = [2, 16], strides = [1, 1]} : vector<2x48xf32> to vector<2x16xf32>
    %644 = arith.addf %642, %643 : vector<2x16xf32>
    %645 = arith.negf %644 : vector<2x16xf32>
    %646 = math.exp %645 : vector<2x16xf32>
    %cst_154 = arith.constant 1.000000e+00 : f32
    %647 = vector.broadcast %cst_154 : f32 to vector<2x16xf32>
    %648 = arith.addf %647, %646 : vector<2x16xf32>
    %649 = arith.divf %647, %648 : vector<2x16xf32>
    %650 = vector.extract_strided_slice %641 {offsets = [0, 16], sizes = [2, 16], strides = [1, 1]} : vector<2x48xf32> to vector<2x16xf32>
    %651 = vector.extract_strided_slice %639 {offsets = [0, 16], sizes = [2, 16], strides = [1, 1]} : vector<2x48xf32> to vector<2x16xf32>
    %652 = arith.addf %650, %651 : vector<2x16xf32>
    %653 = arith.negf %652 : vector<2x16xf32>
    %654 = math.exp %653 : vector<2x16xf32>
    %cst_155 = arith.constant 1.000000e+00 : f32
    %655 = vector.broadcast %cst_155 : f32 to vector<2x16xf32>
    %656 = arith.addf %655, %654 : vector<2x16xf32>
    %657 = arith.divf %655, %656 : vector<2x16xf32>
    %658 = vector.extract_strided_slice %641 {offsets = [0, 32], sizes = [2, 16], strides = [1, 1]} : vector<2x48xf32> to vector<2x16xf32>
    %659 = vector.extract_strided_slice %639 {offsets = [0, 32], sizes = [2, 16], strides = [1, 1]} : vector<2x48xf32> to vector<2x16xf32>
    %660 = arith.mulf %649, %659 : vector<2x16xf32>
    %661 = arith.addf %658, %660 : vector<2x16xf32>
    %662 = math.tanh %661 : vector<2x16xf32>
    %cst_156 = arith.constant 1.000000e+00 : f32
    %663 = vector.broadcast %cst_156 : f32 to vector<2x16xf32>
    %664 = arith.subf %663, %657 : vector<2x16xf32>
    %665 = arith.mulf %664, %662 : vector<2x16xf32>
    %666 = arith.mulf %657, %521 : vector<2x16xf32>
    %667 = arith.addf %665, %666 : vector<2x16xf32>
    %668 = vector.broadcast %560 : vector<2x1xf32> to vector<2x16xf32>
    %669 = arith.mulf %668, %667 : vector<2x16xf32>
    %cst_157 = arith.constant 1.000000e+00 : f32
    %670 = vector.broadcast %cst_157 : f32 to vector<2x1xf32>
    %671 = arith.subf %670, %560 : vector<2x1xf32>
    %672 = vector.broadcast %671 : vector<2x1xf32> to vector<2x16xf32>
    %673 = arith.mulf %672, %521 : vector<2x16xf32>
    %674 = arith.addf %669, %673 : vector<2x16xf32>
    %cst_158 = arith.constant dense<0.000000e+00> : vector<2x96xf32>
    %675 = tpu.matmul %559, %248, %cst_158 {dimension_numbers = #tpu.dot_dimension_numbers<[1], [0], [0], [1], [0, 0, 1, 1], [], []>} : vector<2x32xf32>, vector<32x96xf32>, vector<2x96xf32> -> vector<2x96xf32>
    %676 = vector.broadcast %249 : vector<1x96xf32> to vector<2x96xf32>
    %677 = arith.addf %675, %676 : vector<2x96xf32>
    %678 = vector.extract_strided_slice %247 {offsets = [0, 2, 0], sizes = [2, 1, 96], strides = [1, 1, 1]} : vector<2x8x96xf32> to vector<2x1x96xf32>
    %679 = vector.shape_cast %678 : vector<2x1x96xf32> to vector<2x96xf32>
    %680 = vector.extract_strided_slice %679 {offsets = [0, 0], sizes = [2, 32], strides = [1, 1]} : vector<2x96xf32> to vector<2x32xf32>
    %681 = vector.extract_strided_slice %677 {offsets = [0, 0], sizes = [2, 32], strides = [1, 1]} : vector<2x96xf32> to vector<2x32xf32>
    %682 = arith.addf %680, %681 : vector<2x32xf32>
    %683 = arith.negf %682 : vector<2x32xf32>
    %684 = math.exp %683 : vector<2x32xf32>
    %cst_159 = arith.constant 1.000000e+00 : f32
    %685 = vector.broadcast %cst_159 : f32 to vector<2x32xf32>
    %686 = arith.addf %685, %684 : vector<2x32xf32>
    %687 = arith.divf %685, %686 : vector<2x32xf32>
    %688 = vector.extract_strided_slice %679 {offsets = [0, 32], sizes = [2, 32], strides = [1, 1]} : vector<2x96xf32> to vector<2x32xf32>
    %689 = vector.extract_strided_slice %677 {offsets = [0, 32], sizes = [2, 32], strides = [1, 1]} : vector<2x96xf32> to vector<2x32xf32>
    %690 = arith.addf %688, %689 : vector<2x32xf32>
    %691 = arith.negf %690 : vector<2x32xf32>
    %692 = math.exp %691 : vector<2x32xf32>
    %cst_160 = arith.constant 1.000000e+00 : f32
    %693 = vector.broadcast %cst_160 : f32 to vector<2x32xf32>
    %694 = arith.addf %693, %692 : vector<2x32xf32>
    %695 = arith.divf %693, %694 : vector<2x32xf32>
    %696 = vector.extract_strided_slice %679 {offsets = [0, 64], sizes = [2, 32], strides = [1, 1]} : vector<2x96xf32> to vector<2x32xf32>
    %697 = vector.extract_strided_slice %677 {offsets = [0, 64], sizes = [2, 32], strides = [1, 1]} : vector<2x96xf32> to vector<2x32xf32>
    %698 = arith.mulf %687, %697 : vector<2x32xf32>
    %699 = arith.addf %696, %698 : vector<2x32xf32>
    %700 = math.tanh %699 : vector<2x32xf32>
    %cst_161 = arith.constant 1.000000e+00 : f32
    %701 = vector.broadcast %cst_161 : f32 to vector<2x32xf32>
    %702 = arith.subf %701, %695 : vector<2x32xf32>
    %703 = arith.mulf %702, %700 : vector<2x32xf32>
    %704 = arith.mulf %695, %559 : vector<2x32xf32>
    %705 = arith.addf %703, %704 : vector<2x32xf32>
    %706 = vector.broadcast %560 : vector<2x1xf32> to vector<2x32xf32>
    %707 = arith.mulf %706, %705 : vector<2x32xf32>
    %cst_162 = arith.constant 1.000000e+00 : f32
    %708 = vector.broadcast %cst_162 : f32 to vector<2x1xf32>
    %709 = arith.subf %708, %560 : vector<2x1xf32>
    %710 = vector.broadcast %709 : vector<2x1xf32> to vector<2x32xf32>
    %711 = arith.mulf %710, %559 : vector<2x32xf32>
    %712 = arith.addf %707, %711 : vector<2x32xf32>
    %713 = vector.extract_strided_slice %1 {offsets = [0, 3], sizes = [2, 1], strides = [1, 1]} : vector<2x8xf32> to vector<2x1xf32>
    %cst_163 = arith.constant dense<0.000000e+00> : vector<2x12xf32>
    %714 = tpu.matmul %598, %224, %cst_163 {dimension_numbers = #tpu.dot_dimension_numbers<[1], [0], [0], [1], [0, 0, 1, 1], [], []>} : vector<2x4xf32>, vector<4x12xf32>, vector<2x12xf32> -> vector<2x12xf32>
    %715 = vector.broadcast %225 : vector<1x12xf32> to vector<2x12xf32>
    %716 = arith.addf %714, %715 : vector<2x12xf32>
    %717 = vector.extract_strided_slice %223 {offsets = [0, 3, 0], sizes = [2, 1, 12], strides = [1, 1, 1]} : vector<2x8x12xf32> to vector<2x1x12xf32>
    %718 = vector.shape_cast %717 : vector<2x1x12xf32> to vector<2x12xf32>
    %719 = vector.extract_strided_slice %718 {offsets = [0, 0], sizes = [2, 4], strides = [1, 1]} : vector<2x12xf32> to vector<2x4xf32>
    %720 = vector.extract_strided_slice %716 {offsets = [0, 0], sizes = [2, 4], strides = [1, 1]} : vector<2x12xf32> to vector<2x4xf32>
    %721 = arith.addf %719, %720 : vector<2x4xf32>
    %722 = arith.negf %721 : vector<2x4xf32>
    %723 = math.exp %722 : vector<2x4xf32>
    %cst_164 = arith.constant 1.000000e+00 : f32
    %724 = vector.broadcast %cst_164 : f32 to vector<2x4xf32>
    %725 = arith.addf %724, %723 : vector<2x4xf32>
    %726 = arith.divf %724, %725 : vector<2x4xf32>
    %727 = vector.extract_strided_slice %718 {offsets = [0, 4], sizes = [2, 4], strides = [1, 1]} : vector<2x12xf32> to vector<2x4xf32>
    %728 = vector.extract_strided_slice %716 {offsets = [0, 4], sizes = [2, 4], strides = [1, 1]} : vector<2x12xf32> to vector<2x4xf32>
    %729 = arith.addf %727, %728 : vector<2x4xf32>
    %730 = arith.negf %729 : vector<2x4xf32>
    %731 = math.exp %730 : vector<2x4xf32>
    %cst_165 = arith.constant 1.000000e+00 : f32
    %732 = vector.broadcast %cst_165 : f32 to vector<2x4xf32>
    %733 = arith.addf %732, %731 : vector<2x4xf32>
    %734 = arith.divf %732, %733 : vector<2x4xf32>
    %735 = vector.extract_strided_slice %718 {offsets = [0, 8], sizes = [2, 4], strides = [1, 1]} : vector<2x12xf32> to vector<2x4xf32>
    %736 = vector.extract_strided_slice %716 {offsets = [0, 8], sizes = [2, 4], strides = [1, 1]} : vector<2x12xf32> to vector<2x4xf32>
    %737 = arith.mulf %726, %736 : vector<2x4xf32>
    %738 = arith.addf %735, %737 : vector<2x4xf32>
    %739 = math.tanh %738 : vector<2x4xf32>
    %cst_166 = arith.constant 1.000000e+00 : f32
    %740 = vector.broadcast %cst_166 : f32 to vector<2x4xf32>
    %741 = arith.subf %740, %734 : vector<2x4xf32>
    %742 = arith.mulf %741, %739 : vector<2x4xf32>
    %743 = arith.mulf %734, %598 : vector<2x4xf32>
    %744 = arith.addf %742, %743 : vector<2x4xf32>
    %745 = vector.broadcast %713 : vector<2x1xf32> to vector<2x4xf32>
    %746 = arith.mulf %745, %744 : vector<2x4xf32>
    %cst_167 = arith.constant 1.000000e+00 : f32
    %747 = vector.broadcast %cst_167 : f32 to vector<2x1xf32>
    %748 = arith.subf %747, %713 : vector<2x1xf32>
    %749 = vector.broadcast %748 : vector<2x1xf32> to vector<2x4xf32>
    %750 = arith.mulf %749, %598 : vector<2x4xf32>
    %751 = arith.addf %746, %750 : vector<2x4xf32>
    %cst_168 = arith.constant dense<0.000000e+00> : vector<2x24xf32>
    %752 = tpu.matmul %636, %232, %cst_168 {dimension_numbers = #tpu.dot_dimension_numbers<[1], [0], [0], [1], [0, 0, 1, 1], [], []>} : vector<2x8xf32>, vector<8x24xf32>, vector<2x24xf32> -> vector<2x24xf32>
    %753 = vector.broadcast %233 : vector<1x24xf32> to vector<2x24xf32>
    %754 = arith.addf %752, %753 : vector<2x24xf32>
    %755 = vector.extract_strided_slice %231 {offsets = [0, 3, 0], sizes = [2, 1, 24], strides = [1, 1, 1]} : vector<2x8x24xf32> to vector<2x1x24xf32>
    %756 = vector.shape_cast %755 : vector<2x1x24xf32> to vector<2x24xf32>
    %757 = vector.extract_strided_slice %756 {offsets = [0, 0], sizes = [2, 8], strides = [1, 1]} : vector<2x24xf32> to vector<2x8xf32>
    %758 = vector.extract_strided_slice %754 {offsets = [0, 0], sizes = [2, 8], strides = [1, 1]} : vector<2x24xf32> to vector<2x8xf32>
    %759 = arith.addf %757, %758 : vector<2x8xf32>
    %760 = arith.negf %759 : vector<2x8xf32>
    %761 = math.exp %760 : vector<2x8xf32>
    %cst_169 = arith.constant 1.000000e+00 : f32
    %762 = vector.broadcast %cst_169 : f32 to vector<2x8xf32>
    %763 = arith.addf %762, %761 : vector<2x8xf32>
    %764 = arith.divf %762, %763 : vector<2x8xf32>
    %765 = vector.extract_strided_slice %756 {offsets = [0, 8], sizes = [2, 8], strides = [1, 1]} : vector<2x24xf32> to vector<2x8xf32>
    %766 = vector.extract_strided_slice %754 {offsets = [0, 8], sizes = [2, 8], strides = [1, 1]} : vector<2x24xf32> to vector<2x8xf32>
    %767 = arith.addf %765, %766 : vector<2x8xf32>
    %768 = arith.negf %767 : vector<2x8xf32>
    %769 = math.exp %768 : vector<2x8xf32>
    %cst_170 = arith.constant 1.000000e+00 : f32
    %770 = vector.broadcast %cst_170 : f32 to vector<2x8xf32>
    %771 = arith.addf %770, %769 : vector<2x8xf32>
    %772 = arith.divf %770, %771 : vector<2x8xf32>
    %773 = vector.extract_strided_slice %756 {offsets = [0, 16], sizes = [2, 8], strides = [1, 1]} : vector<2x24xf32> to vector<2x8xf32>
    %774 = vector.extract_strided_slice %754 {offsets = [0, 16], sizes = [2, 8], strides = [1, 1]} : vector<2x24xf32> to vector<2x8xf32>
    %775 = arith.mulf %764, %774 : vector<2x8xf32>
    %776 = arith.addf %773, %775 : vector<2x8xf32>
    %777 = math.tanh %776 : vector<2x8xf32>
    %cst_171 = arith.constant 1.000000e+00 : f32
    %778 = vector.broadcast %cst_171 : f32 to vector<2x8xf32>
    %779 = arith.subf %778, %772 : vector<2x8xf32>
    %780 = arith.mulf %779, %777 : vector<2x8xf32>
    %781 = arith.mulf %772, %636 : vector<2x8xf32>
    %782 = arith.addf %780, %781 : vector<2x8xf32>
    %783 = vector.broadcast %713 : vector<2x1xf32> to vector<2x8xf32>
    %784 = arith.mulf %783, %782 : vector<2x8xf32>
    %cst_172 = arith.constant 1.000000e+00 : f32
    %785 = vector.broadcast %cst_172 : f32 to vector<2x1xf32>
    %786 = arith.subf %785, %713 : vector<2x1xf32>
    %787 = vector.broadcast %786 : vector<2x1xf32> to vector<2x8xf32>
    %788 = arith.mulf %787, %636 : vector<2x8xf32>
    %789 = arith.addf %784, %788 : vector<2x8xf32>
    %cst_173 = arith.constant dense<0.000000e+00> : vector<2x48xf32>
    %790 = tpu.matmul %674, %240, %cst_173 {dimension_numbers = #tpu.dot_dimension_numbers<[1], [0], [0], [1], [0, 0, 1, 1], [], []>} : vector<2x16xf32>, vector<16x48xf32>, vector<2x48xf32> -> vector<2x48xf32>
    %791 = vector.broadcast %241 : vector<1x48xf32> to vector<2x48xf32>
    %792 = arith.addf %790, %791 : vector<2x48xf32>
    %793 = vector.extract_strided_slice %239 {offsets = [0, 3, 0], sizes = [2, 1, 48], strides = [1, 1, 1]} : vector<2x8x48xf32> to vector<2x1x48xf32>
    %794 = vector.shape_cast %793 : vector<2x1x48xf32> to vector<2x48xf32>
    %795 = vector.extract_strided_slice %794 {offsets = [0, 0], sizes = [2, 16], strides = [1, 1]} : vector<2x48xf32> to vector<2x16xf32>
    %796 = vector.extract_strided_slice %792 {offsets = [0, 0], sizes = [2, 16], strides = [1, 1]} : vector<2x48xf32> to vector<2x16xf32>
    %797 = arith.addf %795, %796 : vector<2x16xf32>
    %798 = arith.negf %797 : vector<2x16xf32>
    %799 = math.exp %798 : vector<2x16xf32>
    %cst_174 = arith.constant 1.000000e+00 : f32
    %800 = vector.broadcast %cst_174 : f32 to vector<2x16xf32>
    %801 = arith.addf %800, %799 : vector<2x16xf32>
    %802 = arith.divf %800, %801 : vector<2x16xf32>
    %803 = vector.extract_strided_slice %794 {offsets = [0, 16], sizes = [2, 16], strides = [1, 1]} : vector<2x48xf32> to vector<2x16xf32>
    %804 = vector.extract_strided_slice %792 {offsets = [0, 16], sizes = [2, 16], strides = [1, 1]} : vector<2x48xf32> to vector<2x16xf32>
    %805 = arith.addf %803, %804 : vector<2x16xf32>
    %806 = arith.negf %805 : vector<2x16xf32>
    %807 = math.exp %806 : vector<2x16xf32>
    %cst_175 = arith.constant 1.000000e+00 : f32
    %808 = vector.broadcast %cst_175 : f32 to vector<2x16xf32>
    %809 = arith.addf %808, %807 : vector<2x16xf32>
    %810 = arith.divf %808, %809 : vector<2x16xf32>
    %811 = vector.extract_strided_slice %794 {offsets = [0, 32], sizes = [2, 16], strides = [1, 1]} : vector<2x48xf32> to vector<2x16xf32>
    %812 = vector.extract_strided_slice %792 {offsets = [0, 32], sizes = [2, 16], strides = [1, 1]} : vector<2x48xf32> to vector<2x16xf32>
    %813 = arith.mulf %802, %812 : vector<2x16xf32>
    %814 = arith.addf %811, %813 : vector<2x16xf32>
    %815 = math.tanh %814 : vector<2x16xf32>
    %cst_176 = arith.constant 1.000000e+00 : f32
    %816 = vector.broadcast %cst_176 : f32 to vector<2x16xf32>
    %817 = arith.subf %816, %810 : vector<2x16xf32>
    %818 = arith.mulf %817, %815 : vector<2x16xf32>
    %819 = arith.mulf %810, %674 : vector<2x16xf32>
    %820 = arith.addf %818, %819 : vector<2x16xf32>
    %821 = vector.broadcast %713 : vector<2x1xf32> to vector<2x16xf32>
    %822 = arith.mulf %821, %820 : vector<2x16xf32>
    %cst_177 = arith.constant 1.000000e+00 : f32
    %823 = vector.broadcast %cst_177 : f32 to vector<2x1xf32>
    %824 = arith.subf %823, %713 : vector<2x1xf32>
    %825 = vector.broadcast %824 : vector<2x1xf32> to vector<2x16xf32>
    %826 = arith.mulf %825, %674 : vector<2x16xf32>
    %827 = arith.addf %822, %826 : vector<2x16xf32>
    %cst_178 = arith.constant dense<0.000000e+00> : vector<2x96xf32>
    %828 = tpu.matmul %712, %248, %cst_178 {dimension_numbers = #tpu.dot_dimension_numbers<[1], [0], [0], [1], [0, 0, 1, 1], [], []>} : vector<2x32xf32>, vector<32x96xf32>, vector<2x96xf32> -> vector<2x96xf32>
    %829 = vector.broadcast %249 : vector<1x96xf32> to vector<2x96xf32>
    %830 = arith.addf %828, %829 : vector<2x96xf32>
    %831 = vector.extract_strided_slice %247 {offsets = [0, 3, 0], sizes = [2, 1, 96], strides = [1, 1, 1]} : vector<2x8x96xf32> to vector<2x1x96xf32>
    %832 = vector.shape_cast %831 : vector<2x1x96xf32> to vector<2x96xf32>
    %833 = vector.extract_strided_slice %832 {offsets = [0, 0], sizes = [2, 32], strides = [1, 1]} : vector<2x96xf32> to vector<2x32xf32>
    %834 = vector.extract_strided_slice %830 {offsets = [0, 0], sizes = [2, 32], strides = [1, 1]} : vector<2x96xf32> to vector<2x32xf32>
    %835 = arith.addf %833, %834 : vector<2x32xf32>
    %836 = arith.negf %835 : vector<2x32xf32>
    %837 = math.exp %836 : vector<2x32xf32>
    %cst_179 = arith.constant 1.000000e+00 : f32
    %838 = vector.broadcast %cst_179 : f32 to vector<2x32xf32>
    %839 = arith.addf %838, %837 : vector<2x32xf32>
    %840 = arith.divf %838, %839 : vector<2x32xf32>
    %841 = vector.extract_strided_slice %832 {offsets = [0, 32], sizes = [2, 32], strides = [1, 1]} : vector<2x96xf32> to vector<2x32xf32>
    %842 = vector.extract_strided_slice %830 {offsets = [0, 32], sizes = [2, 32], strides = [1, 1]} : vector<2x96xf32> to vector<2x32xf32>
    %843 = arith.addf %841, %842 : vector<2x32xf32>
    %844 = arith.negf %843 : vector<2x32xf32>
    %845 = math.exp %844 : vector<2x32xf32>
    %cst_180 = arith.constant 1.000000e+00 : f32
    %846 = vector.broadcast %cst_180 : f32 to vector<2x32xf32>
    %847 = arith.addf %846, %845 : vector<2x32xf32>
    %848 = arith.divf %846, %847 : vector<2x32xf32>
    %849 = vector.extract_strided_slice %832 {offsets = [0, 64], sizes = [2, 32], strides = [1, 1]} : vector<2x96xf32> to vector<2x32xf32>
    %850 = vector.extract_strided_slice %830 {offsets = [0, 64], sizes = [2, 32], strides = [1, 1]} : vector<2x96xf32> to vector<2x32xf32>
    %851 = arith.mulf %840, %850 : vector<2x32xf32>
    %852 = arith.addf %849, %851 : vector<2x32xf32>
    %853 = math.tanh %852 : vector<2x32xf32>
    %cst_181 = arith.constant 1.000000e+00 : f32
    %854 = vector.broadcast %cst_181 : f32 to vector<2x32xf32>
    %855 = arith.subf %854, %848 : vector<2x32xf32>
    %856 = arith.mulf %855, %853 : vector<2x32xf32>
    %857 = arith.mulf %848, %712 : vector<2x32xf32>
    %858 = arith.addf %856, %857 : vector<2x32xf32>
    %859 = vector.broadcast %713 : vector<2x1xf32> to vector<2x32xf32>
    %860 = arith.mulf %859, %858 : vector<2x32xf32>
    %cst_182 = arith.constant 1.000000e+00 : f32
    %861 = vector.broadcast %cst_182 : f32 to vector<2x1xf32>
    %862 = arith.subf %861, %713 : vector<2x1xf32>
    %863 = vector.broadcast %862 : vector<2x1xf32> to vector<2x32xf32>
    %864 = arith.mulf %863, %712 : vector<2x32xf32>
    %865 = arith.addf %860, %864 : vector<2x32xf32>
    %866 = vector.extract_strided_slice %1 {offsets = [0, 4], sizes = [2, 1], strides = [1, 1]} : vector<2x8xf32> to vector<2x1xf32>
    %cst_183 = arith.constant dense<0.000000e+00> : vector<2x12xf32>
    %867 = tpu.matmul %751, %224, %cst_183 {dimension_numbers = #tpu.dot_dimension_numbers<[1], [0], [0], [1], [0, 0, 1, 1], [], []>} : vector<2x4xf32>, vector<4x12xf32>, vector<2x12xf32> -> vector<2x12xf32>
    %868 = vector.broadcast %225 : vector<1x12xf32> to vector<2x12xf32>
    %869 = arith.addf %867, %868 : vector<2x12xf32>
    %870 = vector.extract_strided_slice %223 {offsets = [0, 4, 0], sizes = [2, 1, 12], strides = [1, 1, 1]} : vector<2x8x12xf32> to vector<2x1x12xf32>
    %871 = vector.shape_cast %870 : vector<2x1x12xf32> to vector<2x12xf32>
    %872 = vector.extract_strided_slice %871 {offsets = [0, 0], sizes = [2, 4], strides = [1, 1]} : vector<2x12xf32> to vector<2x4xf32>
    %873 = vector.extract_strided_slice %869 {offsets = [0, 0], sizes = [2, 4], strides = [1, 1]} : vector<2x12xf32> to vector<2x4xf32>
    %874 = arith.addf %872, %873 : vector<2x4xf32>
    %875 = arith.negf %874 : vector<2x4xf32>
    %876 = math.exp %875 : vector<2x4xf32>
    %cst_184 = arith.constant 1.000000e+00 : f32
    %877 = vector.broadcast %cst_184 : f32 to vector<2x4xf32>
    %878 = arith.addf %877, %876 : vector<2x4xf32>
    %879 = arith.divf %877, %878 : vector<2x4xf32>
    %880 = vector.extract_strided_slice %871 {offsets = [0, 4], sizes = [2, 4], strides = [1, 1]} : vector<2x12xf32> to vector<2x4xf32>
    %881 = vector.extract_strided_slice %869 {offsets = [0, 4], sizes = [2, 4], strides = [1, 1]} : vector<2x12xf32> to vector<2x4xf32>
    %882 = arith.addf %880, %881 : vector<2x4xf32>
    %883 = arith.negf %882 : vector<2x4xf32>
    %884 = math.exp %883 : vector<2x4xf32>
    %cst_185 = arith.constant 1.000000e+00 : f32
    %885 = vector.broadcast %cst_185 : f32 to vector<2x4xf32>
    %886 = arith.addf %885, %884 : vector<2x4xf32>
    %887 = arith.divf %885, %886 : vector<2x4xf32>
    %888 = vector.extract_strided_slice %871 {offsets = [0, 8], sizes = [2, 4], strides = [1, 1]} : vector<2x12xf32> to vector<2x4xf32>
    %889 = vector.extract_strided_slice %869 {offsets = [0, 8], sizes = [2, 4], strides = [1, 1]} : vector<2x12xf32> to vector<2x4xf32>
    %890 = arith.mulf %879, %889 : vector<2x4xf32>
    %891 = arith.addf %888, %890 : vector<2x4xf32>
    %892 = math.tanh %891 : vector<2x4xf32>
    %cst_186 = arith.constant 1.000000e+00 : f32
    %893 = vector.broadcast %cst_186 : f32 to vector<2x4xf32>
    %894 = arith.subf %893, %887 : vector<2x4xf32>
    %895 = arith.mulf %894, %892 : vector<2x4xf32>
    %896 = arith.mulf %887, %751 : vector<2x4xf32>
    %897 = arith.addf %895, %896 : vector<2x4xf32>
    %898 = vector.broadcast %866 : vector<2x1xf32> to vector<2x4xf32>
    %899 = arith.mulf %898, %897 : vector<2x4xf32>
    %cst_187 = arith.constant 1.000000e+00 : f32
    %900 = vector.broadcast %cst_187 : f32 to vector<2x1xf32>
    %901 = arith.subf %900, %866 : vector<2x1xf32>
    %902 = vector.broadcast %901 : vector<2x1xf32> to vector<2x4xf32>
    %903 = arith.mulf %902, %751 : vector<2x4xf32>
    %904 = arith.addf %899, %903 : vector<2x4xf32>
    %cst_188 = arith.constant dense<0.000000e+00> : vector<2x24xf32>
    %905 = tpu.matmul %789, %232, %cst_188 {dimension_numbers = #tpu.dot_dimension_numbers<[1], [0], [0], [1], [0, 0, 1, 1], [], []>} : vector<2x8xf32>, vector<8x24xf32>, vector<2x24xf32> -> vector<2x24xf32>
    %906 = vector.broadcast %233 : vector<1x24xf32> to vector<2x24xf32>
    %907 = arith.addf %905, %906 : vector<2x24xf32>
    %908 = vector.extract_strided_slice %231 {offsets = [0, 4, 0], sizes = [2, 1, 24], strides = [1, 1, 1]} : vector<2x8x24xf32> to vector<2x1x24xf32>
    %909 = vector.shape_cast %908 : vector<2x1x24xf32> to vector<2x24xf32>
    %910 = vector.extract_strided_slice %909 {offsets = [0, 0], sizes = [2, 8], strides = [1, 1]} : vector<2x24xf32> to vector<2x8xf32>
    %911 = vector.extract_strided_slice %907 {offsets = [0, 0], sizes = [2, 8], strides = [1, 1]} : vector<2x24xf32> to vector<2x8xf32>
    %912 = arith.addf %910, %911 : vector<2x8xf32>
    %913 = arith.negf %912 : vector<2x8xf32>
    %914 = math.exp %913 : vector<2x8xf32>
    %cst_189 = arith.constant 1.000000e+00 : f32
    %915 = vector.broadcast %cst_189 : f32 to vector<2x8xf32>
    %916 = arith.addf %915, %914 : vector<2x8xf32>
    %917 = arith.divf %915, %916 : vector<2x8xf32>
    %918 = vector.extract_strided_slice %909 {offsets = [0, 8], sizes = [2, 8], strides = [1, 1]} : vector<2x24xf32> to vector<2x8xf32>
    %919 = vector.extract_strided_slice %907 {offsets = [0, 8], sizes = [2, 8], strides = [1, 1]} : vector<2x24xf32> to vector<2x8xf32>
    %920 = arith.addf %918, %919 : vector<2x8xf32>
    %921 = arith.negf %920 : vector<2x8xf32>
    %922 = math.exp %921 : vector<2x8xf32>
    %cst_190 = arith.constant 1.000000e+00 : f32
    %923 = vector.broadcast %cst_190 : f32 to vector<2x8xf32>
    %924 = arith.addf %923, %922 : vector<2x8xf32>
    %925 = arith.divf %923, %924 : vector<2x8xf32>
    %926 = vector.extract_strided_slice %909 {offsets = [0, 16], sizes = [2, 8], strides = [1, 1]} : vector<2x24xf32> to vector<2x8xf32>
    %927 = vector.extract_strided_slice %907 {offsets = [0, 16], sizes = [2, 8], strides = [1, 1]} : vector<2x24xf32> to vector<2x8xf32>
    %928 = arith.mulf %917, %927 : vector<2x8xf32>
    %929 = arith.addf %926, %928 : vector<2x8xf32>
    %930 = math.tanh %929 : vector<2x8xf32>
    %cst_191 = arith.constant 1.000000e+00 : f32
    %931 = vector.broadcast %cst_191 : f32 to vector<2x8xf32>
    %932 = arith.subf %931, %925 : vector<2x8xf32>
    %933 = arith.mulf %932, %930 : vector<2x8xf32>
    %934 = arith.mulf %925, %789 : vector<2x8xf32>
    %935 = arith.addf %933, %934 : vector<2x8xf32>
    %936 = vector.broadcast %866 : vector<2x1xf32> to vector<2x8xf32>
    %937 = arith.mulf %936, %935 : vector<2x8xf32>
    %cst_192 = arith.constant 1.000000e+00 : f32
    %938 = vector.broadcast %cst_192 : f32 to vector<2x1xf32>
    %939 = arith.subf %938, %866 : vector<2x1xf32>
    %940 = vector.broadcast %939 : vector<2x1xf32> to vector<2x8xf32>
    %941 = arith.mulf %940, %789 : vector<2x8xf32>
    %942 = arith.addf %937, %941 : vector<2x8xf32>
    %cst_193 = arith.constant dense<0.000000e+00> : vector<2x48xf32>
    %943 = tpu.matmul %827, %240, %cst_193 {dimension_numbers = #tpu.dot_dimension_numbers<[1], [0], [0], [1], [0, 0, 1, 1], [], []>} : vector<2x16xf32>, vector<16x48xf32>, vector<2x48xf32> -> vector<2x48xf32>
    %944 = vector.broadcast %241 : vector<1x48xf32> to vector<2x48xf32>
    %945 = arith.addf %943, %944 : vector<2x48xf32>
    %946 = vector.extract_strided_slice %239 {offsets = [0, 4, 0], sizes = [2, 1, 48], strides = [1, 1, 1]} : vector<2x8x48xf32> to vector<2x1x48xf32>
    %947 = vector.shape_cast %946 : vector<2x1x48xf32> to vector<2x48xf32>
    %948 = vector.extract_strided_slice %947 {offsets = [0, 0], sizes = [2, 16], strides = [1, 1]} : vector<2x48xf32> to vector<2x16xf32>
    %949 = vector.extract_strided_slice %945 {offsets = [0, 0], sizes = [2, 16], strides = [1, 1]} : vector<2x48xf32> to vector<2x16xf32>
    %950 = arith.addf %948, %949 : vector<2x16xf32>
    %951 = arith.negf %950 : vector<2x16xf32>
    %952 = math.exp %951 : vector<2x16xf32>
    %cst_194 = arith.constant 1.000000e+00 : f32
    %953 = vector.broadcast %cst_194 : f32 to vector<2x16xf32>
    %954 = arith.addf %953, %952 : vector<2x16xf32>
    %955 = arith.divf %953, %954 : vector<2x16xf32>
    %956 = vector.extract_strided_slice %947 {offsets = [0, 16], sizes = [2, 16], strides = [1, 1]} : vector<2x48xf32> to vector<2x16xf32>
    %957 = vector.extract_strided_slice %945 {offsets = [0, 16], sizes = [2, 16], strides = [1, 1]} : vector<2x48xf32> to vector<2x16xf32>
    %958 = arith.addf %956, %957 : vector<2x16xf32>
    %959 = arith.negf %958 : vector<2x16xf32>
    %960 = math.exp %959 : vector<2x16xf32>
    %cst_195 = arith.constant 1.000000e+00 : f32
    %961 = vector.broadcast %cst_195 : f32 to vector<2x16xf32>
    %962 = arith.addf %961, %960 : vector<2x16xf32>
    %963 = arith.divf %961, %962 : vector<2x16xf32>
    %964 = vector.extract_strided_slice %947 {offsets = [0, 32], sizes = [2, 16], strides = [1, 1]} : vector<2x48xf32> to vector<2x16xf32>
    %965 = vector.extract_strided_slice %945 {offsets = [0, 32], sizes = [2, 16], strides = [1, 1]} : vector<2x48xf32> to vector<2x16xf32>
    %966 = arith.mulf %955, %965 : vector<2x16xf32>
    %967 = arith.addf %964, %966 : vector<2x16xf32>
    %968 = math.tanh %967 : vector<2x16xf32>
    %cst_196 = arith.constant 1.000000e+00 : f32
    %969 = vector.broadcast %cst_196 : f32 to vector<2x16xf32>
    %970 = arith.subf %969, %963 : vector<2x16xf32>
    %971 = arith.mulf %970, %968 : vector<2x16xf32>
    %972 = arith.mulf %963, %827 : vector<2x16xf32>
    %973 = arith.addf %971, %972 : vector<2x16xf32>
    %974 = vector.broadcast %866 : vector<2x1xf32> to vector<2x16xf32>
    %975 = arith.mulf %974, %973 : vector<2x16xf32>
    %cst_197 = arith.constant 1.000000e+00 : f32
    %976 = vector.broadcast %cst_197 : f32 to vector<2x1xf32>
    %977 = arith.subf %976, %866 : vector<2x1xf32>
    %978 = vector.broadcast %977 : vector<2x1xf32> to vector<2x16xf32>
    %979 = arith.mulf %978, %827 : vector<2x16xf32>
    %980 = arith.addf %975, %979 : vector<2x16xf32>
    %cst_198 = arith.constant dense<0.000000e+00> : vector<2x96xf32>
    %981 = tpu.matmul %865, %248, %cst_198 {dimension_numbers = #tpu.dot_dimension_numbers<[1], [0], [0], [1], [0, 0, 1, 1], [], []>} : vector<2x32xf32>, vector<32x96xf32>, vector<2x96xf32> -> vector<2x96xf32>
    %982 = vector.broadcast %249 : vector<1x96xf32> to vector<2x96xf32>
    %983 = arith.addf %981, %982 : vector<2x96xf32>
    %984 = vector.extract_strided_slice %247 {offsets = [0, 4, 0], sizes = [2, 1, 96], strides = [1, 1, 1]} : vector<2x8x96xf32> to vector<2x1x96xf32>
    %985 = vector.shape_cast %984 : vector<2x1x96xf32> to vector<2x96xf32>
    %986 = vector.extract_strided_slice %985 {offsets = [0, 0], sizes = [2, 32], strides = [1, 1]} : vector<2x96xf32> to vector<2x32xf32>
    %987 = vector.extract_strided_slice %983 {offsets = [0, 0], sizes = [2, 32], strides = [1, 1]} : vector<2x96xf32> to vector<2x32xf32>
    %988 = arith.addf %986, %987 : vector<2x32xf32>
    %989 = arith.negf %988 : vector<2x32xf32>
    %990 = math.exp %989 : vector<2x32xf32>
    %cst_199 = arith.constant 1.000000e+00 : f32
    %991 = vector.broadcast %cst_199 : f32 to vector<2x32xf32>
    %992 = arith.addf %991, %990 : vector<2x32xf32>
    %993 = arith.divf %991, %992 : vector<2x32xf32>
    %994 = vector.extract_strided_slice %985 {offsets = [0, 32], sizes = [2, 32], strides = [1, 1]} : vector<2x96xf32> to vector<2x32xf32>
    %995 = vector.extract_strided_slice %983 {offsets = [0, 32], sizes = [2, 32], strides = [1, 1]} : vector<2x96xf32> to vector<2x32xf32>
    %996 = arith.addf %994, %995 : vector<2x32xf32>
    %997 = arith.negf %996 : vector<2x32xf32>
    %998 = math.exp %997 : vector<2x32xf32>
    %cst_200 = arith.constant 1.000000e+00 : f32
    %999 = vector.broadcast %cst_200 : f32 to vector<2x32xf32>
    %1000 = arith.addf %999, %998 : vector<2x32xf32>
    %1001 = arith.divf %999, %1000 : vector<2x32xf32>
    %1002 = vector.extract_strided_slice %985 {offsets = [0, 64], sizes = [2, 32], strides = [1, 1]} : vector<2x96xf32> to vector<2x32xf32>
    %1003 = vector.extract_strided_slice %983 {offsets = [0, 64], sizes = [2, 32], strides = [1, 1]} : vector<2x96xf32> to vector<2x32xf32>
    %1004 = arith.mulf %993, %1003 : vector<2x32xf32>
    %1005 = arith.addf %1002, %1004 : vector<2x32xf32>
    %1006 = math.tanh %1005 : vector<2x32xf32>
    %cst_201 = arith.constant 1.000000e+00 : f32
    %1007 = vector.broadcast %cst_201 : f32 to vector<2x32xf32>
    %1008 = arith.subf %1007, %1001 : vector<2x32xf32>
    %1009 = arith.mulf %1008, %1006 : vector<2x32xf32>
    %1010 = arith.mulf %1001, %865 : vector<2x32xf32>
    %1011 = arith.addf %1009, %1010 : vector<2x32xf32>
    %1012 = vector.broadcast %866 : vector<2x1xf32> to vector<2x32xf32>
    %1013 = arith.mulf %1012, %1011 : vector<2x32xf32>
    %cst_202 = arith.constant 1.000000e+00 : f32
    %1014 = vector.broadcast %cst_202 : f32 to vector<2x1xf32>
    %1015 = arith.subf %1014, %866 : vector<2x1xf32>
    %1016 = vector.broadcast %1015 : vector<2x1xf32> to vector<2x32xf32>
    %1017 = arith.mulf %1016, %865 : vector<2x32xf32>
    %1018 = arith.addf %1013, %1017 : vector<2x32xf32>
    %1019 = vector.extract_strided_slice %1 {offsets = [0, 5], sizes = [2, 1], strides = [1, 1]} : vector<2x8xf32> to vector<2x1xf32>
    %cst_203 = arith.constant dense<0.000000e+00> : vector<2x12xf32>
    %1020 = tpu.matmul %904, %224, %cst_203 {dimension_numbers = #tpu.dot_dimension_numbers<[1], [0], [0], [1], [0, 0, 1, 1], [], []>} : vector<2x4xf32>, vector<4x12xf32>, vector<2x12xf32> -> vector<2x12xf32>
    %1021 = vector.broadcast %225 : vector<1x12xf32> to vector<2x12xf32>
    %1022 = arith.addf %1020, %1021 : vector<2x12xf32>
    %1023 = vector.extract_strided_slice %223 {offsets = [0, 5, 0], sizes = [2, 1, 12], strides = [1, 1, 1]} : vector<2x8x12xf32> to vector<2x1x12xf32>
    %1024 = vector.shape_cast %1023 : vector<2x1x12xf32> to vector<2x12xf32>
    %1025 = vector.extract_strided_slice %1024 {offsets = [0, 0], sizes = [2, 4], strides = [1, 1]} : vector<2x12xf32> to vector<2x4xf32>
    %1026 = vector.extract_strided_slice %1022 {offsets = [0, 0], sizes = [2, 4], strides = [1, 1]} : vector<2x12xf32> to vector<2x4xf32>
    %1027 = arith.addf %1025, %1026 : vector<2x4xf32>
    %1028 = arith.negf %1027 : vector<2x4xf32>
    %1029 = math.exp %1028 : vector<2x4xf32>
    %cst_204 = arith.constant 1.000000e+00 : f32
    %1030 = vector.broadcast %cst_204 : f32 to vector<2x4xf32>
    %1031 = arith.addf %1030, %1029 : vector<2x4xf32>
    %1032 = arith.divf %1030, %1031 : vector<2x4xf32>
    %1033 = vector.extract_strided_slice %1024 {offsets = [0, 4], sizes = [2, 4], strides = [1, 1]} : vector<2x12xf32> to vector<2x4xf32>
    %1034 = vector.extract_strided_slice %1022 {offsets = [0, 4], sizes = [2, 4], strides = [1, 1]} : vector<2x12xf32> to vector<2x4xf32>
    %1035 = arith.addf %1033, %1034 : vector<2x4xf32>
    %1036 = arith.negf %1035 : vector<2x4xf32>
    %1037 = math.exp %1036 : vector<2x4xf32>
    %cst_205 = arith.constant 1.000000e+00 : f32
    %1038 = vector.broadcast %cst_205 : f32 to vector<2x4xf32>
    %1039 = arith.addf %1038, %1037 : vector<2x4xf32>
    %1040 = arith.divf %1038, %1039 : vector<2x4xf32>
    %1041 = vector.extract_strided_slice %1024 {offsets = [0, 8], sizes = [2, 4], strides = [1, 1]} : vector<2x12xf32> to vector<2x4xf32>
    %1042 = vector.extract_strided_slice %1022 {offsets = [0, 8], sizes = [2, 4], strides = [1, 1]} : vector<2x12xf32> to vector<2x4xf32>
    %1043 = arith.mulf %1032, %1042 : vector<2x4xf32>
    %1044 = arith.addf %1041, %1043 : vector<2x4xf32>
    %1045 = math.tanh %1044 : vector<2x4xf32>
    %cst_206 = arith.constant 1.000000e+00 : f32
    %1046 = vector.broadcast %cst_206 : f32 to vector<2x4xf32>
    %1047 = arith.subf %1046, %1040 : vector<2x4xf32>
    %1048 = arith.mulf %1047, %1045 : vector<2x4xf32>
    %1049 = arith.mulf %1040, %904 : vector<2x4xf32>
    %1050 = arith.addf %1048, %1049 : vector<2x4xf32>
    %1051 = vector.broadcast %1019 : vector<2x1xf32> to vector<2x4xf32>
    %1052 = arith.mulf %1051, %1050 : vector<2x4xf32>
    %cst_207 = arith.constant 1.000000e+00 : f32
    %1053 = vector.broadcast %cst_207 : f32 to vector<2x1xf32>
    %1054 = arith.subf %1053, %1019 : vector<2x1xf32>
    %1055 = vector.broadcast %1054 : vector<2x1xf32> to vector<2x4xf32>
    %1056 = arith.mulf %1055, %904 : vector<2x4xf32>
    %1057 = arith.addf %1052, %1056 : vector<2x4xf32>
    %cst_208 = arith.constant dense<0.000000e+00> : vector<2x24xf32>
    %1058 = tpu.matmul %942, %232, %cst_208 {dimension_numbers = #tpu.dot_dimension_numbers<[1], [0], [0], [1], [0, 0, 1, 1], [], []>} : vector<2x8xf32>, vector<8x24xf32>, vector<2x24xf32> -> vector<2x24xf32>
    %1059 = vector.broadcast %233 : vector<1x24xf32> to vector<2x24xf32>
    %1060 = arith.addf %1058, %1059 : vector<2x24xf32>
    %1061 = vector.extract_strided_slice %231 {offsets = [0, 5, 0], sizes = [2, 1, 24], strides = [1, 1, 1]} : vector<2x8x24xf32> to vector<2x1x24xf32>
    %1062 = vector.shape_cast %1061 : vector<2x1x24xf32> to vector<2x24xf32>
    %1063 = vector.extract_strided_slice %1062 {offsets = [0, 0], sizes = [2, 8], strides = [1, 1]} : vector<2x24xf32> to vector<2x8xf32>
    %1064 = vector.extract_strided_slice %1060 {offsets = [0, 0], sizes = [2, 8], strides = [1, 1]} : vector<2x24xf32> to vector<2x8xf32>
    %1065 = arith.addf %1063, %1064 : vector<2x8xf32>
    %1066 = arith.negf %1065 : vector<2x8xf32>
    %1067 = math.exp %1066 : vector<2x8xf32>
    %cst_209 = arith.constant 1.000000e+00 : f32
    %1068 = vector.broadcast %cst_209 : f32 to vector<2x8xf32>
    %1069 = arith.addf %1068, %1067 : vector<2x8xf32>
    %1070 = arith.divf %1068, %1069 : vector<2x8xf32>
    %1071 = vector.extract_strided_slice %1062 {offsets = [0, 8], sizes = [2, 8], strides = [1, 1]} : vector<2x24xf32> to vector<2x8xf32>
    %1072 = vector.extract_strided_slice %1060 {offsets = [0, 8], sizes = [2, 8], strides = [1, 1]} : vector<2x24xf32> to vector<2x8xf32>
    %1073 = arith.addf %1071, %1072 : vector<2x8xf32>
    %1074 = arith.negf %1073 : vector<2x8xf32>
    %1075 = math.exp %1074 : vector<2x8xf32>
    %cst_210 = arith.constant 1.000000e+00 : f32
    %1076 = vector.broadcast %cst_210 : f32 to vector<2x8xf32>
    %1077 = arith.addf %1076, %1075 : vector<2x8xf32>
    %1078 = arith.divf %1076, %1077 : vector<2x8xf32>
    %1079 = vector.extract_strided_slice %1062 {offsets = [0, 16], sizes = [2, 8], strides = [1, 1]} : vector<2x24xf32> to vector<2x8xf32>
    %1080 = vector.extract_strided_slice %1060 {offsets = [0, 16], sizes = [2, 8], strides = [1, 1]} : vector<2x24xf32> to vector<2x8xf32>
    %1081 = arith.mulf %1070, %1080 : vector<2x8xf32>
    %1082 = arith.addf %1079, %1081 : vector<2x8xf32>
    %1083 = math.tanh %1082 : vector<2x8xf32>
    %cst_211 = arith.constant 1.000000e+00 : f32
    %1084 = vector.broadcast %cst_211 : f32 to vector<2x8xf32>
    %1085 = arith.subf %1084, %1078 : vector<2x8xf32>
    %1086 = arith.mulf %1085, %1083 : vector<2x8xf32>
    %1087 = arith.mulf %1078, %942 : vector<2x8xf32>
    %1088 = arith.addf %1086, %1087 : vector<2x8xf32>
    %1089 = vector.broadcast %1019 : vector<2x1xf32> to vector<2x8xf32>
    %1090 = arith.mulf %1089, %1088 : vector<2x8xf32>
    %cst_212 = arith.constant 1.000000e+00 : f32
    %1091 = vector.broadcast %cst_212 : f32 to vector<2x1xf32>
    %1092 = arith.subf %1091, %1019 : vector<2x1xf32>
    %1093 = vector.broadcast %1092 : vector<2x1xf32> to vector<2x8xf32>
    %1094 = arith.mulf %1093, %942 : vector<2x8xf32>
    %1095 = arith.addf %1090, %1094 : vector<2x8xf32>
    %cst_213 = arith.constant dense<0.000000e+00> : vector<2x48xf32>
    %1096 = tpu.matmul %980, %240, %cst_213 {dimension_numbers = #tpu.dot_dimension_numbers<[1], [0], [0], [1], [0, 0, 1, 1], [], []>} : vector<2x16xf32>, vector<16x48xf32>, vector<2x48xf32> -> vector<2x48xf32>
    %1097 = vector.broadcast %241 : vector<1x48xf32> to vector<2x48xf32>
    %1098 = arith.addf %1096, %1097 : vector<2x48xf32>
    %1099 = vector.extract_strided_slice %239 {offsets = [0, 5, 0], sizes = [2, 1, 48], strides = [1, 1, 1]} : vector<2x8x48xf32> to vector<2x1x48xf32>
    %1100 = vector.shape_cast %1099 : vector<2x1x48xf32> to vector<2x48xf32>
    %1101 = vector.extract_strided_slice %1100 {offsets = [0, 0], sizes = [2, 16], strides = [1, 1]} : vector<2x48xf32> to vector<2x16xf32>
    %1102 = vector.extract_strided_slice %1098 {offsets = [0, 0], sizes = [2, 16], strides = [1, 1]} : vector<2x48xf32> to vector<2x16xf32>
    %1103 = arith.addf %1101, %1102 : vector<2x16xf32>
    %1104 = arith.negf %1103 : vector<2x16xf32>
    %1105 = math.exp %1104 : vector<2x16xf32>
    %cst_214 = arith.constant 1.000000e+00 : f32
    %1106 = vector.broadcast %cst_214 : f32 to vector<2x16xf32>
    %1107 = arith.addf %1106, %1105 : vector<2x16xf32>
    %1108 = arith.divf %1106, %1107 : vector<2x16xf32>
    %1109 = vector.extract_strided_slice %1100 {offsets = [0, 16], sizes = [2, 16], strides = [1, 1]} : vector<2x48xf32> to vector<2x16xf32>
    %1110 = vector.extract_strided_slice %1098 {offsets = [0, 16], sizes = [2, 16], strides = [1, 1]} : vector<2x48xf32> to vector<2x16xf32>
    %1111 = arith.addf %1109, %1110 : vector<2x16xf32>
    %1112 = arith.negf %1111 : vector<2x16xf32>
    %1113 = math.exp %1112 : vector<2x16xf32>
    %cst_215 = arith.constant 1.000000e+00 : f32
    %1114 = vector.broadcast %cst_215 : f32 to vector<2x16xf32>
    %1115 = arith.addf %1114, %1113 : vector<2x16xf32>
    %1116 = arith.divf %1114, %1115 : vector<2x16xf32>
    %1117 = vector.extract_strided_slice %1100 {offsets = [0, 32], sizes = [2, 16], strides = [1, 1]} : vector<2x48xf32> to vector<2x16xf32>
    %1118 = vector.extract_strided_slice %1098 {offsets = [0, 32], sizes = [2, 16], strides = [1, 1]} : vector<2x48xf32> to vector<2x16xf32>
    %1119 = arith.mulf %1108, %1118 : vector<2x16xf32>
    %1120 = arith.addf %1117, %1119 : vector<2x16xf32>
    %1121 = math.tanh %1120 : vector<2x16xf32>
    %cst_216 = arith.constant 1.000000e+00 : f32
    %1122 = vector.broadcast %cst_216 : f32 to vector<2x16xf32>
    %1123 = arith.subf %1122, %1116 : vector<2x16xf32>
    %1124 = arith.mulf %1123, %1121 : vector<2x16xf32>
    %1125 = arith.mulf %1116, %980 : vector<2x16xf32>
    %1126 = arith.addf %1124, %1125 : vector<2x16xf32>
    %1127 = vector.broadcast %1019 : vector<2x1xf32> to vector<2x16xf32>
    %1128 = arith.mulf %1127, %1126 : vector<2x16xf32>
    %cst_217 = arith.constant 1.000000e+00 : f32
    %1129 = vector.broadcast %cst_217 : f32 to vector<2x1xf32>
    %1130 = arith.subf %1129, %1019 : vector<2x1xf32>
    %1131 = vector.broadcast %1130 : vector<2x1xf32> to vector<2x16xf32>
    %1132 = arith.mulf %1131, %980 : vector<2x16xf32>
    %1133 = arith.addf %1128, %1132 : vector<2x16xf32>
    %cst_218 = arith.constant dense<0.000000e+00> : vector<2x96xf32>
    %1134 = tpu.matmul %1018, %248, %cst_218 {dimension_numbers = #tpu.dot_dimension_numbers<[1], [0], [0], [1], [0, 0, 1, 1], [], []>} : vector<2x32xf32>, vector<32x96xf32>, vector<2x96xf32> -> vector<2x96xf32>
    %1135 = vector.broadcast %249 : vector<1x96xf32> to vector<2x96xf32>
    %1136 = arith.addf %1134, %1135 : vector<2x96xf32>
    %1137 = vector.extract_strided_slice %247 {offsets = [0, 5, 0], sizes = [2, 1, 96], strides = [1, 1, 1]} : vector<2x8x96xf32> to vector<2x1x96xf32>
    %1138 = vector.shape_cast %1137 : vector<2x1x96xf32> to vector<2x96xf32>
    %1139 = vector.extract_strided_slice %1138 {offsets = [0, 0], sizes = [2, 32], strides = [1, 1]} : vector<2x96xf32> to vector<2x32xf32>
    %1140 = vector.extract_strided_slice %1136 {offsets = [0, 0], sizes = [2, 32], strides = [1, 1]} : vector<2x96xf32> to vector<2x32xf32>
    %1141 = arith.addf %1139, %1140 : vector<2x32xf32>
    %1142 = arith.negf %1141 : vector<2x32xf32>
    %1143 = math.exp %1142 : vector<2x32xf32>
    %cst_219 = arith.constant 1.000000e+00 : f32
    %1144 = vector.broadcast %cst_219 : f32 to vector<2x32xf32>
    %1145 = arith.addf %1144, %1143 : vector<2x32xf32>
    %1146 = arith.divf %1144, %1145 : vector<2x32xf32>
    %1147 = vector.extract_strided_slice %1138 {offsets = [0, 32], sizes = [2, 32], strides = [1, 1]} : vector<2x96xf32> to vector<2x32xf32>
    %1148 = vector.extract_strided_slice %1136 {offsets = [0, 32], sizes = [2, 32], strides = [1, 1]} : vector<2x96xf32> to vector<2x32xf32>
    %1149 = arith.addf %1147, %1148 : vector<2x32xf32>
    %1150 = arith.negf %1149 : vector<2x32xf32>
    %1151 = math.exp %1150 : vector<2x32xf32>
    %cst_220 = arith.constant 1.000000e+00 : f32
    %1152 = vector.broadcast %cst_220 : f32 to vector<2x32xf32>
    %1153 = arith.addf %1152, %1151 : vector<2x32xf32>
    %1154 = arith.divf %1152, %1153 : vector<2x32xf32>
    %1155 = vector.extract_strided_slice %1138 {offsets = [0, 64], sizes = [2, 32], strides = [1, 1]} : vector<2x96xf32> to vector<2x32xf32>
    %1156 = vector.extract_strided_slice %1136 {offsets = [0, 64], sizes = [2, 32], strides = [1, 1]} : vector<2x96xf32> to vector<2x32xf32>
    %1157 = arith.mulf %1146, %1156 : vector<2x32xf32>
    %1158 = arith.addf %1155, %1157 : vector<2x32xf32>
    %1159 = math.tanh %1158 : vector<2x32xf32>
    %cst_221 = arith.constant 1.000000e+00 : f32
    %1160 = vector.broadcast %cst_221 : f32 to vector<2x32xf32>
    %1161 = arith.subf %1160, %1154 : vector<2x32xf32>
    %1162 = arith.mulf %1161, %1159 : vector<2x32xf32>
    %1163 = arith.mulf %1154, %1018 : vector<2x32xf32>
    %1164 = arith.addf %1162, %1163 : vector<2x32xf32>
    %1165 = vector.broadcast %1019 : vector<2x1xf32> to vector<2x32xf32>
    %1166 = arith.mulf %1165, %1164 : vector<2x32xf32>
    %cst_222 = arith.constant 1.000000e+00 : f32
    %1167 = vector.broadcast %cst_222 : f32 to vector<2x1xf32>
    %1168 = arith.subf %1167, %1019 : vector<2x1xf32>
    %1169 = vector.broadcast %1168 : vector<2x1xf32> to vector<2x32xf32>
    %1170 = arith.mulf %1169, %1018 : vector<2x32xf32>
    %1171 = arith.addf %1166, %1170 : vector<2x32xf32>
    %1172 = vector.extract_strided_slice %1 {offsets = [0, 6], sizes = [2, 1], strides = [1, 1]} : vector<2x8xf32> to vector<2x1xf32>
    %cst_223 = arith.constant dense<0.000000e+00> : vector<2x12xf32>
    %1173 = tpu.matmul %1057, %224, %cst_223 {dimension_numbers = #tpu.dot_dimension_numbers<[1], [0], [0], [1], [0, 0, 1, 1], [], []>} : vector<2x4xf32>, vector<4x12xf32>, vector<2x12xf32> -> vector<2x12xf32>
    %1174 = vector.broadcast %225 : vector<1x12xf32> to vector<2x12xf32>
    %1175 = arith.addf %1173, %1174 : vector<2x12xf32>
    %1176 = vector.extract_strided_slice %223 {offsets = [0, 6, 0], sizes = [2, 1, 12], strides = [1, 1, 1]} : vector<2x8x12xf32> to vector<2x1x12xf32>
    %1177 = vector.shape_cast %1176 : vector<2x1x12xf32> to vector<2x12xf32>
    %1178 = vector.extract_strided_slice %1177 {offsets = [0, 0], sizes = [2, 4], strides = [1, 1]} : vector<2x12xf32> to vector<2x4xf32>
    %1179 = vector.extract_strided_slice %1175 {offsets = [0, 0], sizes = [2, 4], strides = [1, 1]} : vector<2x12xf32> to vector<2x4xf32>
    %1180 = arith.addf %1178, %1179 : vector<2x4xf32>
    %1181 = arith.negf %1180 : vector<2x4xf32>
    %1182 = math.exp %1181 : vector<2x4xf32>
    %cst_224 = arith.constant 1.000000e+00 : f32
    %1183 = vector.broadcast %cst_224 : f32 to vector<2x4xf32>
    %1184 = arith.addf %1183, %1182 : vector<2x4xf32>
    %1185 = arith.divf %1183, %1184 : vector<2x4xf32>
    %1186 = vector.extract_strided_slice %1177 {offsets = [0, 4], sizes = [2, 4], strides = [1, 1]} : vector<2x12xf32> to vector<2x4xf32>
    %1187 = vector.extract_strided_slice %1175 {offsets = [0, 4], sizes = [2, 4], strides = [1, 1]} : vector<2x12xf32> to vector<2x4xf32>
    %1188 = arith.addf %1186, %1187 : vector<2x4xf32>
    %1189 = arith.negf %1188 : vector<2x4xf32>
    %1190 = math.exp %1189 : vector<2x4xf32>
    %cst_225 = arith.constant 1.000000e+00 : f32
    %1191 = vector.broadcast %cst_225 : f32 to vector<2x4xf32>
    %1192 = arith.addf %1191, %1190 : vector<2x4xf32>
    %1193 = arith.divf %1191, %1192 : vector<2x4xf32>
    %1194 = vector.extract_strided_slice %1177 {offsets = [0, 8], sizes = [2, 4], strides = [1, 1]} : vector<2x12xf32> to vector<2x4xf32>
    %1195 = vector.extract_strided_slice %1175 {offsets = [0, 8], sizes = [2, 4], strides = [1, 1]} : vector<2x12xf32> to vector<2x4xf32>
    %1196 = arith.mulf %1185, %1195 : vector<2x4xf32>
    %1197 = arith.addf %1194, %1196 : vector<2x4xf32>
    %1198 = math.tanh %1197 : vector<2x4xf32>
    %cst_226 = arith.constant 1.000000e+00 : f32
    %1199 = vector.broadcast %cst_226 : f32 to vector<2x4xf32>
    %1200 = arith.subf %1199, %1193 : vector<2x4xf32>
    %1201 = arith.mulf %1200, %1198 : vector<2x4xf32>
    %1202 = arith.mulf %1193, %1057 : vector<2x4xf32>
    %1203 = arith.addf %1201, %1202 : vector<2x4xf32>
    %1204 = vector.broadcast %1172 : vector<2x1xf32> to vector<2x4xf32>
    %1205 = arith.mulf %1204, %1203 : vector<2x4xf32>
    %cst_227 = arith.constant 1.000000e+00 : f32
    %1206 = vector.broadcast %cst_227 : f32 to vector<2x1xf32>
    %1207 = arith.subf %1206, %1172 : vector<2x1xf32>
    %1208 = vector.broadcast %1207 : vector<2x1xf32> to vector<2x4xf32>
    %1209 = arith.mulf %1208, %1057 : vector<2x4xf32>
    %1210 = arith.addf %1205, %1209 : vector<2x4xf32>
    %cst_228 = arith.constant dense<0.000000e+00> : vector<2x24xf32>
    %1211 = tpu.matmul %1095, %232, %cst_228 {dimension_numbers = #tpu.dot_dimension_numbers<[1], [0], [0], [1], [0, 0, 1, 1], [], []>} : vector<2x8xf32>, vector<8x24xf32>, vector<2x24xf32> -> vector<2x24xf32>
    %1212 = vector.broadcast %233 : vector<1x24xf32> to vector<2x24xf32>
    %1213 = arith.addf %1211, %1212 : vector<2x24xf32>
    %1214 = vector.extract_strided_slice %231 {offsets = [0, 6, 0], sizes = [2, 1, 24], strides = [1, 1, 1]} : vector<2x8x24xf32> to vector<2x1x24xf32>
    %1215 = vector.shape_cast %1214 : vector<2x1x24xf32> to vector<2x24xf32>
    %1216 = vector.extract_strided_slice %1215 {offsets = [0, 0], sizes = [2, 8], strides = [1, 1]} : vector<2x24xf32> to vector<2x8xf32>
    %1217 = vector.extract_strided_slice %1213 {offsets = [0, 0], sizes = [2, 8], strides = [1, 1]} : vector<2x24xf32> to vector<2x8xf32>
    %1218 = arith.addf %1216, %1217 : vector<2x8xf32>
    %1219 = arith.negf %1218 : vector<2x8xf32>
    %1220 = math.exp %1219 : vector<2x8xf32>
    %cst_229 = arith.constant 1.000000e+00 : f32
    %1221 = vector.broadcast %cst_229 : f32 to vector<2x8xf32>
    %1222 = arith.addf %1221, %1220 : vector<2x8xf32>
    %1223 = arith.divf %1221, %1222 : vector<2x8xf32>
    %1224 = vector.extract_strided_slice %1215 {offsets = [0, 8], sizes = [2, 8], strides = [1, 1]} : vector<2x24xf32> to vector<2x8xf32>
    %1225 = vector.extract_strided_slice %1213 {offsets = [0, 8], sizes = [2, 8], strides = [1, 1]} : vector<2x24xf32> to vector<2x8xf32>
    %1226 = arith.addf %1224, %1225 : vector<2x8xf32>
    %1227 = arith.negf %1226 : vector<2x8xf32>
    %1228 = math.exp %1227 : vector<2x8xf32>
    %cst_230 = arith.constant 1.000000e+00 : f32
    %1229 = vector.broadcast %cst_230 : f32 to vector<2x8xf32>
    %1230 = arith.addf %1229, %1228 : vector<2x8xf32>
    %1231 = arith.divf %1229, %1230 : vector<2x8xf32>
    %1232 = vector.extract_strided_slice %1215 {offsets = [0, 16], sizes = [2, 8], strides = [1, 1]} : vector<2x24xf32> to vector<2x8xf32>
    %1233 = vector.extract_strided_slice %1213 {offsets = [0, 16], sizes = [2, 8], strides = [1, 1]} : vector<2x24xf32> to vector<2x8xf32>
    %1234 = arith.mulf %1223, %1233 : vector<2x8xf32>
    %1235 = arith.addf %1232, %1234 : vector<2x8xf32>
    %1236 = math.tanh %1235 : vector<2x8xf32>
    %cst_231 = arith.constant 1.000000e+00 : f32
    %1237 = vector.broadcast %cst_231 : f32 to vector<2x8xf32>
    %1238 = arith.subf %1237, %1231 : vector<2x8xf32>
    %1239 = arith.mulf %1238, %1236 : vector<2x8xf32>
    %1240 = arith.mulf %1231, %1095 : vector<2x8xf32>
    %1241 = arith.addf %1239, %1240 : vector<2x8xf32>
    %1242 = vector.broadcast %1172 : vector<2x1xf32> to vector<2x8xf32>
    %1243 = arith.mulf %1242, %1241 : vector<2x8xf32>
    %cst_232 = arith.constant 1.000000e+00 : f32
    %1244 = vector.broadcast %cst_232 : f32 to vector<2x1xf32>
    %1245 = arith.subf %1244, %1172 : vector<2x1xf32>
    %1246 = vector.broadcast %1245 : vector<2x1xf32> to vector<2x8xf32>
    %1247 = arith.mulf %1246, %1095 : vector<2x8xf32>
    %1248 = arith.addf %1243, %1247 : vector<2x8xf32>
    %cst_233 = arith.constant dense<0.000000e+00> : vector<2x48xf32>
    %1249 = tpu.matmul %1133, %240, %cst_233 {dimension_numbers = #tpu.dot_dimension_numbers<[1], [0], [0], [1], [0, 0, 1, 1], [], []>} : vector<2x16xf32>, vector<16x48xf32>, vector<2x48xf32> -> vector<2x48xf32>
    %1250 = vector.broadcast %241 : vector<1x48xf32> to vector<2x48xf32>
    %1251 = arith.addf %1249, %1250 : vector<2x48xf32>
    %1252 = vector.extract_strided_slice %239 {offsets = [0, 6, 0], sizes = [2, 1, 48], strides = [1, 1, 1]} : vector<2x8x48xf32> to vector<2x1x48xf32>
    %1253 = vector.shape_cast %1252 : vector<2x1x48xf32> to vector<2x48xf32>
    %1254 = vector.extract_strided_slice %1253 {offsets = [0, 0], sizes = [2, 16], strides = [1, 1]} : vector<2x48xf32> to vector<2x16xf32>
    %1255 = vector.extract_strided_slice %1251 {offsets = [0, 0], sizes = [2, 16], strides = [1, 1]} : vector<2x48xf32> to vector<2x16xf32>
    %1256 = arith.addf %1254, %1255 : vector<2x16xf32>
    %1257 = arith.negf %1256 : vector<2x16xf32>
    %1258 = math.exp %1257 : vector<2x16xf32>
    %cst_234 = arith.constant 1.000000e+00 : f32
    %1259 = vector.broadcast %cst_234 : f32 to vector<2x16xf32>
    %1260 = arith.addf %1259, %1258 : vector<2x16xf32>
    %1261 = arith.divf %1259, %1260 : vector<2x16xf32>
    %1262 = vector.extract_strided_slice %1253 {offsets = [0, 16], sizes = [2, 16], strides = [1, 1]} : vector<2x48xf32> to vector<2x16xf32>
    %1263 = vector.extract_strided_slice %1251 {offsets = [0, 16], sizes = [2, 16], strides = [1, 1]} : vector<2x48xf32> to vector<2x16xf32>
    %1264 = arith.addf %1262, %1263 : vector<2x16xf32>
    %1265 = arith.negf %1264 : vector<2x16xf32>
    %1266 = math.exp %1265 : vector<2x16xf32>
    %cst_235 = arith.constant 1.000000e+00 : f32
    %1267 = vector.broadcast %cst_235 : f32 to vector<2x16xf32>
    %1268 = arith.addf %1267, %1266 : vector<2x16xf32>
    %1269 = arith.divf %1267, %1268 : vector<2x16xf32>
    %1270 = vector.extract_strided_slice %1253 {offsets = [0, 32], sizes = [2, 16], strides = [1, 1]} : vector<2x48xf32> to vector<2x16xf32>
    %1271 = vector.extract_strided_slice %1251 {offsets = [0, 32], sizes = [2, 16], strides = [1, 1]} : vector<2x48xf32> to vector<2x16xf32>
    %1272 = arith.mulf %1261, %1271 : vector<2x16xf32>
    %1273 = arith.addf %1270, %1272 : vector<2x16xf32>
    %1274 = math.tanh %1273 : vector<2x16xf32>
    %cst_236 = arith.constant 1.000000e+00 : f32
    %1275 = vector.broadcast %cst_236 : f32 to vector<2x16xf32>
    %1276 = arith.subf %1275, %1269 : vector<2x16xf32>
    %1277 = arith.mulf %1276, %1274 : vector<2x16xf32>
    %1278 = arith.mulf %1269, %1133 : vector<2x16xf32>
    %1279 = arith.addf %1277, %1278 : vector<2x16xf32>
    %1280 = vector.broadcast %1172 : vector<2x1xf32> to vector<2x16xf32>
    %1281 = arith.mulf %1280, %1279 : vector<2x16xf32>
    %cst_237 = arith.constant 1.000000e+00 : f32
    %1282 = vector.broadcast %cst_237 : f32 to vector<2x1xf32>
    %1283 = arith.subf %1282, %1172 : vector<2x1xf32>
    %1284 = vector.broadcast %1283 : vector<2x1xf32> to vector<2x16xf32>
    %1285 = arith.mulf %1284, %1133 : vector<2x16xf32>
    %1286 = arith.addf %1281, %1285 : vector<2x16xf32>
    %cst_238 = arith.constant dense<0.000000e+00> : vector<2x96xf32>
    %1287 = tpu.matmul %1171, %248, %cst_238 {dimension_numbers = #tpu.dot_dimension_numbers<[1], [0], [0], [1], [0, 0, 1, 1], [], []>} : vector<2x32xf32>, vector<32x96xf32>, vector<2x96xf32> -> vector<2x96xf32>
    %1288 = vector.broadcast %249 : vector<1x96xf32> to vector<2x96xf32>
    %1289 = arith.addf %1287, %1288 : vector<2x96xf32>
    %1290 = vector.extract_strided_slice %247 {offsets = [0, 6, 0], sizes = [2, 1, 96], strides = [1, 1, 1]} : vector<2x8x96xf32> to vector<2x1x96xf32>
    %1291 = vector.shape_cast %1290 : vector<2x1x96xf32> to vector<2x96xf32>
    %1292 = vector.extract_strided_slice %1291 {offsets = [0, 0], sizes = [2, 32], strides = [1, 1]} : vector<2x96xf32> to vector<2x32xf32>
    %1293 = vector.extract_strided_slice %1289 {offsets = [0, 0], sizes = [2, 32], strides = [1, 1]} : vector<2x96xf32> to vector<2x32xf32>
    %1294 = arith.addf %1292, %1293 : vector<2x32xf32>
    %1295 = arith.negf %1294 : vector<2x32xf32>
    %1296 = math.exp %1295 : vector<2x32xf32>
    %cst_239 = arith.constant 1.000000e+00 : f32
    %1297 = vector.broadcast %cst_239 : f32 to vector<2x32xf32>
    %1298 = arith.addf %1297, %1296 : vector<2x32xf32>
    %1299 = arith.divf %1297, %1298 : vector<2x32xf32>
    %1300 = vector.extract_strided_slice %1291 {offsets = [0, 32], sizes = [2, 32], strides = [1, 1]} : vector<2x96xf32> to vector<2x32xf32>
    %1301 = vector.extract_strided_slice %1289 {offsets = [0, 32], sizes = [2, 32], strides = [1, 1]} : vector<2x96xf32> to vector<2x32xf32>
    %1302 = arith.addf %1300, %1301 : vector<2x32xf32>
    %1303 = arith.negf %1302 : vector<2x32xf32>
    %1304 = math.exp %1303 : vector<2x32xf32>
    %cst_240 = arith.constant 1.000000e+00 : f32
    %1305 = vector.broadcast %cst_240 : f32 to vector<2x32xf32>
    %1306 = arith.addf %1305, %1304 : vector<2x32xf32>
    %1307 = arith.divf %1305, %1306 : vector<2x32xf32>
    %1308 = vector.extract_strided_slice %1291 {offsets = [0, 64], sizes = [2, 32], strides = [1, 1]} : vector<2x96xf32> to vector<2x32xf32>
    %1309 = vector.extract_strided_slice %1289 {offsets = [0, 64], sizes = [2, 32], strides = [1, 1]} : vector<2x96xf32> to vector<2x32xf32>
    %1310 = arith.mulf %1299, %1309 : vector<2x32xf32>
    %1311 = arith.addf %1308, %1310 : vector<2x32xf32>
    %1312 = math.tanh %1311 : vector<2x32xf32>
    %cst_241 = arith.constant 1.000000e+00 : f32
    %1313 = vector.broadcast %cst_241 : f32 to vector<2x32xf32>
    %1314 = arith.subf %1313, %1307 : vector<2x32xf32>
    %1315 = arith.mulf %1314, %1312 : vector<2x32xf32>
    %1316 = arith.mulf %1307, %1171 : vector<2x32xf32>
    %1317 = arith.addf %1315, %1316 : vector<2x32xf32>
    %1318 = vector.broadcast %1172 : vector<2x1xf32> to vector<2x32xf32>
    %1319 = arith.mulf %1318, %1317 : vector<2x32xf32>
    %cst_242 = arith.constant 1.000000e+00 : f32
    %1320 = vector.broadcast %cst_242 : f32 to vector<2x1xf32>
    %1321 = arith.subf %1320, %1172 : vector<2x1xf32>
    %1322 = vector.broadcast %1321 : vector<2x1xf32> to vector<2x32xf32>
    %1323 = arith.mulf %1322, %1171 : vector<2x32xf32>
    %1324 = arith.addf %1319, %1323 : vector<2x32xf32>
    %1325 = vector.extract_strided_slice %1 {offsets = [0, 7], sizes = [2, 1], strides = [1, 1]} : vector<2x8xf32> to vector<2x1xf32>
    %cst_243 = arith.constant dense<0.000000e+00> : vector<2x12xf32>
    %1326 = tpu.matmul %1210, %224, %cst_243 {dimension_numbers = #tpu.dot_dimension_numbers<[1], [0], [0], [1], [0, 0, 1, 1], [], []>} : vector<2x4xf32>, vector<4x12xf32>, vector<2x12xf32> -> vector<2x12xf32>
    %1327 = vector.broadcast %225 : vector<1x12xf32> to vector<2x12xf32>
    %1328 = arith.addf %1326, %1327 : vector<2x12xf32>
    %1329 = vector.extract_strided_slice %223 {offsets = [0, 7, 0], sizes = [2, 1, 12], strides = [1, 1, 1]} : vector<2x8x12xf32> to vector<2x1x12xf32>
    %1330 = vector.shape_cast %1329 : vector<2x1x12xf32> to vector<2x12xf32>
    %1331 = vector.extract_strided_slice %1330 {offsets = [0, 0], sizes = [2, 4], strides = [1, 1]} : vector<2x12xf32> to vector<2x4xf32>
    %1332 = vector.extract_strided_slice %1328 {offsets = [0, 0], sizes = [2, 4], strides = [1, 1]} : vector<2x12xf32> to vector<2x4xf32>
    %1333 = arith.addf %1331, %1332 : vector<2x4xf32>
    %1334 = arith.negf %1333 : vector<2x4xf32>
    %1335 = math.exp %1334 : vector<2x4xf32>
    %cst_244 = arith.constant 1.000000e+00 : f32
    %1336 = vector.broadcast %cst_244 : f32 to vector<2x4xf32>
    %1337 = arith.addf %1336, %1335 : vector<2x4xf32>
    %1338 = arith.divf %1336, %1337 : vector<2x4xf32>
    %1339 = vector.extract_strided_slice %1330 {offsets = [0, 4], sizes = [2, 4], strides = [1, 1]} : vector<2x12xf32> to vector<2x4xf32>
    %1340 = vector.extract_strided_slice %1328 {offsets = [0, 4], sizes = [2, 4], strides = [1, 1]} : vector<2x12xf32> to vector<2x4xf32>
    %1341 = arith.addf %1339, %1340 : vector<2x4xf32>
    %1342 = arith.negf %1341 : vector<2x4xf32>
    %1343 = math.exp %1342 : vector<2x4xf32>
    %cst_245 = arith.constant 1.000000e+00 : f32
    %1344 = vector.broadcast %cst_245 : f32 to vector<2x4xf32>
    %1345 = arith.addf %1344, %1343 : vector<2x4xf32>
    %1346 = arith.divf %1344, %1345 : vector<2x4xf32>
    %1347 = vector.extract_strided_slice %1330 {offsets = [0, 8], sizes = [2, 4], strides = [1, 1]} : vector<2x12xf32> to vector<2x4xf32>
    %1348 = vector.extract_strided_slice %1328 {offsets = [0, 8], sizes = [2, 4], strides = [1, 1]} : vector<2x12xf32> to vector<2x4xf32>
    %1349 = arith.mulf %1338, %1348 : vector<2x4xf32>
    %1350 = arith.addf %1347, %1349 : vector<2x4xf32>
    %1351 = math.tanh %1350 : vector<2x4xf32>
    %cst_246 = arith.constant 1.000000e+00 : f32
    %1352 = vector.broadcast %cst_246 : f32 to vector<2x4xf32>
    %1353 = arith.subf %1352, %1346 : vector<2x4xf32>
    %1354 = arith.mulf %1353, %1351 : vector<2x4xf32>
    %1355 = arith.mulf %1346, %1210 : vector<2x4xf32>
    %1356 = arith.addf %1354, %1355 : vector<2x4xf32>
    %1357 = vector.broadcast %1325 : vector<2x1xf32> to vector<2x4xf32>
    %1358 = arith.mulf %1357, %1356 : vector<2x4xf32>
    %cst_247 = arith.constant 1.000000e+00 : f32
    %1359 = vector.broadcast %cst_247 : f32 to vector<2x1xf32>
    %1360 = arith.subf %1359, %1325 : vector<2x1xf32>
    %1361 = vector.broadcast %1360 : vector<2x1xf32> to vector<2x4xf32>
    %1362 = arith.mulf %1361, %1210 : vector<2x4xf32>
    %1363 = arith.addf %1358, %1362 : vector<2x4xf32>
    %cst_248 = arith.constant dense<0.000000e+00> : vector<2x24xf32>
    %1364 = tpu.matmul %1248, %232, %cst_248 {dimension_numbers = #tpu.dot_dimension_numbers<[1], [0], [0], [1], [0, 0, 1, 1], [], []>} : vector<2x8xf32>, vector<8x24xf32>, vector<2x24xf32> -> vector<2x24xf32>
    %1365 = vector.broadcast %233 : vector<1x24xf32> to vector<2x24xf32>
    %1366 = arith.addf %1364, %1365 : vector<2x24xf32>
    %1367 = vector.extract_strided_slice %231 {offsets = [0, 7, 0], sizes = [2, 1, 24], strides = [1, 1, 1]} : vector<2x8x24xf32> to vector<2x1x24xf32>
    %1368 = vector.shape_cast %1367 : vector<2x1x24xf32> to vector<2x24xf32>
    %1369 = vector.extract_strided_slice %1368 {offsets = [0, 0], sizes = [2, 8], strides = [1, 1]} : vector<2x24xf32> to vector<2x8xf32>
    %1370 = vector.extract_strided_slice %1366 {offsets = [0, 0], sizes = [2, 8], strides = [1, 1]} : vector<2x24xf32> to vector<2x8xf32>
    %1371 = arith.addf %1369, %1370 : vector<2x8xf32>
    %1372 = arith.negf %1371 : vector<2x8xf32>
    %1373 = math.exp %1372 : vector<2x8xf32>
    %cst_249 = arith.constant 1.000000e+00 : f32
    %1374 = vector.broadcast %cst_249 : f32 to vector<2x8xf32>
    %1375 = arith.addf %1374, %1373 : vector<2x8xf32>
    %1376 = arith.divf %1374, %1375 : vector<2x8xf32>
    %1377 = vector.extract_strided_slice %1368 {offsets = [0, 8], sizes = [2, 8], strides = [1, 1]} : vector<2x24xf32> to vector<2x8xf32>
    %1378 = vector.extract_strided_slice %1366 {offsets = [0, 8], sizes = [2, 8], strides = [1, 1]} : vector<2x24xf32> to vector<2x8xf32>
    %1379 = arith.addf %1377, %1378 : vector<2x8xf32>
    %1380 = arith.negf %1379 : vector<2x8xf32>
    %1381 = math.exp %1380 : vector<2x8xf32>
    %cst_250 = arith.constant 1.000000e+00 : f32
    %1382 = vector.broadcast %cst_250 : f32 to vector<2x8xf32>
    %1383 = arith.addf %1382, %1381 : vector<2x8xf32>
    %1384 = arith.divf %1382, %1383 : vector<2x8xf32>
    %1385 = vector.extract_strided_slice %1368 {offsets = [0, 16], sizes = [2, 8], strides = [1, 1]} : vector<2x24xf32> to vector<2x8xf32>
    %1386 = vector.extract_strided_slice %1366 {offsets = [0, 16], sizes = [2, 8], strides = [1, 1]} : vector<2x24xf32> to vector<2x8xf32>
    %1387 = arith.mulf %1376, %1386 : vector<2x8xf32>
    %1388 = arith.addf %1385, %1387 : vector<2x8xf32>
    %1389 = math.tanh %1388 : vector<2x8xf32>
    %cst_251 = arith.constant 1.000000e+00 : f32
    %1390 = vector.broadcast %cst_251 : f32 to vector<2x8xf32>
    %1391 = arith.subf %1390, %1384 : vector<2x8xf32>
    %1392 = arith.mulf %1391, %1389 : vector<2x8xf32>
    %1393 = arith.mulf %1384, %1248 : vector<2x8xf32>
    %1394 = arith.addf %1392, %1393 : vector<2x8xf32>
    %1395 = vector.broadcast %1325 : vector<2x1xf32> to vector<2x8xf32>
    %1396 = arith.mulf %1395, %1394 : vector<2x8xf32>
    %cst_252 = arith.constant 1.000000e+00 : f32
    %1397 = vector.broadcast %cst_252 : f32 to vector<2x1xf32>
    %1398 = arith.subf %1397, %1325 : vector<2x1xf32>
    %1399 = vector.broadcast %1398 : vector<2x1xf32> to vector<2x8xf32>
    %1400 = arith.mulf %1399, %1248 : vector<2x8xf32>
    %1401 = arith.addf %1396, %1400 : vector<2x8xf32>
    %cst_253 = arith.constant dense<0.000000e+00> : vector<2x48xf32>
    %1402 = tpu.matmul %1286, %240, %cst_253 {dimension_numbers = #tpu.dot_dimension_numbers<[1], [0], [0], [1], [0, 0, 1, 1], [], []>} : vector<2x16xf32>, vector<16x48xf32>, vector<2x48xf32> -> vector<2x48xf32>
    %1403 = vector.broadcast %241 : vector<1x48xf32> to vector<2x48xf32>
    %1404 = arith.addf %1402, %1403 : vector<2x48xf32>
    %1405 = vector.extract_strided_slice %239 {offsets = [0, 7, 0], sizes = [2, 1, 48], strides = [1, 1, 1]} : vector<2x8x48xf32> to vector<2x1x48xf32>
    %1406 = vector.shape_cast %1405 : vector<2x1x48xf32> to vector<2x48xf32>
    %1407 = vector.extract_strided_slice %1406 {offsets = [0, 0], sizes = [2, 16], strides = [1, 1]} : vector<2x48xf32> to vector<2x16xf32>
    %1408 = vector.extract_strided_slice %1404 {offsets = [0, 0], sizes = [2, 16], strides = [1, 1]} : vector<2x48xf32> to vector<2x16xf32>
    %1409 = arith.addf %1407, %1408 : vector<2x16xf32>
    %1410 = arith.negf %1409 : vector<2x16xf32>
    %1411 = math.exp %1410 : vector<2x16xf32>
    %cst_254 = arith.constant 1.000000e+00 : f32
    %1412 = vector.broadcast %cst_254 : f32 to vector<2x16xf32>
    %1413 = arith.addf %1412, %1411 : vector<2x16xf32>
    %1414 = arith.divf %1412, %1413 : vector<2x16xf32>
    %1415 = vector.extract_strided_slice %1406 {offsets = [0, 16], sizes = [2, 16], strides = [1, 1]} : vector<2x48xf32> to vector<2x16xf32>
    %1416 = vector.extract_strided_slice %1404 {offsets = [0, 16], sizes = [2, 16], strides = [1, 1]} : vector<2x48xf32> to vector<2x16xf32>
    %1417 = arith.addf %1415, %1416 : vector<2x16xf32>
    %1418 = arith.negf %1417 : vector<2x16xf32>
    %1419 = math.exp %1418 : vector<2x16xf32>
    %cst_255 = arith.constant 1.000000e+00 : f32
    %1420 = vector.broadcast %cst_255 : f32 to vector<2x16xf32>
    %1421 = arith.addf %1420, %1419 : vector<2x16xf32>
    %1422 = arith.divf %1420, %1421 : vector<2x16xf32>
    %1423 = vector.extract_strided_slice %1406 {offsets = [0, 32], sizes = [2, 16], strides = [1, 1]} : vector<2x48xf32> to vector<2x16xf32>
    %1424 = vector.extract_strided_slice %1404 {offsets = [0, 32], sizes = [2, 16], strides = [1, 1]} : vector<2x48xf32> to vector<2x16xf32>
    %1425 = arith.mulf %1414, %1424 : vector<2x16xf32>
    %1426 = arith.addf %1423, %1425 : vector<2x16xf32>
    %1427 = math.tanh %1426 : vector<2x16xf32>
    %cst_256 = arith.constant 1.000000e+00 : f32
    %1428 = vector.broadcast %cst_256 : f32 to vector<2x16xf32>
    %1429 = arith.subf %1428, %1422 : vector<2x16xf32>
    %1430 = arith.mulf %1429, %1427 : vector<2x16xf32>
    %1431 = arith.mulf %1422, %1286 : vector<2x16xf32>
    %1432 = arith.addf %1430, %1431 : vector<2x16xf32>
    %1433 = vector.broadcast %1325 : vector<2x1xf32> to vector<2x16xf32>
    %1434 = arith.mulf %1433, %1432 : vector<2x16xf32>
    %cst_257 = arith.constant 1.000000e+00 : f32
    %1435 = vector.broadcast %cst_257 : f32 to vector<2x1xf32>
    %1436 = arith.subf %1435, %1325 : vector<2x1xf32>
    %1437 = vector.broadcast %1436 : vector<2x1xf32> to vector<2x16xf32>
    %1438 = arith.mulf %1437, %1286 : vector<2x16xf32>
    %1439 = arith.addf %1434, %1438 : vector<2x16xf32>
    %cst_258 = arith.constant dense<0.000000e+00> : vector<2x96xf32>
    %1440 = tpu.matmul %1324, %248, %cst_258 {dimension_numbers = #tpu.dot_dimension_numbers<[1], [0], [0], [1], [0, 0, 1, 1], [], []>} : vector<2x32xf32>, vector<32x96xf32>, vector<2x96xf32> -> vector<2x96xf32>
    %1441 = vector.broadcast %249 : vector<1x96xf32> to vector<2x96xf32>
    %1442 = arith.addf %1440, %1441 : vector<2x96xf32>
    %1443 = vector.extract_strided_slice %247 {offsets = [0, 7, 0], sizes = [2, 1, 96], strides = [1, 1, 1]} : vector<2x8x96xf32> to vector<2x1x96xf32>
    %1444 = vector.shape_cast %1443 : vector<2x1x96xf32> to vector<2x96xf32>
    %1445 = vector.extract_strided_slice %1444 {offsets = [0, 0], sizes = [2, 32], strides = [1, 1]} : vector<2x96xf32> to vector<2x32xf32>
    %1446 = vector.extract_strided_slice %1442 {offsets = [0, 0], sizes = [2, 32], strides = [1, 1]} : vector<2x96xf32> to vector<2x32xf32>
    %1447 = arith.addf %1445, %1446 : vector<2x32xf32>
    %1448 = arith.negf %1447 : vector<2x32xf32>
    %1449 = math.exp %1448 : vector<2x32xf32>
    %cst_259 = arith.constant 1.000000e+00 : f32
    %1450 = vector.broadcast %cst_259 : f32 to vector<2x32xf32>
    %1451 = arith.addf %1450, %1449 : vector<2x32xf32>
    %1452 = arith.divf %1450, %1451 : vector<2x32xf32>
    %1453 = vector.extract_strided_slice %1444 {offsets = [0, 32], sizes = [2, 32], strides = [1, 1]} : vector<2x96xf32> to vector<2x32xf32>
    %1454 = vector.extract_strided_slice %1442 {offsets = [0, 32], sizes = [2, 32], strides = [1, 1]} : vector<2x96xf32> to vector<2x32xf32>
    %1455 = arith.addf %1453, %1454 : vector<2x32xf32>
    %1456 = arith.negf %1455 : vector<2x32xf32>
    %1457 = math.exp %1456 : vector<2x32xf32>
    %cst_260 = arith.constant 1.000000e+00 : f32
    %1458 = vector.broadcast %cst_260 : f32 to vector<2x32xf32>
    %1459 = arith.addf %1458, %1457 : vector<2x32xf32>
    %1460 = arith.divf %1458, %1459 : vector<2x32xf32>
    %1461 = vector.extract_strided_slice %1444 {offsets = [0, 64], sizes = [2, 32], strides = [1, 1]} : vector<2x96xf32> to vector<2x32xf32>
    %1462 = vector.extract_strided_slice %1442 {offsets = [0, 64], sizes = [2, 32], strides = [1, 1]} : vector<2x96xf32> to vector<2x32xf32>
    %1463 = arith.mulf %1452, %1462 : vector<2x32xf32>
    %1464 = arith.addf %1461, %1463 : vector<2x32xf32>
    %1465 = math.tanh %1464 : vector<2x32xf32>
    %cst_261 = arith.constant 1.000000e+00 : f32
    %1466 = vector.broadcast %cst_261 : f32 to vector<2x32xf32>
    %1467 = arith.subf %1466, %1460 : vector<2x32xf32>
    %1468 = arith.mulf %1467, %1465 : vector<2x32xf32>
    %1469 = arith.mulf %1460, %1324 : vector<2x32xf32>
    %1470 = arith.addf %1468, %1469 : vector<2x32xf32>
    %1471 = vector.broadcast %1325 : vector<2x1xf32> to vector<2x32xf32>
    %1472 = arith.mulf %1471, %1470 : vector<2x32xf32>
    %cst_262 = arith.constant 1.000000e+00 : f32
    %1473 = vector.broadcast %cst_262 : f32 to vector<2x1xf32>
    %1474 = arith.subf %1473, %1325 : vector<2x1xf32>
    %1475 = vector.broadcast %1474 : vector<2x1xf32> to vector<2x32xf32>
    %1476 = arith.mulf %1475, %1324 : vector<2x32xf32>
    %1477 = arith.addf %1472, %1476 : vector<2x32xf32>
    %1478 = vector.shape_cast %61 : vector<16x4xf32> to vector<2x8x4xf32>
    %c144 = arith.constant 144 : index
    %c0_263 = arith.constant 0 : index
    %1479 = vector.load %arg3[%c144, %c0_263] : memref<784x128xf32, #tpu.memory_space<vmem>>, vector<4x32xf32>
    %cst_264 = arith.constant dense<0.000000e+00> : vector<2x32xf32>
    %1480 = tpu.matmul %1363, %1479, %cst_264 {dimension_numbers = #tpu.dot_dimension_numbers<[1], [0], [0], [1], [0, 0, 1, 1], [], []>} : vector<2x4xf32>, vector<4x32xf32>, vector<2x32xf32> -> vector<2x32xf32>
    %c152 = arith.constant 152 : index
    %c0_265 = arith.constant 0 : index
    %1481 = vector.load %arg3[%c152, %c0_265] : memref<784x128xf32, #tpu.memory_space<vmem>>, vector<1x32xf32>
    %1482 = vector.broadcast %1481 : vector<1x32xf32> to vector<2x32xf32>
    %1483 = arith.addf %1480, %1482 : vector<2x32xf32>
    %c160 = arith.constant 160 : index
    %c0_266 = arith.constant 0 : index
    %1484 = vector.load %arg3[%c160, %c0_266] : memref<784x128xf32, #tpu.memory_space<vmem>>, vector<4x32xf32>
    %cst_267 = arith.constant dense<0.000000e+00> : vector<16x32xf32>
    %1485 = tpu.matmul %61, %1484, %cst_267 {dimension_numbers = #tpu.dot_dimension_numbers<[1], [0], [0], [1], [0, 0, 1, 1], [], []>} : vector<16x4xf32>, vector<4x32xf32>, vector<16x32xf32> -> vector<16x32xf32>
    %c168 = arith.constant 168 : index
    %c0_268 = arith.constant 0 : index
    %1486 = vector.load %arg3[%c168, %c0_268] : memref<784x128xf32, #tpu.memory_space<vmem>>, vector<1x32xf32>
    %1487 = vector.broadcast %1486 : vector<1x32xf32> to vector<16x32xf32>
    %1488 = arith.addf %1485, %1487 : vector<16x32xf32>
    %1489 = vector.shape_cast %1488 : vector<16x32xf32> to vector<2x8x32xf32>
    %1490 = vector.shape_cast %1483 : vector<2x32xf32> to vector<2x1x32xf32>
    %1491 = vector.broadcast %1490 : vector<2x1x32xf32> to vector<2x8x32xf32>
    %1492 = arith.mulf %1491, %1489 : vector<2x8x32xf32>
    %cst_269 = arith.constant dense<0.000000e+00> : vector<2x8xf32>
    %1493 = vector.multi_reduction <add>, %1492, %cst_269 [2] : vector<2x8x32xf32> to vector<2x8xf32>
    %cst_270 = arith.constant 0.176776692 : f32
    %1494 = vector.broadcast %cst_270 : f32 to vector<2x8xf32>
    %1495 = arith.mulf %1493, %1494 : vector<2x8xf32>
    %cst_271 = arith.constant 5.000000e-01 : f32
    %1496 = vector.broadcast %cst_271 : f32 to vector<2x8xf32>
    %1497 = arith.cmpf ogt, %0, %1496 : vector<2x8xf32>
    %cst_272 = arith.constant -1.000000e+09 : f32
    %1498 = vector.broadcast %cst_272 : f32 to vector<2x8xf32>
    %1499 = arith.select %1497, %1498, %1495 : vector<2x8xi1>, vector<2x8xf32>
    %cst_273 = arith.constant dense<0xFF800000> : vector<2xf32>
    %1500 = vector.multi_reduction <maximumf>, %1499, %cst_273 [1] : vector<2x8xf32> to vector<2xf32>
    %1501 = vector.shape_cast %1500 : vector<2xf32> to vector<2x1xf32>
    %1502 = vector.broadcast %1501 : vector<2x1xf32> to vector<2x8xf32>
    %1503 = arith.subf %1499, %1502 : vector<2x8xf32>
    %1504 = math.exp %1503 : vector<2x8xf32>
    %cst_274 = arith.constant dense<0.000000e+00> : vector<2xf32>
    %1505 = vector.multi_reduction <add>, %1504, %cst_274 [1] : vector<2x8xf32> to vector<2xf32>
    %1506 = vector.shape_cast %1505 : vector<2xf32> to vector<2x1xf32>
    %1507 = vector.broadcast %1506 : vector<2x1xf32> to vector<2x8xf32>
    %1508 = arith.divf %1504, %1507 : vector<2x8xf32>
    %1509 = vector.shape_cast %1508 : vector<2x8xf32> to vector<2x8x1xf32>
    %1510 = vector.broadcast %1509 : vector<2x8x1xf32> to vector<2x8x4xf32>
    %1511 = arith.mulf %1510, %1478 : vector<2x8x4xf32>
    %cst_275 = arith.constant dense<0.000000e+00> : vector<2x4xf32>
    %1512 = vector.multi_reduction <add>, %1511, %cst_275 [1] : vector<2x8x4xf32> to vector<2x4xf32>
    %c176 = arith.constant 176 : index
    %c0_276 = arith.constant 0 : index
    %1513 = vector.load %arg3[%c176, %c0_276] : memref<784x128xf32, #tpu.memory_space<vmem>>, vector<4x4xf32>
    %cst_277 = arith.constant dense<0.000000e+00> : vector<2x4xf32>
    %1514 = tpu.matmul %1512, %1513, %cst_277 {dimension_numbers = #tpu.dot_dimension_numbers<[1], [0], [0], [1], [0, 0, 1, 1], [], []>} : vector<2x4xf32>, vector<4x4xf32>, vector<2x4xf32> -> vector<2x4xf32>
    %c184 = arith.constant 184 : index
    %c0_278 = arith.constant 0 : index
    %1515 = vector.load %arg3[%c184, %c0_278] : memref<784x128xf32, #tpu.memory_space<vmem>>, vector<1x4xf32>
    %1516 = vector.broadcast %1515 : vector<1x4xf32> to vector<2x4xf32>
    %1517 = arith.addf %1514, %1516 : vector<2x4xf32>
    %1518 = vector.shape_cast %113 : vector<16x8xf32> to vector<2x8x8xf32>
    %c272 = arith.constant 272 : index
    %c0_279 = arith.constant 0 : index
    %1519 = vector.load %arg3[%c272, %c0_279] : memref<784x128xf32, #tpu.memory_space<vmem>>, vector<8x32xf32>
    %cst_280 = arith.constant dense<0.000000e+00> : vector<2x32xf32>
    %1520 = tpu.matmul %1401, %1519, %cst_280 {dimension_numbers = #tpu.dot_dimension_numbers<[1], [0], [0], [1], [0, 0, 1, 1], [], []>} : vector<2x8xf32>, vector<8x32xf32>, vector<2x32xf32> -> vector<2x32xf32>
    %c280 = arith.constant 280 : index
    %c0_281 = arith.constant 0 : index
    %1521 = vector.load %arg3[%c280, %c0_281] : memref<784x128xf32, #tpu.memory_space<vmem>>, vector<1x32xf32>
    %1522 = vector.broadcast %1521 : vector<1x32xf32> to vector<2x32xf32>
    %1523 = arith.addf %1520, %1522 : vector<2x32xf32>
    %c288 = arith.constant 288 : index
    %c0_282 = arith.constant 0 : index
    %1524 = vector.load %arg3[%c288, %c0_282] : memref<784x128xf32, #tpu.memory_space<vmem>>, vector<8x32xf32>
    %cst_283 = arith.constant dense<0.000000e+00> : vector<16x32xf32>
    %1525 = tpu.matmul %113, %1524, %cst_283 {dimension_numbers = #tpu.dot_dimension_numbers<[1], [0], [0], [1], [0, 0, 1, 1], [], []>} : vector<16x8xf32>, vector<8x32xf32>, vector<16x32xf32> -> vector<16x32xf32>
    %c296 = arith.constant 296 : index
    %c0_284 = arith.constant 0 : index
    %1526 = vector.load %arg3[%c296, %c0_284] : memref<784x128xf32, #tpu.memory_space<vmem>>, vector<1x32xf32>
    %1527 = vector.broadcast %1526 : vector<1x32xf32> to vector<16x32xf32>
    %1528 = arith.addf %1525, %1527 : vector<16x32xf32>
    %1529 = vector.shape_cast %1528 : vector<16x32xf32> to vector<2x8x32xf32>
    %1530 = vector.shape_cast %1523 : vector<2x32xf32> to vector<2x1x32xf32>
    %1531 = vector.broadcast %1530 : vector<2x1x32xf32> to vector<2x8x32xf32>
    %1532 = arith.mulf %1531, %1529 : vector<2x8x32xf32>
    %cst_285 = arith.constant dense<0.000000e+00> : vector<2x8xf32>
    %1533 = vector.multi_reduction <add>, %1532, %cst_285 [2] : vector<2x8x32xf32> to vector<2x8xf32>
    %cst_286 = arith.constant 0.176776692 : f32
    %1534 = vector.broadcast %cst_286 : f32 to vector<2x8xf32>
    %1535 = arith.mulf %1533, %1534 : vector<2x8xf32>
    %cst_287 = arith.constant 5.000000e-01 : f32
    %1536 = vector.broadcast %cst_287 : f32 to vector<2x8xf32>
    %1537 = arith.cmpf ogt, %0, %1536 : vector<2x8xf32>
    %cst_288 = arith.constant -1.000000e+09 : f32
    %1538 = vector.broadcast %cst_288 : f32 to vector<2x8xf32>
    %1539 = arith.select %1537, %1538, %1535 : vector<2x8xi1>, vector<2x8xf32>
    %cst_289 = arith.constant dense<0xFF800000> : vector<2xf32>
    %1540 = vector.multi_reduction <maximumf>, %1539, %cst_289 [1] : vector<2x8xf32> to vector<2xf32>
    %1541 = vector.shape_cast %1540 : vector<2xf32> to vector<2x1xf32>
    %1542 = vector.broadcast %1541 : vector<2x1xf32> to vector<2x8xf32>
    %1543 = arith.subf %1539, %1542 : vector<2x8xf32>
    %1544 = math.exp %1543 : vector<2x8xf32>
    %cst_290 = arith.constant dense<0.000000e+00> : vector<2xf32>
    %1545 = vector.multi_reduction <add>, %1544, %cst_290 [1] : vector<2x8xf32> to vector<2xf32>
    %1546 = vector.shape_cast %1545 : vector<2xf32> to vector<2x1xf32>
    %1547 = vector.broadcast %1546 : vector<2x1xf32> to vector<2x8xf32>
    %1548 = arith.divf %1544, %1547 : vector<2x8xf32>
    %1549 = vector.shape_cast %1548 : vector<2x8xf32> to vector<2x8x1xf32>
    %1550 = vector.broadcast %1549 : vector<2x8x1xf32> to vector<2x8x8xf32>
    %1551 = arith.mulf %1550, %1518 : vector<2x8x8xf32>
    %cst_291 = arith.constant dense<0.000000e+00> : vector<2x8xf32>
    %1552 = vector.multi_reduction <add>, %1551, %cst_291 [1] : vector<2x8x8xf32> to vector<2x8xf32>
    %c304 = arith.constant 304 : index
    %c0_292 = arith.constant 0 : index
    %1553 = vector.load %arg3[%c304, %c0_292] : memref<784x128xf32, #tpu.memory_space<vmem>>, vector<8x8xf32>
    %cst_293 = arith.constant dense<0.000000e+00> : vector<2x8xf32>
    %1554 = tpu.matmul %1552, %1553, %cst_293 {dimension_numbers = #tpu.dot_dimension_numbers<[1], [0], [0], [1], [0, 0, 1, 1], [], []>} : vector<2x8xf32>, vector<8x8xf32>, vector<2x8xf32> -> vector<2x8xf32>
    %c312 = arith.constant 312 : index
    %c0_294 = arith.constant 0 : index
    %1555 = vector.load %arg3[%c312, %c0_294] : memref<784x128xf32, #tpu.memory_space<vmem>>, vector<1x8xf32>
    %1556 = vector.broadcast %1555 : vector<1x8xf32> to vector<2x8xf32>
    %1557 = arith.addf %1554, %1556 : vector<2x8xf32>
    %1558 = vector.shape_cast %165 : vector<16x16xf32> to vector<2x8x16xf32>
    %c424 = arith.constant 424 : index
    %c0_295 = arith.constant 0 : index
    %1559 = vector.load %arg3[%c424, %c0_295] : memref<784x128xf32, #tpu.memory_space<vmem>>, vector<16x32xf32>
    %cst_296 = arith.constant dense<0.000000e+00> : vector<2x32xf32>
    %1560 = tpu.matmul %1439, %1559, %cst_296 {dimension_numbers = #tpu.dot_dimension_numbers<[1], [0], [0], [1], [0, 0, 1, 1], [], []>} : vector<2x16xf32>, vector<16x32xf32>, vector<2x32xf32> -> vector<2x32xf32>
    %c440 = arith.constant 440 : index
    %c0_297 = arith.constant 0 : index
    %1561 = vector.load %arg3[%c440, %c0_297] : memref<784x128xf32, #tpu.memory_space<vmem>>, vector<1x32xf32>
    %1562 = vector.broadcast %1561 : vector<1x32xf32> to vector<2x32xf32>
    %1563 = arith.addf %1560, %1562 : vector<2x32xf32>
    %c448 = arith.constant 448 : index
    %c0_298 = arith.constant 0 : index
    %1564 = vector.load %arg3[%c448, %c0_298] : memref<784x128xf32, #tpu.memory_space<vmem>>, vector<16x32xf32>
    %cst_299 = arith.constant dense<0.000000e+00> : vector<16x32xf32>
    %1565 = tpu.matmul %165, %1564, %cst_299 {dimension_numbers = #tpu.dot_dimension_numbers<[1], [0], [0], [1], [0, 0, 1, 1], [], []>} : vector<16x16xf32>, vector<16x32xf32>, vector<16x32xf32> -> vector<16x32xf32>
    %c464 = arith.constant 464 : index
    %c0_300 = arith.constant 0 : index
    %1566 = vector.load %arg3[%c464, %c0_300] : memref<784x128xf32, #tpu.memory_space<vmem>>, vector<1x32xf32>
    %1567 = vector.broadcast %1566 : vector<1x32xf32> to vector<16x32xf32>
    %1568 = arith.addf %1565, %1567 : vector<16x32xf32>
    %1569 = vector.shape_cast %1568 : vector<16x32xf32> to vector<2x8x32xf32>
    %1570 = vector.shape_cast %1563 : vector<2x32xf32> to vector<2x1x32xf32>
    %1571 = vector.broadcast %1570 : vector<2x1x32xf32> to vector<2x8x32xf32>
    %1572 = arith.mulf %1571, %1569 : vector<2x8x32xf32>
    %cst_301 = arith.constant dense<0.000000e+00> : vector<2x8xf32>
    %1573 = vector.multi_reduction <add>, %1572, %cst_301 [2] : vector<2x8x32xf32> to vector<2x8xf32>
    %cst_302 = arith.constant 0.176776692 : f32
    %1574 = vector.broadcast %cst_302 : f32 to vector<2x8xf32>
    %1575 = arith.mulf %1573, %1574 : vector<2x8xf32>
    %cst_303 = arith.constant 5.000000e-01 : f32
    %1576 = vector.broadcast %cst_303 : f32 to vector<2x8xf32>
    %1577 = arith.cmpf ogt, %0, %1576 : vector<2x8xf32>
    %cst_304 = arith.constant -1.000000e+09 : f32
    %1578 = vector.broadcast %cst_304 : f32 to vector<2x8xf32>
    %1579 = arith.select %1577, %1578, %1575 : vector<2x8xi1>, vector<2x8xf32>
    %cst_305 = arith.constant dense<0xFF800000> : vector<2xf32>
    %1580 = vector.multi_reduction <maximumf>, %1579, %cst_305 [1] : vector<2x8xf32> to vector<2xf32>
    %1581 = vector.shape_cast %1580 : vector<2xf32> to vector<2x1xf32>
    %1582 = vector.broadcast %1581 : vector<2x1xf32> to vector<2x8xf32>
    %1583 = arith.subf %1579, %1582 : vector<2x8xf32>
    %1584 = math.exp %1583 : vector<2x8xf32>
    %cst_306 = arith.constant dense<0.000000e+00> : vector<2xf32>
    %1585 = vector.multi_reduction <add>, %1584, %cst_306 [1] : vector<2x8xf32> to vector<2xf32>
    %1586 = vector.shape_cast %1585 : vector<2xf32> to vector<2x1xf32>
    %1587 = vector.broadcast %1586 : vector<2x1xf32> to vector<2x8xf32>
    %1588 = arith.divf %1584, %1587 : vector<2x8xf32>
    %1589 = vector.shape_cast %1588 : vector<2x8xf32> to vector<2x8x1xf32>
    %1590 = vector.broadcast %1589 : vector<2x8x1xf32> to vector<2x8x16xf32>
    %1591 = arith.mulf %1590, %1558 : vector<2x8x16xf32>
    %cst_307 = arith.constant dense<0.000000e+00> : vector<2x16xf32>
    %1592 = vector.multi_reduction <add>, %1591, %cst_307 [1] : vector<2x8x16xf32> to vector<2x16xf32>
    %c472 = arith.constant 472 : index
    %c0_308 = arith.constant 0 : index
    %1593 = vector.load %arg3[%c472, %c0_308] : memref<784x128xf32, #tpu.memory_space<vmem>>, vector<16x16xf32>
    %cst_309 = arith.constant dense<0.000000e+00> : vector<2x16xf32>
    %1594 = tpu.matmul %1592, %1593, %cst_309 {dimension_numbers = #tpu.dot_dimension_numbers<[1], [0], [0], [1], [0, 0, 1, 1], [], []>} : vector<2x16xf32>, vector<16x16xf32>, vector<2x16xf32> -> vector<2x16xf32>
    %c488 = arith.constant 488 : index
    %c0_310 = arith.constant 0 : index
    %1595 = vector.load %arg3[%c488, %c0_310] : memref<784x128xf32, #tpu.memory_space<vmem>>, vector<1x16xf32>
    %1596 = vector.broadcast %1595 : vector<1x16xf32> to vector<2x16xf32>
    %1597 = arith.addf %1594, %1596 : vector<2x16xf32>
    %1598 = vector.shape_cast %217 : vector<16x32xf32> to vector<2x8x32xf32>
    %c664 = arith.constant 664 : index
    %c0_311 = arith.constant 0 : index
    %1599 = vector.load %arg3[%c664, %c0_311] : memref<784x128xf32, #tpu.memory_space<vmem>>, vector<32x32xf32>
    %cst_312 = arith.constant dense<0.000000e+00> : vector<2x32xf32>
    %1600 = tpu.matmul %1477, %1599, %cst_312 {dimension_numbers = #tpu.dot_dimension_numbers<[1], [0], [0], [1], [0, 0, 1, 1], [], []>} : vector<2x32xf32>, vector<32x32xf32>, vector<2x32xf32> -> vector<2x32xf32>
    %c696 = arith.constant 696 : index
    %c0_313 = arith.constant 0 : index
    %1601 = vector.load %arg3[%c696, %c0_313] : memref<784x128xf32, #tpu.memory_space<vmem>>, vector<1x32xf32>
    %1602 = vector.broadcast %1601 : vector<1x32xf32> to vector<2x32xf32>
    %1603 = arith.addf %1600, %1602 : vector<2x32xf32>
    %c704 = arith.constant 704 : index
    %c0_314 = arith.constant 0 : index
    %1604 = vector.load %arg3[%c704, %c0_314] : memref<784x128xf32, #tpu.memory_space<vmem>>, vector<32x32xf32>
    %cst_315 = arith.constant dense<0.000000e+00> : vector<16x32xf32>
    %1605 = tpu.matmul %217, %1604, %cst_315 {dimension_numbers = #tpu.dot_dimension_numbers<[1], [0], [0], [1], [0, 0, 1, 1], [], []>} : vector<16x32xf32>, vector<32x32xf32>, vector<16x32xf32> -> vector<16x32xf32>
    %c736 = arith.constant 736 : index
    %c0_316 = arith.constant 0 : index
    %1606 = vector.load %arg3[%c736, %c0_316] : memref<784x128xf32, #tpu.memory_space<vmem>>, vector<1x32xf32>
    %1607 = vector.broadcast %1606 : vector<1x32xf32> to vector<16x32xf32>
    %1608 = arith.addf %1605, %1607 : vector<16x32xf32>
    %1609 = vector.shape_cast %1608 : vector<16x32xf32> to vector<2x8x32xf32>
    %1610 = vector.shape_cast %1603 : vector<2x32xf32> to vector<2x1x32xf32>
    %1611 = vector.broadcast %1610 : vector<2x1x32xf32> to vector<2x8x32xf32>
    %1612 = arith.mulf %1611, %1609 : vector<2x8x32xf32>
    %cst_317 = arith.constant dense<0.000000e+00> : vector<2x8xf32>
    %1613 = vector.multi_reduction <add>, %1612, %cst_317 [2] : vector<2x8x32xf32> to vector<2x8xf32>
    %cst_318 = arith.constant 0.176776692 : f32
    %1614 = vector.broadcast %cst_318 : f32 to vector<2x8xf32>
    %1615 = arith.mulf %1613, %1614 : vector<2x8xf32>
    %cst_319 = arith.constant 5.000000e-01 : f32
    %1616 = vector.broadcast %cst_319 : f32 to vector<2x8xf32>
    %1617 = arith.cmpf ogt, %0, %1616 : vector<2x8xf32>
    %cst_320 = arith.constant -1.000000e+09 : f32
    %1618 = vector.broadcast %cst_320 : f32 to vector<2x8xf32>
    %1619 = arith.select %1617, %1618, %1615 : vector<2x8xi1>, vector<2x8xf32>
    %cst_321 = arith.constant dense<0xFF800000> : vector<2xf32>
    %1620 = vector.multi_reduction <maximumf>, %1619, %cst_321 [1] : vector<2x8xf32> to vector<2xf32>
    %1621 = vector.shape_cast %1620 : vector<2xf32> to vector<2x1xf32>
    %1622 = vector.broadcast %1621 : vector<2x1xf32> to vector<2x8xf32>
    %1623 = arith.subf %1619, %1622 : vector<2x8xf32>
    %1624 = math.exp %1623 : vector<2x8xf32>
    %cst_322 = arith.constant dense<0.000000e+00> : vector<2xf32>
    %1625 = vector.multi_reduction <add>, %1624, %cst_322 [1] : vector<2x8xf32> to vector<2xf32>
    %1626 = vector.shape_cast %1625 : vector<2xf32> to vector<2x1xf32>
    %1627 = vector.broadcast %1626 : vector<2x1xf32> to vector<2x8xf32>
    %1628 = arith.divf %1624, %1627 : vector<2x8xf32>
    %1629 = vector.shape_cast %1628 : vector<2x8xf32> to vector<2x8x1xf32>
    %1630 = vector.broadcast %1629 : vector<2x8x1xf32> to vector<2x8x32xf32>
    %1631 = arith.mulf %1630, %1598 : vector<2x8x32xf32>
    %cst_323 = arith.constant dense<0.000000e+00> : vector<2x32xf32>
    %1632 = vector.multi_reduction <add>, %1631, %cst_323 [1] : vector<2x8x32xf32> to vector<2x32xf32>
    %c744 = arith.constant 744 : index
    %c0_324 = arith.constant 0 : index
    %1633 = vector.load %arg3[%c744, %c0_324] : memref<784x128xf32, #tpu.memory_space<vmem>>, vector<32x32xf32>
    %cst_325 = arith.constant dense<0.000000e+00> : vector<2x32xf32>
    %1634 = tpu.matmul %1632, %1633, %cst_325 {dimension_numbers = #tpu.dot_dimension_numbers<[1], [0], [0], [1], [0, 0, 1, 1], [], []>} : vector<2x32xf32>, vector<32x32xf32>, vector<2x32xf32> -> vector<2x32xf32>
    %c776 = arith.constant 776 : index
    %c0_326 = arith.constant 0 : index
    %1635 = vector.load %arg3[%c776, %c0_326] : memref<784x128xf32, #tpu.memory_space<vmem>>, vector<1x32xf32>
    %1636 = vector.broadcast %1635 : vector<1x32xf32> to vector<2x32xf32>
    %1637 = arith.addf %1634, %1636 : vector<2x32xf32>
    %1638 = tpu.concatenate %1517, %1557, %1597, %1637 in 1 : vector<2x4xf32>, vector<2x8xf32>, vector<2x16xf32>, vector<2x32xf32> -> vector<2x60xf32>
    %c0_327 = arith.constant 0 : index
    %c0_328 = arith.constant 0 : index
    %1639 = vector.load %arg4[%c0_327, %c0_328] : memref<2x60xf32, #tpu.memory_space<vmem>>, vector<2x60xf32>
    tpu.vector_store %arg4[%c0_327, %c0_328], %1638 {strides = array<i32>} : memref<2x60xf32, #tpu.memory_space<vmem>>, vector<2x60xf32>,
    %1640 = tpu.concatenate %1508, %1548, %1588, %1628 in 1 : vector<2x8xf32>, vector<2x8xf32>, vector<2x8xf32>, vector<2x8xf32> -> vector<2x32xf32>
    %c0_329 = arith.constant 0 : index
    %c0_330 = arith.constant 0 : index
    %1641 = vector.load %arg5[%c0_329, %c0_330] : memref<2x32xf32, #tpu.memory_space<vmem>>, vector<2x32xf32>
    tpu.vector_store %arg5[%c0_329, %c0_330], %1640 {strides = array<i32>} : memref<2x32xf32, #tpu.memory_space<vmem>>, vector<2x32xf32>,
    return
  }
}

</mosaic_0001>

<llo_original>
// kernel: conv_gru_attn_forward.1
$region0: #{conv_gru_attn_forward.1}
  #allocation0 [shape = 'u32[]', space=smem, size = 0x4, offset = 0x4, fixed_abs, tag = 'smem constant byte address 0x4 - core index']
  #allocation1 [shape = 'u32[144,128]{1,0:T(1,128)}', space=vmem, size = 0x12000, scoped, tag = 'internal scratch']
  %s0 = inlined_call_operand.vmem [shape: f32[16,1], index: 0, kind: input, shape index: {}]
  %s1 = inlined_call_operand.vmem [shape: f32[2,8], index: 1, kind: input, shape index: {}]
  %s2 = inlined_call_operand.vmem [shape: f32[2,8], index: 2, kind: input, shape index: {}]
  %s3 = inlined_call_operand.hbm [shape: f32[784,128], index: 3, kind: input, shape index: {}]
  %s4 = inlined_call_operand.hbm [shape: f32[2,60], index: 4, kind: output, shape index: {0}]
  %s5 = inlined_call_operand.vmem [shape: f32[2,32], index: 5, kind: output, shape index: {1}]
  %6 = xla_tuple %s4, %s5
  %s7 = sld [smem:[#allocation0]]
  $region38: #{conv_gru_attn_forward.1} parent=0
    _
  %s9 = ssub.s32 1, %s7
  %s10 = scalar_select 0, %s9, %s7
  $region1: #{conv_gru_attn_forward.1} parent=0
    #allocation2 [shape = 'u8[401408]{0}', space=vmem, size = 0x62000, scoped, tag = 'input window, operand 3, single buffered']
    #allocation3 [shape = 's32[1]{0}', space=sflag, size = 0x4, scoped, tag = 'scoped memory for conv_gru_attn_forward.1']
    #allocation4 [shape = 's32[1]{0}', space=sflag, size = 0x4, scoped, tag = 'scoped memory for conv_gru_attn_forward.1']
    #allocation5 [shape = 'u8[1024]{0}', space=vmem, size = 0x400, scoped, tag = 'output window, operand 0, single buffered']
    %11 = vsyncpa [#allocation3], 0
    %12 = vsyncpa [#allocation4], 0
    // Predicated region
    $region2: #{conv_gru_attn_forward.1} parent=1 // pred_check
      _
    $region3: #{conv_gru_attn_forward.1} parent=1 // pred_check_branch
      %14 = sbr.rel (0) target = $region5
    $region4: #{conv_gru_attn_forward.1} parent=1 // pred_region
      _
    $region5: #{conv_gru_attn_forward.1} parent=1 // pred_fallthru
      _
    // Predicated region
    $region6: #{conv_gru_attn_forward.1} parent=1 // pred_check
      _
    $region7: #{conv_gru_attn_forward.1} parent=1 // pred_check_branch
      %16 = sbr.rel (0) target = $region9
    $region8: #{conv_gru_attn_forward.1} parent=1 // pred_region
      _
    $region9: #{conv_gru_attn_forward.1} parent=1 // pred_fallthru
      _
    // Predicated region
    $region10: #{conv_gru_attn_forward.1} parent=1 // pred_check
      _
    $region11: #{conv_gru_attn_forward.1} parent=1 // pred_check_branch
      %18 = sbr.rel (0) target = $region13
    $region12: #{conv_gru_attn_forward.1} parent=1 // pred_region
      _
    $region13: #{conv_gru_attn_forward.1} parent=1 // pred_fallthru
      _
    // Predicated region
    $region14: #{conv_gru_attn_forward.1} parent=1 // pred_check
      _
    $region15: #{conv_gru_attn_forward.1} parent=1 // pred_check_branch
      %20 = sbr.rel (0) target = $region17
    $region16: #{conv_gru_attn_forward.1} parent=1 // pred_region
      %s22 = ssub.s32 12544, 12544
      %23 = vsyncadd [#allocation3], %s22
      %s24 = sshll.u32 [#allocation2], 4
      %s25 = int_to_ptr.vmem [resolvable:$true] %s24
      %30 = dma.hbm_to_vmem [thread:$0]  %s3, 12544, %s25, [#allocation3], 128, 128, 8
    $region17: #{conv_gru_attn_forward.1} parent=1 // pred_fallthru
      _
    // Predicated region
    $region18: #{conv_gru_attn_forward.1} parent=1 // pred_check
      _
    $region19: #{conv_gru_attn_forward.1} parent=1 // pred_check_branch
      %32 = sbr.rel (0) target = $region21
    $region20: #{conv_gru_attn_forward.1} parent=1 // pred_region
      %33 = dma.done [#allocation3], 12544
    $region21: #{conv_gru_attn_forward.1} parent=1 // pred_fallthru
      _
    %v34 = vld [vmem:[%s1] sm:$0x3]
    %v35 = vld [vmem:[%s2] sm:$0x3]
    %v36 = vld [vmem:[%s0] sm:$0xff]
    %v37 = vld [vmem:[%s0 + $0x8] sm:$0xff]
    %v38 = vld [vmem:[#allocation2] sm:$0x1]
    %40 = vset.pattern.permute.xlu0 0
    %41 = vperm.xlu0 %40, %v36
    %v42 = vpop.permute.xlu0 %41
    %45 = vset.pattern.permute.xlu0 0
    %46 = vperm.xlu0 %45, %v37
    %v47 = vpop.permute.xlu0 %46
    %v49 = vlaneseq
    %v50 = vshrl.u32 %v49, 7
    %v51 = vsub.s32 0, %v50
    %v52 = vrot.slane %v38, %v51
    %v53 = vmul.f32 %v42, %v52
    %v54 = vmul.f32 %v47, %v52
    %v55 = vld [vmem:[#allocation2 + $0x8] sm:$0x1]
    %v56 = vlaneseq
    %v57 = vshrl.u32 %v56, 7
    %v58 = vsub.s32 0, %v57
    %v59 = vrot.slane %v55, %v58
    %v60 = vadd.f32 %v53, %v59
    %v61 = vadd.f32 %v54, %v59
    %v62 = vld [vmem:[#allocation2 + $0x10] sm:$0xff]
    %v63 = vld [vmem:[#allocation2 + $0x18] sm:$0xff]
    %v64 = vld [vmem:[#allocation2 + $0x20] sm:$0xff]
    %v65 = vld [vmem:[#allocation2 + $0x28] sm:$0xff]
    %v66 = vld [vmem:[#allocation2 + $0x30] sm:$0x1]
    %vm67 = vcmask 261120
    %v69 = vsel %vm67, %v60, 0
    %v72 = vsel %vm67, %v61, 0
    %74 = vmatprep.subr.mxu0 0.0
    %75 = vmatpush1.msra.mxu0 %v62
    %76 = vmatprep.subr.mxu0 0.0
    %77 = vmatpush1.msra.mxu0 %v63
    %78 = vmatprep.subr.mxu0 0.0
    %79 = vmatpush1.msra.mxu0 %v64
    %80 = vmatprep.subr.mxu0 0.0
    %81 = vmatpush1.msra.mxu0 %v65
    %82 = vmatprep.subr.mxu0 0.0
    %83 = vmatpush1.msra.mxu0 0.0
    %84 = vmatprep.subr.mxu0 0.0
    %85 = vmatpush1.msra.mxu0 0.0
    %86 = vmatprep.subr.mxu0 0.0
    %87 = vmatpush1.msra.mxu0 0.0
    %88 = vmatprep.subr.mxu0 0.0
    %89 = vmatpush1.msra.mxu0 0.0
    %90 = vmatprep.subr.mxu0 0.0
    %91 = vmatpush1.msra.mxu0 0.0
    %92 = vmatprep.subr.mxu0 0.0
    %93 = vmatpush1.msra.mxu0 0.0
    %94 = vmatprep.subr.mxu0 0.0
    %95 = vmatpush1.msra.mxu0 0.0
    %96 = vmatprep.subr.mxu0 0.0
    %97 = vmatpush1.msra.mxu0 0.0
    %98 = vmatprep.subr.mxu0 0.0
    %99 = vmatpush1.msra.mxu0 0.0
    %100 = vmatprep.subr.mxu0 0.0
    %101 = vmatpush1.msra.mxu0 0.0
    %102 = vmatprep.subr.mxu0 0.0
    %103 = vmatpush1.msra.mxu0 0.0
    %104 = vmatprep.subr.mxu0 0.0
    %105 = vmatpush1.msra.mxu0 0.0
    %106 = vmatprep.subr.mxu0 0.0
    %107 = vmatpush1.msra.mxu0 0.0
    %108 = vmatprep.subr.mxu0 0.0
    %109 = vmatpush1.msra.mxu0 0.0
    %110 = vmatprep.subr.mxu0 0.0
    %111 = vmatpush1.msra.mxu0 0.0
    %112 = vmatprep.subr.mxu0 0.0
    %113 = vmatpush1.msra.mxu0 0.0
    %114 = vmatprep.subr.mxu0 0.0
    %115 = vmatpush1.msra.mxu0 0.0
    %116 = vmatprep.subr.mxu0 0.0
    %117 = vmatpush1.msra.mxu0 0.0
    %118 = vmatprep.subr.mxu0 0.0
    %119 = vmatpush1.msra.mxu0 0.0
    %120 = vmatprep.subr.mxu0 0.0
    %121 = vmatpush1.msra.mxu0 0.0
    %122 = vmatprep.subr.mxu0 0.0
    %123 = vmatpush1.msra.mxu0 0.0
    %124 = vmatprep.subr.mxu0 0.0
    %125 = vmatpush1.msra.mxu0 0.0
    %126 = vmatprep.subr.mxu0 0.0
    %127 = vmatpush1.msra.mxu0 0.0
    %128 = vmatprep.subr.mxu0 0.0
    %129 = vmatpush1.msra.mxu0 0.0
    %130 = vmatprep.subr.mxu0 0.0
    %131 = vmatpush1.msra.mxu0 0.0
    %132 = vmatprep.subr.mxu0 0.0
    %133 = vmatpush1.msra.mxu0 0.0
    %134 = vmatprep.subr.mxu0 0.0
    %135 = vmatpush1.msra.mxu0 0.0
    %136 = vmatprep.subr.mxu0 0.0
    %137 = vmatpush1.msra.mxu0 0.0
    %138 = vmatprep.mubr.f32.mxu0 0.0
    %139 = vmatmul.mubr.f32.gmra.mrb[0].mxu0 %v69
    %v140 = vpop.f32.mrb[0].mxu0
    %v141 = vadd.f32 0.0, %v140
    %v142 = vpop.f32.mrb[0].mxu0
    %143 = vmatprep.mubr.f32.mxu0 0.0
    %144 = vmatmul.mubr.f32.gmra.mrb[0].mxu0 %v72
    %v145 = vpop.f32.mrb[0].mxu0
    %v146 = vadd.f32 0.0, %v145
    %v147 = vpop.f32.mrb[0].mxu0
    %148 = vdwg.mxu0
    %v151 = vrot.slane %v141, 5
    %v152 = vrot.slane %v146, 5
    %vm155 = vcmask 1042432
    %v156 = vsel %vm155, 0.0, %v151
    %v157 = vsel %vm155, 0.0, %v152
    %160 = vrot.lane.b32.xlu0 %v156, 12
    %v161 = vpop.permute.xlu0 %160
    %162 = vrot.lane.b32.xlu0 %v157, 12
    %v163 = vpop.permute.xlu0 %162
    %v166 = vadd.f32 %v141, %v161
    %v167 = vadd.f32 %v146, %v163
    %v168 = vrot.slane %v141, 6
    %v169 = vrot.slane %v146, 6
    %170 = vrot.lane.b32.xlu0 %v168, 124
    %v171 = vpop.permute.xlu0 %170
    %172 = vrot.lane.b32.xlu0 %v169, 124
    %v173 = vpop.permute.xlu0 %172
    %vm176 = vcmask 1041408
    %v177 = vsel %vm176, 0.0, %v171
    %v178 = vsel %vm176, 0.0, %v173
    %181 = vrot.lane.b32.xlu0 %v177, 12
    %v182 = vpop.permute.xlu0 %181
    %183 = vrot.lane.b32.xlu0 %v178, 12
    %v184 = vpop.permute.xlu0 %183
    %v187 = vadd.f32 %v166, %v182
    %v188 = vadd.f32 %v167, %v184
    %v189 = vrot.slane %v141, 7
    %v190 = vrot.slane %v146, 7
    %191 = vrot.lane.b32.xlu0 %v189, 120
    %v192 = vpop.permute.xlu0 %191
    %193 = vrot.lane.b32.xlu0 %v190, 120
    %v194 = vpop.permute.xlu0 %193
    %vm197 = vcmask 1040384
    %v198 = vsel %vm197, 0.0, %v192
    %v199 = vsel %vm197, 0.0, %v194
    %202 = vrot.lane.b32.xlu0 %v198, 12
    %v203 = vpop.permute.xlu0 %202
    %204 = vrot.lane.b32.xlu0 %v199, 12
    %v205 = vpop.permute.xlu0 %204
    %v208 = vadd.f32 %v187, %v203
    %v209 = vadd.f32 %v188, %v205
    %v210 = vlaneseq
    %v211 = vshrl.u32 %v210, 7
    %v212 = vsub.s32 0, %v211
    %v213 = vrot.slane %v66, %v212
    %215 = vrot.lane.b32.xlu0 %v213, 12
    %v216 = vpop.permute.xlu0 %215
    %v218 = vadd.f32 %v208, %v216
    %v219 = vadd.f32 %v209, %v216
    %v220 = vmax.f32 %v218, 0.0
    %v221 = vmax.f32 %v219, 0.0
    %v222 = vld [vmem:[#allocation2 + $0x38] sm:$0xf]
    %v223 = vld [vmem:[#allocation2 + $0x40] sm:$0x1]
    %226 = vrot.lane.b32.xlu0 %v220, 116
    %v227 = vpop.permute.xlu0 %226
    %228 = vrot.lane.b32.xlu0 %v221, 116
    %v229 = vpop.permute.xlu0 %228
    %vm230 = vcmask 31744
    %v231 = vsel %vm230, %v227, 0
    %v233 = vsel %vm230, %v229, 0
    %vm235 = vcmask 1043456
    %v237 = vsel %vm235, %v222, 0
    %239 = vmatprep.subr.mxu0 0.0
    %240 = vmatpush1.msra.mxu0 %v237
    %241 = vmatprep.subr.mxu0 0.0
    %242 = vmatpush1.msra.mxu0 0.0
    %243 = vmatprep.subr.mxu0 0.0
    %244 = vmatpush1.msra.mxu0 0.0
    %245 = vmatprep.subr.mxu0 0.0
    %246 = vmatpush1.msra.mxu0 0.0
    %247 = vmatprep.subr.mxu0 0.0
    %248 = vmatpush1.msra.mxu0 0.0
    %249 = vmatprep.subr.mxu0 0.0
    %250 = vmatpush1.msra.mxu0 0.0
    %251 = vmatprep.subr.mxu0 0.0
    %252 = vmatpush1.msra.mxu0 0.0
    %253 = vmatprep.subr.mxu0 0.0
    %254 = vmatpush1.msra.mxu0 0.0
    %255 = vmatprep.subr.mxu0 0.0
    %256 = vmatpush1.msra.mxu0 0.0
    %257 = vmatprep.subr.mxu0 0.0
    %258 = vmatpush1.msra.mxu0 0.0
    %259 = vmatprep.subr.mxu0 0.0
    %260 = vmatpush1.msra.mxu0 0.0
    %261 = vmatprep.subr.mxu0 0.0
    %262 = vmatpush1.msra.mxu0 0.0
    %263 = vmatprep.subr.mxu0 0.0
    %264 = vmatpush1.msra.mxu0 0.0
    %265 = vmatprep.subr.mxu0 0.0
    %266 = vmatpush1.msra.mxu0 0.0
    %267 = vmatprep.subr.mxu0 0.0
    %268 = vmatpush1.msra.mxu0 0.0
    %269 = vmatprep.subr.mxu0 0.0
    %270 = vmatpush1.msra.mxu0 0.0
    %271 = vmatprep.subr.mxu0 0.0
    %272 = vmatpush1.msra.mxu0 0.0
    %273 = vmatprep.subr.mxu0 0.0
    %274 = vmatpush1.msra.mxu0 0.0
    %275 = vmatprep.subr.mxu0 0.0
    %276 = vmatpush1.msra.mxu0 0.0
    %277 = vmatprep.subr.mxu0 0.0
    %278 = vmatpush1.msra.mxu0 0.0
    %279 = vmatprep.subr.mxu0 0.0
    %280 = vmatpush1.msra.mxu0 0.0
    %281 = vmatprep.subr.mxu0 0.0
    %282 = vmatpush1.msra.mxu0 0.0
    %283 = vmatprep.subr.mxu0 0.0
    %284 = vmatpush1.msra.mxu0 0.0
    %285 = vmatprep.subr.mxu0 0.0
    %286 = vmatpush1.msra.mxu0 0.0
    %287 = vmatprep.subr.mxu0 0.0
    %288 = vmatpush1.msra.mxu0 0.0
    %289 = vmatprep.subr.mxu0 0.0
    %290 = vmatpush1.msra.mxu0 0.0
    %291 = vmatprep.subr.mxu0 0.0
    %292 = vmatpush1.msra.mxu0 0.0
    %293 = vmatprep.subr.mxu0 0.0
    %294 = vmatpush1.msra.mxu0 0.0
    %295 = vmatprep.subr.mxu0 0.0
    %296 = vmatpush1.msra.mxu0 0.0
    %297 = vmatprep.subr.mxu0 0.0
    %298 = vmatpush1.msra.mxu0 0.0
    %299 = vmatprep.subr.mxu0 0.0
    %300 = vmatpush1.msra.mxu0 0.0
    %301 = vmatprep.subr.mxu0 0.0
    %302 = vmatpush1.msra.mxu0 0.0
    %303 = vmatprep.mubr.f32.mxu0 0.0
    %304 = vmatmul.mubr.f32.gmra.mrb[0].mxu0 %v231
    %v305 = vpop.f32.mrb[0].mxu0
    %v306 = vadd.f32 0.0, %v305
    %v307 = vpop.f32.mrb[0].mxu0
    %308 = vmatprep.mubr.f32.mxu0 0.0
    %309 = vmatmul.mubr.f32.gmra.mrb[0].mxu0 %v233
    %v310 = vpop.f32.mrb[0].mxu0
    %v311 = vadd.f32 0.0, %v310
    %v312 = vpop.f32.mrb[0].mxu0
    %313 = vdwg.mxu0
    %v316 = vrot.slane %v306, 5
    %v317 = vrot.slane %v311, 5
    %v320 = vsel %vm155, 0.0, %v316
    %v321 = vsel %vm155, 0.0, %v317
    %324 = vrot.lane.b32.xlu0 %v320, 12
    %v325 = vpop.permute.xlu0 %324
    %326 = vrot.lane.b32.xlu0 %v321, 12
    %v327 = vpop.permute.xlu0 %326
    %v330 = vadd.f32 %v306, %v325
    %v331 = vadd.f32 %v311, %v327
    %v332 = vrot.slane %v306, 6
    %v333 = vrot.slane %v311, 6
    %334 = vrot.lane.b32.xlu0 %v332, 124
    %v335 = vpop.permute.xlu0 %334
    %336 = vrot.lane.b32.xlu0 %v333, 124
    %v337 = vpop.permute.xlu0 %336
    %v340 = vsel %vm176, 0.0, %v335
    %v341 = vsel %vm176, 0.0, %v337
    %344 = vrot.lane.b32.xlu0 %v340, 12
    %v345 = vpop.permute.xlu0 %344
    %346 = vrot.lane.b32.xlu0 %v341, 12
    %v347 = vpop.permute.xlu0 %346
    %v350 = vadd.f32 %v330, %v345
    %v351 = vadd.f32 %v331, %v347
    %v352 = vrot.slane %v306, 7
    %v353 = vrot.slane %v311, 7
    %354 = vrot.lane.b32.xlu0 %v352, 120
    %v355 = vpop.permute.xlu0 %354
    %356 = vrot.lane.b32.xlu0 %v353, 120
    %v357 = vpop.permute.xlu0 %356
    %v360 = vsel %vm197, 0.0, %v355
    %v361 = vsel %vm197, 0.0, %v357
    %364 = vrot.lane.b32.xlu0 %v360, 12
    %v365 = vpop.permute.xlu0 %364
    %366 = vrot.lane.b32.xlu0 %v361, 12
    %v367 = vpop.permute.xlu0 %366
    %v370 = vadd.f32 %v350, %v365
    %v371 = vadd.f32 %v351, %v367
    %v372 = vlaneseq
    %v373 = vshrl.u32 %v372, 7
    %v374 = vsub.s32 0, %v373
    %v375 = vrot.slane %v223, %v374
    %377 = vrot.lane.b32.xlu0 %v375, 12
    %v378 = vpop.permute.xlu0 %377
    %v380 = vadd.f32 %v370, %v378
    %v381 = vadd.f32 %v371, %v378
    %v382 = vmax.f32 %v380, 0.0
    %v383 = vmax.f32 %v381, 0.0
    %v384 = vld [vmem:[#allocation2 + $0x48] sm:$0xff]
    %v385 = vld [vmem:[#allocation2 + $0x50] sm:$0xff]
    %v386 = vld [vmem:[#allocation2 + $0x58] sm:$0xff]
    %v387 = vld [vmem:[#allocation2 + $0x60] sm:$0xff]
    %v388 = vld [vmem:[#allocation2 + $0x68] sm:$0x1]
    %v389 = vlaneseq
    %v390 = vshrl.u32 %v389, 7
    %v391 = vsub.s32 0, %v390
    %v392 = vrot.slane %v388, %v391
    %393 = vmatprep.subr.mxu0 0.0
    %394 = vmatpush1.msra.mxu0 %v384
    %395 = vmatprep.subr.mxu0 0.0
    %396 = vmatpush1.msra.mxu0 %v385
    %397 = vmatprep.subr.mxu0 0.0
    %398 = vmatpush1.msra.mxu0 %v386
    %399 = vmatprep.subr.mxu0 0.0
    %400 = vmatpush1.msra.mxu0 %v387
    %401 = vmatprep.subr.mxu0 0.0
    %402 = vmatpush1.msra.mxu0 0.0
    %403 = vmatprep.subr.mxu0 0.0
    %404 = vmatpush1.msra.mxu0 0.0
    %405 = vmatprep.subr.mxu0 0.0
    %406 = vmatpush1.msra.mxu0 0.0
    %407 = vmatprep.subr.mxu0 0.0
    %408 = vmatpush1.msra.mxu0 0.0
    %409 = vmatprep.subr.mxu0 0.0
    %410 = vmatpush1.msra.mxu0 0.0
    %411 = vmatprep.subr.mxu0 0.0
    %412 = vmatpush1.msra.mxu0 0.0
    %413 = vmatprep.subr.mxu0 0.0
    %414 = vmatpush1.msra.mxu0 0.0
    %415 = vmatprep.subr.mxu0 0.0
    %416 = vmatpush1.msra.mxu0 0.0
    %417 = vmatprep.subr.mxu0 0.0
    %418 = vmatpush1.msra.mxu0 0.0
    %419 = vmatprep.subr.mxu0 0.0
    %420 = vmatpush1.msra.mxu0 0.0
    %421 = vmatprep.subr.mxu0 0.0
    %422 = vmatpush1.msra.mxu0 0.0
    %423 = vmatprep.subr.mxu0 0.0
    %424 = vmatpush1.msra.mxu0 0.0
    %425 = vmatprep.subr.mxu0 0.0
    %426 = vmatpush1.msra.mxu0 0.0
    %427 = vmatprep.subr.mxu0 0.0
    %428 = vmatpush1.msra.mxu0 0.0
    %429 = vmatprep.subr.mxu0 0.0
    %430 = vmatpush1.msra.mxu0 0.0
    %431 = vmatprep.subr.mxu0 0.0
    %432 = vmatpush1.msra.mxu0 0.0
    %433 = vmatprep.subr.mxu0 0.0
    %434 = vmatpush1.msra.mxu0 0.0
    %435 = vmatprep.subr.mxu0 0.0
    %436 = vmatpush1.msra.mxu0 0.0
    %437 = vmatprep.subr.mxu0 0.0
    %438 = vmatpush1.msra.mxu0 0.0
    %439 = vmatprep.subr.mxu0 0.0
    %440 = vmatpush1.msra.mxu0 0.0
    %441 = vmatprep.subr.mxu0 0.0
    %442 = vmatpush1.msra.mxu0 0.0
    %443 = vmatprep.subr.mxu0 0.0
    %444 = vmatpush1.msra.mxu0 0.0
    %445 = vmatprep.subr.mxu0 0.0
    %446 = vmatpush1.msra.mxu0 0.0
    %447 = vmatprep.subr.mxu0 0.0
    %448 = vmatpush1.msra.mxu0 0.0
    %449 = vmatprep.subr.mxu0 0.0
    %450 = vmatpush1.msra.mxu0 0.0
    %451 = vmatprep.subr.mxu0 0.0
    %452 = vmatpush1.msra.mxu0 0.0
    %453 = vmatprep.subr.mxu0 0.0
    %454 = vmatpush1.msra.mxu0 0.0
    %455 = vmatprep.subr.mxu0 0.0
    %456 = vmatpush1.msra.mxu0 0.0
    %457 = vmatprep.mubr.f32.mxu0 0.0
    %458 = vmatmul.mubr.f32.gmra.mrb[0].mxu0 %v69
    %v459 = vpop.f32.mrb[0].mxu0
    %v460 = vadd.f32 %v392, %v459
    %v461 = vpop.f32.mrb[0].mxu0
    %462 = vmatprep.mubr.f32.mxu0 0.0
    %463 = vmatmul.mubr.f32.gmra.mrb[0].mxu0 %v72
    %v464 = vpop.f32.mrb[0].mxu0
    %v465 = vadd.f32 %v392, %v464
    %v466 = vpop.f32.mrb[0].mxu0
    %467 = vdwg.mxu0
    %470 = vrot.lane.b32.xlu0 %v460, 12
    %v471 = vpop.permute.xlu0 %470
    %472 = vrot.lane.b32.xlu0 %v465, 12
    %v473 = vpop.permute.xlu0 %472
    %v476 = vadd.f32 %v382, %v471
    %v477 = vadd.f32 %v383, %v473
    %v478 = vmax.f32 %v476, 0.0
    %v479 = vmax.f32 %v477, 0.0
    %v480 = vld [vmem:[#allocation2 + $0xc0] sm:$0xf]
    %v481 = vld [vmem:[#allocation2 + $0xc8] sm:$0x1]
    %484 = vrot.lane.b32.xlu0 %v478, 116
    %v485 = vpop.permute.xlu0 %484
    %486 = vrot.lane.b32.xlu0 %v479, 116
    %v487 = vpop.permute.xlu0 %486
    %v488 = vsel %vm230, %v485, 0
    %v490 = vsel %vm230, %v487, 0
    %v493 = vsel %vm235, %v480, 0
    %495 = vmatprep.subr.mxu0 0.0
    %496 = vmatpush1.msra.mxu0 %v493
    %497 = vmatprep.subr.mxu0 0.0
    %498 = vmatpush1.msra.mxu0 0.0
    %499 = vmatprep.subr.mxu0 0.0
    %500 = vmatpush1.msra.mxu0 0.0
    %501 = vmatprep.subr.mxu0 0.0
    %502 = vmatpush1.msra.mxu0 0.0
    %503 = vmatprep.subr.mxu0 0.0
    %504 = vmatpush1.msra.mxu0 0.0
    %505 = vmatprep.subr.mxu0 0.0
    %506 = vmatpush1.msra.mxu0 0.0
    %507 = vmatprep.subr.mxu0 0.0
    %508 = vmatpush1.msra.mxu0 0.0
    %509 = vmatprep.subr.mxu0 0.0
    %510 = vmatpush1.msra.mxu0 0.0
    %511 = vmatprep.subr.mxu0 0.0
    %512 = vmatpush1.msra.mxu0 0.0
    %513 = vmatprep.subr.mxu0 0.0
    %514 = vmatpush1.msra.mxu0 0.0
    %515 = vmatprep.subr.mxu0 0.0
    %516 = vmatpush1.msra.mxu0 0.0
    %517 = vmatprep.subr.mxu0 0.0
    %518 = vmatpush1.msra.mxu0 0.0
    %519 = vmatprep.subr.mxu0 0.0
    %520 = vmatpush1.msra.mxu0 0.0
    %521 = vmatprep.subr.mxu0 0.0
    %522 = vmatpush1.msra.mxu0 0.0
    %523 = vmatprep.subr.mxu0 0.0
    %524 = vmatpush1.msra.mxu0 0.0
    %525 = vmatprep.subr.mxu0 0.0
    %526 = vmatpush1.msra.mxu0 0.0
    %527 = vmatprep.subr.mxu0 0.0
    %528 = vmatpush1.msra.mxu0 0.0
    %529 = vmatprep.subr.mxu0 0.0
    %530 = vmatpush1.msra.mxu0 0.0
    %531 = vmatprep.subr.mxu0 0.0
    %532 = vmatpush1.msra.mxu0 0.0
    %533 = vmatprep.subr.mxu0 0.0
    %534 = vmatpush1.msra.mxu0 0.0
    %535 = vmatprep.subr.mxu0 0.0
    %536 = vmatpush1.msra.mxu0 0.0
    %537 = vmatprep.subr.mxu0 0.0
    %538 = vmatpush1.msra.mxu0 0.0
    %539 = vmatprep.subr.mxu0 0.0
    %540 = vmatpush1.msra.mxu0 0.0
    %541 = vmatprep.subr.mxu0 0.0
    %542 = vmatpush1.msra.mxu0 0.0
    %543 = vmatprep.subr.mxu0 0.0
    %544 = vmatpush1.msra.mxu0 0.0
    %545 = vmatprep.subr.mxu0 0.0
    %546 = vmatpush1.msra.mxu0 0.0
    %547 = vmatprep.subr.mxu0 0.0
    %548 = vmatpush1.msra.mxu0 0.0
    %549 = vmatprep.subr.mxu0 0.0
    %550 = vmatpush1.msra.mxu0 0.0
    %551 = vmatprep.subr.mxu0 0.0
    %552 = vmatpush1.msra.mxu0 0.0
    %553 = vmatprep.subr.mxu0 0.0
    %554 = vmatpush1.msra.mxu0 0.0
    %555 = vmatprep.subr.mxu0 0.0
    %556 = vmatpush1.msra.mxu0 0.0
    %557 = vmatprep.subr.mxu0 0.0
    %558 = vmatpush1.msra.mxu0 0.0
    %559 = vmatprep.mubr.f32.mxu0 0.0
    %560 = vmatmul.mubr.f32.gmra.mrb[0].mxu0 %v488
    %v561 = vpop.f32.mrb[0].mxu0
    %v562 = vadd.f32 0.0, %v561
    %v563 = vpop.f32.mrb[0].mxu0
    %564 = vmatprep.mubr.f32.mxu0 0.0
    %565 = vmatmul.mubr.f32.gmra.mrb[0].mxu0 %v490
    %v566 = vpop.f32.mrb[0].mxu0
    %v567 = vadd.f32 0.0, %v566
    %v568 = vpop.f32.mrb[0].mxu0
    %569 = vdwg.mxu0
    %v572 = vrot.slane %v562, 5
    %v573 = vrot.slane %v567, 5
    %v576 = vsel %vm155, 0.0, %v572
    %v577 = vsel %vm155, 0.0, %v573
    %580 = vrot.lane.b32.xlu0 %v576, 24
    %v581 = vpop.permute.xlu0 %580
    %582 = vrot.lane.b32.xlu0 %v577, 24
    %v583 = vpop.permute.xlu0 %582
    %v586 = vadd.f32 %v562, %v581
    %v587 = vadd.f32 %v567, %v583
    %v588 = vrot.slane %v562, 6
    %v589 = vrot.slane %v567, 6
    %590 = vrot.lane.b32.xlu0 %v588, 120
    %v591 = vpop.permute.xlu0 %590
    %592 = vrot.lane.b32.xlu0 %v589, 120
    %v593 = vpop.permute.xlu0 %592
    %v596 = vsel %vm176, 0.0, %v591
    %v597 = vsel %vm176, 0.0, %v593
    %600 = vrot.lane.b32.xlu0 %v596, 24
    %v601 = vpop.permute.xlu0 %600
    %602 = vrot.lane.b32.xlu0 %v597, 24
    %v603 = vpop.permute.xlu0 %602
    %v606 = vadd.f32 %v586, %v601
    %v607 = vadd.f32 %v587, %v603
    %v608 = vrot.slane %v562, 7
    %v609 = vrot.slane %v567, 7
    %610 = vrot.lane.b32.xlu0 %v608, 112
    %v611 = vpop.permute.xlu0 %610
    %612 = vrot.lane.b32.xlu0 %v609, 112
    %v613 = vpop.permute.xlu0 %612
    %v616 = vsel %vm197, 0.0, %v611
    %v617 = vsel %vm197, 0.0, %v613
    %620 = vrot.lane.b32.xlu0 %v616, 24
    %v621 = vpop.permute.xlu0 %620
    %622 = vrot.lane.b32.xlu0 %v617, 24
    %v623 = vpop.permute.xlu0 %622
    %v626 = vadd.f32 %v606, %v621
    %v627 = vadd.f32 %v607, %v623
    %v628 = vlaneseq
    %v629 = vshrl.u32 %v628, 7
    %v630 = vsub.s32 0, %v629
    %v631 = vrot.slane %v481, %v630
    %633 = vrot.lane.b32.xlu0 %v631, 24
    %v634 = vpop.permute.xlu0 %633
    %v636 = vadd.f32 %v626, %v634
    %v637 = vadd.f32 %v627, %v634
    %v638 = vmax.f32 %v636, 0.0
    %v639 = vmax.f32 %v637, 0.0
    %v640 = vld [vmem:[#allocation2 + $0xd0] sm:$0xff]
    %v641 = vld [vmem:[#allocation2 + $0xd8] sm:$0x1]
    %644 = vrot.lane.b32.xlu0 %v638, 104
    %v645 = vpop.permute.xlu0 %644
    %646 = vrot.lane.b32.xlu0 %v639, 104
    %v647 = vpop.permute.xlu0 %646
    %vm648 = vcmask 64512
    %v649 = vsel %vm648, %v645, 0
    %v651 = vsel %vm648, %v647, 0
    %653 = vmatprep.subr.mxu0 0.0
    %654 = vmatpush1.msra.mxu0 %v640
    %655 = vmatprep.subr.mxu0 0.0
    %656 = vmatpush1.msra.mxu0 0.0
    %657 = vmatprep.subr.mxu0 0.0
    %658 = vmatpush1.msra.mxu0 0.0
    %659 = vmatprep.subr.mxu0 0.0
    %660 = vmatpush1.msra.mxu0 0.0
    %661 = vmatprep.subr.mxu0 0.0
    %662 = vmatpush1.msra.mxu0 0.0
    %663 = vmatprep.subr.mxu0 0.0
    %664 = vmatpush1.msra.mxu0 0.0
    %665 = vmatprep.subr.mxu0 0.0
    %666 = vmatpush1.msra.mxu0 0.0
    %667 = vmatprep.subr.mxu0 0.0
    %668 = vmatpush1.msra.mxu0 0.0
    %669 = vmatprep.subr.mxu0 0.0
    %670 = vmatpush1.msra.mxu0 0.0
    %671 = vmatprep.subr.mxu0 0.0
    %672 = vmatpush1.msra.mxu0 0.0
    %673 = vmatprep.subr.mxu0 0.0
    %674 = vmatpush1.msra.mxu0 0.0
    %675 = vmatprep.subr.mxu0 0.0
    %676 = vmatpush1.msra.mxu0 0.0
    %677 = vmatprep.subr.mxu0 0.0
    %678 = vmatpush1.msra.mxu0 0.0
    %679 = vmatprep.subr.mxu0 0.0
    %680 = vmatpush1.msra.mxu0 0.0
    %681 = vmatprep.subr.mxu0 0.0
    %682 = vmatpush1.msra.mxu0 0.0
    %683 = vmatprep.subr.mxu0 0.0
    %684 = vmatpush1.msra.mxu0 0.0
    %685 = vmatprep.subr.mxu0 0.0
    %686 = vmatpush1.msra.mxu0 0.0
    %687 = vmatprep.subr.mxu0 0.0
    %688 = vmatpush1.msra.mxu0 0.0
    %689 = vmatprep.subr.mxu0 0.0
    %690 = vmatpush1.msra.mxu0 0.0
    %691 = vmatprep.subr.mxu0 0.0
    %692 = vmatpush1.msra.mxu0 0.0
    %693 = vmatprep.subr.mxu0 0.0
    %694 = vmatpush1.msra.mxu0 0.0
    %695 = vmatprep.subr.mxu0 0.0
    %696 = vmatpush1.msra.mxu0 0.0
    %697 = vmatprep.subr.mxu0 0.0
    %698 = vmatpush1.msra.mxu0 0.0
    %699 = vmatprep.subr.mxu0 0.0
    %700 = vmatpush1.msra.mxu0 0.0
    %701 = vmatprep.subr.mxu0 0.0
    %702 = vmatpush1.msra.mxu0 0.0
    %703 = vmatprep.subr.mxu0 0.0
    %704 = vmatpush1.msra.mxu0 0.0
    %705 = vmatprep.subr.mxu0 0.0
    %706 = vmatpush1.msra.mxu0 0.0
    %707 = vmatprep.subr.mxu0 0.0
    %708 = vmatpush1.msra.mxu0 0.0
    %709 = vmatprep.subr.mxu0 0.0
    %710 = vmatpush1.msra.mxu0 0.0
    %711 = vmatprep.subr.mxu0 0.0
    %712 = vmatpush1.msra.mxu0 0.0
    %713 = vmatprep.subr.mxu0 0.0
    %714 = vmatpush1.msra.mxu0 0.0
    %715 = vmatprep.subr.mxu0 0.0
    %716 = vmatpush1.msra.mxu0 0.0
    %717 = vmatprep.mubr.f32.mxu0 0.0
    %718 = vmatmul.mubr.f32.gmra.mrb[0].mxu0 %v649
    %v719 = vpop.f32.mrb[0].mxu0
    %v720 = vadd.f32 0.0, %v719
    %v721 = vpop.f32.mrb[0].mxu0
    %722 = vmatprep.mubr.f32.mxu0 0.0
    %723 = vmatmul.mubr.f32.gmra.mrb[0].mxu0 %v651
    %v724 = vpop.f32.mrb[0].mxu0
    %v725 = vadd.f32 0.0, %v724
    %v726 = vpop.f32.mrb[0].mxu0
    %727 = vdwg.mxu0
    %v730 = vrot.slane %v720, 5
    %v731 = vrot.slane %v725, 5
    %v734 = vsel %vm155, 0.0, %v730
    %v735 = vsel %vm155, 0.0, %v731
    %738 = vrot.lane.b32.xlu0 %v734, 24
    %v739 = vpop.permute.xlu0 %738
    %740 = vrot.lane.b32.xlu0 %v735, 24
    %v741 = vpop.permute.xlu0 %740
    %v744 = vadd.f32 %v720, %v739
    %v745 = vadd.f32 %v725, %v741
    %v746 = vrot.slane %v720, 6
    %v747 = vrot.slane %v725, 6
    %748 = vrot.lane.b32.xlu0 %v746, 120
    %v749 = vpop.permute.xlu0 %748
    %750 = vrot.lane.b32.xlu0 %v747, 120
    %v751 = vpop.permute.xlu0 %750
    %v754 = vsel %vm176, 0.0, %v749
    %v755 = vsel %vm176, 0.0, %v751
    %758 = vrot.lane.b32.xlu0 %v754, 24
    %v759 = vpop.permute.xlu0 %758
    %760 = vrot.lane.b32.xlu0 %v755, 24
    %v761 = vpop.permute.xlu0 %760
    %v764 = vadd.f32 %v744, %v759
    %v765 = vadd.f32 %v745, %v761
    %v766 = vrot.slane %v720, 7
    %v767 = vrot.slane %v725, 7
    %768 = vrot.lane.b32.xlu0 %v766, 112
    %v769 = vpop.permute.xlu0 %768
    %770 = vrot.lane.b32.xlu0 %v767, 112
    %v771 = vpop.permute.xlu0 %770
    %v774 = vsel %vm197, 0.0, %v769
    %v775 = vsel %vm197, 0.0, %v771
    %778 = vrot.lane.b32.xlu0 %v774, 24
    %v779 = vpop.permute.xlu0 %778
    %780 = vrot.lane.b32.xlu0 %v775, 24
    %v781 = vpop.permute.xlu0 %780
    %v784 = vadd.f32 %v764, %v779
    %v785 = vadd.f32 %v765, %v781
    %v786 = vlaneseq
    %v787 = vshrl.u32 %v786, 7
    %v788 = vsub.s32 0, %v787
    %v789 = vrot.slane %v641, %v788
    %791 = vrot.lane.b32.xlu0 %v789, 24
    %v792 = vpop.permute.xlu0 %791
    %v794 = vadd.f32 %v784, %v792
    %v795 = vadd.f32 %v785, %v792
    %v796 = vmax.f32 %v794, 0.0
    %v797 = vmax.f32 %v795, 0.0
    %v798 = vld [vmem:[#allocation2 + $0xe0] sm:$0xf]
    %v799 = vld [vmem:[#allocation2 + $0xe8] sm:$0x1]
    %v800 = vlaneseq
    %v801 = vshrl.u32 %v800, 7
    %v802 = vsub.s32 0, %v801
    %v803 = vrot.slane %v799, %v802
    %v805 = vsel %vm235, %v798, 0
    %807 = vmatprep.subr.mxu0 0.0
    %808 = vmatpush1.msra.mxu0 %v805
    %809 = vmatprep.subr.mxu0 0.0
    %810 = vmatpush1.msra.mxu0 0.0
    %811 = vmatprep.subr.mxu0 0.0
    %812 = vmatpush1.msra.mxu0 0.0
    %813 = vmatprep.subr.mxu0 0.0
    %814 = vmatpush1.msra.mxu0 0.0
    %815 = vmatprep.subr.mxu0 0.0
    %816 = vmatpush1.msra.mxu0 0.0
    %817 = vmatprep.subr.mxu0 0.0
    %818 = vmatpush1.msra.mxu0 0.0
    %819 = vmatprep.subr.mxu0 0.0
    %820 = vmatpush1.msra.mxu0 0.0
    %821 = vmatprep.subr.mxu0 0.0
    %822 = vmatpush1.msra.mxu0 0.0
    %823 = vmatprep.subr.mxu0 0.0
    %824 = vmatpush1.msra.mxu0 0.0
    %825 = vmatprep.subr.mxu0 0.0
    %826 = vmatpush1.msra.mxu0 0.0
    %827 = vmatprep.subr.mxu0 0.0
    %828 = vmatpush1.msra.mxu0 0.0
    %829 = vmatprep.subr.mxu0 0.0
    %830 = vmatpush1.msra.mxu0 0.0
    %831 = vmatprep.subr.mxu0 0.0
    %832 = vmatpush1.msra.mxu0 0.0
    %833 = vmatprep.subr.mxu0 0.0
    %834 = vmatpush1.msra.mxu0 0.0
    %835 = vmatprep.subr.mxu0 0.0
    %836 = vmatpush1.msra.mxu0 0.0
    %837 = vmatprep.subr.mxu0 0.0
    %838 = vmatpush1.msra.mxu0 0.0
    %839 = vmatprep.subr.mxu0 0.0
    %840 = vmatpush1.msra.mxu0 0.0
    %841 = vmatprep.subr.mxu0 0.0
    %842 = vmatpush1.msra.mxu0 0.0
    %843 = vmatprep.subr.mxu0 0.0
    %844 = vmatpush1.msra.mxu0 0.0
    %845 = vmatprep.subr.mxu0 0.0
    %846 = vmatpush1.msra.mxu0 0.0
    %847 = vmatprep.subr.mxu0 0.0
    %848 = vmatpush1.msra.mxu0 0.0
    %849 = vmatprep.subr.mxu0 0.0
    %850 = vmatpush1.msra.mxu0 0.0
    %851 = vmatprep.subr.mxu0 0.0
    %852 = vmatpush1.msra.mxu0 0.0
    %853 = vmatprep.subr.mxu0 0.0
    %854 = vmatpush1.msra.mxu0 0.0
    %855 = vmatprep.subr.mxu0 0.0
    %856 = vmatpush1.msra.mxu0 0.0
    %857 = vmatprep.subr.mxu0 0.0
    %858 = vmatpush1.msra.mxu0 0.0
    %859 = vmatprep.subr.mxu0 0.0
    %860 = vmatpush1.msra.mxu0 0.0
    %861 = vmatprep.subr.mxu0 0.0
    %862 = vmatpush1.msra.mxu0 0.0
    %863 = vmatprep.subr.mxu0 0.0
    %864 = vmatpush1.msra.mxu0 0.0
    %865 = vmatprep.subr.mxu0 0.0
    %866 = vmatpush1.msra.mxu0 0.0
    %867 = vmatprep.subr.mxu0 0.0
    %868 = vmatpush1.msra.mxu0 0.0
    %869 = vmatprep.subr.mxu0 0.0
    %870 = vmatpush1.msra.mxu0 0.0
    %871 = vmatprep.mubr.f32.mxu0 0.0
    %872 = vmatmul.mubr.f32.gmra.mrb[0].mxu0 %v488
    %v873 = vpop.f32.mrb[0].mxu0
    %v874 = vadd.f32 %v803, %v873
    %v875 = vpop.f32.mrb[0].mxu0
    %876 = vmatprep.mubr.f32.mxu0 0.0
    %877 = vmatmul.mubr.f32.gmra.mrb[0].mxu0 %v490
    %v878 = vpop.f32.mrb[0].mxu0
    %v879 = vadd.f32 %v803, %v878
    %v880 = vpop.f32.mrb[0].mxu0
    %881 = vdwg.mxu0
    %884 = vrot.lane.b32.xlu0 %v874, 24
    %v885 = vpop.permute.xlu0 %884
    %886 = vrot.lane.b32.xlu0 %v879, 24
    %v887 = vpop.permute.xlu0 %886
    %v890 = vadd.f32 %v796, %v885
    %v891 = vadd.f32 %v797, %v887
    %v892 = vmax.f32 %v890, 0.0
    %v893 = vmax.f32 %v891, 0.0
    %v894 = vld [vmem:[#allocation2 + $0x140] sm:$0xff]
    %v895 = vld [vmem:[#allocation2 + $0x148] sm:$0x1]
    %898 = vrot.lane.b32.xlu0 %v892, 104
    %v899 = vpop.permute.xlu0 %898
    %900 = vrot.lane.b32.xlu0 %v893, 104
    %v901 = vpop.permute.xlu0 %900
    %v902 = vsel %vm648, %v899, 0
    %v904 = vsel %vm648, %v901, 0
    %906 = vmatprep.subr.mxu0 0.0
    %907 = vmatpush1.msra.mxu0 %v894
    %908 = vmatprep.subr.mxu0 0.0
    %909 = vmatpush1.msra.mxu0 0.0
    %910 = vmatprep.subr.mxu0 0.0
    %911 = vmatpush1.msra.mxu0 0.0
    %912 = vmatprep.subr.mxu0 0.0
    %913 = vmatpush1.msra.mxu0 0.0
    %914 = vmatprep.subr.mxu0 0.0
    %915 = vmatpush1.msra.mxu0 0.0
    %916 = vmatprep.subr.mxu0 0.0
    %917 = vmatpush1.msra.mxu0 0.0
    %918 = vmatprep.subr.mxu0 0.0
    %919 = vmatpush1.msra.mxu0 0.0
    %920 = vmatprep.subr.mxu0 0.0
    %921 = vmatpush1.msra.mxu0 0.0
    %922 = vmatprep.subr.mxu0 0.0
    %923 = vmatpush1.msra.mxu0 0.0
    %924 = vmatprep.subr.mxu0 0.0
    %925 = vmatpush1.msra.mxu0 0.0
    %926 = vmatprep.subr.mxu0 0.0
    %927 = vmatpush1.msra.mxu0 0.0
    %928 = vmatprep.subr.mxu0 0.0
    %929 = vmatpush1.msra.mxu0 0.0
    %930 = vmatprep.subr.mxu0 0.0
    %931 = vmatpush1.msra.mxu0 0.0
    %932 = vmatprep.subr.mxu0 0.0
    %933 = vmatpush1.msra.mxu0 0.0
    %934 = vmatprep.subr.mxu0 0.0
    %935 = vmatpush1.msra.mxu0 0.0
    %936 = vmatprep.subr.mxu0 0.0
    %937 = vmatpush1.msra.mxu0 0.0
    %938 = vmatprep.subr.mxu0 0.0
    %939 = vmatpush1.msra.mxu0 0.0
    %940 = vmatprep.subr.mxu0 0.0
    %941 = vmatpush1.msra.mxu0 0.0
    %942 = vmatprep.subr.mxu0 0.0
    %943 = vmatpush1.msra.mxu0 0.0
    %944 = vmatprep.subr.mxu0 0.0
    %945 = vmatpush1.msra.mxu0 0.0
    %946 = vmatprep.subr.mxu0 0.0
    %947 = vmatpush1.msra.mxu0 0.0
    %948 = vmatprep.subr.mxu0 0.0
    %949 = vmatpush1.msra.mxu0 0.0
    %950 = vmatprep.subr.mxu0 0.0
    %951 = vmatpush1.msra.mxu0 0.0
    %952 = vmatprep.subr.mxu0 0.0
    %953 = vmatpush1.msra.mxu0 0.0
    %954 = vmatprep.subr.mxu0 0.0
    %955 = vmatpush1.msra.mxu0 0.0
    %956 = vmatprep.subr.mxu0 0.0
    %957 = vmatpush1.msra.mxu0 0.0
    %958 = vmatprep.subr.mxu0 0.0
    %959 = vmatpush1.msra.mxu0 0.0
    %960 = vmatprep.subr.mxu0 0.0
    %961 = vmatpush1.msra.mxu0 0.0
    %962 = vmatprep.subr.mxu0 0.0
    %963 = vmatpush1.msra.mxu0 0.0
    %964 = vmatprep.subr.mxu0 0.0
    %965 = vmatpush1.msra.mxu0 0.0
    %966 = vmatprep.subr.mxu0 0.0
    %967 = vmatpush1.msra.mxu0 0.0
    %968 = vmatprep.subr.mxu0 0.0
    %969 = vmatpush1.msra.mxu0 0.0
    %970 = vmatprep.mubr.f32.mxu0 0.0
    %971 = vmatmul.mubr.f32.gmra.mrb[0].mxu0 %v902
    %v972 = vpop.f32.mrb[0].mxu0
    %v973 = vadd.f32 0.0, %v972
    %v974 = vpop.f32.mrb[0].mxu0
    %975 = vmatprep.mubr.f32.mxu0 0.0
    %976 = vmatmul.mubr.f32.gmra.mrb[0].mxu0 %v904
    %v977 = vpop.f32.mrb[0].mxu0
    %v978 = vadd.f32 0.0, %v977
    %v979 = vpop.f32.mrb[0].mxu0
    %980 = vdwg.mxu0
    %v983 = vrot.slane %v973, 5
    %v984 = vrot.slane %v978, 5
    %v987 = vsel %vm155, 0.0, %v983
    %v988 = vsel %vm155, 0.0, %v984
    %991 = vrot.lane.b32.xlu0 %v987, 48
    %v992 = vpop.permute.xlu0 %991
    %993 = vrot.lane.b32.xlu0 %v988, 48
    %v994 = vpop.permute.xlu0 %993
    %v997 = vadd.f32 %v973, %v992
    %v998 = vadd.f32 %v978, %v994
    %v999 = vrot.slane %v973, 6
    %v1000 = vrot.slane %v978, 6
    %1001 = vrot.lane.b32.xlu0 %v999, 112
    %v1002 = vpop.permute.xlu0 %1001
    %1003 = vrot.lane.b32.xlu0 %v1000, 112
    %v1004 = vpop.permute.xlu0 %1003
    %v1007 = vsel %vm176, 0.0, %v1002
    %v1008 = vsel %vm176, 0.0, %v1004
    %1011 = vrot.lane.b32.xlu0 %v1007, 48
    %v1012 = vpop.permute.xlu0 %1011
    %1013 = vrot.lane.b32.xlu0 %v1008, 48
    %v1014 = vpop.permute.xlu0 %1013
    %v1017 = vadd.f32 %v997, %v1012
    %v1018 = vadd.f32 %v998, %v1014
    %v1019 = vrot.slane %v973, 7
    %v1020 = vrot.slane %v978, 7
    %1021 = vrot.lane.b32.xlu0 %v1019, 96
    %v1022 = vpop.permute.xlu0 %1021
    %1023 = vrot.lane.b32.xlu0 %v1020, 96
    %v1024 = vpop.permute.xlu0 %1023
    %v1027 = vsel %vm197, 0.0, %v1022
    %v1028 = vsel %vm197, 0.0, %v1024
    %1031 = vrot.lane.b32.xlu0 %v1027, 48
    %v1032 = vpop.permute.xlu0 %1031
    %1033 = vrot.lane.b32.xlu0 %v1028, 48
    %v1034 = vpop.permute.xlu0 %1033
    %v1037 = vadd.f32 %v1017, %v1032
    %v1038 = vadd.f32 %v1018, %v1034
    %v1039 = vlaneseq
    %v1040 = vshrl.u32 %v1039, 7
    %v1041 = vsub.s32 0, %v1040
    %v1042 = vrot.slane %v895, %v1041
    %1044 = vrot.lane.b32.xlu0 %v1042, 48
    %v1045 = vpop.permute.xlu0 %1044
    %v1047 = vadd.f32 %v1037, %v1045
    %v1048 = vadd.f32 %v1038, %v1045
    %v1049 = vmax.f32 %v1047, 0.0
    %v1050 = vmax.f32 %v1048, 0.0
    %v1051 = vld [vmem:[#allocation2 + $0x150] sm:$0xff]
    %v1052 = vld [vmem:[#allocation2 + $0x158] sm:$0xff]
    %v1053 = vld [vmem:[#allocation2 + $0x160] sm:$0x1]
    %1056 = vrot.lane.b32.xlu0 %v1049, 80
    %v1057 = vpop.permute.xlu0 %1056
    %1058 = vrot.lane.b32.xlu0 %v1050, 80
    %v1059 = vpop.permute.xlu0 %1058
    %vm1060 = vcmask 130048
    %v1061 = vsel %vm1060, %v1057, 0
    %v1063 = vsel %vm1060, %v1059, 0
    %1065 = vmatprep.subr.mxu0 0.0
    %1066 = vmatpush1.msra.mxu0 %v1051
    %1067 = vmatprep.subr.mxu0 0.0
    %1068 = vmatpush1.msra.mxu0 %v1052
    %1069 = vmatprep.subr.mxu0 0.0
    %1070 = vmatpush1.msra.mxu0 0.0
    %1071 = vmatprep.subr.mxu0 0.0
    %1072 = vmatpush1.msra.mxu0 0.0
    %1073 = vmatprep.subr.mxu0 0.0
    %1074 = vmatpush1.msra.mxu0 0.0
    %1075 = vmatprep.subr.mxu0 0.0
    %1076 = vmatpush1.msra.mxu0 0.0
    %1077 = vmatprep.subr.mxu0 0.0
    %1078 = vmatpush1.msra.mxu0 0.0
    %1079 = vmatprep.subr.mxu0 0.0
    %1080 = vmatpush1.msra.mxu0 0.0
    %1081 = vmatprep.subr.mxu0 0.0
    %1082 = vmatpush1.msra.mxu0 0.0
    %1083 = vmatprep.subr.mxu0 0.0
    %1084 = vmatpush1.msra.mxu0 0.0
    %1085 = vmatprep.subr.mxu0 0.0
    %1086 = vmatpush1.msra.mxu0 0.0
    %1087 = vmatprep.subr.mxu0 0.0
    %1088 = vmatpush1.msra.mxu0 0.0
    %1089 = vmatprep.subr.mxu0 0.0
    %1090 = vmatpush1.msra.mxu0 0.0
    %1091 = vmatprep.subr.mxu0 0.0
    %1092 = vmatpush1.msra.mxu0 0.0
    %1093 = vmatprep.subr.mxu0 0.0
    %1094 = vmatpush1.msra.mxu0 0.0
    %1095 = vmatprep.subr.mxu0 0.0
    %1096 = vmatpush1.msra.mxu0 0.0
    %1097 = vmatprep.subr.mxu0 0.0
    %1098 = vmatpush1.msra.mxu0 0.0
    %1099 = vmatprep.subr.mxu0 0.0
    %1100 = vmatpush1.msra.mxu0 0.0
    %1101 = vmatprep.subr.mxu0 0.0
    %1102 = vmatpush1.msra.mxu0 0.0
    %1103 = vmatprep.subr.mxu0 0.0
    %1104 = vmatpush1.msra.mxu0 0.0
    %1105 = vmatprep.subr.mxu0 0.0
    %1106 = vmatpush1.msra.mxu0 0.0
    %1107 = vmatprep.subr.mxu0 0.0
    %1108 = vmatpush1.msra.mxu0 0.0
    %1109 = vmatprep.subr.mxu0 0.0
    %1110 = vmatpush1.msra.mxu0 0.0
    %1111 = vmatprep.subr.mxu0 0.0
    %1112 = vmatpush1.msra.mxu0 0.0
    %1113 = vmatprep.subr.mxu0 0.0
    %1114 = vmatpush1.msra.mxu0 0.0
    %1115 = vmatprep.subr.mxu0 0.0
    %1116 = vmatpush1.msra.mxu0 0.0
    %1117 = vmatprep.subr.mxu0 0.0
    %1118 = vmatpush1.msra.mxu0 0.0
    %1119 = vmatprep.subr.mxu0 0.0
    %1120 = vmatpush1.msra.mxu0 0.0
    %1121 = vmatprep.subr.mxu0 0.0
    %1122 = vmatpush1.msra.mxu0 0.0
    %1123 = vmatprep.subr.mxu0 0.0
    %1124 = vmatpush1.msra.mxu0 0.0
    %1125 = vmatprep.subr.mxu0 0.0
    %1126 = vmatpush1.msra.mxu0 0.0
    %1127 = vmatprep.subr.mxu0 0.0
    %1128 = vmatpush1.msra.mxu0 0.0
    %1129 = vmatprep.mubr.f32.mxu0 0.0
    %1130 = vmatmul.mubr.f32.gmra.mrb[0].mxu0 %v1061
    %v1131 = vpop.f32.mrb[0].mxu0
    %v1132 = vadd.f32 0.0, %v1131
    %v1133 = vpop.f32.mrb[0].mxu0
    %1134 = vmatprep.mubr.f32.mxu0 0.0
    %1135 = vmatmul.mubr.f32.gmra.mrb[0].mxu0 %v1063
    %v1136 = vpop.f32.mrb[0].mxu0
    %v1137 = vadd.f32 0.0, %v1136
    %v1138 = vpop.f32.mrb[0].mxu0
    %1139 = vdwg.mxu0
    %v1142 = vrot.slane %v1132, 5
    %v1143 = vrot.slane %v1137, 5
    %v1146 = vsel %vm155, 0.0, %v1142
    %v1147 = vsel %vm155, 0.0, %v1143
    %1150 = vrot.lane.b32.xlu0 %v1146, 48
    %v1151 = vpop.permute.xlu0 %1150
    %1152 = vrot.lane.b32.xlu0 %v1147, 48
    %v1153 = vpop.permute.xlu0 %1152
    %v1156 = vadd.f32 %v1132, %v1151
    %v1157 = vadd.f32 %v1137, %v1153
    %v1158 = vrot.slane %v1132, 6
    %v1159 = vrot.slane %v1137, 6
    %1160 = vrot.lane.b32.xlu0 %v1158, 112
    %v1161 = vpop.permute.xlu0 %1160
    %1162 = vrot.lane.b32.xlu0 %v1159, 112
    %v1163 = vpop.permute.xlu0 %1162
    %v1166 = vsel %vm176, 0.0, %v1161
    %v1167 = vsel %vm176, 0.0, %v1163
    %1170 = vrot.lane.b32.xlu0 %v1166, 48
    %v1171 = vpop.permute.xlu0 %1170
    %1172 = vrot.lane.b32.xlu0 %v1167, 48
    %v1173 = vpop.permute.xlu0 %1172
    %v1176 = vadd.f32 %v1156, %v1171
    %v1177 = vadd.f32 %v1157, %v1173
    %v1178 = vrot.slane %v1132, 7
    %v1179 = vrot.slane %v1137, 7
    %1180 = vrot.lane.b32.xlu0 %v1178, 96
    %v1181 = vpop.permute.xlu0 %1180
    %1182 = vrot.lane.b32.xlu0 %v1179, 96
    %v1183 = vpop.permute.xlu0 %1182
    %v1186 = vsel %vm197, 0.0, %v1181
    %v1187 = vsel %vm197, 0.0, %v1183
    %1190 = vrot.lane.b32.xlu0 %v1186, 48
    %v1191 = vpop.permute.xlu0 %1190
    %1192 = vrot.lane.b32.xlu0 %v1187, 48
    %v1193 = vpop.permute.xlu0 %1192
    %v1196 = vadd.f32 %v1176, %v1191
    %v1197 = vadd.f32 %v1177, %v1193
    %v1198 = vlaneseq
    %v1199 = vshrl.u32 %v1198, 7
    %v1200 = vsub.s32 0, %v1199
    %v1201 = vrot.slane %v1053, %v1200
    %1203 = vrot.lane.b32.xlu0 %v1201, 48
    %v1204 = vpop.permute.xlu0 %1203
    %v1206 = vadd.f32 %v1196, %v1204
    %v1207 = vadd.f32 %v1197, %v1204
    %v1208 = vmax.f32 %v1206, 0.0
    %v1209 = vmax.f32 %v1207, 0.0
    %v1210 = vld [vmem:[#allocation2 + $0x168] sm:$0xff]
    %v1211 = vld [vmem:[#allocation2 + $0x170] sm:$0x1]
    %v1212 = vlaneseq
    %v1213 = vshrl.u32 %v1212, 7
    %v1214 = vsub.s32 0, %v1213
    %v1215 = vrot.slane %v1211, %v1214
    %1216 = vmatprep.subr.mxu0 0.0
    %1217 = vmatpush1.msra.mxu0 %v1210
    %1218 = vmatprep.subr.mxu0 0.0
    %1219 = vmatpush1.msra.mxu0 0.0
    %1220 = vmatprep.subr.mxu0 0.0
    %1221 = vmatpush1.msra.mxu0 0.0
    %1222 = vmatprep.subr.mxu0 0.0
    %1223 = vmatpush1.msra.mxu0 0.0
    %1224 = vmatprep.subr.mxu0 0.0
    %1225 = vmatpush1.msra.mxu0 0.0
    %1226 = vmatprep.subr.mxu0 0.0
    %1227 = vmatpush1.msra.mxu0 0.0
    %1228 = vmatprep.subr.mxu0 0.0
    %1229 = vmatpush1.msra.mxu0 0.0
    %1230 = vmatprep.subr.mxu0 0.0
    %1231 = vmatpush1.msra.mxu0 0.0
    %1232 = vmatprep.subr.mxu0 0.0
    %1233 = vmatpush1.msra.mxu0 0.0
    %1234 = vmatprep.subr.mxu0 0.0
    %1235 = vmatpush1.msra.mxu0 0.0
    %1236 = vmatprep.subr.mxu0 0.0
    %1237 = vmatpush1.msra.mxu0 0.0
    %1238 = vmatprep.subr.mxu0 0.0
    %1239 = vmatpush1.msra.mxu0 0.0
    %1240 = vmatprep.subr.mxu0 0.0
    %1241 = vmatpush1.msra.mxu0 0.0
    %1242 = vmatprep.subr.mxu0 0.0
    %1243 = vmatpush1.msra.mxu0 0.0
    %1244 = vmatprep.subr.mxu0 0.0
    %1245 = vmatpush1.msra.mxu0 0.0
    %1246 = vmatprep.subr.mxu0 0.0
    %1247 = vmatpush1.msra.mxu0 0.0
    %1248 = vmatprep.subr.mxu0 0.0
    %1249 = vmatpush1.msra.mxu0 0.0
    %1250 = vmatprep.subr.mxu0 0.0
    %1251 = vmatpush1.msra.mxu0 0.0
    %1252 = vmatprep.subr.mxu0 0.0
    %1253 = vmatpush1.msra.mxu0 0.0
    %1254 = vmatprep.subr.mxu0 0.0
    %1255 = vmatpush1.msra.mxu0 0.0
    %1256 = vmatprep.subr.mxu0 0.0
    %1257 = vmatpush1.msra.mxu0 0.0
    %1258 = vmatprep.subr.mxu0 0.0
    %1259 = vmatpush1.msra.mxu0 0.0
    %1260 = vmatprep.subr.mxu0 0.0
    %1261 = vmatpush1.msra.mxu0 0.0
    %1262 = vmatprep.subr.mxu0 0.0
    %1263 = vmatpush1.msra.mxu0 0.0
    %1264 = vmatprep.subr.mxu0 0.0
    %1265 = vmatpush1.msra.mxu0 0.0
    %1266 = vmatprep.subr.mxu0 0.0
    %1267 = vmatpush1.msra.mxu0 0.0
    %1268 = vmatprep.subr.mxu0 0.0
    %1269 = vmatpush1.msra.mxu0 0.0
    %1270 = vmatprep.subr.mxu0 0.0
    %1271 = vmatpush1.msra.mxu0 0.0
    %1272 = vmatprep.subr.mxu0 0.0
    %1273 = vmatpush1.msra.mxu0 0.0
    %1274 = vmatprep.subr.mxu0 0.0
    %1275 = vmatpush1.msra.mxu0 0.0
    %1276 = vmatprep.subr.mxu0 0.0
    %1277 = vmatpush1.msra.mxu0 0.0
    %1278 = vmatprep.subr.mxu0 0.0
    %1279 = vmatpush1.msra.mxu0 0.0
    %1280 = vmatprep.mubr.f32.mxu0 0.0
    %1281 = vmatmul.mubr.f32.gmra.mrb[0].mxu0 %v902
    %v1282 = vpop.f32.mrb[0].mxu0
    %v1283 = vadd.f32 %v1215, %v1282
    %v1284 = vpop.f32.mrb[0].mxu0
    %1285 = vmatprep.mubr.f32.mxu0 0.0
    %1286 = vmatmul.mubr.f32.gmra.mrb[0].mxu0 %v904
    %v1287 = vpop.f32.mrb[0].mxu0
    %v1288 = vadd.f32 %v1215, %v1287
    %v1289 = vpop.f32.mrb[0].mxu0
    %1290 = vdwg.mxu0
    %1293 = vrot.lane.b32.xlu0 %v1283, 48
    %v1294 = vpop.permute.xlu0 %1293
    %1295 = vrot.lane.b32.xlu0 %v1288, 48
    %v1296 = vpop.permute.xlu0 %1295
    %v1299 = vadd.f32 %v1208, %v1294
    %v1300 = vadd.f32 %v1209, %v1296
    %v1301 = vmax.f32 %v1299, 0.0
    %v1302 = vmax.f32 %v1300, 0.0
    %v1303 = vld [vmem:[#allocation2 + $0x1f0] sm:$0xff]
    %v1304 = vld [vmem:[#allocation2 + $0x1f8] sm:$0xff]
    %v1305 = vld [vmem:[#allocation2 + $0x200] sm:$0x1]
    %1308 = vrot.lane.b32.xlu0 %v1301, 80
    %v1309 = vpop.permute.xlu0 %1308
    %1310 = vrot.lane.b32.xlu0 %v1302, 80
    %v1311 = vpop.permute.xlu0 %1310
    %v1312 = vsel %vm1060, %v1309, 0
    %v1314 = vsel %vm1060, %v1311, 0
    %1316 = vmatprep.subr.mxu0 0.0
    %1317 = vmatpush1.msra.mxu0 %v1303
    %1318 = vmatprep.subr.mxu0 0.0
    %1319 = vmatpush1.msra.mxu0 %v1304
    %1320 = vmatprep.subr.mxu0 0.0
    %1321 = vmatpush1.msra.mxu0 0.0
    %1322 = vmatprep.subr.mxu0 0.0
    %1323 = vmatpush1.msra.mxu0 0.0
    %1324 = vmatprep.subr.mxu0 0.0
    %1325 = vmatpush1.msra.mxu0 0.0
    %1326 = vmatprep.subr.mxu0 0.0
    %1327 = vmatpush1.msra.mxu0 0.0
    %1328 = vmatprep.subr.mxu0 0.0
    %1329 = vmatpush1.msra.mxu0 0.0
    %1330 = vmatprep.subr.mxu0 0.0
    %1331 = vmatpush1.msra.mxu0 0.0
    %1332 = vmatprep.subr.mxu0 0.0
    %1333 = vmatpush1.msra.mxu0 0.0
    %1334 = vmatprep.subr.mxu0 0.0
    %1335 = vmatpush1.msra.mxu0 0.0
    %1336 = vmatprep.subr.mxu0 0.0
    %1337 = vmatpush1.msra.mxu0 0.0
    %1338 = vmatprep.subr.mxu0 0.0
    %1339 = vmatpush1.msra.mxu0 0.0
    %1340 = vmatprep.subr.mxu0 0.0
    %1341 = vmatpush1.msra.mxu0 0.0
    %1342 = vmatprep.subr.mxu0 0.0
    %1343 = vmatpush1.msra.mxu0 0.0
    %1344 = vmatprep.subr.mxu0 0.0
    %1345 = vmatpush1.msra.mxu0 0.0
    %1346 = vmatprep.subr.mxu0 0.0
    %1347 = vmatpush1.msra.mxu0 0.0
    %1348 = vmatprep.subr.mxu0 0.0
    %1349 = vmatpush1.msra.mxu0 0.0
    %1350 = vmatprep.subr.mxu0 0.0
    %1351 = vmatpush1.msra.mxu0 0.0
    %1352 = vmatprep.subr.mxu0 0.0
    %1353 = vmatpush1.msra.mxu0 0.0
    %1354 = vmatprep.subr.mxu0 0.0
    %1355 = vmatpush1.msra.mxu0 0.0
    %1356 = vmatprep.subr.mxu0 0.0
    %1357 = vmatpush1.msra.mxu0 0.0
    %1358 = vmatprep.subr.mxu0 0.0
    %1359 = vmatpush1.msra.mxu0 0.0
    %1360 = vmatprep.subr.mxu0 0.0
    %1361 = vmatpush1.msra.mxu0 0.0
    %1362 = vmatprep.subr.mxu0 0.0
    %1363 = vmatpush1.msra.mxu0 0.0
    %1364 = vmatprep.subr.mxu0 0.0
    %1365 = vmatpush1.msra.mxu0 0.0
    %1366 = vmatprep.subr.mxu0 0.0
    %1367 = vmatpush1.msra.mxu0 0.0
    %1368 = vmatprep.subr.mxu0 0.0
    %1369 = vmatpush1.msra.mxu0 0.0
    %1370 = vmatprep.subr.mxu0 0.0
    %1371 = vmatpush1.msra.mxu0 0.0
    %1372 = vmatprep.subr.mxu0 0.0
    %1373 = vmatpush1.msra.mxu0 0.0
    %1374 = vmatprep.subr.mxu0 0.0
    %1375 = vmatpush1.msra.mxu0 0.0
    %1376 = vmatprep.subr.mxu0 0.0
    %1377 = vmatpush1.msra.mxu0 0.0
    %1378 = vmatprep.subr.mxu0 0.0
    %1379 = vmatpush1.msra.mxu0 0.0
    %1380 = vmatprep.mubr.f32.mxu0 0.0
    %1381 = vmatmul.mubr.f32.gmra.mrb[0].mxu0 %v1312
    %v1382 = vpop.f32.mrb[0].mxu0
    %v1383 = vadd.f32 0.0, %v1382
    %v1384 = vpop.f32.mrb[0].mxu0
    %1385 = vmatprep.mubr.f32.mxu0 0.0
    %1386 = vmatmul.mubr.f32.gmra.mrb[0].mxu0 %v1314
    %v1387 = vpop.f32.mrb[0].mxu0
    %v1388 = vadd.f32 0.0, %v1387
    %v1389 = vpop.f32.mrb[0].mxu0
    %1390 = vdwg.mxu0
    %v1393 = vrot.slane %v1383, 5
    %v1394 = vrot.slane %v1388, 5
    %v1397 = vsel %vm155, 0.0, %v1393
    %v1398 = vsel %vm155, 0.0, %v1394
    %1401 = vrot.lane.b32.xlu0 %v1397, 96
    %v1402 = vpop.permute.xlu0 %1401
    %1403 = vrot.lane.b32.xlu0 %v1398, 96
    %v1404 = vpop.permute.xlu0 %1403
    %v1407 = vadd.f32 %v1383, %v1402
    %v1408 = vadd.f32 %v1388, %v1404
    %v1409 = vrot.slane %v1383, 6
    %v1410 = vrot.slane %v1388, 6
    %1411 = vrot.lane.b32.xlu0 %v1409, 96
    %v1412 = vpop.permute.xlu0 %1411
    %1413 = vrot.lane.b32.xlu0 %v1410, 96
    %v1414 = vpop.permute.xlu0 %1413
    %v1417 = vsel %vm176, 0.0, %v1412
    %v1418 = vsel %vm176, 0.0, %v1414
    %1421 = vrot.lane.b32.xlu0 %v1417, 96
    %v1422 = vpop.permute.xlu0 %1421
    %1423 = vrot.lane.b32.xlu0 %v1418, 96
    %v1424 = vpop.permute.xlu0 %1423
    %v1427 = vadd.f32 %v1407, %v1422
    %v1428 = vadd.f32 %v1408, %v1424
    %v1429 = vrot.slane %v1383, 7
    %v1430 = vrot.slane %v1388, 7
    %1431 = vrot.lane.b32.xlu0 %v1429, 64
    %v1432 = vpop.permute.xlu0 %1431
    %1433 = vrot.lane.b32.xlu0 %v1430, 64
    %v1434 = vpop.permute.xlu0 %1433
    %v1437 = vsel %vm197, 0.0, %v1432
    %v1438 = vsel %vm197, 0.0, %v1434
    %1441 = vrot.lane.b32.xlu0 %v1437, 96
    %v1442 = vpop.permute.xlu0 %1441
    %1443 = vrot.lane.b32.xlu0 %v1438, 96
    %v1444 = vpop.permute.xlu0 %1443
    %v1447 = vadd.f32 %v1427, %v1442
    %v1448 = vadd.f32 %v1428, %v1444
    %v1449 = vlaneseq
    %v1450 = vshrl.u32 %v1449, 7
    %v1451 = vsub.s32 0, %v1450
    %v1452 = vrot.slane %v1305, %v1451
    %1454 = vrot.lane.b32.xlu0 %v1452, 96
    %v1455 = vpop.permute.xlu0 %1454
    %v1457 = vadd.f32 %v1447, %v1455
    %v1458 = vadd.f32 %v1448, %v1455
    %v1459 = vmax.f32 %v1457, 0.0
    %v1460 = vmax.f32 %v1458, 0.0
    %v1461 = vld [vmem:[#allocation2 + $0x208] sm:$0xff]
    %v1462 = vld [vmem:[#allocation2 + $0x210] sm:$0xff]
    %v1463 = vld [vmem:[#allocation2 + $0x218] sm:$0xff]
    %v1464 = vld [vmem:[#allocation2 + $0x220] sm:$0xff]
    %v1465 = vld [vmem:[#allocation2 + $0x228] sm:$0x1]
    %1468 = vrot.lane.b32.xlu0 %v1459, 32
    %v1469 = vpop.permute.xlu0 %1468
    %1470 = vrot.lane.b32.xlu0 %v1460, 32
    %v1471 = vpop.permute.xlu0 %1470
    %v1472 = vsel %vm67, %v1469, 0
    %v1474 = vsel %vm67, %v1471, 0
    %1476 = vmatprep.subr.mxu0 0.0
    %1477 = vmatpush1.msra.mxu0 %v1461
    %1478 = vmatprep.subr.mxu0 0.0
    %1479 = vmatpush1.msra.mxu0 %v1462
    %1480 = vmatprep.subr.mxu0 0.0
    %1481 = vmatpush1.msra.mxu0 %v1463
    %1482 = vmatprep.subr.mxu0 0.0
    %1483 = vmatpush1.msra.mxu0 %v1464
    %1484 = vmatprep.subr.mxu0 0.0
    %1485 = vmatpush1.msra.mxu0 0.0
    %1486 = vmatprep.subr.mxu0 0.0
    %1487 = vmatpush1.msra.mxu0 0.0
    %1488 = vmatprep.subr.mxu0 0.0
    %1489 = vmatpush1.msra.mxu0 0.0
    %1490 = vmatprep.subr.mxu0 0.0
    %1491 = vmatpush1.msra.mxu0 0.0
    %1492 = vmatprep.subr.mxu0 0.0
    %1493 = vmatpush1.msra.mxu0 0.0
    %1494 = vmatprep.subr.mxu0 0.0
    %1495 = vmatpush1.msra.mxu0 0.0
    %1496 = vmatprep.subr.mxu0 0.0
    %1497 = vmatpush1.msra.mxu0 0.0
    %1498 = vmatprep.subr.mxu0 0.0
    %1499 = vmatpush1.msra.mxu0 0.0
    %1500 = vmatprep.subr.mxu0 0.0
    %1501 = vmatpush1.msra.mxu0 0.0
    %1502 = vmatprep.subr.mxu0 0.0
    %1503 = vmatpush1.msra.mxu0 0.0
    %1504 = vmatprep.subr.mxu0 0.0
    %1505 = vmatpush1.msra.mxu0 0.0
    %1506 = vmatprep.subr.mxu0 0.0
    %1507 = vmatpush1.msra.mxu0 0.0
    %1508 = vmatprep.subr.mxu0 0.0
    %1509 = vmatpush1.msra.mxu0 0.0
    %1510 = vmatprep.subr.mxu0 0.0
    %1511 = vmatpush1.msra.mxu0 0.0
    %1512 = vmatprep.subr.mxu0 0.0
    %1513 = vmatpush1.msra.mxu0 0.0
    %1514 = vmatprep.subr.mxu0 0.0
    %1515 = vmatpush1.msra.mxu0 0.0
    %1516 = vmatprep.subr.mxu0 0.0
    %1517 = vmatpush1.msra.mxu0 0.0
    %1518 = vmatprep.subr.mxu0 0.0
    %1519 = vmatpush1.msra.mxu0 0.0
    %1520 = vmatprep.subr.mxu0 0.0
    %1521 = vmatpush1.msra.mxu0 0.0
    %1522 = vmatprep.subr.mxu0 0.0
    %1523 = vmatpush1.msra.mxu0 0.0
    %1524 = vmatprep.subr.mxu0 0.0
    %1525 = vmatpush1.msra.mxu0 0.0
    %1526 = vmatprep.subr.mxu0 0.0
    %1527 = vmatpush1.msra.mxu0 0.0
    %1528 = vmatprep.subr.mxu0 0.0
    %1529 = vmatpush1.msra.mxu0 0.0
    %1530 = vmatprep.subr.mxu0 0.0
    %1531 = vmatpush1.msra.mxu0 0.0
    %1532 = vmatprep.subr.mxu0 0.0
    %1533 = vmatpush1.msra.mxu0 0.0
    %1534 = vmatprep.subr.mxu0 0.0
    %1535 = vmatpush1.msra.mxu0 0.0
    %1536 = vmatprep.subr.mxu0 0.0
    %1537 = vmatpush1.msra.mxu0 0.0
    %1538 = vmatprep.subr.mxu0 0.0
    %1539 = vmatpush1.msra.mxu0 0.0
    %1540 = vmatprep.mubr.f32.mxu0 0.0
    %1541 = vmatmul.mubr.f32.gmra.mrb[0].mxu0 %v1472
    %v1542 = vpop.f32.mrb[0].mxu0
    %v1543 = vadd.f32 0.0, %v1542
    %v1544 = vpop.f32.mrb[0].mxu0
    %1545 = vmatprep.mubr.f32.mxu0 0.0
    %1546 = vmatmul.mubr.f32.gmra.mrb[0].mxu0 %v1474
    %v1547 = vpop.f32.mrb[0].mxu0
    %v1548 = vadd.f32 0.0, %v1547
    %v1549 = vpop.f32.mrb[0].mxu0
    %1550 = vdwg.mxu0
    %v1553 = vrot.slane %v1543, 5
    %v1554 = vrot.slane %v1548, 5
    %v1557 = vsel %vm155, 0.0, %v1553
    %v1558 = vsel %vm155, 0.0, %v1554
    %1561 = vrot.lane.b32.xlu0 %v1557, 96
    %v1562 = vpop.permute.xlu0 %1561
    %1563 = vrot.lane.b32.xlu0 %v1558, 96
    %v1564 = vpop.permute.xlu0 %1563
    %v1567 = vadd.f32 %v1543, %v1562
    %v1568 = vadd.f32 %v1548, %v1564
    %v1569 = vrot.slane %v1543, 6
    %v1570 = vrot.slane %v1548, 6
    %1571 = vrot.lane.b32.xlu0 %v1569, 96
    %v1572 = vpop.permute.xlu0 %1571
    %1573 = vrot.lane.b32.xlu0 %v1570, 96
    %v1574 = vpop.permute.xlu0 %1573
    %v1577 = vsel %vm176, 0.0, %v1572
    %v1578 = vsel %vm176, 0.0, %v1574
    %1581 = vrot.lane.b32.xlu0 %v1577, 96
    %v1582 = vpop.permute.xlu0 %1581
    %1583 = vrot.lane.b32.xlu0 %v1578, 96
    %v1584 = vpop.permute.xlu0 %1583
    %v1587 = vadd.f32 %v1567, %v1582
    %v1588 = vadd.f32 %v1568, %v1584
    %v1589 = vrot.slane %v1543, 7
    %v1590 = vrot.slane %v1548, 7
    %1591 = vrot.lane.b32.xlu0 %v1589, 64
    %v1592 = vpop.permute.xlu0 %1591
    %1593 = vrot.lane.b32.xlu0 %v1590, 64
    %v1594 = vpop.permute.xlu0 %1593
    %v1597 = vsel %vm197, 0.0, %v1592
    %v1598 = vsel %vm197, 0.0, %v1594
    %1601 = vrot.lane.b32.xlu0 %v1597, 96
    %v1602 = vpop.permute.xlu0 %1601
    %1603 = vrot.lane.b32.xlu0 %v1598, 96
    %v1604 = vpop.permute.xlu0 %1603
    %v1607 = vadd.f32 %v1587, %v1602
    %v1608 = vadd.f32 %v1588, %v1604
    %v1609 = vlaneseq
    %v1610 = vshrl.u32 %v1609, 7
    %v1611 = vsub.s32 0, %v1610
    %v1612 = vrot.slane %v1465, %v1611
    %1614 = vrot.lane.b32.xlu0 %v1612, 96
    %v1615 = vpop.permute.xlu0 %1614
    %v1617 = vadd.f32 %v1607, %v1615
    %v1618 = vadd.f32 %v1608, %v1615
    %v1619 = vmax.f32 %v1617, 0.0
    %v1620 = vmax.f32 %v1618, 0.0
    %v1621 = vld [vmem:[#allocation2 + $0x230] sm:$0xff]
    %v1622 = vld [vmem:[#allocation2 + $0x238] sm:$0xff]
    %v1623 = vld [vmem:[#allocation2 + $0x240] sm:$0x1]
    %v1624 = vlaneseq
    %v1625 = vshrl.u32 %v1624, 7
    %v1626 = vsub.s32 0, %v1625
    %v1627 = vrot.slane %v1623, %v1626
    %1628 = vmatprep.subr.mxu0 0.0
    %1629 = vmatpush1.msra.mxu0 %v1621
    %1630 = vmatprep.subr.mxu0 0.0
    %1631 = vmatpush1.msra.mxu0 %v1622
    %1632 = vmatprep.subr.mxu0 0.0
    %1633 = vmatpush1.msra.mxu0 0.0
    %1634 = vmatprep.subr.mxu0 0.0
    %1635 = vmatpush1.msra.mxu0 0.0
    %1636 = vmatprep.subr.mxu0 0.0
    %1637 = vmatpush1.msra.mxu0 0.0
    %1638 = vmatprep.subr.mxu0 0.0
    %1639 = vmatpush1.msra.mxu0 0.0
    %1640 = vmatprep.subr.mxu0 0.0
    %1641 = vmatpush1.msra.mxu0 0.0
    %1642 = vmatprep.subr.mxu0 0.0
    %1643 = vmatpush1.msra.mxu0 0.0
    %1644 = vmatprep.subr.mxu0 0.0
    %1645 = vmatpush1.msra.mxu0 0.0
    %1646 = vmatprep.subr.mxu0 0.0
    %1647 = vmatpush1.msra.mxu0 0.0
    %1648 = vmatprep.subr.mxu0 0.0
    %1649 = vmatpush1.msra.mxu0 0.0
    %1650 = vmatprep.subr.mxu0 0.0
    %1651 = vmatpush1.msra.mxu0 0.0
    %1652 = vmatprep.subr.mxu0 0.0
    %1653 = vmatpush1.msra.mxu0 0.0
    %1654 = vmatprep.subr.mxu0 0.0
    %1655 = vmatpush1.msra.mxu0 0.0
    %1656 = vmatprep.subr.mxu0 0.0
    %1657 = vmatpush1.msra.mxu0 0.0
    %1658 = vmatprep.subr.mxu0 0.0
    %1659 = vmatpush1.msra.mxu0 0.0
    %1660 = vmatprep.subr.mxu0 0.0
    %1661 = vmatpush1.msra.mxu0 0.0
    %1662 = vmatprep.subr.mxu0 0.0
    %1663 = vmatpush1.msra.mxu0 0.0
    %1664 = vmatprep.subr.mxu0 0.0
    %1665 = vmatpush1.msra.mxu0 0.0
    %1666 = vmatprep.subr.mxu0 0.0
    %1667 = vmatpush1.msra.mxu0 0.0
    %1668 = vmatprep.subr.mxu0 0.0
    %1669 = vmatpush1.msra.mxu0 0.0
    %1670 = vmatprep.subr.mxu0 0.0
    %1671 = vmatpush1.msra.mxu0 0.0
    %1672 = vmatprep.subr.mxu0 0.0
    %1673 = vmatpush1.msra.mxu0 0.0
    %1674 = vmatprep.subr.mxu0 0.0
    %1675 = vmatpush1.msra.mxu0 0.0
    %1676 = vmatprep.subr.mxu0 0.0
    %1677 = vmatpush1.msra.mxu0 0.0
    %1678 = vmatprep.subr.mxu0 0.0
    %1679 = vmatpush1.msra.mxu0 0.0
    %1680 = vmatprep.subr.mxu0 0.0
    %1681 = vmatpush1.msra.mxu0 0.0
    %1682 = vmatprep.subr.mxu0 0.0
    %1683 = vmatpush1.msra.mxu0 0.0
    %1684 = vmatprep.subr.mxu0 0.0
    %1685 = vmatpush1.msra.mxu0 0.0
    %1686 = vmatprep.subr.mxu0 0.0
    %1687 = vmatpush1.msra.mxu0 0.0
    %1688 = vmatprep.subr.mxu0 0.0
    %1689 = vmatpush1.msra.mxu0 0.0
    %1690 = vmatprep.subr.mxu0 0.0
    %1691 = vmatpush1.msra.mxu0 0.0
    %1692 = vmatprep.mubr.f32.mxu0 0.0
    %1693 = vmatmul.mubr.f32.gmra.mrb[0].mxu0 %v1312
    %v1694 = vpop.f32.mrb[0].mxu0
    %v1695 = vadd.f32 %v1627, %v1694
    %v1696 = vpop.f32.mrb[0].mxu0
    %1697 = vmatprep.mubr.f32.mxu0 0.0
    %1698 = vmatmul.mubr.f32.gmra.mrb[0].mxu0 %v1314
    %v1699 = vpop.f32.mrb[0].mxu0
    %v1700 = vadd.f32 %v1627, %v1699
    %v1701 = vpop.f32.mrb[0].mxu0
    %1702 = vdwg.mxu0
    %1705 = vrot.lane.b32.xlu0 %v1695, 96
    %v1706 = vpop.permute.xlu0 %1705
    %1707 = vrot.lane.b32.xlu0 %v1700, 96
    %v1708 = vpop.permute.xlu0 %1707
    %v1711 = vadd.f32 %v1619, %v1706
    %v1712 = vadd.f32 %v1620, %v1708
    %v1713 = vmax.f32 %v1711, 0.0
    %v1714 = vmax.f32 %v1712, 0.0
    %v1715 = vld [vmem:[#allocation2 + $0x70] sm:$0xf]
    %v1716 = vld [vmem:[#allocation2 + $0x78] sm:$0x1]
    %v1717 = vlaneseq
    %v1718 = vshrl.u32 %v1717, 7
    %v1719 = vsub.s32 0, %v1718
    %v1720 = vrot.slane %v1716, %v1719
    %v1722 = vsel %vm235, %v1715, 0
    %1724 = vmatprep.subr.mxu0 0.0
    %1725 = vmatpush1.msra.mxu0 %v1722
    %1726 = vmatprep.subr.mxu0 0.0
    %1727 = vmatpush1.msra.mxu0 0.0
    %1728 = vmatprep.subr.mxu0 0.0
    %1729 = vmatpush1.msra.mxu0 0.0
    %1730 = vmatprep.subr.mxu0 0.0
    %1731 = vmatpush1.msra.mxu0 0.0
    %1732 = vmatprep.subr.mxu0 0.0
    %1733 = vmatpush1.msra.mxu0 0.0
    %1734 = vmatprep.subr.mxu0 0.0
    %1735 = vmatpush1.msra.mxu0 0.0
    %1736 = vmatprep.subr.mxu0 0.0
    %1737 = vmatpush1.msra.mxu0 0.0
    %1738 = vmatprep.subr.mxu0 0.0
    %1739 = vmatpush1.msra.mxu0 0.0
    %1740 = vmatprep.subr.mxu0 0.0
    %1741 = vmatpush1.msra.mxu0 0.0
    %1742 = vmatprep.subr.mxu0 0.0
    %1743 = vmatpush1.msra.mxu0 0.0
    %1744 = vmatprep.subr.mxu0 0.0
    %1745 = vmatpush1.msra.mxu0 0.0
    %1746 = vmatprep.subr.mxu0 0.0
    %1747 = vmatpush1.msra.mxu0 0.0
    %1748 = vmatprep.subr.mxu0 0.0
    %1749 = vmatpush1.msra.mxu0 0.0
    %1750 = vmatprep.subr.mxu0 0.0
    %1751 = vmatpush1.msra.mxu0 0.0
    %1752 = vmatprep.subr.mxu0 0.0
    %1753 = vmatpush1.msra.mxu0 0.0
    %1754 = vmatprep.subr.mxu0 0.0
    %1755 = vmatpush1.msra.mxu0 0.0
    %1756 = vmatprep.subr.mxu0 0.0
    %1757 = vmatpush1.msra.mxu0 0.0
    %1758 = vmatprep.subr.mxu0 0.0
    %1759 = vmatpush1.msra.mxu0 0.0
    %1760 = vmatprep.subr.mxu0 0.0
    %1761 = vmatpush1.msra.mxu0 0.0
    %1762 = vmatprep.subr.mxu0 0.0
    %1763 = vmatpush1.msra.mxu0 0.0
    %1764 = vmatprep.subr.mxu0 0.0
    %1765 = vmatpush1.msra.mxu0 0.0
    %1766 = vmatprep.subr.mxu0 0.0
    %1767 = vmatpush1.msra.mxu0 0.0
    %1768 = vmatprep.subr.mxu0 0.0
    %1769 = vmatpush1.msra.mxu0 0.0
    %1770 = vmatprep.subr.mxu0 0.0
    %1771 = vmatpush1.msra.mxu0 0.0
    %1772 = vmatprep.subr.mxu0 0.0
    %1773 = vmatpush1.msra.mxu0 0.0
    %1774 = vmatprep.subr.mxu0 0.0
    %1775 = vmatpush1.msra.mxu0 0.0
    %1776 = vmatprep.subr.mxu0 0.0
    %1777 = vmatpush1.msra.mxu0 0.0
    %1778 = vmatprep.subr.mxu0 0.0
    %1779 = vmatpush1.msra.mxu0 0.0
    %1780 = vmatprep.subr.mxu0 0.0
    %1781 = vmatpush1.msra.mxu0 0.0
    %1782 = vmatprep.subr.mxu0 0.0
    %1783 = vmatpush1.msra.mxu0 0.0
    %1784 = vmatprep.subr.mxu0 0.0
    %1785 = vmatpush1.msra.mxu0 0.0
    %1786 = vmatprep.subr.mxu0 0.0
    %1787 = vmatpush1.msra.mxu0 0.0
    %1788 = vmatprep.mubr.f32.mxu0 0.0
    %1789 = vmatmul.mubr.f32.gmra.mrb[0].mxu0 %v488
    %v1790 = vpop.f32.mrb[0].mxu0
    %v1791 = vadd.f32 %v1720, %v1790
    %v1792 = vpop.f32.mrb[0].mxu0
    %1793 = vmatprep.mubr.f32.mxu0 0.0
    %1794 = vmatmul.mubr.f32.gmra.mrb[0].mxu0 %v490
    %v1795 = vpop.f32.mrb[0].mxu0
    %v1796 = vadd.f32 %v1720, %v1795
    %v1797 = vpop.f32.mrb[0].mxu0
    %1798 = vdwg.mxu0
    %v1799 = vld [vmem:[#allocation2 + $0x80] sm:$0xf]
    %v1800 = vld [vmem:[#allocation2 + $0x88] sm:$0x1]
    %v1801 = vld [vmem:[#allocation2 + $0xf0] sm:$0xff]
    %v1802 = vld [vmem:[#allocation2 + $0xf8] sm:$0x1]
    %v1803 = vlaneseq
    %v1804 = vshrl.u32 %v1803, 7
    %v1805 = vsub.s32 0, %v1804
    %v1806 = vrot.slane %v1802, %v1805
    %1807 = vmatprep.subr.mxu0 0.0
    %1808 = vmatpush1.msra.mxu0 %v1801
    %1809 = vmatprep.subr.mxu0 0.0
    %1810 = vmatpush1.msra.mxu0 0.0
    %1811 = vmatprep.subr.mxu0 0.0
    %1812 = vmatpush1.msra.mxu0 0.0
    %1813 = vmatprep.subr.mxu0 0.0
    %1814 = vmatpush1.msra.mxu0 0.0
    %1815 = vmatprep.subr.mxu0 0.0
    %1816 = vmatpush1.msra.mxu0 0.0
    %1817 = vmatprep.subr.mxu0 0.0
    %1818 = vmatpush1.msra.mxu0 0.0
    %1819 = vmatprep.subr.mxu0 0.0
    %1820 = vmatpush1.msra.mxu0 0.0
    %1821 = vmatprep.subr.mxu0 0.0
    %1822 = vmatpush1.msra.mxu0 0.0
    %1823 = vmatprep.subr.mxu0 0.0
    %1824 = vmatpush1.msra.mxu0 0.0
    %1825 = vmatprep.subr.mxu0 0.0
    %1826 = vmatpush1.msra.mxu0 0.0
    %1827 = vmatprep.subr.mxu0 0.0
    %1828 = vmatpush1.msra.mxu0 0.0
    %1829 = vmatprep.subr.mxu0 0.0
    %1830 = vmatpush1.msra.mxu0 0.0
    %1831 = vmatprep.subr.mxu0 0.0
    %1832 = vmatpush1.msra.mxu0 0.0
    %1833 = vmatprep.subr.mxu0 0.0
    %1834 = vmatpush1.msra.mxu0 0.0
    %1835 = vmatprep.subr.mxu0 0.0
    %1836 = vmatpush1.msra.mxu0 0.0
    %1837 = vmatprep.subr.mxu0 0.0
    %1838 = vmatpush1.msra.mxu0 0.0
    %1839 = vmatprep.subr.mxu0 0.0
    %1840 = vmatpush1.msra.mxu0 0.0
    %1841 = vmatprep.subr.mxu0 0.0
    %1842 = vmatpush1.msra.mxu0 0.0
    %1843 = vmatprep.subr.mxu0 0.0
    %1844 = vmatpush1.msra.mxu0 0.0
    %1845 = vmatprep.subr.mxu0 0.0
    %1846 = vmatpush1.msra.mxu0 0.0
    %1847 = vmatprep.subr.mxu0 0.0
    %1848 = vmatpush1.msra.mxu0 0.0
    %1849 = vmatprep.subr.mxu0 0.0
    %1850 = vmatpush1.msra.mxu0 0.0
    %1851 = vmatprep.subr.mxu0 0.0
    %1852 = vmatpush1.msra.mxu0 0.0
    %1853 = vmatprep.subr.mxu0 0.0
    %1854 = vmatpush1.msra.mxu0 0.0
    %1855 = vmatprep.subr.mxu0 0.0
    %1856 = vmatpush1.msra.mxu0 0.0
    %1857 = vmatprep.subr.mxu0 0.0
    %1858 = vmatpush1.msra.mxu0 0.0
    %1859 = vmatprep.subr.mxu0 0.0
    %1860 = vmatpush1.msra.mxu0 0.0
    %1861 = vmatprep.subr.mxu0 0.0
    %1862 = vmatpush1.msra.mxu0 0.0
    %1863 = vmatprep.subr.mxu0 0.0
    %1864 = vmatpush1.msra.mxu0 0.0
    %1865 = vmatprep.subr.mxu0 0.0
    %1866 = vmatpush1.msra.mxu0 0.0
    %1867 = vmatprep.subr.mxu0 0.0
    %1868 = vmatpush1.msra.mxu0 0.0
    %1869 = vmatprep.subr.mxu0 0.0
    %1870 = vmatpush1.msra.mxu0 0.0
    %1871 = vmatprep.mubr.f32.mxu0 0.0
    %1872 = vmatmul.mubr.f32.gmra.mrb[0].mxu0 %v902
    %v1873 = vpop.f32.mrb[0].mxu0
    %v1874 = vadd.f32 %v1806, %v1873
    %v1875 = vpop.f32.mrb[0].mxu0
    %1876 = vmatprep.mubr.f32.mxu0 0.0
    %1877 = vmatmul.mubr.f32.gmra.mrb[0].mxu0 %v904
    %v1878 = vpop.f32.mrb[0].mxu0
    %v1879 = vadd.f32 %v1806, %v1878
    %v1880 = vpop.f32.mrb[0].mxu0
    %1881 = vdwg.mxu0
    %v1882 = vld [vmem:[#allocation2 + $0x100] sm:$0xff]
    %v1883 = vld [vmem:[#allocation2 + $0x108] sm:$0x1]
    %v1884 = vld [vmem:[#allocation2 + $0x178] sm:$0xff]
    %v1885 = vld [vmem:[#allocation2 + $0x180] sm:$0xff]
    %v1886 = vld [vmem:[#allocation2 + $0x188] sm:$0x1]
    %v1887 = vlaneseq
    %v1888 = vshrl.u32 %v1887, 7
    %v1889 = vsub.s32 0, %v1888
    %v1890 = vrot.slane %v1886, %v1889
    %1891 = vmatprep.subr.mxu0 0.0
    %1892 = vmatpush1.msra.mxu0 %v1884
    %1893 = vmatprep.subr.mxu0 0.0
    %1894 = vmatpush1.msra.mxu0 %v1885
    %1895 = vmatprep.subr.mxu0 0.0
    %1896 = vmatpush1.msra.mxu0 0.0
    %1897 = vmatprep.subr.mxu0 0.0
    %1898 = vmatpush1.msra.mxu0 0.0
    %1899 = vmatprep.subr.mxu0 0.0
    %1900 = vmatpush1.msra.mxu0 0.0
    %1901 = vmatprep.subr.mxu0 0.0
    %1902 = vmatpush1.msra.mxu0 0.0
    %1903 = vmatprep.subr.mxu0 0.0
    %1904 = vmatpush1.msra.mxu0 0.0
    %1905 = vmatprep.subr.mxu0 0.0
    %1906 = vmatpush1.msra.mxu0 0.0
    %1907 = vmatprep.subr.mxu0 0.0
    %1908 = vmatpush1.msra.mxu0 0.0
    %1909 = vmatprep.subr.mxu0 0.0
    %1910 = vmatpush1.msra.mxu0 0.0
    %1911 = vmatprep.subr.mxu0 0.0
    %1912 = vmatpush1.msra.mxu0 0.0
    %1913 = vmatprep.subr.mxu0 0.0
    %1914 = vmatpush1.msra.mxu0 0.0
    %1915 = vmatprep.subr.mxu0 0.0
    %1916 = vmatpush1.msra.mxu0 0.0
    %1917 = vmatprep.subr.mxu0 0.0
    %1918 = vmatpush1.msra.mxu0 0.0
    %1919 = vmatprep.subr.mxu0 0.0
    %1920 = vmatpush1.msra.mxu0 0.0
    %1921 = vmatprep.subr.mxu0 0.0
    %1922 = vmatpush1.msra.mxu0 0.0
    %1923 = vmatprep.subr.mxu0 0.0
    %1924 = vmatpush1.msra.mxu0 0.0
    %1925 = vmatprep.subr.mxu0 0.0
    %1926 = vmatpush1.msra.mxu0 0.0
    %1927 = vmatprep.subr.mxu0 0.0
    %1928 = vmatpush1.msra.mxu0 0.0
    %1929 = vmatprep.subr.mxu0 0.0
    %1930 = vmatpush1.msra.mxu0 0.0
    %1931 = vmatprep.subr.mxu0 0.0
    %1932 = vmatpush1.msra.mxu0 0.0
    %1933 = vmatprep.subr.mxu0 0.0
    %1934 = vmatpush1.msra.mxu0 0.0
    %1935 = vmatprep.subr.mxu0 0.0
    %1936 = vmatpush1.msra.mxu0 0.0
    %1937 = vmatprep.subr.mxu0 0.0
    %1938 = vmatpush1.msra.mxu0 0.0
    %1939 = vmatprep.subr.mxu0 0.0
    %1940 = vmatpush1.msra.mxu0 0.0
    %1941 = vmatprep.subr.mxu0 0.0
    %1942 = vmatpush1.msra.mxu0 0.0
    %1943 = vmatprep.subr.mxu0 0.0
    %1944 = vmatpush1.msra.mxu0 0.0
    %1945 = vmatprep.subr.mxu0 0.0
    %1946 = vmatpush1.msra.mxu0 0.0
    %1947 = vmatprep.subr.mxu0 0.0
    %1948 = vmatpush1.msra.mxu0 0.0
    %1949 = vmatprep.subr.mxu0 0.0
    %1950 = vmatpush1.msra.mxu0 0.0
    %1951 = vmatprep.subr.mxu0 0.0
    %1952 = vmatpush1.msra.mxu0 0.0
    %1953 = vmatprep.subr.mxu0 0.0
    %1954 = vmatpush1.msra.mxu0 0.0
    %1955 = vmatprep.mubr.f32.mxu0 0.0
    %1956 = vmatmul.mubr.f32.gmra.mrb[0].mxu0 %v1312
    %v1957 = vpop.f32.mrb[0].mxu0
    %v1958 = vadd.f32 %v1890, %v1957
    %v1959 = vpop.f32.mrb[0].mxu0
    %1960 = vmatprep.mubr.f32.mxu0 0.0
    %1961 = vmatmul.mubr.f32.gmra.mrb[0].mxu0 %v1314
    %v1962 = vpop.f32.mrb[0].mxu0
    %v1963 = vadd.f32 %v1890, %v1962
    %v1964 = vpop.f32.mrb[0].mxu0
    %1965 = vdwg.mxu0
    %v1966 = vld [vmem:[#allocation2 + $0x190] sm:$0xff]
    %v1967 = vld [vmem:[#allocation2 + $0x198] sm:$0xff]
    %v1968 = vld [vmem:[#allocation2 + $0x1a0] sm:$0x1]
    %v1969 = vld [vmem:[#allocation2 + $0x248] sm:$0xff]
    %v1970 = vld [vmem:[#allocation2 + $0x250] sm:$0xff]
    %v1971 = vld [vmem:[#allocation2 + $0x258] sm:$0xff]
    %v1972 = vld [vmem:[#allocation2 + $0x260] sm:$0xff]
    %v1973 = vld [vmem:[#allocation2 + $0x268] sm:$0x1]
    %v1974 = vlaneseq
    %v1975 = vshrl.u32 %v1974, 7
    %v1976 = vsub.s32 0, %v1975
    %v1977 = vrot.slane %v1973, %v1976
    %1980 = vrot.lane.b32.xlu0 %v1713, 32
    %v1981 = vpop.permute.xlu0 %1980
    %1982 = vrot.lane.b32.xlu0 %v1714, 32
    %v1983 = vpop.permute.xlu0 %1982
    %v1984 = vsel %vm67, %v1981, 0
    %v1986 = vsel %vm67, %v1983, 0
    %1988 = vmatprep.subr.mxu0 0.0
    %1989 = vmatpush1.msra.mxu0 %v1969
    %1990 = vmatprep.subr.mxu0 0.0
    %1991 = vmatpush1.msra.mxu0 %v1970
    %1992 = vmatprep.subr.mxu0 0.0
    %1993 = vmatpush1.msra.mxu0 %v1971
    %1994 = vmatprep.subr.mxu0 0.0
    %1995 = vmatpush1.msra.mxu0 %v1972
    %1996 = vmatprep.subr.mxu0 0.0
    %1997 = vmatpush1.msra.mxu0 0.0
    %1998 = vmatprep.subr.mxu0 0.0
    %1999 = vmatpush1.msra.mxu0 0.0
    %2000 = vmatprep.subr.mxu0 0.0
    %2001 = vmatpush1.msra.mxu0 0.0
    %2002 = vmatprep.subr.mxu0 0.0
    %2003 = vmatpush1.msra.mxu0 0.0
    %2004 = vmatprep.subr.mxu0 0.0
    %2005 = vmatpush1.msra.mxu0 0.0
    %2006 = vmatprep.subr.mxu0 0.0
    %2007 = vmatpush1.msra.mxu0 0.0
    %2008 = vmatprep.subr.mxu0 0.0
    %2009 = vmatpush1.msra.mxu0 0.0
    %2010 = vmatprep.subr.mxu0 0.0
    %2011 = vmatpush1.msra.mxu0 0.0
    %2012 = vmatprep.subr.mxu0 0.0
    %2013 = vmatpush1.msra.mxu0 0.0
    %2014 = vmatprep.subr.mxu0 0.0
    %2015 = vmatpush1.msra.mxu0 0.0
    %2016 = vmatprep.subr.mxu0 0.0
    %2017 = vmatpush1.msra.mxu0 0.0
    %2018 = vmatprep.subr.mxu0 0.0
    %2019 = vmatpush1.msra.mxu0 0.0
    %2020 = vmatprep.subr.mxu0 0.0
    %2021 = vmatpush1.msra.mxu0 0.0
    %2022 = vmatprep.subr.mxu0 0.0
    %2023 = vmatpush1.msra.mxu0 0.0
    %2024 = vmatprep.subr.mxu0 0.0
    %2025 = vmatpush1.msra.mxu0 0.0
    %2026 = vmatprep.subr.mxu0 0.0
    %2027 = vmatpush1.msra.mxu0 0.0
    %2028 = vmatprep.subr.mxu0 0.0
    %2029 = vmatpush1.msra.mxu0 0.0
    %2030 = vmatprep.subr.mxu0 0.0
    %2031 = vmatpush1.msra.mxu0 0.0
    %2032 = vmatprep.subr.mxu0 0.0
    %2033 = vmatpush1.msra.mxu0 0.0
    %2034 = vmatprep.subr.mxu0 0.0
    %2035 = vmatpush1.msra.mxu0 0.0
    %2036 = vmatprep.subr.mxu0 0.0
    %2037 = vmatpush1.msra.mxu0 0.0
    %2038 = vmatprep.subr.mxu0 0.0
    %2039 = vmatpush1.msra.mxu0 0.0
    %2040 = vmatprep.subr.mxu0 0.0
    %2041 = vmatpush1.msra.mxu0 0.0
    %2042 = vmatprep.subr.mxu0 0.0
    %2043 = vmatpush1.msra.mxu0 0.0
    %2044 = vmatprep.subr.mxu0 0.0
    %2045 = vmatpush1.msra.mxu0 0.0
    %2046 = vmatprep.subr.mxu0 0.0
    %2047 = vmatpush1.msra.mxu0 0.0
    %2048 = vmatprep.subr.mxu0 0.0
    %2049 = vmatpush1.msra.mxu0 0.0
    %2050 = vmatprep.subr.mxu0 0.0
    %2051 = vmatpush1.msra.mxu0 0.0
    %2052 = vmatprep.mubr.f32.mxu0 0.0
    %2053 = vmatmul.mubr.f32.gmra.mrb[0].mxu0 %v1984
    %v2054 = vpop.f32.mrb[0].mxu0
    %v2055 = vadd.f32 %v1977, %v2054
    %v2056 = vpop.f32.mrb[0].mxu0
    %2057 = vmatprep.mubr.f32.mxu0 0.0
    %2058 = vmatmul.mubr.f32.gmra.mrb[0].mxu0 %v1986
    %v2059 = vpop.f32.mrb[0].mxu0
    %v2060 = vadd.f32 %v1977, %v2059
    %v2061 = vpop.f32.mrb[0].mxu0
    %2062 = vdwg.mxu0
    %v2063 = vld [vmem:[#allocation2 + $0x270] sm:$0xff]
    %v2064 = vld [vmem:[#allocation2 + $0x278] sm:$0xff]
    %v2065 = vld [vmem:[#allocation2 + $0x280] sm:$0xff]
    %v2066 = vld [vmem:[#allocation2 + $0x288] sm:$0xff]
    %v2067 = vld [vmem:[#allocation2 + $0x290] sm:$0x1]
    %v2068 = vlaneseq
    %v2069 = vshrl.u32 %v2068, 7
    %v2070 = vsub.s32 0, %v2069
    %v2071 = vrot.slane %v1800, %v2070
    %v2073 = vsel %vm230, 0.0, 0
    %v2076 = vsel %vm235, %v1799, 0
    %2078 = vmatprep.subr.mxu0 0.0
    %2079 = vmatpush1.msra.mxu0 %v2076
    %2080 = vmatprep.subr.mxu0 0.0
    %2081 = vmatpush1.msra.mxu0 0.0
    %2082 = vmatprep.subr.mxu0 0.0
    %2083 = vmatpush1.msra.mxu0 0.0
    %2084 = vmatprep.subr.mxu0 0.0
    %2085 = vmatpush1.msra.mxu0 0.0
    %2086 = vmatprep.subr.mxu0 0.0
    %2087 = vmatpush1.msra.mxu0 0.0
    %2088 = vmatprep.subr.mxu0 0.0
    %2089 = vmatpush1.msra.mxu0 0.0
    %2090 = vmatprep.subr.mxu0 0.0
    %2091 = vmatpush1.msra.mxu0 0.0
    %2092 = vmatprep.subr.mxu0 0.0
    %2093 = vmatpush1.msra.mxu0 0.0
    %2094 = vmatprep.subr.mxu0 0.0
    %2095 = vmatpush1.msra.mxu0 0.0
    %2096 = vmatprep.subr.mxu0 0.0
    %2097 = vmatpush1.msra.mxu0 0.0
    %2098 = vmatprep.subr.mxu0 0.0
    %2099 = vmatpush1.msra.mxu0 0.0
    %2100 = vmatprep.subr.mxu0 0.0
    %2101 = vmatpush1.msra.mxu0 0.0
    %2102 = vmatprep.subr.mxu0 0.0
    %2103 = vmatpush1.msra.mxu0 0.0
    %2104 = vmatprep.subr.mxu0 0.0
    %2105 = vmatpush1.msra.mxu0 0.0
    %2106 = vmatprep.subr.mxu0 0.0
    %2107 = vmatpush1.msra.mxu0 0.0
    %2108 = vmatprep.subr.mxu0 0.0
    %2109 = vmatpush1.msra.mxu0 0.0
    %2110 = vmatprep.subr.mxu0 0.0
    %2111 = vmatpush1.msra.mxu0 0.0
    %2112 = vmatprep.subr.mxu0 0.0
    %2113 = vmatpush1.msra.mxu0 0.0
    %2114 = vmatprep.subr.mxu0 0.0
    %2115 = vmatpush1.msra.mxu0 0.0
    %2116 = vmatprep.subr.mxu0 0.0
    %2117 = vmatpush1.msra.mxu0 0.0
    %2118 = vmatprep.subr.mxu0 0.0
    %2119 = vmatpush1.msra.mxu0 0.0
    %2120 = vmatprep.subr.mxu0 0.0
    %2121 = vmatpush1.msra.mxu0 0.0
    %2122 = vmatprep.subr.mxu0 0.0
    %2123 = vmatpush1.msra.mxu0 0.0
    %2124 = vmatprep.subr.mxu0 0.0
    %2125 = vmatpush1.msra.mxu0 0.0
    %2126 = vmatprep.subr.mxu0 0.0
    %2127 = vmatpush1.msra.mxu0 0.0
    %2128 = vmatprep.subr.mxu0 0.0
    %2129 = vmatpush1.msra.mxu0 0.0
    %2130 = vmatprep.subr.mxu0 0.0
    %2131 = vmatpush1.msra.mxu0 0.0
    %2132 = vmatprep.subr.mxu0 0.0
    %2133 = vmatpush1.msra.mxu0 0.0
    %2134 = vmatprep.subr.mxu0 0.0
    %2135 = vmatpush1.msra.mxu0 0.0
    %2136 = vmatprep.subr.mxu0 0.0
    %2137 = vmatpush1.msra.mxu0 0.0
    %2138 = vmatprep.subr.mxu0 0.0
    %2139 = vmatpush1.msra.mxu0 0.0
    %2140 = vmatprep.subr.mxu0 0.0
    %2141 = vmatpush1.msra.mxu0 0.0
    %2142 = vmatprep.mubr.f32.mxu0 0.0
    %2143 = vmatmul.mubr.f32.gmra.mrb[0].mxu0 %v2073
    %v2144 = vpop.f32.mrb[0].mxu0
    %v2145 = vadd.f32 %v2071, %v2144
    %v2146 = vpop.f32.mrb[0].mxu0
    %2147 = vdwg.mxu0
    %v2149 = vrot.slane %v2145, 1
    %v2152 = vadd.f32 %v1791, %v2145
    %v2153 = vadd.f32 %v1796, %v2149
    %v2154 = vxor.u32 %v2152, 2147483648
    %v2155 = vxor.u32 %v2153, 2147483648
    %v2156 = vmul.f32 %v2154, 1.442695
    %v2157 = vpow.pop %v2156
    %v2158 = vmul.f32 %v2155, 1.442695
    %v2159 = vpow.pop %v2158
    %v2160 = vadd.f32 %v2157, 1.0
    %v2161 = vadd.f32 %v2159, 1.0
    %v2162 = vrcp.pop %v2160
    %v2163 = vmul.f32 1.0, %v2162
    %v2164 = vrcp.pop %v2161
    %v2165 = vmul.f32 1.0, %v2164
    %2166 = vrot.lane.b32.xlu0 %v2145, 120
    %v2167 = vpop.permute.xlu0 %2166
    %2168 = vrot.lane.b32.xlu0 %v2149, 120
    %v2169 = vpop.permute.xlu0 %2168
    %v2172 = vmul.f32 %v2163, %v2167
    %v2173 = vmul.f32 %v2165, %v2169
    %2176 = vrot.lane.b32.xlu0 %v2172, 8
    %v2177 = vpop.permute.xlu0 %2176
    %2178 = vrot.lane.b32.xlu0 %v2173, 8
    %v2179 = vpop.permute.xlu0 %2178
    %v2182 = vadd.f32 %v1791, %v2177
    %v2183 = vadd.f32 %v1796, %v2179
    %v2184 = vtanh.pop %v2182
    %v2185 = vtanh.pop %v2183
    %v2186 = vsub.f32 1.0, %v2163
    %v2187 = vsub.f32 1.0, %v2165
    %2190 = vrot.lane.b32.xlu0 %v2184, 124
    %v2191 = vpop.permute.xlu0 %2190
    %2192 = vrot.lane.b32.xlu0 %v2185, 124
    %v2193 = vpop.permute.xlu0 %2192
    %v2196 = vmul.f32 %v2186, %v2191
    %v2197 = vmul.f32 %v2187, %v2193
    %v2198 = vmul.f32 %v2163, 0.0
    %v2199 = vmul.f32 %v2165, 0.0
    %v2200 = vadd.f32 %v2196, %v2198
    %v2201 = vadd.f32 %v2197, %v2199
    %2203 = vset.pattern.permute.xlu0 0
    %2204 = vperm.xlu0 %2203, %v35
    %v2205 = vpop.permute.xlu0 %2204
    %v2209 = vrot.slane %v2201, 7
    %vm2210 = vcmask 1041409
    %v2211 = vsel %vm2210, %v2209, %v2200
    %2212 = vrot.lane.b32.xlu0 %v2211, 124
    %v2213 = vpop.permute.xlu0 %2212
    %v2215 = vmul.f32 %v2205, %v2213
    %v2216 = vsub.f32 1.0, %v35
    %2218 = vset.pattern.permute.xlu0 0
    %2219 = vperm.xlu0 %2218, %v2216
    %v2220 = vpop.permute.xlu0 %2219
    %v2222 = vmul.f32 %v2220, 0.0
    %v2223 = vadd.f32 %v2215, %v2222
    %v2224 = vlaneseq
    %v2225 = vshrl.u32 %v2224, 7
    %v2226 = vsub.s32 0, %v2225
    %v2227 = vrot.slane %v1883, %v2226
    %v2228 = vsel %vm648, 0.0, 0
    %2230 = vmatprep.subr.mxu0 0.0
    %2231 = vmatpush1.msra.mxu0 %v1882
    %2232 = vmatprep.subr.mxu0 0.0
    %2233 = vmatpush1.msra.mxu0 0.0
    %2234 = vmatprep.subr.mxu0 0.0
    %2235 = vmatpush1.msra.mxu0 0.0
    %2236 = vmatprep.subr.mxu0 0.0
    %2237 = vmatpush1.msra.mxu0 0.0
    %2238 = vmatprep.subr.mxu0 0.0
    %2239 = vmatpush1.msra.mxu0 0.0
    %2240 = vmatprep.subr.mxu0 0.0
    %2241 = vmatpush1.msra.mxu0 0.0
    %2242 = vmatprep.subr.mxu0 0.0
    %2243 = vmatpush1.msra.mxu0 0.0
    %2244 = vmatprep.subr.mxu0 0.0
    %2245 = vmatpush1.msra.mxu0 0.0
    %2246 = vmatprep.subr.mxu0 0.0
    %2247 = vmatpush1.msra.mxu0 0.0
    %2248 = vmatprep.subr.mxu0 0.0
    %2249 = vmatpush1.msra.mxu0 0.0
    %2250 = vmatprep.subr.mxu0 0.0
    %2251 = vmatpush1.msra.mxu0 0.0
    %2252 = vmatprep.subr.mxu0 0.0
    %2253 = vmatpush1.msra.mxu0 0.0
    %2254 = vmatprep.subr.mxu0 0.0
    %2255 = vmatpush1.msra.mxu0 0.0
    %2256 = vmatprep.subr.mxu0 0.0
    %2257 = vmatpush1.msra.mxu0 0.0
    %2258 = vmatprep.subr.mxu0 0.0
    %2259 = vmatpush1.msra.mxu0 0.0
    %2260 = vmatprep.subr.mxu0 0.0
    %2261 = vmatpush1.msra.mxu0 0.0
    %2262 = vmatprep.subr.mxu0 0.0
    %2263 = vmatpush1.msra.mxu0 0.0
    %2264 = vmatprep.subr.mxu0 0.0
    %2265 = vmatpush1.msra.mxu0 0.0
    %2266 = vmatprep.subr.mxu0 0.0
    %2267 = vmatpush1.msra.mxu0 0.0
    %2268 = vmatprep.subr.mxu0 0.0
    %2269 = vmatpush1.msra.mxu0 0.0
    %2270 = vmatprep.subr.mxu0 0.0
    %2271 = vmatpush1.msra.mxu0 0.0
    %2272 = vmatprep.subr.mxu0 0.0
    %2273 = vmatpush1.msra.mxu0 0.0
    %2274 = vmatprep.subr.mxu0 0.0
    %2275 = vmatpush1.msra.mxu0 0.0
    %2276 = vmatprep.subr.mxu0 0.0
    %2277 = vmatpush1.msra.mxu0 0.0
    %2278 = vmatprep.subr.mxu0 0.0
    %2279 = vmatpush1.msra.mxu0 0.0
    %2280 = vmatprep.subr.mxu0 0.0
    %2281 = vmatpush1.msra.mxu0 0.0
    %2282 = vmatprep.subr.mxu0 0.0
    %2283 = vmatpush1.msra.mxu0 0.0
    %2284 = vmatprep.subr.mxu0 0.0
    %2285 = vmatpush1.msra.mxu0 0.0
    %2286 = vmatprep.subr.mxu0 0.0
    %2287 = vmatpush1.msra.mxu0 0.0
    %2288 = vmatprep.subr.mxu0 0.0
    %2289 = vmatpush1.msra.mxu0 0.0
    %2290 = vmatprep.subr.mxu0 0.0
    %2291 = vmatpush1.msra.mxu0 0.0
    %2292 = vmatprep.subr.mxu0 0.0
    %2293 = vmatpush1.msra.mxu0 0.0
    %2294 = vmatprep.mubr.f32.mxu0 0.0
    %2295 = vmatmul.mubr.f32.gmra.mrb[0].mxu0 %v2228
    %v2296 = vpop.f32.mrb[0].mxu0
    %v2297 = vadd.f32 %v2227, %v2296
    %v2298 = vpop.f32.mrb[0].mxu0
    %2299 = vdwg.mxu0
    %v2301 = vrot.slane %v2297, 1
    %v2304 = vadd.f32 %v1874, %v2297
    %v2305 = vadd.f32 %v1879, %v2301
    %v2306 = vxor.u32 %v2304, 2147483648
    %v2307 = vxor.u32 %v2305, 2147483648
    %v2308 = vmul.f32 %v2306, 1.442695
    %v2309 = vpow.pop %v2308
    %v2310 = vmul.f32 %v2307, 1.442695
    %v2311 = vpow.pop %v2310
    %v2312 = vadd.f32 %v2309, 1.0
    %v2313 = vadd.f32 %v2311, 1.0
    %v2314 = vrcp.pop %v2312
    %v2315 = vmul.f32 1.0, %v2314
    %v2316 = vrcp.pop %v2313
    %v2317 = vmul.f32 1.0, %v2316
    %2318 = vrot.lane.b32.xlu0 %v2297, 112
    %v2319 = vpop.permute.xlu0 %2318
    %2320 = vrot.lane.b32.xlu0 %v2301, 112
    %v2321 = vpop.permute.xlu0 %2320
    %v2324 = vmul.f32 %v2315, %v2319
    %v2325 = vmul.f32 %v2317, %v2321
    %2328 = vrot.lane.b32.xlu0 %v2324, 16
    %v2329 = vpop.permute.xlu0 %2328
    %2330 = vrot.lane.b32.xlu0 %v2325, 16
    %v2331 = vpop.permute.xlu0 %2330
    %v2334 = vadd.f32 %v1874, %v2329
    %v2335 = vadd.f32 %v1879, %v2331
    %v2336 = vtanh.pop %v2334
    %v2337 = vtanh.pop %v2335
    %v2338 = vsub.f32 1.0, %v2315
    %v2339 = vsub.f32 1.0, %v2317
    %2342 = vrot.lane.b32.xlu0 %v2336, 120
    %v2343 = vpop.permute.xlu0 %2342
    %2344 = vrot.lane.b32.xlu0 %v2337, 120
    %v2345 = vpop.permute.xlu0 %2344
    %v2348 = vmul.f32 %v2338, %v2343
    %v2349 = vmul.f32 %v2339, %v2345
    %v2350 = vmul.f32 %v2315, 0.0
    %v2351 = vmul.f32 %v2317, 0.0
    %v2352 = vadd.f32 %v2348, %v2350
    %v2353 = vadd.f32 %v2349, %v2351
    %v2356 = vrot.slane %v2353, 7
    %v2357 = vsel %vm2210, %v2356, %v2352
    %2358 = vrot.lane.b32.xlu0 %v2357, 120
    %v2359 = vpop.permute.xlu0 %2358
    %v2361 = vmul.f32 %v2205, %v2359
    %v2362 = vadd.f32 %v2361, %v2222
    %v2363 = vlaneseq
    %v2364 = vshrl.u32 %v2363, 7
    %v2365 = vsub.s32 0, %v2364
    %v2366 = vrot.slane %v1968, %v2365
    %v2367 = vsel %vm1060, 0.0, 0
    %2369 = vmatprep.subr.mxu0 0.0
    %2370 = vmatpush1.msra.mxu0 %v1966
    %2371 = vmatprep.subr.mxu0 0.0
    %2372 = vmatpush1.msra.mxu0 %v1967
    %2373 = vmatprep.subr.mxu0 0.0
    %2374 = vmatpush1.msra.mxu0 0.0
    %2375 = vmatprep.subr.mxu0 0.0
    %2376 = vmatpush1.msra.mxu0 0.0
    %2377 = vmatprep.subr.mxu0 0.0
    %2378 = vmatpush1.msra.mxu0 0.0
    %2379 = vmatprep.subr.mxu0 0.0
    %2380 = vmatpush1.msra.mxu0 0.0
    %2381 = vmatprep.subr.mxu0 0.0
    %2382 = vmatpush1.msra.mxu0 0.0
    %2383 = vmatprep.subr.mxu0 0.0
    %2384 = vmatpush1.msra.mxu0 0.0
    %2385 = vmatprep.subr.mxu0 0.0
    %2386 = vmatpush1.msra.mxu0 0.0
    %2387 = vmatprep.subr.mxu0 0.0
    %2388 = vmatpush1.msra.mxu0 0.0
    %2389 = vmatprep.subr.mxu0 0.0
    %2390 = vmatpush1.msra.mxu0 0.0
    %2391 = vmatprep.subr.mxu0 0.0
    %2392 = vmatpush1.msra.mxu0 0.0
    %2393 = vmatprep.subr.mxu0 0.0
    %2394 = vmatpush1.msra.mxu0 0.0
    %2395 = vmatprep.subr.mxu0 0.0
    %2396 = vmatpush1.msra.mxu0 0.0
    %2397 = vmatprep.subr.mxu0 0.0
    %2398 = vmatpush1.msra.mxu0 0.0
    %2399 = vmatprep.subr.mxu0 0.0
    %2400 = vmatpush1.msra.mxu0 0.0
    %2401 = vmatprep.subr.mxu0 0.0
    %2402 = vmatpush1.msra.mxu0 0.0
    %2403 = vmatprep.subr.mxu0 0.0
    %2404 = vmatpush1.msra.mxu0 0.0
    %2405 = vmatprep.subr.mxu0 0.0
    %2406 = vmatpush1.msra.mxu0 0.0
    %2407 = vmatprep.subr.mxu0 0.0
    %2408 = vmatpush1.msra.mxu0 0.0
    %2409 = vmatprep.subr.mxu0 0.0
    %2410 = vmatpush1.msra.mxu0 0.0
    %2411 = vmatprep.subr.mxu0 0.0
    %2412 = vmatpush1.msra.mxu0 0.0
    %2413 = vmatprep.subr.mxu0 0.0
    %2414 = vmatpush1.msra.mxu0 0.0
    %2415 = vmatprep.subr.mxu0 0.0
    %2416 = vmatpush1.msra.mxu0 0.0
    %2417 = vmatprep.subr.mxu0 0.0
    %2418 = vmatpush1.msra.mxu0 0.0
    %2419 = vmatprep.subr.mxu0 0.0
    %2420 = vmatpush1.msra.mxu0 0.0
    %2421 = vmatprep.subr.mxu0 0.0
    %2422 = vmatpush1.msra.mxu0 0.0
    %2423 = vmatprep.subr.mxu0 0.0
    %2424 = vmatpush1.msra.mxu0 0.0
    %2425 = vmatprep.subr.mxu0 0.0
    %2426 = vmatpush1.msra.mxu0 0.0
    %2427 = vmatprep.subr.mxu0 0.0
    %2428 = vmatpush1.msra.mxu0 0.0
    %2429 = vmatprep.subr.mxu0 0.0
    %2430 = vmatpush1.msra.mxu0 0.0
    %2431 = vmatprep.subr.mxu0 0.0
    %2432 = vmatpush1.msra.mxu0 0.0
    %2433 = vmatprep.mubr.f32.mxu0 0.0
    %2434 = vmatmul.mubr.f32.gmra.mrb[0].mxu0 %v2367
    %v2435 = vpop.f32.mrb[0].mxu0
    %v2436 = vadd.f32 %v2366, %v2435
    %v2437 = vpop.f32.mrb[0].mxu0
    %2438 = vdwg.mxu0
    %v2440 = vrot.slane %v2436, 1
    %v2443 = vadd.f32 %v1958, %v2436
    %v2444 = vadd.f32 %v1963, %v2440
    %v2445 = vxor.u32 %v2443, 2147483648
    %v2446 = vxor.u32 %v2444, 2147483648
    %v2447 = vmul.f32 %v2445, 1.442695
    %v2448 = vpow.pop %v2447
    %v2449 = vmul.f32 %v2446, 1.442695
    %v2450 = vpow.pop %v2449
    %v2451 = vadd.f32 %v2448, 1.0
    %v2452 = vadd.f32 %v2450, 1.0
    %v2453 = vrcp.pop %v2451
    %v2454 = vmul.f32 1.0, %v2453
    %v2455 = vrcp.pop %v2452
    %v2456 = vmul.f32 1.0, %v2455
    %2457 = vrot.lane.b32.xlu0 %v2436, 96
    %v2458 = vpop.permute.xlu0 %2457
    %2459 = vrot.lane.b32.xlu0 %v2440, 96
    %v2460 = vpop.permute.xlu0 %2459
    %v2463 = vmul.f32 %v2454, %v2458
    %v2464 = vmul.f32 %v2456, %v2460
    %2467 = vrot.lane.b32.xlu0 %v2463, 32
    %v2468 = vpop.permute.xlu0 %2467
    %2469 = vrot.lane.b32.xlu0 %v2464, 32
    %v2470 = vpop.permute.xlu0 %2469
    %v2473 = vadd.f32 %v1958, %v2468
    %v2474 = vadd.f32 %v1963, %v2470
    %v2475 = vtanh.pop %v2473
    %v2476 = vtanh.pop %v2474
    %v2477 = vsub.f32 1.0, %v2454
    %v2478 = vsub.f32 1.0, %v2456
    %2481 = vrot.lane.b32.xlu0 %v2475, 112
    %v2482 = vpop.permute.xlu0 %2481
    %2483 = vrot.lane.b32.xlu0 %v2476, 112
    %v2484 = vpop.permute.xlu0 %2483
    %v2487 = vmul.f32 %v2477, %v2482
    %v2488 = vmul.f32 %v2478, %v2484
    %v2489 = vmul.f32 %v2454, 0.0
    %v2490 = vmul.f32 %v2456, 0.0
    %v2491 = vadd.f32 %v2487, %v2489
    %v2492 = vadd.f32 %v2488, %v2490
    %v2495 = vrot.slane %v2492, 7
    %v2496 = vsel %vm2210, %v2495, %v2491
    %2497 = vrot.lane.b32.xlu0 %v2496, 112
    %v2498 = vpop.permute.xlu0 %2497
    %v2500 = vmul.f32 %v2205, %v2498
    %v2501 = vadd.f32 %v2500, %v2222
    %v2502 = vlaneseq
    %v2503 = vshrl.u32 %v2502, 7
    %v2504 = vsub.s32 0, %v2503
    %v2505 = vrot.slane %v2067, %v2504
    %v2506 = vsel %vm67, 0.0, 0
    %2508 = vmatprep.subr.mxu0 0.0
    %2509 = vmatpush1.msra.mxu0 %v2063
    %2510 = vmatprep.subr.mxu0 0.0
    %2511 = vmatpush1.msra.mxu0 %v2064
    %2512 = vmatprep.subr.mxu0 0.0
    %2513 = vmatpush1.msra.mxu0 %v2065
    %2514 = vmatprep.subr.mxu0 0.0
    %2515 = vmatpush1.msra.mxu0 %v2066
    %2516 = vmatprep.subr.mxu0 0.0
    %2517 = vmatpush1.msra.mxu0 0.0
    %2518 = vmatprep.subr.mxu0 0.0
    %2519 = vmatpush1.msra.mxu0 0.0
    %2520 = vmatprep.subr.mxu0 0.0
    %2521 = vmatpush1.msra.mxu0 0.0
    %2522 = vmatprep.subr.mxu0 0.0
    %2523 = vmatpush1.msra.mxu0 0.0
    %2524 = vmatprep.subr.mxu0 0.0
    %2525 = vmatpush1.msra.mxu0 0.0
    %2526 = vmatprep.subr.mxu0 0.0
    %2527 = vmatpush1.msra.mxu0 0.0
    %2528 = vmatprep.subr.mxu0 0.0
    %2529 = vmatpush1.msra.mxu0 0.0
    %2530 = vmatprep.subr.mxu0 0.0
    %2531 = vmatpush1.msra.mxu0 0.0
    %2532 = vmatprep.subr.mxu0 0.0
    %2533 = vmatpush1.msra.mxu0 0.0
    %2534 = vmatprep.subr.mxu0 0.0
    %2535 = vmatpush1.msra.mxu0 0.0
    %2536 = vmatprep.subr.mxu0 0.0
    %2537 = vmatpush1.msra.mxu0 0.0
    %2538 = vmatprep.subr.mxu0 0.0
    %2539 = vmatpush1.msra.mxu0 0.0
    %2540 = vmatprep.subr.mxu0 0.0
    %2541 = vmatpush1.msra.mxu0 0.0
    %2542 = vmatprep.subr.mxu0 0.0
    %2543 = vmatpush1.msra.mxu0 0.0
    %2544 = vmatprep.subr.mxu0 0.0
    %2545 = vmatpush1.msra.mxu0 0.0
    %2546 = vmatprep.subr.mxu0 0.0
    %2547 = vmatpush1.msra.mxu0 0.0
    %2548 = vmatprep.subr.mxu0 0.0
    %2549 = vmatpush1.msra.mxu0 0.0
    %2550 = vmatprep.subr.mxu0 0.0
    %2551 = vmatpush1.msra.mxu0 0.0
    %2552 = vmatprep.subr.mxu0 0.0
    %2553 = vmatpush1.msra.mxu0 0.0
    %2554 = vmatprep.subr.mxu0 0.0
    %2555 = vmatpush1.msra.mxu0 0.0
    %2556 = vmatprep.subr.mxu0 0.0
    %2557 = vmatpush1.msra.mxu0 0.0
    %2558 = vmatprep.subr.mxu0 0.0
    %2559 = vmatpush1.msra.mxu0 0.0
    %2560 = vmatprep.subr.mxu0 0.0
    %2561 = vmatpush1.msra.mxu0 0.0
    %2562 = vmatprep.subr.mxu0 0.0
    %2563 = vmatpush1.msra.mxu0 0.0
    %2564 = vmatprep.subr.mxu0 0.0
    %2565 = vmatpush1.msra.mxu0 0.0
    %2566 = vmatprep.subr.mxu0 0.0
    %2567 = vmatpush1.msra.mxu0 0.0
    %2568 = vmatprep.subr.mxu0 0.0
    %2569 = vmatpush1.msra.mxu0 0.0
    %2570 = vmatprep.subr.mxu0 0.0
    %2571 = vmatpush1.msra.mxu0 0.0
    %2572 = vmatprep.mubr.f32.mxu0 0.0
    %2573 = vmatmul.mubr.f32.gmra.mrb[0].mxu0 %v2506
    %v2574 = vpop.f32.mrb[0].mxu0
    %v2575 = vadd.f32 %v2505, %v2574
    %v2576 = vpop.f32.mrb[0].mxu0
    %2577 = vdwg.mxu0
    %v2579 = vrot.slane %v2575, 1
    %v2582 = vadd.f32 %v2055, %v2575
    %v2583 = vadd.f32 %v2060, %v2579
    %v2584 = vxor.u32 %v2582, 2147483648
    %v2585 = vxor.u32 %v2583, 2147483648
    %v2586 = vmul.f32 %v2584, 1.442695
    %v2587 = vpow.pop %v2586
    %v2588 = vmul.f32 %v2585, 1.442695
    %v2589 = vpow.pop %v2588
    %v2590 = vadd.f32 %v2587, 1.0
    %v2591 = vadd.f32 %v2589, 1.0
    %v2592 = vrcp.pop %v2590
    %v2593 = vmul.f32 1.0, %v2592
    %v2594 = vrcp.pop %v2591
    %v2595 = vmul.f32 1.0, %v2594
    %2596 = vrot.lane.b32.xlu0 %v2575, 64
    %v2597 = vpop.permute.xlu0 %2596
    %2598 = vrot.lane.b32.xlu0 %v2579, 64
    %v2599 = vpop.permute.xlu0 %2598
    %v2602 = vmul.f32 %v2593, %v2597
    %v2603 = vmul.f32 %v2595, %v2599
    %2606 = vrot.lane.b32.xlu0 %v2602, 64
    %v2607 = vpop.permute.xlu0 %2606
    %2608 = vrot.lane.b32.xlu0 %v2603, 64
    %v2609 = vpop.permute.xlu0 %2608
    %v2612 = vadd.f32 %v2055, %v2607
    %v2613 = vadd.f32 %v2060, %v2609
    %v2614 = vtanh.pop %v2612
    %v2615 = vtanh.pop %v2613
    %v2616 = vsub.f32 1.0, %v2593
    %v2617 = vsub.f32 1.0, %v2595
    %2620 = vrot.lane.b32.xlu0 %v2614, 96
    %v2621 = vpop.permute.xlu0 %2620
    %2622 = vrot.lane.b32.xlu0 %v2615, 96
    %v2623 = vpop.permute.xlu0 %2622
    %v2626 = vmul.f32 %v2616, %v2621
    %v2627 = vmul.f32 %v2617, %v2623
    %v2628 = vmul.f32 %v2593, 0.0
    %v2629 = vmul.f32 %v2595, 0.0
    %v2630 = vadd.f32 %v2626, %v2628
    %v2631 = vadd.f32 %v2627, %v2629
    %v2634 = vrot.slane %v2631, 7
    %v2635 = vsel %vm2210, %v2634, %v2630
    %2636 = vrot.lane.b32.xlu0 %v2635, 96
    %v2637 = vpop.permute.xlu0 %2636
    %v2639 = vmul.f32 %v2205, %v2637
    %v2640 = vadd.f32 %v2639, %v2222
    %v2642 = vsel %vm230, %v2223, 0
    %2644 = vmatprep.subr.mxu0 0.0
    %2645 = vmatpush1.msra.mxu0 %v2076
    %2646 = vmatprep.subr.mxu0 0.0
    %2647 = vmatpush1.msra.mxu0 0.0
    %2648 = vmatprep.subr.mxu0 0.0
    %2649 = vmatpush1.msra.mxu0 0.0
    %2650 = vmatprep.subr.mxu0 0.0
    %2651 = vmatpush1.msra.mxu0 0.0
    %2652 = vmatprep.subr.mxu0 0.0
    %2653 = vmatpush1.msra.mxu0 0.0
    %2654 = vmatprep.subr.mxu0 0.0
    %2655 = vmatpush1.msra.mxu0 0.0
    %2656 = vmatprep.subr.mxu0 0.0
    %2657 = vmatpush1.msra.mxu0 0.0
    %2658 = vmatprep.subr.mxu0 0.0
    %2659 = vmatpush1.msra.mxu0 0.0
    %2660 = vmatprep.subr.mxu0 0.0
    %2661 = vmatpush1.msra.mxu0 0.0
    %2662 = vmatprep.subr.mxu0 0.0
    %2663 = vmatpush1.msra.mxu0 0.0
    %2664 = vmatprep.subr.mxu0 0.0
    %2665 = vmatpush1.msra.mxu0 0.0
    %2666 = vmatprep.subr.mxu0 0.0
    %2667 = vmatpush1.msra.mxu0 0.0
    %2668 = vmatprep.subr.mxu0 0.0
    %2669 = vmatpush1.msra.mxu0 0.0
    %2670 = vmatprep.subr.mxu0 0.0
    %2671 = vmatpush1.msra.mxu0 0.0
    %2672 = vmatprep.subr.mxu0 0.0
    %2673 = vmatpush1.msra.mxu0 0.0
    %2674 = vmatprep.subr.mxu0 0.0
    %2675 = vmatpush1.msra.mxu0 0.0
    %2676 = vmatprep.subr.mxu0 0.0
    %2677 = vmatpush1.msra.mxu0 0.0
    %2678 = vmatprep.subr.mxu0 0.0
    %2679 = vmatpush1.msra.mxu0 0.0
    %2680 = vmatprep.subr.mxu0 0.0
    %2681 = vmatpush1.msra.mxu0 0.0
    %2682 = vmatprep.subr.mxu0 0.0
    %2683 = vmatpush1.msra.mxu0 0.0
    %2684 = vmatprep.subr.mxu0 0.0
    %2685 = vmatpush1.msra.mxu0 0.0
    %2686 = vmatprep.subr.mxu0 0.0
    %2687 = vmatpush1.msra.mxu0 0.0
    %2688 = vmatprep.subr.mxu0 0.0
    %2689 = vmatpush1.msra.mxu0 0.0
    %2690 = vmatprep.subr.mxu0 0.0
    %2691 = vmatpush1.msra.mxu0 0.0
    %2692 = vmatprep.subr.mxu0 0.0
    %2693 = vmatpush1.msra.mxu0 0.0
    %2694 = vmatprep.subr.mxu0 0.0
    %2695 = vmatpush1.msra.mxu0 0.0
    %2696 = vmatprep.subr.mxu0 0.0
    %2697 = vmatpush1.msra.mxu0 0.0
    %2698 = vmatprep.subr.mxu0 0.0
    %2699 = vmatpush1.msra.mxu0 0.0
    %2700 = vmatprep.subr.mxu0 0.0
    %2701 = vmatpush1.msra.mxu0 0.0
    %2702 = vmatprep.subr.mxu0 0.0
    %2703 = vmatpush1.msra.mxu0 0.0
    %2704 = vmatprep.subr.mxu0 0.0
    %2705 = vmatpush1.msra.mxu0 0.0
    %2706 = vmatprep.subr.mxu0 0.0
    %2707 = vmatpush1.msra.mxu0 0.0
    %2708 = vmatprep.mubr.f32.mxu0 0.0
    %2709 = vmatmul.mubr.f32.gmra.mrb[0].mxu0 %v2642
    %v2710 = vpop.f32.mrb[0].mxu0
    %v2711 = vadd.f32 %v2071, %v2710
    %v2712 = vpop.f32.mrb[0].mxu0
    %2713 = vdwg.mxu0
    %v2715 = vrot.slane %v2711, 7
    %v2718 = vadd.f32 %v1791, %v2715
    %v2719 = vadd.f32 %v1796, %v2711
    %v2720 = vxor.u32 %v2718, 2147483648
    %v2721 = vxor.u32 %v2719, 2147483648
    %v2722 = vmul.f32 %v2720, 1.442695
    %v2723 = vpow.pop %v2722
    %v2724 = vmul.f32 %v2721, 1.442695
    %v2725 = vpow.pop %v2724
    %v2726 = vadd.f32 %v2723, 1.0
    %v2727 = vadd.f32 %v2725, 1.0
    %v2728 = vrcp.pop %v2726
    %v2729 = vmul.f32 1.0, %v2728
    %v2730 = vrcp.pop %v2727
    %v2731 = vmul.f32 1.0, %v2730
    %2732 = vrot.lane.b32.xlu0 %v2715, 120
    %v2733 = vpop.permute.xlu0 %2732
    %2734 = vrot.lane.b32.xlu0 %v2711, 120
    %v2735 = vpop.permute.xlu0 %2734
    %v2738 = vmul.f32 %v2729, %v2733
    %v2739 = vmul.f32 %v2731, %v2735
    %2742 = vrot.lane.b32.xlu0 %v2738, 8
    %v2743 = vpop.permute.xlu0 %2742
    %2744 = vrot.lane.b32.xlu0 %v2739, 8
    %v2745 = vpop.permute.xlu0 %2744
    %v2748 = vadd.f32 %v1791, %v2743
    %v2749 = vadd.f32 %v1796, %v2745
    %v2750 = vtanh.pop %v2748
    %v2751 = vtanh.pop %v2749
    %v2752 = vsub.f32 1.0, %v2729
    %v2753 = vsub.f32 1.0, %v2731
    %2756 = vrot.lane.b32.xlu0 %v2750, 124
    %v2757 = vpop.permute.xlu0 %2756
    %2758 = vrot.lane.b32.xlu0 %v2751, 124
    %v2759 = vpop.permute.xlu0 %2758
    %v2762 = vmul.f32 %v2752, %v2757
    %v2763 = vmul.f32 %v2753, %v2759
    %v2764 = vrot.slane %v2223, 7
    %2765 = vrot.lane.b32.xlu0 %v2764, 4
    %v2766 = vpop.permute.xlu0 %2765
    %2767 = vrot.lane.b32.xlu0 %v2223, 4
    %v2768 = vpop.permute.xlu0 %2767
    %v2771 = vmul.f32 %v2729, %v2766
    %v2772 = vmul.f32 %v2731, %v2768
    %v2773 = vadd.f32 %v2762, %v2771
    %v2774 = vadd.f32 %v2763, %v2772
    %2775 = vset.pattern.permute.xlu0 1
    %2776 = vperm.xlu0 %2775, %v35
    %v2777 = vpop.permute.xlu0 %2776
    %v2781 = vrot.slane %v2773, 1
    %v2782 = vsel %vm2210, %v2774, %v2781
    %2783 = vrot.lane.b32.xlu0 %v2782, 124
    %v2784 = vpop.permute.xlu0 %2783
    %v2786 = vmul.f32 %v2777, %v2784
    %2787 = vset.pattern.permute.xlu0 1
    %2788 = vperm.xlu0 %2787, %v2216
    %v2789 = vpop.permute.xlu0 %2788
    %v2791 = vmul.f32 %v2789, %v2223
    %v2792 = vadd.f32 %v2786, %v2791
    %v2794 = vsel %vm648, %v2362, 0
    %2796 = vmatprep.subr.mxu0 0.0
    %2797 = vmatpush1.msra.mxu0 %v1882
    %2798 = vmatprep.subr.mxu0 0.0
    %2799 = vmatpush1.msra.mxu0 0.0
    %2800 = vmatprep.subr.mxu0 0.0
    %2801 = vmatpush1.msra.mxu0 0.0
    %2802 = vmatprep.subr.mxu0 0.0
    %2803 = vmatpush1.msra.mxu0 0.0
    %2804 = vmatprep.subr.mxu0 0.0
    %2805 = vmatpush1.msra.mxu0 0.0
    %2806 = vmatprep.subr.mxu0 0.0
    %2807 = vmatpush1.msra.mxu0 0.0
    %2808 = vmatprep.subr.mxu0 0.0
    %2809 = vmatpush1.msra.mxu0 0.0
    %2810 = vmatprep.subr.mxu0 0.0
    %2811 = vmatpush1.msra.mxu0 0.0
    %2812 = vmatprep.subr.mxu0 0.0
    %2813 = vmatpush1.msra.mxu0 0.0
    %2814 = vmatprep.subr.mxu0 0.0
    %2815 = vmatpush1.msra.mxu0 0.0
    %2816 = vmatprep.subr.mxu0 0.0
    %2817 = vmatpush1.msra.mxu0 0.0
    %2818 = vmatprep.subr.mxu0 0.0
    %2819 = vmatpush1.msra.mxu0 0.0
    %2820 = vmatprep.subr.mxu0 0.0
    %2821 = vmatpush1.msra.mxu0 0.0
    %2822 = vmatprep.subr.mxu0 0.0
    %2823 = vmatpush1.msra.mxu0 0.0
    %2824 = vmatprep.subr.mxu0 0.0
    %2825 = vmatpush1.msra.mxu0 0.0
    %2826 = vmatprep.subr.mxu0 0.0
    %2827 = vmatpush1.msra.mxu0 0.0
    %2828 = vmatprep.subr.mxu0 0.0
    %2829 = vmatpush1.msra.mxu0 0.0
    %2830 = vmatprep.subr.mxu0 0.0
    %2831 = vmatpush1.msra.mxu0 0.0
    %2832 = vmatprep.subr.mxu0 0.0
    %2833 = vmatpush1.msra.mxu0 0.0
    %2834 = vmatprep.subr.mxu0 0.0
    %2835 = vmatpush1.msra.mxu0 0.0
    %2836 = vmatprep.subr.mxu0 0.0
    %2837 = vmatpush1.msra.mxu0 0.0
    %2838 = vmatprep.subr.mxu0 0.0
    %2839 = vmatpush1.msra.mxu0 0.0
    %2840 = vmatprep.subr.mxu0 0.0
    %2841 = vmatpush1.msra.mxu0 0.0
    %2842 = vmatprep.subr.mxu0 0.0
    %2843 = vmatpush1.msra.mxu0 0.0
    %2844 = vmatprep.subr.mxu0 0.0
    %2845 = vmatpush1.msra.mxu0 0.0
    %2846 = vmatprep.subr.mxu0 0.0
    %2847 = vmatpush1.msra.mxu0 0.0
    %2848 = vmatprep.subr.mxu0 0.0
    %2849 = vmatpush1.msra.mxu0 0.0
    %2850 = vmatprep.subr.mxu0 0.0
    %2851 = vmatpush1.msra.mxu0 0.0
    %2852 = vmatprep.subr.mxu0 0.0
    %2853 = vmatpush1.msra.mxu0 0.0
    %2854 = vmatprep.subr.mxu0 0.0
    %2855 = vmatpush1.msra.mxu0 0.0
    %2856 = vmatprep.subr.mxu0 0.0
    %2857 = vmatpush1.msra.mxu0 0.0
    %2858 = vmatprep.subr.mxu0 0.0
    %2859 = vmatpush1.msra.mxu0 0.0
    %2860 = vmatprep.mubr.f32.mxu0 0.0
    %2861 = vmatmul.mubr.f32.gmra.mrb[0].mxu0 %v2794
    %v2862 = vpop.f32.mrb[0].mxu0
    %v2863 = vadd.f32 %v2227, %v2862
    %v2864 = vpop.f32.mrb[0].mxu0
    %2865 = vdwg.mxu0
    %v2867 = vrot.slane %v2863, 7
    %v2870 = vadd.f32 %v1874, %v2867
    %v2871 = vadd.f32 %v1879, %v2863
    %v2872 = vxor.u32 %v2870, 2147483648
    %v2873 = vxor.u32 %v2871, 2147483648
    %v2874 = vmul.f32 %v2872, 1.442695
    %v2875 = vpow.pop %v2874
    %v2876 = vmul.f32 %v2873, 1.442695
    %v2877 = vpow.pop %v2876
    %v2878 = vadd.f32 %v2875, 1.0
    %v2879 = vadd.f32 %v2877, 1.0
    %v2880 = vrcp.pop %v2878
    %v2881 = vmul.f32 1.0, %v2880
    %v2882 = vrcp.pop %v2879
    %v2883 = vmul.f32 1.0, %v2882
    %2884 = vrot.lane.b32.xlu0 %v2867, 112
    %v2885 = vpop.permute.xlu0 %2884
    %2886 = vrot.lane.b32.xlu0 %v2863, 112
    %v2887 = vpop.permute.xlu0 %2886
    %v2890 = vmul.f32 %v2881, %v2885
    %v2891 = vmul.f32 %v2883, %v2887
    %2894 = vrot.lane.b32.xlu0 %v2890, 16
    %v2895 = vpop.permute.xlu0 %2894
    %2896 = vrot.lane.b32.xlu0 %v2891, 16
    %v2897 = vpop.permute.xlu0 %2896
    %v2900 = vadd.f32 %v1874, %v2895
    %v2901 = vadd.f32 %v1879, %v2897
    %v2902 = vtanh.pop %v2900
    %v2903 = vtanh.pop %v2901
    %v2904 = vsub.f32 1.0, %v2881
    %v2905 = vsub.f32 1.0, %v2883
    %2908 = vrot.lane.b32.xlu0 %v2902, 120
    %v2909 = vpop.permute.xlu0 %2908
    %2910 = vrot.lane.b32.xlu0 %v2903, 120
    %v2911 = vpop.permute.xlu0 %2910
    %v2914 = vmul.f32 %v2904, %v2909
    %v2915 = vmul.f32 %v2905, %v2911
    %v2916 = vrot.slane %v2362, 7
    %2917 = vrot.lane.b32.xlu0 %v2916, 8
    %v2918 = vpop.permute.xlu0 %2917
    %2919 = vrot.lane.b32.xlu0 %v2362, 8
    %v2920 = vpop.permute.xlu0 %2919
    %v2923 = vmul.f32 %v2881, %v2918
    %v2924 = vmul.f32 %v2883, %v2920
    %v2925 = vadd.f32 %v2914, %v2923
    %v2926 = vadd.f32 %v2915, %v2924
    %v2929 = vrot.slane %v2925, 1
    %v2930 = vsel %vm2210, %v2926, %v2929
    %2931 = vrot.lane.b32.xlu0 %v2930, 120
    %v2932 = vpop.permute.xlu0 %2931
    %v2934 = vmul.f32 %v2777, %v2932
    %v2935 = vmul.f32 %v2789, %v2362
    %v2936 = vadd.f32 %v2934, %v2935
    %v2938 = vsel %vm1060, %v2501, 0
    %2940 = vmatprep.subr.mxu0 0.0
    %2941 = vmatpush1.msra.mxu0 %v1966
    %2942 = vmatprep.subr.mxu0 0.0
    %2943 = vmatpush1.msra.mxu0 %v1967
    %2944 = vmatprep.subr.mxu0 0.0
    %2945 = vmatpush1.msra.mxu0 0.0
    %2946 = vmatprep.subr.mxu0 0.0
    %2947 = vmatpush1.msra.mxu0 0.0
    %2948 = vmatprep.subr.mxu0 0.0
    %2949 = vmatpush1.msra.mxu0 0.0
    %2950 = vmatprep.subr.mxu0 0.0
    %2951 = vmatpush1.msra.mxu0 0.0
    %2952 = vmatprep.subr.mxu0 0.0
    %2953 = vmatpush1.msra.mxu0 0.0
    %2954 = vmatprep.subr.mxu0 0.0
    %2955 = vmatpush1.msra.mxu0 0.0
    %2956 = vmatprep.subr.mxu0 0.0
    %2957 = vmatpush1.msra.mxu0 0.0
    %2958 = vmatprep.subr.mxu0 0.0
    %2959 = vmatpush1.msra.mxu0 0.0
    %2960 = vmatprep.subr.mxu0 0.0
    %2961 = vmatpush1.msra.mxu0 0.0
    %2962 = vmatprep.subr.mxu0 0.0
    %2963 = vmatpush1.msra.mxu0 0.0
    %2964 = vmatprep.subr.mxu0 0.0
    %2965 = vmatpush1.msra.mxu0 0.0
    %2966 = vmatprep.subr.mxu0 0.0
    %2967 = vmatpush1.msra.mxu0 0.0
    %2968 = vmatprep.subr.mxu0 0.0
    %2969 = vmatpush1.msra.mxu0 0.0
    %2970 = vmatprep.subr.mxu0 0.0
    %2971 = vmatpush1.msra.mxu0 0.0
    %2972 = vmatprep.subr.mxu0 0.0
    %2973 = vmatpush1.msra.mxu0 0.0
    %2974 = vmatprep.subr.mxu0 0.0
    %2975 = vmatpush1.msra.mxu0 0.0
    %2976 = vmatprep.subr.mxu0 0.0
    %2977 = vmatpush1.msra.mxu0 0.0
    %2978 = vmatprep.subr.mxu0 0.0
    %2979 = vmatpush1.msra.mxu0 0.0
    %2980 = vmatprep.subr.mxu0 0.0
    %2981 = vmatpush1.msra.mxu0 0.0
    %2982 = vmatprep.subr.mxu0 0.0
    %2983 = vmatpush1.msra.mxu0 0.0
    %2984 = vmatprep.subr.mxu0 0.0
    %2985 = vmatpush1.msra.mxu0 0.0
    %2986 = vmatprep.subr.mxu0 0.0
    %2987 = vmatpush1.msra.mxu0 0.0
    %2988 = vmatprep.subr.mxu0 0.0
    %2989 = vmatpush1.msra.mxu0 0.0
    %2990 = vmatprep.subr.mxu0 0.0
    %2991 = vmatpush1.msra.mxu0 0.0
    %2992 = vmatprep.subr.mxu0 0.0
    %2993 = vmatpush1.msra.mxu0 0.0
    %2994 = vmatprep.subr.mxu0 0.0
    %2995 = vmatpush1.msra.mxu0 0.0
    %2996 = vmatprep.subr.mxu0 0.0
    %2997 = vmatpush1.msra.mxu0 0.0
    %2998 = vmatprep.subr.mxu0 0.0
    %2999 = vmatpush1.msra.mxu0 0.0
    %3000 = vmatprep.subr.mxu0 0.0
    %3001 = vmatpush1.msra.mxu0 0.0
    %3002 = vmatprep.subr.mxu0 0.0
    %3003 = vmatpush1.msra.mxu0 0.0
    %3004 = vmatprep.mubr.f32.mxu0 0.0
    %3005 = vmatmul.mubr.f32.gmra.mrb[0].mxu0 %v2938
    %v3006 = vpop.f32.mrb[0].mxu0
    %v3007 = vadd.f32 %v2366, %v3006
    %v3008 = vpop.f32.mrb[0].mxu0
    %3009 = vdwg.mxu0
    %v3011 = vrot.slane %v3007, 7
    %v3014 = vadd.f32 %v1958, %v3011
    %v3015 = vadd.f32 %v1963, %v3007
    %v3016 = vxor.u32 %v3014, 2147483648
    %v3017 = vxor.u32 %v3015, 2147483648
    %v3018 = vmul.f32 %v3016, 1.442695
    %v3019 = vpow.pop %v3018
    %v3020 = vmul.f32 %v3017, 1.442695
    %v3021 = vpow.pop %v3020
    %v3022 = vadd.f32 %v3019, 1.0
    %v3023 = vadd.f32 %v3021, 1.0
    %v3024 = vrcp.pop %v3022
    %v3025 = vmul.f32 1.0, %v3024
    %v3026 = vrcp.pop %v3023
    %v3027 = vmul.f32 1.0, %v3026
    %3028 = vrot.lane.b32.xlu0 %v3011, 96
    %v3029 = vpop.permute.xlu0 %3028
    %3030 = vrot.lane.b32.xlu0 %v3007, 96
    %v3031 = vpop.permute.xlu0 %3030
    %v3034 = vmul.f32 %v3025, %v3029
    %v3035 = vmul.f32 %v3027, %v3031
    %3038 = vrot.lane.b32.xlu0 %v3034, 32
    %v3039 = vpop.permute.xlu0 %3038
    %3040 = vrot.lane.b32.xlu0 %v3035, 32
    %v3041 = vpop.permute.xlu0 %3040
    %v3044 = vadd.f32 %v1958, %v3039
    %v3045 = vadd.f32 %v1963, %v3041
    %v3046 = vtanh.pop %v3044
    %v3047 = vtanh.pop %v3045
    %v3048 = vsub.f32 1.0, %v3025
    %v3049 = vsub.f32 1.0, %v3027
    %3052 = vrot.lane.b32.xlu0 %v3046, 112
    %v3053 = vpop.permute.xlu0 %3052
    %3054 = vrot.lane.b32.xlu0 %v3047, 112
    %v3055 = vpop.permute.xlu0 %3054
    %v3058 = vmul.f32 %v3048, %v3053
    %v3059 = vmul.f32 %v3049, %v3055
    %v3060 = vrot.slane %v2501, 7
    %3061 = vrot.lane.b32.xlu0 %v3060, 16
    %v3062 = vpop.permute.xlu0 %3061
    %3063 = vrot.lane.b32.xlu0 %v2501, 16
    %v3064 = vpop.permute.xlu0 %3063
    %v3067 = vmul.f32 %v3025, %v3062
    %v3068 = vmul.f32 %v3027, %v3064
    %v3069 = vadd.f32 %v3058, %v3067
    %v3070 = vadd.f32 %v3059, %v3068
    %v3073 = vrot.slane %v3069, 1
    %v3074 = vsel %vm2210, %v3070, %v3073
    %3075 = vrot.lane.b32.xlu0 %v3074, 112
    %v3076 = vpop.permute.xlu0 %3075
    %v3078 = vmul.f32 %v2777, %v3076
    %v3079 = vmul.f32 %v2789, %v2501
    %v3080 = vadd.f32 %v3078, %v3079
    %v3082 = vsel %vm67, %v2640, 0
    %3084 = vmatprep.subr.mxu0 0.0
    %3085 = vmatpush1.msra.mxu0 %v2063
    %3086 = vmatprep.subr.mxu0 0.0
    %3087 = vmatpush1.msra.mxu0 %v2064
    %3088 = vmatprep.subr.mxu0 0.0
    %3089 = vmatpush1.msra.mxu0 %v2065
    %3090 = vmatprep.subr.mxu0 0.0
    %3091 = vmatpush1.msra.mxu0 %v2066
    %3092 = vmatprep.subr.mxu0 0.0
    %3093 = vmatpush1.msra.mxu0 0.0
    %3094 = vmatprep.subr.mxu0 0.0
    %3095 = vmatpush1.msra.mxu0 0.0
    %3096 = vmatprep.subr.mxu0 0.0
    %3097 = vmatpush1.msra.mxu0 0.0
    %3098 = vmatprep.subr.mxu0 0.0
    %3099 = vmatpush1.msra.mxu0 0.0
    %3100 = vmatprep.subr.mxu0 0.0
    %3101 = vmatpush1.msra.mxu0 0.0
    %3102 = vmatprep.subr.mxu0 0.0
    %3103 = vmatpush1.msra.mxu0 0.0
    %3104 = vmatprep.subr.mxu0 0.0
    %3105 = vmatpush1.msra.mxu0 0.0
    %3106 = vmatprep.subr.mxu0 0.0
    %3107 = vmatpush1.msra.mxu0 0.0
    %3108 = vmatprep.subr.mxu0 0.0
    %3109 = vmatpush1.msra.mxu0 0.0
    %3110 = vmatprep.subr.mxu0 0.0
    %3111 = vmatpush1.msra.mxu0 0.0
    %3112 = vmatprep.subr.mxu0 0.0
    %3113 = vmatpush1.msra.mxu0 0.0
    %3114 = vmatprep.subr.mxu0 0.0
    %3115 = vmatpush1.msra.mxu0 0.0
    %3116 = vmatprep.subr.mxu0 0.0
    %3117 = vmatpush1.msra.mxu0 0.0
    %3118 = vmatprep.subr.mxu0 0.0
    %3119 = vmatpush1.msra.mxu0 0.0
    %3120 = vmatprep.subr.mxu0 0.0
    %3121 = vmatpush1.msra.mxu0 0.0
    %3122 = vmatprep.subr.mxu0 0.0
    %3123 = vmatpush1.msra.mxu0 0.0
    %3124 = vmatprep.subr.mxu0 0.0
    %3125 = vmatpush1.msra.mxu0 0.0
    %3126 = vmatprep.subr.mxu0 0.0
    %3127 = vmatpush1.msra.mxu0 0.0
    %3128 = vmatprep.subr.mxu0 0.0
    %3129 = vmatpush1.msra.mxu0 0.0
    %3130 = vmatprep.subr.mxu0 0.0
    %3131 = vmatpush1.msra.mxu0 0.0
    %3132 = vmatprep.subr.mxu0 0.0
    %3133 = vmatpush1.msra.mxu0 0.0
    %3134 = vmatprep.subr.mxu0 0.0
    %3135 = vmatpush1.msra.mxu0 0.0
    %3136 = vmatprep.subr.mxu0 0.0
    %3137 = vmatpush1.msra.mxu0 0.0
    %3138 = vmatprep.subr.mxu0 0.0
    %3139 = vmatpush1.msra.mxu0 0.0
    %3140 = vmatprep.subr.mxu0 0.0
    %3141 = vmatpush1.msra.mxu0 0.0
    %3142 = vmatprep.subr.mxu0 0.0
    %3143 = vmatpush1.msra.mxu0 0.0
    %3144 = vmatprep.subr.mxu0 0.0
    %3145 = vmatpush1.msra.mxu0 0.0
    %3146 = vmatprep.subr.mxu0 0.0
    %3147 = vmatpush1.msra.mxu0 0.0
    %3148 = vmatprep.mubr.f32.mxu0 0.0
    %3149 = vmatmul.mubr.f32.gmra.mrb[0].mxu0 %v3082
    %v3150 = vpop.f32.mrb[0].mxu0
    %v3151 = vadd.f32 %v2505, %v3150
    %v3152 = vpop.f32.mrb[0].mxu0
    %3153 = vdwg.mxu0
    %v3155 = vrot.slane %v3151, 7
    %v3158 = vadd.f32 %v2055, %v3155
    %v3159 = vadd.f32 %v2060, %v3151
    %v3160 = vxor.u32 %v3158, 2147483648
    %v3161 = vxor.u32 %v3159, 2147483648
    %v3162 = vmul.f32 %v3160, 1.442695
    %v3163 = vpow.pop %v3162
    %v3164 = vmul.f32 %v3161, 1.442695
    %v3165 = vpow.pop %v3164
    %v3166 = vadd.f32 %v3163, 1.0
    %v3167 = vadd.f32 %v3165, 1.0
    %v3168 = vrcp.pop %v3166
    %v3169 = vmul.f32 1.0, %v3168
    %v3170 = vrcp.pop %v3167
    %v3171 = vmul.f32 1.0, %v3170
    %3172 = vrot.lane.b32.xlu0 %v3155, 64
    %v3173 = vpop.permute.xlu0 %3172
    %3174 = vrot.lane.b32.xlu0 %v3151, 64
    %v3175 = vpop.permute.xlu0 %3174
    %v3178 = vmul.f32 %v3169, %v3173
    %v3179 = vmul.f32 %v3171, %v3175
    %3182 = vrot.lane.b32.xlu0 %v3178, 64
    %v3183 = vpop.permute.xlu0 %3182
    %3184 = vrot.lane.b32.xlu0 %v3179, 64
    %v3185 = vpop.permute.xlu0 %3184
    %v3188 = vadd.f32 %v2055, %v3183
    %v3189 = vadd.f32 %v2060, %v3185
    %v3190 = vtanh.pop %v3188
    %v3191 = vtanh.pop %v3189
    %v3192 = vsub.f32 1.0, %v3169
    %v3193 = vsub.f32 1.0, %v3171
    %3196 = vrot.lane.b32.xlu0 %v3190, 96
    %v3197 = vpop.permute.xlu0 %3196
    %3198 = vrot.lane.b32.xlu0 %v3191, 96
    %v3199 = vpop.permute.xlu0 %3198
    %v3202 = vmul.f32 %v3192, %v3197
    %v3203 = vmul.f32 %v3193, %v3199
    %v3204 = vrot.slane %v2640, 7
    %3205 = vrot.lane.b32.xlu0 %v3204, 32
    %v3206 = vpop.permute.xlu0 %3205
    %3207 = vrot.lane.b32.xlu0 %v2640, 32
    %v3208 = vpop.permute.xlu0 %3207
    %v3211 = vmul.f32 %v3169, %v3206
    %v3212 = vmul.f32 %v3171, %v3208
    %v3213 = vadd.f32 %v3202, %v3211
    %v3214 = vadd.f32 %v3203, %v3212
    %v3217 = vrot.slane %v3213, 1
    %v3218 = vsel %vm2210, %v3214, %v3217
    %3219 = vrot.lane.b32.xlu0 %v3218, 96
    %v3220 = vpop.permute.xlu0 %3219
    %v3222 = vmul.f32 %v2777, %v3220
    %v3223 = vmul.f32 %v2789, %v2640
    %v3224 = vadd.f32 %v3222, %v3223
    %v3226 = vsel %vm230, %v2792, 0
    %3228 = vmatprep.subr.mxu0 0.0
    %3229 = vmatpush1.msra.mxu0 %v2076
    %3230 = vmatprep.subr.mxu0 0.0
    %3231 = vmatpush1.msra.mxu0 0.0
    %3232 = vmatprep.subr.mxu0 0.0
    %3233 = vmatpush1.msra.mxu0 0.0
    %3234 = vmatprep.subr.mxu0 0.0
    %3235 = vmatpush1.msra.mxu0 0.0
    %3236 = vmatprep.subr.mxu0 0.0
    %3237 = vmatpush1.msra.mxu0 0.0
    %3238 = vmatprep.subr.mxu0 0.0
    %3239 = vmatpush1.msra.mxu0 0.0
    %3240 = vmatprep.subr.mxu0 0.0
    %3241 = vmatpush1.msra.mxu0 0.0
    %3242 = vmatprep.subr.mxu0 0.0
    %3243 = vmatpush1.msra.mxu0 0.0
    %3244 = vmatprep.subr.mxu0 0.0
    %3245 = vmatpush1.msra.mxu0 0.0
    %3246 = vmatprep.subr.mxu0 0.0
    %3247 = vmatpush1.msra.mxu0 0.0
    %3248 = vmatprep.subr.mxu0 0.0
    %3249 = vmatpush1.msra.mxu0 0.0
    %3250 = vmatprep.subr.mxu0 0.0
    %3251 = vmatpush1.msra.mxu0 0.0
    %3252 = vmatprep.subr.mxu0 0.0
    %3253 = vmatpush1.msra.mxu0 0.0
    %3254 = vmatprep.subr.mxu0 0.0
    %3255 = vmatpush1.msra.mxu0 0.0
    %3256 = vmatprep.subr.mxu0 0.0
    %3257 = vmatpush1.msra.mxu0 0.0
    %3258 = vmatprep.subr.mxu0 0.0
    %3259 = vmatpush1.msra.mxu0 0.0
    %3260 = vmatprep.subr.mxu0 0.0
    %3261 = vmatpush1.msra.mxu0 0.0
    %3262 = vmatprep.subr.mxu0 0.0
    %3263 = vmatpush1.msra.mxu0 0.0
    %3264 = vmatprep.subr.mxu0 0.0
    %3265 = vmatpush1.msra.mxu0 0.0
    %3266 = vmatprep.subr.mxu0 0.0
    %3267 = vmatpush1.msra.mxu0 0.0
    %3268 = vmatprep.subr.mxu0 0.0
    %3269 = vmatpush1.msra.mxu0 0.0
    %3270 = vmatprep.subr.mxu0 0.0
    %3271 = vmatpush1.msra.mxu0 0.0
    %3272 = vmatprep.subr.mxu0 0.0
    %3273 = vmatpush1.msra.mxu0 0.0
    %3274 = vmatprep.subr.mxu0 0.0
    %3275 = vmatpush1.msra.mxu0 0.0
    %3276 = vmatprep.subr.mxu0 0.0
    %3277 = vmatpush1.msra.mxu0 0.0
    %3278 = vmatprep.subr.mxu0 0.0
    %3279 = vmatpush1.msra.mxu0 0.0
    %3280 = vmatprep.subr.mxu0 0.0
    %3281 = vmatpush1.msra.mxu0 0.0
    %3282 = vmatprep.subr.mxu0 0.0
    %3283 = vmatpush1.msra.mxu0 0.0
    %3284 = vmatprep.subr.mxu0 0.0
    %3285 = vmatpush1.msra.mxu0 0.0
    %3286 = vmatprep.subr.mxu0 0.0
    %3287 = vmatpush1.msra.mxu0 0.0
    %3288 = vmatprep.subr.mxu0 0.0
    %3289 = vmatpush1.msra.mxu0 0.0
    %3290 = vmatprep.subr.mxu0 0.0
    %3291 = vmatpush1.msra.mxu0 0.0
    %3292 = vmatprep.mubr.f32.mxu0 0.0
    %3293 = vmatmul.mubr.f32.gmra.mrb[0].mxu0 %v3226
    %v3294 = vpop.f32.mrb[0].mxu0
    %v3295 = vadd.f32 %v2071, %v3294
    %v3296 = vpop.f32.mrb[0].mxu0
    %3297 = vdwg.mxu0
    %v3299 = vrot.slane %v3295, 6
    %v3300 = vrot.slane %v3295, 7
    %v3303 = vadd.f32 %v1791, %v3299
    %v3304 = vadd.f32 %v1796, %v3300
    %v3305 = vxor.u32 %v3303, 2147483648
    %v3306 = vxor.u32 %v3304, 2147483648
    %v3307 = vmul.f32 %v3305, 1.442695
    %v3308 = vpow.pop %v3307
    %v3309 = vmul.f32 %v3306, 1.442695
    %v3310 = vpow.pop %v3309
    %v3311 = vadd.f32 %v3308, 1.0
    %v3312 = vadd.f32 %v3310, 1.0
    %v3313 = vrcp.pop %v3311
    %v3314 = vmul.f32 1.0, %v3313
    %v3315 = vrcp.pop %v3312
    %v3316 = vmul.f32 1.0, %v3315
    %3317 = vrot.lane.b32.xlu0 %v3299, 120
    %v3318 = vpop.permute.xlu0 %3317
    %3319 = vrot.lane.b32.xlu0 %v3300, 120
    %v3320 = vpop.permute.xlu0 %3319
    %v3323 = vmul.f32 %v3314, %v3318
    %v3324 = vmul.f32 %v3316, %v3320
    %3327 = vrot.lane.b32.xlu0 %v3323, 8
    %v3328 = vpop.permute.xlu0 %3327
    %3329 = vrot.lane.b32.xlu0 %v3324, 8
    %v3330 = vpop.permute.xlu0 %3329
    %v3333 = vadd.f32 %v1791, %v3328
    %v3334 = vadd.f32 %v1796, %v3330
    %v3335 = vtanh.pop %v3333
    %v3336 = vtanh.pop %v3334
    %v3337 = vsub.f32 1.0, %v3314
    %v3338 = vsub.f32 1.0, %v3316
    %3341 = vrot.lane.b32.xlu0 %v3335, 124
    %v3342 = vpop.permute.xlu0 %3341
    %3343 = vrot.lane.b32.xlu0 %v3336, 124
    %v3344 = vpop.permute.xlu0 %3343
    %v3347 = vmul.f32 %v3337, %v3342
    %v3348 = vmul.f32 %v3338, %v3344
    %v3349 = vrot.slane %v2792, 6
    %v3350 = vrot.slane %v2792, 7
    %3351 = vrot.lane.b32.xlu0 %v3349, 4
    %v3352 = vpop.permute.xlu0 %3351
    %3353 = vrot.lane.b32.xlu0 %v3350, 4
    %v3354 = vpop.permute.xlu0 %3353
    %v3357 = vmul.f32 %v3314, %v3352
    %v3358 = vmul.f32 %v3316, %v3354
    %v3359 = vadd.f32 %v3347, %v3357
    %v3360 = vadd.f32 %v3348, %v3358
    %3361 = vset.pattern.permute.xlu0 2
    %3362 = vperm.xlu0 %3361, %v35
    %v3363 = vpop.permute.xlu0 %3362
    %v3367 = vrot.slane %v3359, 2
    %v3368 = vrot.slane %v3360, 1
    %v3369 = vsel %vm2210, %v3368, %v3367
    %3370 = vrot.lane.b32.xlu0 %v3369, 124
    %v3371 = vpop.permute.xlu0 %3370
    %v3373 = vmul.f32 %v3363, %v3371
    %3374 = vset.pattern.permute.xlu0 2
    %3375 = vperm.xlu0 %3374, %v2216
    %v3376 = vpop.permute.xlu0 %3375
    %v3378 = vmul.f32 %v3376, %v2792
    %v3379 = vadd.f32 %v3373, %v3378
    %v3381 = vsel %vm648, %v2936, 0
    %3383 = vmatprep.subr.mxu0 0.0
    %3384 = vmatpush1.msra.mxu0 %v1882
    %3385 = vmatprep.subr.mxu0 0.0
    %3386 = vmatpush1.msra.mxu0 0.0
    %3387 = vmatprep.subr.mxu0 0.0
    %3388 = vmatpush1.msra.mxu0 0.0
    %3389 = vmatprep.subr.mxu0 0.0
    %3390 = vmatpush1.msra.mxu0 0.0
    %3391 = vmatprep.subr.mxu0 0.0
    %3392 = vmatpush1.msra.mxu0 0.0
    %3393 = vmatprep.subr.mxu0 0.0
    %3394 = vmatpush1.msra.mxu0 0.0
    %3395 = vmatprep.subr.mxu0 0.0
    %3396 = vmatpush1.msra.mxu0 0.0
    %3397 = vmatprep.subr.mxu0 0.0
    %3398 = vmatpush1.msra.mxu0 0.0
    %3399 = vmatprep.subr.mxu0 0.0
    %3400 = vmatpush1.msra.mxu0 0.0
    %3401 = vmatprep.subr.mxu0 0.0
    %3402 = vmatpush1.msra.mxu0 0.0
    %3403 = vmatprep.subr.mxu0 0.0
    %3404 = vmatpush1.msra.mxu0 0.0
    %3405 = vmatprep.subr.mxu0 0.0
    %3406 = vmatpush1.msra.mxu0 0.0
    %3407 = vmatprep.subr.mxu0 0.0
    %3408 = vmatpush1.msra.mxu0 0.0
    %3409 = vmatprep.subr.mxu0 0.0
    %3410 = vmatpush1.msra.mxu0 0.0
    %3411 = vmatprep.subr.mxu0 0.0
    %3412 = vmatpush1.msra.mxu0 0.0
    %3413 = vmatprep.subr.mxu0 0.0
    %3414 = vmatpush1.msra.mxu0 0.0
    %3415 = vmatprep.subr.mxu0 0.0
    %3416 = vmatpush1.msra.mxu0 0.0
    %3417 = vmatprep.subr.mxu0 0.0
    %3418 = vmatpush1.msra.mxu0 0.0
    %3419 = vmatprep.subr.mxu0 0.0
    %3420 = vmatpush1.msra.mxu0 0.0
    %3421 = vmatprep.subr.mxu0 0.0
    %3422 = vmatpush1.msra.mxu0 0.0
    %3423 = vmatprep.subr.mxu0 0.0
    %3424 = vmatpush1.msra.mxu0 0.0
    %3425 = vmatprep.subr.mxu0 0.0
    %3426 = vmatpush1.msra.mxu0 0.0
    %3427 = vmatprep.subr.mxu0 0.0
    %3428 = vmatpush1.msra.mxu0 0.0
    %3429 = vmatprep.subr.mxu0 0.0
    %3430 = vmatpush1.msra.mxu0 0.0
    %3431 = vmatprep.subr.mxu0 0.0
    %3432 = vmatpush1.msra.mxu0 0.0
    %3433 = vmatprep.subr.mxu0 0.0
    %3434 = vmatpush1.msra.mxu0 0.0
    %3435 = vmatprep.subr.mxu0 0.0
    %3436 = vmatpush1.msra.mxu0 0.0
    %3437 = vmatprep.subr.mxu0 0.0
    %3438 = vmatpush1.msra.mxu0 0.0
    %3439 = vmatprep.subr.mxu0 0.0
    %3440 = vmatpush1.msra.mxu0 0.0
    %3441 = vmatprep.subr.mxu0 0.0
    %3442 = vmatpush1.msra.mxu0 0.0
    %3443 = vmatprep.subr.mxu0 0.0
    %3444 = vmatpush1.msra.mxu0 0.0
    %3445 = vmatprep.subr.mxu0 0.0
    %3446 = vmatpush1.msra.mxu0 0.0
    %3447 = vmatprep.mubr.f32.mxu0 0.0
    %3448 = vmatmul.mubr.f32.gmra.mrb[0].mxu0 %v3381
    %v3449 = vpop.f32.mrb[0].mxu0
    %v3450 = vadd.f32 %v2227, %v3449
    %v3451 = vpop.f32.mrb[0].mxu0
    %3452 = vdwg.mxu0
    %v3454 = vrot.slane %v3450, 6
    %v3455 = vrot.slane %v3450, 7
    %v3458 = vadd.f32 %v1874, %v3454
    %v3459 = vadd.f32 %v1879, %v3455
    %v3460 = vxor.u32 %v3458, 2147483648
    %v3461 = vxor.u32 %v3459, 2147483648
    %v3462 = vmul.f32 %v3460, 1.442695
    %v3463 = vpow.pop %v3462
    %v3464 = vmul.f32 %v3461, 1.442695
    %v3465 = vpow.pop %v3464
    %v3466 = vadd.f32 %v3463, 1.0
    %v3467 = vadd.f32 %v3465, 1.0
    %v3468 = vrcp.pop %v3466
    %v3469 = vmul.f32 1.0, %v3468
    %v3470 = vrcp.pop %v3467
    %v3471 = vmul.f32 1.0, %v3470
    %3472 = vrot.lane.b32.xlu0 %v3454, 112
    %v3473 = vpop.permute.xlu0 %3472
    %3474 = vrot.lane.b32.xlu0 %v3455, 112
    %v3475 = vpop.permute.xlu0 %3474
    %v3478 = vmul.f32 %v3469, %v3473
    %v3479 = vmul.f32 %v3471, %v3475
    %3482 = vrot.lane.b32.xlu0 %v3478, 16
    %v3483 = vpop.permute.xlu0 %3482
    %3484 = vrot.lane.b32.xlu0 %v3479, 16
    %v3485 = vpop.permute.xlu0 %3484
    %v3488 = vadd.f32 %v1874, %v3483
    %v3489 = vadd.f32 %v1879, %v3485
    %v3490 = vtanh.pop %v3488
    %v3491 = vtanh.pop %v3489
    %v3492 = vsub.f32 1.0, %v3469
    %v3493 = vsub.f32 1.0, %v3471
    %3496 = vrot.lane.b32.xlu0 %v3490, 120
    %v3497 = vpop.permute.xlu0 %3496
    %3498 = vrot.lane.b32.xlu0 %v3491, 120
    %v3499 = vpop.permute.xlu0 %3498
    %v3502 = vmul.f32 %v3492, %v3497
    %v3503 = vmul.f32 %v3493, %v3499
    %v3504 = vrot.slane %v2936, 6
    %v3505 = vrot.slane %v2936, 7
    %3506 = vrot.lane.b32.xlu0 %v3504, 8
    %v3507 = vpop.permute.xlu0 %3506
    %3508 = vrot.lane.b32.xlu0 %v3505, 8
    %v3509 = vpop.permute.xlu0 %3508
    %v3512 = vmul.f32 %v3469, %v3507
    %v3513 = vmul.f32 %v3471, %v3509
    %v3514 = vadd.f32 %v3502, %v3512
    %v3515 = vadd.f32 %v3503, %v3513
    %v3518 = vrot.slane %v3514, 2
    %v3519 = vrot.slane %v3515, 1
    %v3520 = vsel %vm2210, %v3519, %v3518
    %3521 = vrot.lane.b32.xlu0 %v3520, 120
    %v3522 = vpop.permute.xlu0 %3521
    %v3524 = vmul.f32 %v3363, %v3522
    %v3525 = vmul.f32 %v3376, %v2936
    %v3526 = vadd.f32 %v3524, %v3525
    %v3528 = vsel %vm1060, %v3080, 0
    %3530 = vmatprep.subr.mxu0 0.0
    %3531 = vmatpush1.msra.mxu0 %v1966
    %3532 = vmatprep.subr.mxu0 0.0
    %3533 = vmatpush1.msra.mxu0 %v1967
    %3534 = vmatprep.subr.mxu0 0.0
    %3535 = vmatpush1.msra.mxu0 0.0
    %3536 = vmatprep.subr.mxu0 0.0
    %3537 = vmatpush1.msra.mxu0 0.0
    %3538 = vmatprep.subr.mxu0 0.0
    %3539 = vmatpush1.msra.mxu0 0.0
    %3540 = vmatprep.subr.mxu0 0.0
    %3541 = vmatpush1.msra.mxu0 0.0
    %3542 = vmatprep.subr.mxu0 0.0
    %3543 = vmatpush1.msra.mxu0 0.0
    %3544 = vmatprep.subr.mxu0 0.0
    %3545 = vmatpush1.msra.mxu0 0.0
    %3546 = vmatprep.subr.mxu0 0.0
    %3547 = vmatpush1.msra.mxu0 0.0
    %3548 = vmatprep.subr.mxu0 0.0
    %3549 = vmatpush1.msra.mxu0 0.0
    %3550 = vmatprep.subr.mxu0 0.0
    %3551 = vmatpush1.msra.mxu0 0.0
    %3552 = vmatprep.subr.mxu0 0.0
    %3553 = vmatpush1.msra.mxu0 0.0
    %3554 = vmatprep.subr.mxu0 0.0
    %3555 = vmatpush1.msra.mxu0 0.0
    %3556 = vmatprep.subr.mxu0 0.0
    %3557 = vmatpush1.msra.mxu0 0.0
    %3558 = vmatprep.subr.mxu0 0.0
    %3559 = vmatpush1.msra.mxu0 0.0
    %3560 = vmatprep.subr.mxu0 0.0
    %3561 = vmatpush1.msra.mxu0 0.0
    %3562 = vmatprep.subr.mxu0 0.0
    %3563 = vmatpush1.msra.mxu0 0.0
    %3564 = vmatprep.subr.mxu0 0.0
    %3565 = vmatpush1.msra.mxu0 0.0
    %3566 = vmatprep.subr.mxu0 0.0
    %3567 = vmatpush1.msra.mxu0 0.0
    %3568 = vmatprep.subr.mxu0 0.0
    %3569 = vmatpush1.msra.mxu0 0.0
    %3570 = vmatprep.subr.mxu0 0.0
    %3571 = vmatpush1.msra.mxu0 0.0
    %3572 = vmatprep.subr.mxu0 0.0
    %3573 = vmatpush1.msra.mxu0 0.0
    %3574 = vmatprep.subr.mxu0 0.0
    %3575 = vmatpush1.msra.mxu0 0.0
    %3576 = vmatprep.subr.mxu0 0.0
    %3577 = vmatpush1.msra.mxu0 0.0
    %3578 = vmatprep.subr.mxu0 0.0
    %3579 = vmatpush1.msra.mxu0 0.0
    %3580 = vmatprep.subr.mxu0 0.0
    %3581 = vmatpush1.msra.mxu0 0.0
    %3582 = vmatprep.subr.mxu0 0.0
    %3583 = vmatpush1.msra.mxu0 0.0
    %3584 = vmatprep.subr.mxu0 0.0
    %3585 = vmatpush1.msra.mxu0 0.0
    %3586 = vmatprep.subr.mxu0 0.0
    %3587 = vmatpush1.msra.mxu0 0.0
    %3588 = vmatprep.subr.mxu0 0.0
    %3589 = vmatpush1.msra.mxu0 0.0
    %3590 = vmatprep.subr.mxu0 0.0
    %3591 = vmatpush1.msra.mxu0 0.0
    %3592 = vmatprep.subr.mxu0 0.0
    %3593 = vmatpush1.msra.mxu0 0.0
    %3594 = vmatprep.mubr.f32.mxu0 0.0
    %3595 = vmatmul.mubr.f32.gmra.mrb[0].mxu0 %v3528
    %v3596 = vpop.f32.mrb[0].mxu0
    %v3597 = vadd.f32 %v2366, %v3596
    %v3598 = vpop.f32.mrb[0].mxu0
    %3599 = vdwg.mxu0
    %v3601 = vrot.slane %v3597, 6
    %v3602 = vrot.slane %v3597, 7
    %v3605 = vadd.f32 %v1958, %v3601
    %v3606 = vadd.f32 %v1963, %v3602
    %v3607 = vxor.u32 %v3605, 2147483648
    %v3608 = vxor.u32 %v3606, 2147483648
    %v3609 = vmul.f32 %v3607, 1.442695
    %v3610 = vpow.pop %v3609
    %v3611 = vmul.f32 %v3608, 1.442695
    %v3612 = vpow.pop %v3611
    %v3613 = vadd.f32 %v3610, 1.0
    %v3614 = vadd.f32 %v3612, 1.0
    %v3615 = vrcp.pop %v3613
    %v3616 = vmul.f32 1.0, %v3615
    %v3617 = vrcp.pop %v3614
    %v3618 = vmul.f32 1.0, %v3617
    %3619 = vrot.lane.b32.xlu0 %v3601, 96
    %v3620 = vpop.permute.xlu0 %3619
    %3621 = vrot.lane.b32.xlu0 %v3602, 96
    %v3622 = vpop.permute.xlu0 %3621
    %v3625 = vmul.f32 %v3616, %v3620
    %v3626 = vmul.f32 %v3618, %v3622
    %3629 = vrot.lane.b32.xlu0 %v3625, 32
    %v3630 = vpop.permute.xlu0 %3629
    %3631 = vrot.lane.b32.xlu0 %v3626, 32
    %v3632 = vpop.permute.xlu0 %3631
    %v3635 = vadd.f32 %v1958, %v3630
    %v3636 = vadd.f32 %v1963, %v3632
    %v3637 = vtanh.pop %v3635
    %v3638 = vtanh.pop %v3636
    %v3639 = vsub.f32 1.0, %v3616
    %v3640 = vsub.f32 1.0, %v3618
    %3643 = vrot.lane.b32.xlu0 %v3637, 112
    %v3644 = vpop.permute.xlu0 %3643
    %3645 = vrot.lane.b32.xlu0 %v3638, 112
    %v3646 = vpop.permute.xlu0 %3645
    %v3649 = vmul.f32 %v3639, %v3644
    %v3650 = vmul.f32 %v3640, %v3646
    %v3651 = vrot.slane %v3080, 6
    %v3652 = vrot.slane %v3080, 7
    %3653 = vrot.lane.b32.xlu0 %v3651, 16
    %v3654 = vpop.permute.xlu0 %3653
    %3655 = vrot.lane.b32.xlu0 %v3652, 16
    %v3656 = vpop.permute.xlu0 %3655
    %v3659 = vmul.f32 %v3616, %v3654
    %v3660 = vmul.f32 %v3618, %v3656
    %v3661 = vadd.f32 %v3649, %v3659
    %v3662 = vadd.f32 %v3650, %v3660
    %v3665 = vrot.slane %v3661, 2
    %v3666 = vrot.slane %v3662, 1
    %v3667 = vsel %vm2210, %v3666, %v3665
    %3668 = vrot.lane.b32.xlu0 %v3667, 112
    %v3669 = vpop.permute.xlu0 %3668
    %v3671 = vmul.f32 %v3363, %v3669
    %v3672 = vmul.f32 %v3376, %v3080
    %v3673 = vadd.f32 %v3671, %v3672
    %v3675 = vsel %vm67, %v3224, 0
    %3677 = vmatprep.subr.mxu0 0.0
    %3678 = vmatpush1.msra.mxu0 %v2063
    %3679 = vmatprep.subr.mxu0 0.0
    %3680 = vmatpush1.msra.mxu0 %v2064
    %3681 = vmatprep.subr.mxu0 0.0
    %3682 = vmatpush1.msra.mxu0 %v2065
    %3683 = vmatprep.subr.mxu0 0.0
    %3684 = vmatpush1.msra.mxu0 %v2066
    %3685 = vmatprep.subr.mxu0 0.0
    %3686 = vmatpush1.msra.mxu0 0.0
    %3687 = vmatprep.subr.mxu0 0.0
    %3688 = vmatpush1.msra.mxu0 0.0
    %3689 = vmatprep.subr.mxu0 0.0
    %3690 = vmatpush1.msra.mxu0 0.0
    %3691 = vmatprep.subr.mxu0 0.0
    %3692 = vmatpush1.msra.mxu0 0.0
    %3693 = vmatprep.subr.mxu0 0.0
    %3694 = vmatpush1.msra.mxu0 0.0
    %3695 = vmatprep.subr.mxu0 0.0
    %3696 = vmatpush1.msra.mxu0 0.0
    %3697 = vmatprep.subr.mxu0 0.0
    %3698 = vmatpush1.msra.mxu0 0.0
    %3699 = vmatprep.subr.mxu0 0.0
    %3700 = vmatpush1.msra.mxu0 0.0
    %3701 = vmatprep.subr.mxu0 0.0
    %3702 = vmatpush1.msra.mxu0 0.0
    %3703 = vmatprep.subr.mxu0 0.0
    %3704 = vmatpush1.msra.mxu0 0.0
    %3705 = vmatprep.subr.mxu0 0.0
    %3706 = vmatpush1.msra.mxu0 0.0
    %3707 = vmatprep.subr.mxu0 0.0
    %3708 = vmatpush1.msra.mxu0 0.0
    %3709 = vmatprep.subr.mxu0 0.0
    %3710 = vmatpush1.msra.mxu0 0.0
    %3711 = vmatprep.subr.mxu0 0.0
    %3712 = vmatpush1.msra.mxu0 0.0
    %3713 = vmatprep.subr.mxu0 0.0
    %3714 = vmatpush1.msra.mxu0 0.0
    %3715 = vmatprep.subr.mxu0 0.0
    %3716 = vmatpush1.msra.mxu0 0.0
    %3717 = vmatprep.subr.mxu0 0.0
    %3718 = vmatpush1.msra.mxu0 0.0
    %3719 = vmatprep.subr.mxu0 0.0
    %3720 = vmatpush1.msra.mxu0 0.0
    %3721 = vmatprep.subr.mxu0 0.0
    %3722 = vmatpush1.msra.mxu0 0.0
    %3723 = vmatprep.subr.mxu0 0.0
    %3724 = vmatpush1.msra.mxu0 0.0
    %3725 = vmatprep.subr.mxu0 0.0
    %3726 = vmatpush1.msra.mxu0 0.0
    %3727 = vmatprep.subr.mxu0 0.0
    %3728 = vmatpush1.msra.mxu0 0.0
    %3729 = vmatprep.subr.mxu0 0.0
    %3730 = vmatpush1.msra.mxu0 0.0
    %3731 = vmatprep.subr.mxu0 0.0
    %3732 = vmatpush1.msra.mxu0 0.0
    %3733 = vmatprep.subr.mxu0 0.0
    %3734 = vmatpush1.msra.mxu0 0.0
    %3735 = vmatprep.subr.mxu0 0.0
    %3736 = vmatpush1.msra.mxu0 0.0
    %3737 = vmatprep.subr.mxu0 0.0
    %3738 = vmatpush1.msra.mxu0 0.0
    %3739 = vmatprep.subr.mxu0 0.0
    %3740 = vmatpush1.msra.mxu0 0.0
    %3741 = vmatprep.mubr.f32.mxu0 0.0
    %3742 = vmatmul.mubr.f32.gmra.mrb[0].mxu0 %v3675
    %v3743 = vpop.f32.mrb[0].mxu0
    %v3744 = vadd.f32 %v2505, %v3743
    %v3745 = vpop.f32.mrb[0].mxu0
    %3746 = vdwg.mxu0
    %v3748 = vrot.slane %v3744, 6
    %v3749 = vrot.slane %v3744, 7
    %v3752 = vadd.f32 %v2055, %v3748
    %v3753 = vadd.f32 %v2060, %v3749
    %v3754 = vxor.u32 %v3752, 2147483648
    %v3755 = vxor.u32 %v3753, 2147483648
    %v3756 = vmul.f32 %v3754, 1.442695
    %v3757 = vpow.pop %v3756
    %v3758 = vmul.f32 %v3755, 1.442695
    %v3759 = vpow.pop %v3758
    %v3760 = vadd.f32 %v3757, 1.0
    %v3761 = vadd.f32 %v3759, 1.0
    %v3762 = vrcp.pop %v3760
    %v3763 = vmul.f32 1.0, %v3762
    %v3764 = vrcp.pop %v3761
    %v3765 = vmul.f32 1.0, %v3764
    %3766 = vrot.lane.b32.xlu0 %v3748, 64
    %v3767 = vpop.permute.xlu0 %3766
    %3768 = vrot.lane.b32.xlu0 %v3749, 64
    %v3769 = vpop.permute.xlu0 %3768
    %v3772 = vmul.f32 %v3763, %v3767
    %v3773 = vmul.f32 %v3765, %v3769
    %3776 = vrot.lane.b32.xlu0 %v3772, 64
    %v3777 = vpop.permute.xlu0 %3776
    %3778 = vrot.lane.b32.xlu0 %v3773, 64
    %v3779 = vpop.permute.xlu0 %3778
    %v3782 = vadd.f32 %v2055, %v3777
    %v3783 = vadd.f32 %v2060, %v3779
    %v3784 = vtanh.pop %v3782
    %v3785 = vtanh.pop %v3783
    %v3786 = vsub.f32 1.0, %v3763
    %v3787 = vsub.f32 1.0, %v3765
    %3790 = vrot.lane.b32.xlu0 %v3784, 96
    %v3791 = vpop.permute.xlu0 %3790
    %3792 = vrot.lane.b32.xlu0 %v3785, 96
    %v3793 = vpop.permute.xlu0 %3792
    %v3796 = vmul.f32 %v3786, %v3791
    %v3797 = vmul.f32 %v3787, %v3793
    %v3798 = vrot.slane %v3224, 6
    %v3799 = vrot.slane %v3224, 7
    %3800 = vrot.lane.b32.xlu0 %v3798, 32
    %v3801 = vpop.permute.xlu0 %3800
    %3802 = vrot.lane.b32.xlu0 %v3799, 32
    %v3803 = vpop.permute.xlu0 %3802
    %v3806 = vmul.f32 %v3763, %v3801
    %v3807 = vmul.f32 %v3765, %v3803
    %v3808 = vadd.f32 %v3796, %v3806
    %v3809 = vadd.f32 %v3797, %v3807
    %v3812 = vrot.slane %v3808, 2
    %v3813 = vrot.slane %v3809, 1
    %v3814 = vsel %vm2210, %v3813, %v3812
    %3815 = vrot.lane.b32.xlu0 %v3814, 96
    %v3816 = vpop.permute.xlu0 %3815
    %v3818 = vmul.f32 %v3363, %v3816
    %v3819 = vmul.f32 %v3376, %v3224
    %v3820 = vadd.f32 %v3818, %v3819
    %v3822 = vsel %vm230, %v3379, 0
    %3824 = vmatprep.subr.mxu0 0.0
    %3825 = vmatpush1.msra.mxu0 %v2076
    %3826 = vmatprep.subr.mxu0 0.0
    %3827 = vmatpush1.msra.mxu0 0.0
    %3828 = vmatprep.subr.mxu0 0.0
    %3829 = vmatpush1.msra.mxu0 0.0
    %3830 = vmatprep.subr.mxu0 0.0
    %3831 = vmatpush1.msra.mxu0 0.0
    %3832 = vmatprep.subr.mxu0 0.0
    %3833 = vmatpush1.msra.mxu0 0.0
    %3834 = vmatprep.subr.mxu0 0.0
    %3835 = vmatpush1.msra.mxu0 0.0
    %3836 = vmatprep.subr.mxu0 0.0
    %3837 = vmatpush1.msra.mxu0 0.0
    %3838 = vmatprep.subr.mxu0 0.0
    %3839 = vmatpush1.msra.mxu0 0.0
    %3840 = vmatprep.subr.mxu0 0.0
    %3841 = vmatpush1.msra.mxu0 0.0
    %3842 = vmatprep.subr.mxu0 0.0
    %3843 = vmatpush1.msra.mxu0 0.0
    %3844 = vmatprep.subr.mxu0 0.0
    %3845 = vmatpush1.msra.mxu0 0.0
    %3846 = vmatprep.subr.mxu0 0.0
    %3847 = vmatpush1.msra.mxu0 0.0
    %3848 = vmatprep.subr.mxu0 0.0
    %3849 = vmatpush1.msra.mxu0 0.0
    %3850 = vmatprep.subr.mxu0 0.0
    %3851 = vmatpush1.msra.mxu0 0.0
    %3852 = vmatprep.subr.mxu0 0.0
    %3853 = vmatpush1.msra.mxu0 0.0
    %3854 = vmatprep.subr.mxu0 0.0
    %3855 = vmatpush1.msra.mxu0 0.0
    %3856 = vmatprep.subr.mxu0 0.0
    %3857 = vmatpush1.msra.mxu0 0.0
    %3858 = vmatprep.subr.mxu0 0.0
    %3859 = vmatpush1.msra.mxu0 0.0
    %3860 = vmatprep.subr.mxu0 0.0
    %3861 = vmatpush1.msra.mxu0 0.0
    %3862 = vmatprep.subr.mxu0 0.0
    %3863 = vmatpush1.msra.mxu0 0.0
    %3864 = vmatprep.subr.mxu0 0.0
    %3865 = vmatpush1.msra.mxu0 0.0
    %3866 = vmatprep.subr.mxu0 0.0
    %3867 = vmatpush1.msra.mxu0 0.0
    %3868 = vmatprep.subr.mxu0 0.0
    %3869 = vmatpush1.msra.mxu0 0.0
    %3870 = vmatprep.subr.mxu0 0.0
    %3871 = vmatpush1.msra.mxu0 0.0
    %3872 = vmatprep.subr.mxu0 0.0
    %3873 = vmatpush1.msra.mxu0 0.0
    %3874 = vmatprep.subr.mxu0 0.0
    %3875 = vmatpush1.msra.mxu0 0.0
    %3876 = vmatprep.subr.mxu0 0.0
    %3877 = vmatpush1.msra.mxu0 0.0
    %3878 = vmatprep.subr.mxu0 0.0
    %3879 = vmatpush1.msra.mxu0 0.0
    %3880 = vmatprep.subr.mxu0 0.0
    %3881 = vmatpush1.msra.mxu0 0.0
    %3882 = vmatprep.subr.mxu0 0.0
    %3883 = vmatpush1.msra.mxu0 0.0
    %3884 = vmatprep.subr.mxu0 0.0
    %3885 = vmatpush1.msra.mxu0 0.0
    %3886 = vmatprep.subr.mxu0 0.0
    %3887 = vmatpush1.msra.mxu0 0.0
    %3888 = vmatprep.mubr.f32.mxu0 0.0
    %3889 = vmatmul.mubr.f32.gmra.mrb[0].mxu0 %v3822
    %v3890 = vpop.f32.mrb[0].mxu0
    %v3891 = vadd.f32 %v2071, %v3890
    %v3892 = vpop.f32.mrb[0].mxu0
    %3893 = vdwg.mxu0
    %v3895 = vrot.slane %v3891, 5
    %v3896 = vrot.slane %v3891, 6
    %v3899 = vadd.f32 %v1791, %v3895
    %v3900 = vadd.f32 %v1796, %v3896
    %v3901 = vxor.u32 %v3899, 2147483648
    %v3902 = vxor.u32 %v3900, 2147483648
    %v3903 = vmul.f32 %v3901, 1.442695
    %v3904 = vpow.pop %v3903
    %v3905 = vmul.f32 %v3902, 1.442695
    %v3906 = vpow.pop %v3905
    %v3907 = vadd.f32 %v3904, 1.0
    %v3908 = vadd.f32 %v3906, 1.0
    %v3909 = vrcp.pop %v3907
    %v3910 = vmul.f32 1.0, %v3909
    %v3911 = vrcp.pop %v3908
    %v3912 = vmul.f32 1.0, %v3911
    %3913 = vrot.lane.b32.xlu0 %v3895, 120
    %v3914 = vpop.permute.xlu0 %3913
    %3915 = vrot.lane.b32.xlu0 %v3896, 120
    %v3916 = vpop.permute.xlu0 %3915
    %v3919 = vmul.f32 %v3910, %v3914
    %v3920 = vmul.f32 %v3912, %v3916
    %3923 = vrot.lane.b32.xlu0 %v3919, 8
    %v3924 = vpop.permute.xlu0 %3923
    %3925 = vrot.lane.b32.xlu0 %v3920, 8
    %v3926 = vpop.permute.xlu0 %3925
    %v3929 = vadd.f32 %v1791, %v3924
    %v3930 = vadd.f32 %v1796, %v3926
    %v3931 = vtanh.pop %v3929
    %v3932 = vtanh.pop %v3930
    %v3933 = vsub.f32 1.0, %v3910
    %v3934 = vsub.f32 1.0, %v3912
    %3937 = vrot.lane.b32.xlu0 %v3931, 124
    %v3938 = vpop.permute.xlu0 %3937
    %3939 = vrot.lane.b32.xlu0 %v3932, 124
    %v3940 = vpop.permute.xlu0 %3939
    %v3943 = vmul.f32 %v3933, %v3938
    %v3944 = vmul.f32 %v3934, %v3940
    %v3945 = vrot.slane %v3379, 5
    %v3946 = vrot.slane %v3379, 6
    %3947 = vrot.lane.b32.xlu0 %v3945, 4
    %v3948 = vpop.permute.xlu0 %3947
    %3949 = vrot.lane.b32.xlu0 %v3946, 4
    %v3950 = vpop.permute.xlu0 %3949
    %v3953 = vmul.f32 %v3910, %v3948
    %v3954 = vmul.f32 %v3912, %v3950
    %v3955 = vadd.f32 %v3943, %v3953
    %v3956 = vadd.f32 %v3944, %v3954
    %3957 = vset.pattern.permute.xlu0 3
    %3958 = vperm.xlu0 %3957, %v35
    %v3959 = vpop.permute.xlu0 %3958
    %v3963 = vrot.slane %v3955, 3
    %v3964 = vrot.slane %v3956, 2
    %v3965 = vsel %vm2210, %v3964, %v3963
    %3966 = vrot.lane.b32.xlu0 %v3965, 124
    %v3967 = vpop.permute.xlu0 %3966
    %v3969 = vmul.f32 %v3959, %v3967
    %3970 = vset.pattern.permute.xlu0 3
    %3971 = vperm.xlu0 %3970, %v2216
    %v3972 = vpop.permute.xlu0 %3971
    %v3974 = vmul.f32 %v3972, %v3379
    %v3975 = vadd.f32 %v3969, %v3974
    %v3977 = vsel %vm648, %v3526, 0
    %3979 = vmatprep.subr.mxu0 0.0
    %3980 = vmatpush1.msra.mxu0 %v1882
    %3981 = vmatprep.subr.mxu0 0.0
    %3982 = vmatpush1.msra.mxu0 0.0
    %3983 = vmatprep.subr.mxu0 0.0
    %3984 = vmatpush1.msra.mxu0 0.0
    %3985 = vmatprep.subr.mxu0 0.0
    %3986 = vmatpush1.msra.mxu0 0.0
    %3987 = vmatprep.subr.mxu0 0.0
    %3988 = vmatpush1.msra.mxu0 0.0
    %3989 = vmatprep.subr.mxu0 0.0
    %3990 = vmatpush1.msra.mxu0 0.0
    %3991 = vmatprep.subr.mxu0 0.0
    %3992 = vmatpush1.msra.mxu0 0.0
    %3993 = vmatprep.subr.mxu0 0.0
    %3994 = vmatpush1.msra.mxu0 0.0
    %3995 = vmatprep.subr.mxu0 0.0
    %3996 = vmatpush1.msra.mxu0 0.0
    %3997 = vmatprep.subr.mxu0 0.0
    %3998 = vmatpush1.msra.mxu0 0.0
    %3999 = vmatprep.subr.mxu0 0.0
    %4000 = vmatpush1.msra.mxu0 0.0
    %4001 = vmatprep.subr.mxu0 0.0
    %4002 = vmatpush1.msra.mxu0 0.0
    %4003 = vmatprep.subr.mxu0 0.0
    %4004 = vmatpush1.msra.mxu0 0.0
    %4005 = vmatprep.subr.mxu0 0.0
    %4006 = vmatpush1.msra.mxu0 0.0
    %4007 = vmatprep.subr.mxu0 0.0
    %4008 = vmatpush1.msra.mxu0 0.0
    %4009 = vmatprep.subr.mxu0 0.0
    %4010 = vmatpush1.msra.mxu0 0.0
    %4011 = vmatprep.subr.mxu0 0.0
    %4012 = vmatpush1.msra.mxu0 0.0
    %4013 = vmatprep.subr.mxu0 0.0
    %4014 = vmatpush1.msra.mxu0 0.0
    %4015 = vmatprep.subr.mxu0 0.0
    %4016 = vmatpush1.msra.mxu0 0.0
    %4017 = vmatprep.subr.mxu0 0.0
    %4018 = vmatpush1.msra.mxu0 0.0
    %4019 = vmatprep.subr.mxu0 0.0
    %4020 = vmatpush1.msra.mxu0 0.0
    %4021 = vmatprep.subr.mxu0 0.0
    %4022 = vmatpush1.msra.mxu0 0.0
    %4023 = vmatprep.subr.mxu0 0.0
    %4024 = vmatpush1.msra.mxu0 0.0
    %4025 = vmatprep.subr.mxu0 0.0
    %4026 = vmatpush1.msra.mxu0 0.0
    %4027 = vmatprep.subr.mxu0 0.0
    %4028 = vmatpush1.msra.mxu0 0.0
    %4029 = vmatprep.subr.mxu0 0.0
    %4030 = vmatpush1.msra.mxu0 0.0
    %4031 = vmatprep.subr.mxu0 0.0
    %4032 = vmatpush1.msra.mxu0 0.0
    %4033 = vmatprep.subr.mxu0 0.0
    %4034 = vmatpush1.msra.mxu0 0.0
    %4035 = vmatprep.subr.mxu0 0.0
    %4036 = vmatpush1.msra.mxu0 0.0
    %4037 = vmatprep.subr.mxu0 0.0
    %4038 = vmatpush1.msra.mxu0 0.0
    %4039 = vmatprep.subr.mxu0 0.0
    %4040 = vmatpush1.msra.mxu0 0.0
    %4041 = vmatprep.subr.mxu0 0.0
    %4042 = vmatpush1.msra.mxu0 0.0
    %4043 = vmatprep.mubr.f32.mxu0 0.0
    %4044 = vmatmul.mubr.f32.gmra.mrb[0].mxu0 %v3977
    %v4045 = vpop.f32.mrb[0].mxu0
    %v4046 = vadd.f32 %v2227, %v4045
    %v4047 = vpop.f32.mrb[0].mxu0
    %4048 = vdwg.mxu0
    %v4050 = vrot.slane %v4046, 5
    %v4051 = vrot.slane %v4046, 6
    %v4054 = vadd.f32 %v1874, %v4050
    %v4055 = vadd.f32 %v1879, %v4051
    %v4056 = vxor.u32 %v4054, 2147483648
    %v4057 = vxor.u32 %v4055, 2147483648
    %v4058 = vmul.f32 %v4056, 1.442695
    %v4059 = vpow.pop %v4058
    %v4060 = vmul.f32 %v4057, 1.442695
    %v4061 = vpow.pop %v4060
    %v4062 = vadd.f32 %v4059, 1.0
    %v4063 = vadd.f32 %v4061, 1.0
    %v4064 = vrcp.pop %v4062
    %v4065 = vmul.f32 1.0, %v4064
    %v4066 = vrcp.pop %v4063
    %v4067 = vmul.f32 1.0, %v4066
    %4068 = vrot.lane.b32.xlu0 %v4050, 112
    %v4069 = vpop.permute.xlu0 %4068
    %4070 = vrot.lane.b32.xlu0 %v4051, 112
    %v4071 = vpop.permute.xlu0 %4070
    %v4074 = vmul.f32 %v4065, %v4069
    %v4075 = vmul.f32 %v4067, %v4071
    %4078 = vrot.lane.b32.xlu0 %v4074, 16
    %v4079 = vpop.permute.xlu0 %4078
    %4080 = vrot.lane.b32.xlu0 %v4075, 16
    %v4081 = vpop.permute.xlu0 %4080
    %v4084 = vadd.f32 %v1874, %v4079
    %v4085 = vadd.f32 %v1879, %v4081
    %v4086 = vtanh.pop %v4084
    %v4087 = vtanh.pop %v4085
    %v4088 = vsub.f32 1.0, %v4065
    %v4089 = vsub.f32 1.0, %v4067
    %4092 = vrot.lane.b32.xlu0 %v4086, 120
    %v4093 = vpop.permute.xlu0 %4092
    %4094 = vrot.lane.b32.xlu0 %v4087, 120
    %v4095 = vpop.permute.xlu0 %4094
    %v4098 = vmul.f32 %v4088, %v4093
    %v4099 = vmul.f32 %v4089, %v4095
    %v4100 = vrot.slane %v3526, 5
    %v4101 = vrot.slane %v3526, 6
    %4102 = vrot.lane.b32.xlu0 %v4100, 8
    %v4103 = vpop.permute.xlu0 %4102
    %4104 = vrot.lane.b32.xlu0 %v4101, 8
    %v4105 = vpop.permute.xlu0 %4104
    %v4108 = vmul.f32 %v4065, %v4103
    %v4109 = vmul.f32 %v4067, %v4105
    %v4110 = vadd.f32 %v4098, %v4108
    %v4111 = vadd.f32 %v4099, %v4109
    %v4114 = vrot.slane %v4110, 3
    %v4115 = vrot.slane %v4111, 2
    %v4116 = vsel %vm2210, %v4115, %v4114
    %4117 = vrot.lane.b32.xlu0 %v4116, 120
    %v4118 = vpop.permute.xlu0 %4117
    %v4120 = vmul.f32 %v3959, %v4118
    %v4121 = vmul.f32 %v3972, %v3526
    %v4122 = vadd.f32 %v4120, %v4121
    %v4124 = vsel %vm1060, %v3673, 0
    %4126 = vmatprep.subr.mxu0 0.0
    %4127 = vmatpush1.msra.mxu0 %v1966
    %4128 = vmatprep.subr.mxu0 0.0
    %4129 = vmatpush1.msra.mxu0 %v1967
    %4130 = vmatprep.subr.mxu0 0.0
    %4131 = vmatpush1.msra.mxu0 0.0
    %4132 = vmatprep.subr.mxu0 0.0
    %4133 = vmatpush1.msra.mxu0 0.0
    %4134 = vmatprep.subr.mxu0 0.0
    %4135 = vmatpush1.msra.mxu0 0.0
    %4136 = vmatprep.subr.mxu0 0.0
    %4137 = vmatpush1.msra.mxu0 0.0
    %4138 = vmatprep.subr.mxu0 0.0
    %4139 = vmatpush1.msra.mxu0 0.0
    %4140 = vmatprep.subr.mxu0 0.0
    %4141 = vmatpush1.msra.mxu0 0.0
    %4142 = vmatprep.subr.mxu0 0.0
    %4143 = vmatpush1.msra.mxu0 0.0
    %4144 = vmatprep.subr.mxu0 0.0
    %4145 = vmatpush1.msra.mxu0 0.0
    %4146 = vmatprep.subr.mxu0 0.0
    %4147 = vmatpush1.msra.mxu0 0.0
    %4148 = vmatprep.subr.mxu0 0.0
    %4149 = vmatpush1.msra.mxu0 0.0
    %4150 = vmatprep.subr.mxu0 0.0
    %4151 = vmatpush1.msra.mxu0 0.0
    %4152 = vmatprep.subr.mxu0 0.0
    %4153 = vmatpush1.msra.mxu0 0.0
    %4154 = vmatprep.subr.mxu0 0.0
    %4155 = vmatpush1.msra.mxu0 0.0
    %4156 = vmatprep.subr.mxu0 0.0
    %4157 = vmatpush1.msra.mxu0 0.0
    %4158 = vmatprep.subr.mxu0 0.0
    %4159 = vmatpush1.msra.mxu0 0.0
    %4160 = vmatprep.subr.mxu0 0.0
    %4161 = vmatpush1.msra.mxu0 0.0
    %4162 = vmatprep.subr.mxu0 0.0
    %4163 = vmatpush1.msra.mxu0 0.0
    %4164 = vmatprep.subr.mxu0 0.0
    %4165 = vmatpush1.msra.mxu0 0.0
    %4166 = vmatprep.subr.mxu0 0.0
    %4167 = vmatpush1.msra.mxu0 0.0
    %4168 = vmatprep.subr.mxu0 0.0
    %4169 = vmatpush1.msra.mxu0 0.0
    %4170 = vmatprep.subr.mxu0 0.0
    %4171 = vmatpush1.msra.mxu0 0.0
    %4172 = vmatprep.subr.mxu0 0.0
    %4173 = vmatpush1.msra.mxu0 0.0
    %4174 = vmatprep.subr.mxu0 0.0
    %4175 = vmatpush1.msra.mxu0 0.0
    %4176 = vmatprep.subr.mxu0 0.0
    %4177 = vmatpush1.msra.mxu0 0.0
    %4178 = vmatprep.subr.mxu0 0.0
    %4179 = vmatpush1.msra.mxu0 0.0
    %4180 = vmatprep.subr.mxu0 0.0
    %4181 = vmatpush1.msra.mxu0 0.0
    %4182 = vmatprep.subr.mxu0 0.0
    %4183 = vmatpush1.msra.mxu0 0.0
    %4184 = vmatprep.subr.mxu0 0.0
    %4185 = vmatpush1.msra.mxu0 0.0
    %4186 = vmatprep.subr.mxu0 0.0
    %4187 = vmatpush1.msra.mxu0 0.0
    %4188 = vmatprep.subr.mxu0 0.0
    %4189 = vmatpush1.msra.mxu0 0.0
    %4190 = vmatprep.mubr.f32.mxu0 0.0
    %4191 = vmatmul.mubr.f32.gmra.mrb[0].mxu0 %v4124
    %v4192 = vpop.f32.mrb[0].mxu0
    %v4193 = vadd.f32 %v2366, %v4192
    %v4194 = vpop.f32.mrb[0].mxu0
    %4195 = vdwg.mxu0
    %v4197 = vrot.slane %v4193, 5
    %v4198 = vrot.slane %v4193, 6
    %v4201 = vadd.f32 %v1958, %v4197
    %v4202 = vadd.f32 %v1963, %v4198
    %v4203 = vxor.u32 %v4201, 2147483648
    %v4204 = vxor.u32 %v4202, 2147483648
    %v4205 = vmul.f32 %v4203, 1.442695
    %v4206 = vpow.pop %v4205
    %v4207 = vmul.f32 %v4204, 1.442695
    %v4208 = vpow.pop %v4207
    %v4209 = vadd.f32 %v4206, 1.0
    %v4210 = vadd.f32 %v4208, 1.0
    %v4211 = vrcp.pop %v4209
    %v4212 = vmul.f32 1.0, %v4211
    %v4213 = vrcp.pop %v4210
    %v4214 = vmul.f32 1.0, %v4213
    %4215 = vrot.lane.b32.xlu0 %v4197, 96
    %v4216 = vpop.permute.xlu0 %4215
    %4217 = vrot.lane.b32.xlu0 %v4198, 96
    %v4218 = vpop.permute.xlu0 %4217
    %v4221 = vmul.f32 %v4212, %v4216
    %v4222 = vmul.f32 %v4214, %v4218
    %4225 = vrot.lane.b32.xlu0 %v4221, 32
    %v4226 = vpop.permute.xlu0 %4225
    %4227 = vrot.lane.b32.xlu0 %v4222, 32
    %v4228 = vpop.permute.xlu0 %4227
    %v4231 = vadd.f32 %v1958, %v4226
    %v4232 = vadd.f32 %v1963, %v4228
    %v4233 = vtanh.pop %v4231
    %v4234 = vtanh.pop %v4232
    %v4235 = vsub.f32 1.0, %v4212
    %v4236 = vsub.f32 1.0, %v4214
    %4239 = vrot.lane.b32.xlu0 %v4233, 112
    %v4240 = vpop.permute.xlu0 %4239
    %4241 = vrot.lane.b32.xlu0 %v4234, 112
    %v4242 = vpop.permute.xlu0 %4241
    %v4245 = vmul.f32 %v4235, %v4240
    %v4246 = vmul.f32 %v4236, %v4242
    %v4247 = vrot.slane %v3673, 5
    %v4248 = vrot.slane %v3673, 6
    %4249 = vrot.lane.b32.xlu0 %v4247, 16
    %v4250 = vpop.permute.xlu0 %4249
    %4251 = vrot.lane.b32.xlu0 %v4248, 16
    %v4252 = vpop.permute.xlu0 %4251
    %v4255 = vmul.f32 %v4212, %v4250
    %v4256 = vmul.f32 %v4214, %v4252
    %v4257 = vadd.f32 %v4245, %v4255
    %v4258 = vadd.f32 %v4246, %v4256
    %v4261 = vrot.slane %v4257, 3
    %v4262 = vrot.slane %v4258, 2
    %v4263 = vsel %vm2210, %v4262, %v4261
    %4264 = vrot.lane.b32.xlu0 %v4263, 112
    %v4265 = vpop.permute.xlu0 %4264
    %v4267 = vmul.f32 %v3959, %v4265
    %v4268 = vmul.f32 %v3972, %v3673
    %v4269 = vadd.f32 %v4267, %v4268
    %v4271 = vsel %vm67, %v3820, 0
    %4273 = vmatprep.subr.mxu0 0.0
    %4274 = vmatpush1.msra.mxu0 %v2063
    %4275 = vmatprep.subr.mxu0 0.0
    %4276 = vmatpush1.msra.mxu0 %v2064
    %4277 = vmatprep.subr.mxu0 0.0
    %4278 = vmatpush1.msra.mxu0 %v2065
    %4279 = vmatprep.subr.mxu0 0.0
    %4280 = vmatpush1.msra.mxu0 %v2066
    %4281 = vmatprep.subr.mxu0 0.0
    %4282 = vmatpush1.msra.mxu0 0.0
    %4283 = vmatprep.subr.mxu0 0.0
    %4284 = vmatpush1.msra.mxu0 0.0
    %4285 = vmatprep.subr.mxu0 0.0
    %4286 = vmatpush1.msra.mxu0 0.0
    %4287 = vmatprep.subr.mxu0 0.0
    %4288 = vmatpush1.msra.mxu0 0.0
    %4289 = vmatprep.subr.mxu0 0.0
    %4290 = vmatpush1.msra.mxu0 0.0
    %4291 = vmatprep.subr.mxu0 0.0
    %4292 = vmatpush1.msra.mxu0 0.0
    %4293 = vmatprep.subr.mxu0 0.0
    %4294 = vmatpush1.msra.mxu0 0.0
    %4295 = vmatprep.subr.mxu0 0.0
    %4296 = vmatpush1.msra.mxu0 0.0
    %4297 = vmatprep.subr.mxu0 0.0
    %4298 = vmatpush1.msra.mxu0 0.0
    %4299 = vmatprep.subr.mxu0 0.0
    %4300 = vmatpush1.msra.mxu0 0.0
    %4301 = vmatprep.subr.mxu0 0.0
    %4302 = vmatpush1.msra.mxu0 0.0
    %4303 = vmatprep.subr.mxu0 0.0
    %4304 = vmatpush1.msra.mxu0 0.0
    %4305 = vmatprep.subr.mxu0 0.0
    %4306 = vmatpush1.msra.mxu0 0.0
    %4307 = vmatprep.subr.mxu0 0.0
    %4308 = vmatpush1.msra.mxu0 0.0
    %4309 = vmatprep.subr.mxu0 0.0
    %4310 = vmatpush1.msra.mxu0 0.0
    %4311 = vmatprep.subr.mxu0 0.0
    %4312 = vmatpush1.msra.mxu0 0.0
    %4313 = vmatprep.subr.mxu0 0.0
    %4314 = vmatpush1.msra.mxu0 0.0
    %4315 = vmatprep.subr.mxu0 0.0
    %4316 = vmatpush1.msra.mxu0 0.0
    %4317 = vmatprep.subr.mxu0 0.0
    %4318 = vmatpush1.msra.mxu0 0.0
    %4319 = vmatprep.subr.mxu0 0.0
    %4320 = vmatpush1.msra.mxu0 0.0
    %4321 = vmatprep.subr.mxu0 0.0
    %4322 = vmatpush1.msra.mxu0 0.0
    %4323 = vmatprep.subr.mxu0 0.0
    %4324 = vmatpush1.msra.mxu0 0.0
    %4325 = vmatprep.subr.mxu0 0.0
    %4326 = vmatpush1.msra.mxu0 0.0
    %4327 = vmatprep.subr.mxu0 0.0
    %4328 = vmatpush1.msra.mxu0 0.0
    %4329 = vmatprep.subr.mxu0 0.0
    %4330 = vmatpush1.msra.mxu0 0.0
    %4331 = vmatprep.subr.mxu0 0.0
    %4332 = vmatpush1.msra.mxu0 0.0
    %4333 = vmatprep.subr.mxu0 0.0
    %4334 = vmatpush1.msra.mxu0 0.0
    %4335 = vmatprep.subr.mxu0 0.0
    %4336 = vmatpush1.msra.mxu0 0.0
    %4337 = vmatprep.mubr.f32.mxu0 0.0
    %4338 = vmatmul.mubr.f32.gmra.mrb[0].mxu0 %v4271
    %v4339 = vpop.f32.mrb[0].mxu0
    %v4340 = vadd.f32 %v2505, %v4339
    %v4341 = vpop.f32.mrb[0].mxu0
    %4342 = vdwg.mxu0
    %v4344 = vrot.slane %v4340, 5
    %v4345 = vrot.slane %v4340, 6
    %v4348 = vadd.f32 %v2055, %v4344
    %v4349 = vadd.f32 %v2060, %v4345
    %v4350 = vxor.u32 %v4348, 2147483648
    %v4351 = vxor.u32 %v4349, 2147483648
    %v4352 = vmul.f32 %v4350, 1.442695
    %v4353 = vpow.pop %v4352
    %v4354 = vmul.f32 %v4351, 1.442695
    %v4355 = vpow.pop %v4354
    %v4356 = vadd.f32 %v4353, 1.0
    %v4357 = vadd.f32 %v4355, 1.0
    %v4358 = vrcp.pop %v4356
    %v4359 = vmul.f32 1.0, %v4358
    %v4360 = vrcp.pop %v4357
    %v4361 = vmul.f32 1.0, %v4360
    %4362 = vrot.lane.b32.xlu0 %v4344, 64
    %v4363 = vpop.permute.xlu0 %4362
    %4364 = vrot.lane.b32.xlu0 %v4345, 64
    %v4365 = vpop.permute.xlu0 %4364
    %v4368 = vmul.f32 %v4359, %v4363
    %v4369 = vmul.f32 %v4361, %v4365
    %4372 = vrot.lane.b32.xlu0 %v4368, 64
    %v4373 = vpop.permute.xlu0 %4372
    %4374 = vrot.lane.b32.xlu0 %v4369, 64
    %v4375 = vpop.permute.xlu0 %4374
    %v4378 = vadd.f32 %v2055, %v4373
    %v4379 = vadd.f32 %v2060, %v4375
    %v4380 = vtanh.pop %v4378
    %v4381 = vtanh.pop %v4379
    %v4382 = vsub.f32 1.0, %v4359
    %v4383 = vsub.f32 1.0, %v4361
    %4386 = vrot.lane.b32.xlu0 %v4380, 96
    %v4387 = vpop.permute.xlu0 %4386
    %4388 = vrot.lane.b32.xlu0 %v4381, 96
    %v4389 = vpop.permute.xlu0 %4388
    %v4392 = vmul.f32 %v4382, %v4387
    %v4393 = vmul.f32 %v4383, %v4389
    %v4394 = vrot.slane %v3820, 5
    %v4395 = vrot.slane %v3820, 6
    %4396 = vrot.lane.b32.xlu0 %v4394, 32
    %v4397 = vpop.permute.xlu0 %4396
    %4398 = vrot.lane.b32.xlu0 %v4395, 32
    %v4399 = vpop.permute.xlu0 %4398
    %v4402 = vmul.f32 %v4359, %v4397
    %v4403 = vmul.f32 %v4361, %v4399
    %v4404 = vadd.f32 %v4392, %v4402
    %v4405 = vadd.f32 %v4393, %v4403
    %v4408 = vrot.slane %v4404, 3
    %v4409 = vrot.slane %v4405, 2
    %v4410 = vsel %vm2210, %v4409, %v4408
    %4411 = vrot.lane.b32.xlu0 %v4410, 96
    %v4412 = vpop.permute.xlu0 %4411
    %v4414 = vmul.f32 %v3959, %v4412
    %v4415 = vmul.f32 %v3972, %v3820
    %v4416 = vadd.f32 %v4414, %v4415
    %v4418 = vsel %vm230, %v3975, 0
    %4420 = vmatprep.subr.mxu0 0.0
    %4421 = vmatpush1.msra.mxu0 %v2076
    %4422 = vmatprep.subr.mxu0 0.0
    %4423 = vmatpush1.msra.mxu0 0.0
    %4424 = vmatprep.subr.mxu0 0.0
    %4425 = vmatpush1.msra.mxu0 0.0
    %4426 = vmatprep.subr.mxu0 0.0
    %4427 = vmatpush1.msra.mxu0 0.0
    %4428 = vmatprep.subr.mxu0 0.0
    %4429 = vmatpush1.msra.mxu0 0.0
    %4430 = vmatprep.subr.mxu0 0.0
    %4431 = vmatpush1.msra.mxu0 0.0
    %4432 = vmatprep.subr.mxu0 0.0
    %4433 = vmatpush1.msra.mxu0 0.0
    %4434 = vmatprep.subr.mxu0 0.0
    %4435 = vmatpush1.msra.mxu0 0.0
    %4436 = vmatprep.subr.mxu0 0.0
    %4437 = vmatpush1.msra.mxu0 0.0
    %4438 = vmatprep.subr.mxu0 0.0
    %4439 = vmatpush1.msra.mxu0 0.0
    %4440 = vmatprep.subr.mxu0 0.0
    %4441 = vmatpush1.msra.mxu0 0.0
    %4442 = vmatprep.subr.mxu0 0.0
    %4443 = vmatpush1.msra.mxu0 0.0
    %4444 = vmatprep.subr.mxu0 0.0
    %4445 = vmatpush1.msra.mxu0 0.0
    %4446 = vmatprep.subr.mxu0 0.0
    %4447 = vmatpush1.msra.mxu0 0.0
    %4448 = vmatprep.subr.mxu0 0.0
    %4449 = vmatpush1.msra.mxu0 0.0
    %4450 = vmatprep.subr.mxu0 0.0
    %4451 = vmatpush1.msra.mxu0 0.0
    %4452 = vmatprep.subr.mxu0 0.0
    %4453 = vmatpush1.msra.mxu0 0.0
    %4454 = vmatprep.subr.mxu0 0.0
    %4455 = vmatpush1.msra.mxu0 0.0
    %4456 = vmatprep.subr.mxu0 0.0
    %4457 = vmatpush1.msra.mxu0 0.0
    %4458 = vmatprep.subr.mxu0 0.0
    %4459 = vmatpush1.msra.mxu0 0.0
    %4460 = vmatprep.subr.mxu0 0.0
    %4461 = vmatpush1.msra.mxu0 0.0
    %4462 = vmatprep.subr.mxu0 0.0
    %4463 = vmatpush1.msra.mxu0 0.0
    %4464 = vmatprep.subr.mxu0 0.0
    %4465 = vmatpush1.msra.mxu0 0.0
    %4466 = vmatprep.subr.mxu0 0.0
    %4467 = vmatpush1.msra.mxu0 0.0
    %4468 = vmatprep.subr.mxu0 0.0
    %4469 = vmatpush1.msra.mxu0 0.0
    %4470 = vmatprep.subr.mxu0 0.0
    %4471 = vmatpush1.msra.mxu0 0.0
    %4472 = vmatprep.subr.mxu0 0.0
    %4473 = vmatpush1.msra.mxu0 0.0
    %4474 = vmatprep.subr.mxu0 0.0
    %4475 = vmatpush1.msra.mxu0 0.0
    %4476 = vmatprep.subr.mxu0 0.0
    %4477 = vmatpush1.msra.mxu0 0.0
    %4478 = vmatprep.subr.mxu0 0.0
    %4479 = vmatpush1.msra.mxu0 0.0
    %4480 = vmatprep.subr.mxu0 0.0
    %4481 = vmatpush1.msra.mxu0 0.0
    %4482 = vmatprep.subr.mxu0 0.0
    %4483 = vmatpush1.msra.mxu0 0.0
    %4484 = vmatprep.mubr.f32.mxu0 0.0
    %4485 = vmatmul.mubr.f32.gmra.mrb[0].mxu0 %v4418
    %v4486 = vpop.f32.mrb[0].mxu0
    %v4487 = vadd.f32 %v2071, %v4486
    %v4488 = vpop.f32.mrb[0].mxu0
    %4489 = vdwg.mxu0
    %v4491 = vrot.slane %v4487, 4
    %v4492 = vrot.slane %v4487, 5
    %v4495 = vadd.f32 %v1791, %v4491
    %v4496 = vadd.f32 %v1796, %v4492
    %v4497 = vxor.u32 %v4495, 2147483648
    %v4498 = vxor.u32 %v4496, 2147483648
    %v4499 = vmul.f32 %v4497, 1.442695
    %v4500 = vpow.pop %v4499
    %v4501 = vmul.f32 %v4498, 1.442695
    %v4502 = vpow.pop %v4501
    %v4503 = vadd.f32 %v4500, 1.0
    %v4504 = vadd.f32 %v4502, 1.0
    %v4505 = vrcp.pop %v4503
    %v4506 = vmul.f32 1.0, %v4505
    %v4507 = vrcp.pop %v4504
    %v4508 = vmul.f32 1.0, %v4507
    %4509 = vrot.lane.b32.xlu0 %v4491, 120
    %v4510 = vpop.permute.xlu0 %4509
    %4511 = vrot.lane.b32.xlu0 %v4492, 120
    %v4512 = vpop.permute.xlu0 %4511
    %v4515 = vmul.f32 %v4506, %v4510
    %v4516 = vmul.f32 %v4508, %v4512
    %4519 = vrot.lane.b32.xlu0 %v4515, 8
    %v4520 = vpop.permute.xlu0 %4519
    %4521 = vrot.lane.b32.xlu0 %v4516, 8
    %v4522 = vpop.permute.xlu0 %4521
    %v4525 = vadd.f32 %v1791, %v4520
    %v4526 = vadd.f32 %v1796, %v4522
    %v4527 = vtanh.pop %v4525
    %v4528 = vtanh.pop %v4526
    %v4529 = vsub.f32 1.0, %v4506
    %v4530 = vsub.f32 1.0, %v4508
    %4533 = vrot.lane.b32.xlu0 %v4527, 124
    %v4534 = vpop.permute.xlu0 %4533
    %4535 = vrot.lane.b32.xlu0 %v4528, 124
    %v4536 = vpop.permute.xlu0 %4535
    %v4539 = vmul.f32 %v4529, %v4534
    %v4540 = vmul.f32 %v4530, %v4536
    %v4541 = vrot.slane %v3975, 4
    %v4542 = vrot.slane %v3975, 5
    %4543 = vrot.lane.b32.xlu0 %v4541, 4
    %v4544 = vpop.permute.xlu0 %4543
    %4545 = vrot.lane.b32.xlu0 %v4542, 4
    %v4546 = vpop.permute.xlu0 %4545
    %v4549 = vmul.f32 %v4506, %v4544
    %v4550 = vmul.f32 %v4508, %v4546
    %v4551 = vadd.f32 %v4539, %v4549
    %v4552 = vadd.f32 %v4540, %v4550
    %4553 = vset.pattern.permute.xlu0 4
    %4554 = vperm.xlu0 %4553, %v35
    %v4555 = vpop.permute.xlu0 %4554
    %v4559 = vrot.slane %v4551, 4
    %v4560 = vrot.slane %v4552, 3
    %v4561 = vsel %vm2210, %v4560, %v4559
    %4562 = vrot.lane.b32.xlu0 %v4561, 124
    %v4563 = vpop.permute.xlu0 %4562
    %v4565 = vmul.f32 %v4555, %v4563
    %4566 = vset.pattern.permute.xlu0 4
    %4567 = vperm.xlu0 %4566, %v2216
    %v4568 = vpop.permute.xlu0 %4567
    %v4570 = vmul.f32 %v4568, %v3975
    %v4571 = vadd.f32 %v4565, %v4570
    %v4573 = vsel %vm648, %v4122, 0
    %4575 = vmatprep.subr.mxu0 0.0
    %4576 = vmatpush1.msra.mxu0 %v1882
    %4577 = vmatprep.subr.mxu0 0.0
    %4578 = vmatpush1.msra.mxu0 0.0
    %4579 = vmatprep.subr.mxu0 0.0
    %4580 = vmatpush1.msra.mxu0 0.0
    %4581 = vmatprep.subr.mxu0 0.0
    %4582 = vmatpush1.msra.mxu0 0.0
    %4583 = vmatprep.subr.mxu0 0.0
    %4584 = vmatpush1.msra.mxu0 0.0
    %4585 = vmatprep.subr.mxu0 0.0
    %4586 = vmatpush1.msra.mxu0 0.0
    %4587 = vmatprep.subr.mxu0 0.0
    %4588 = vmatpush1.msra.mxu0 0.0
    %4589 = vmatprep.subr.mxu0 0.0
    %4590 = vmatpush1.msra.mxu0 0.0
    %4591 = vmatprep.subr.mxu0 0.0
    %4592 = vmatpush1.msra.mxu0 0.0
    %4593 = vmatprep.subr.mxu0 0.0
    %4594 = vmatpush1.msra.mxu0 0.0
    %4595 = vmatprep.subr.mxu0 0.0
    %4596 = vmatpush1.msra.mxu0 0.0
    %4597 = vmatprep.subr.mxu0 0.0
    %4598 = vmatpush1.msra.mxu0 0.0
    %4599 = vmatprep.subr.mxu0 0.0
    %4600 = vmatpush1.msra.mxu0 0.0
    %4601 = vmatprep.subr.mxu0 0.0
    %4602 = vmatpush1.msra.mxu0 0.0
    %4603 = vmatprep.subr.mxu0 0.0
    %4604 = vmatpush1.msra.mxu0 0.0
    %4605 = vmatprep.subr.mxu0 0.0
    %4606 = vmatpush1.msra.mxu0 0.0
    %4607 = vmatprep.subr.mxu0 0.0
    %4608 = vmatpush1.msra.mxu0 0.0
    %4609 = vmatprep.subr.mxu0 0.0
    %4610 = vmatpush1.msra.mxu0 0.0
    %4611 = vmatprep.subr.mxu0 0.0
    %4612 = vmatpush1.msra.mxu0 0.0
    %4613 = vmatprep.subr.mxu0 0.0
    %4614 = vmatpush1.msra.mxu0 0.0
    %4615 = vmatprep.subr.mxu0 0.0
    %4616 = vmatpush1.msra.mxu0 0.0
    %4617 = vmatprep.subr.mxu0 0.0
    %4618 = vmatpush1.msra.mxu0 0.0
    %4619 = vmatprep.subr.mxu0 0.0
    %4620 = vmatpush1.msra.mxu0 0.0
    %4621 = vmatprep.subr.mxu0 0.0
    %4622 = vmatpush1.msra.mxu0 0.0
    %4623 = vmatprep.subr.mxu0 0.0
    %4624 = vmatpush1.msra.mxu0 0.0
    %4625 = vmatprep.subr.mxu0 0.0
    %4626 = vmatpush1.msra.mxu0 0.0
    %4627 = vmatprep.subr.mxu0 0.0
    %4628 = vmatpush1.msra.mxu0 0.0
    %4629 = vmatprep.subr.mxu0 0.0
    %4630 = vmatpush1.msra.mxu0 0.0
    %4631 = vmatprep.subr.mxu0 0.0
    %4632 = vmatpush1.msra.mxu0 0.0
    %4633 = vmatprep.subr.mxu0 0.0
    %4634 = vmatpush1.msra.mxu0 0.0
    %4635 = vmatprep.subr.mxu0 0.0
    %4636 = vmatpush1.msra.mxu0 0.0
    %4637 = vmatprep.subr.mxu0 0.0
    %4638 = vmatpush1.msra.mxu0 0.0
    %4639 = vmatprep.mubr.f32.mxu0 0.0
    %4640 = vmatmul.mubr.f32.gmra.mrb[0].mxu0 %v4573
    %v4641 = vpop.f32.mrb[0].mxu0
    %v4642 = vadd.f32 %v2227, %v4641
    %v4643 = vpop.f32.mrb[0].mxu0
    %4644 = vdwg.mxu0
    %v4646 = vrot.slane %v4642, 4
    %v4647 = vrot.slane %v4642, 5
    %v4650 = vadd.f32 %v1874, %v4646
    %v4651 = vadd.f32 %v1879, %v4647
    %v4652 = vxor.u32 %v4650, 2147483648
    %v4653 = vxor.u32 %v4651, 2147483648
    %v4654 = vmul.f32 %v4652, 1.442695
    %v4655 = vpow.pop %v4654
    %v4656 = vmul.f32 %v4653, 1.442695
    %v4657 = vpow.pop %v4656
    %v4658 = vadd.f32 %v4655, 1.0
    %v4659 = vadd.f32 %v4657, 1.0
    %v4660 = vrcp.pop %v4658
    %v4661 = vmul.f32 1.0, %v4660
    %v4662 = vrcp.pop %v4659
    %v4663 = vmul.f32 1.0, %v4662
    %4664 = vrot.lane.b32.xlu0 %v4646, 112
    %v4665 = vpop.permute.xlu0 %4664
    %4666 = vrot.lane.b32.xlu0 %v4647, 112
    %v4667 = vpop.permute.xlu0 %4666
    %v4670 = vmul.f32 %v4661, %v4665
    %v4671 = vmul.f32 %v4663, %v4667
    %4674 = vrot.lane.b32.xlu0 %v4670, 16
    %v4675 = vpop.permute.xlu0 %4674
    %4676 = vrot.lane.b32.xlu0 %v4671, 16
    %v4677 = vpop.permute.xlu0 %4676
    %v4680 = vadd.f32 %v1874, %v4675
    %v4681 = vadd.f32 %v1879, %v4677
    %v4682 = vtanh.pop %v4680
    %v4683 = vtanh.pop %v4681
    %v4684 = vsub.f32 1.0, %v4661
    %v4685 = vsub.f32 1.0, %v4663
    %4688 = vrot.lane.b32.xlu0 %v4682, 120
    %v4689 = vpop.permute.xlu0 %4688
    %4690 = vrot.lane.b32.xlu0 %v4683, 120
    %v4691 = vpop.permute.xlu0 %4690
    %v4694 = vmul.f32 %v4684, %v4689
    %v4695 = vmul.f32 %v4685, %v4691
    %v4696 = vrot.slane %v4122, 4
    %v4697 = vrot.slane %v4122, 5
    %4698 = vrot.lane.b32.xlu0 %v4696, 8
    %v4699 = vpop.permute.xlu0 %4698
    %4700 = vrot.lane.b32.xlu0 %v4697, 8
    %v4701 = vpop.permute.xlu0 %4700
    %v4704 = vmul.f32 %v4661, %v4699
    %v4705 = vmul.f32 %v4663, %v4701
    %v4706 = vadd.f32 %v4694, %v4704
    %v4707 = vadd.f32 %v4695, %v4705
    %v4710 = vrot.slane %v4706, 4
    %v4711 = vrot.slane %v4707, 3
    %v4712 = vsel %vm2210, %v4711, %v4710
    %4713 = vrot.lane.b32.xlu0 %v4712, 120
    %v4714 = vpop.permute.xlu0 %4713
    %v4716 = vmul.f32 %v4555, %v4714
    %v4717 = vmul.f32 %v4568, %v4122
    %v4718 = vadd.f32 %v4716, %v4717
    %v4720 = vsel %vm1060, %v4269, 0
    %4722 = vmatprep.subr.mxu0 0.0
    %4723 = vmatpush1.msra.mxu0 %v1966
    %4724 = vmatprep.subr.mxu0 0.0
    %4725 = vmatpush1.msra.mxu0 %v1967
    %4726 = vmatprep.subr.mxu0 0.0
    %4727 = vmatpush1.msra.mxu0 0.0
    %4728 = vmatprep.subr.mxu0 0.0
    %4729 = vmatpush1.msra.mxu0 0.0
    %4730 = vmatprep.subr.mxu0 0.0
    %4731 = vmatpush1.msra.mxu0 0.0
    %4732 = vmatprep.subr.mxu0 0.0
    %4733 = vmatpush1.msra.mxu0 0.0
    %4734 = vmatprep.subr.mxu0 0.0
    %4735 = vmatpush1.msra.mxu0 0.0
    %4736 = vmatprep.subr.mxu0 0.0
    %4737 = vmatpush1.msra.mxu0 0.0
    %4738 = vmatprep.subr.mxu0 0.0
    %4739 = vmatpush1.msra.mxu0 0.0
    %4740 = vmatprep.subr.mxu0 0.0
    %4741 = vmatpush1.msra.mxu0 0.0
    %4742 = vmatprep.subr.mxu0 0.0
    %4743 = vmatpush1.msra.mxu0 0.0
    %4744 = vmatprep.subr.mxu0 0.0
    %4745 = vmatpush1.msra.mxu0 0.0
    %4746 = vmatprep.subr.mxu0 0.0
    %4747 = vmatpush1.msra.mxu0 0.0
    %4748 = vmatprep.subr.mxu0 0.0
    %4749 = vmatpush1.msra.mxu0 0.0
    %4750 = vmatprep.subr.mxu0 0.0
    %4751 = vmatpush1.msra.mxu0 0.0
    %4752 = vmatprep.subr.mxu0 0.0
    %4753 = vmatpush1.msra.mxu0 0.0
    %4754 = vmatprep.subr.mxu0 0.0
    %4755 = vmatpush1.msra.mxu0 0.0
    %4756 = vmatprep.subr.mxu0 0.0
    %4757 = vmatpush1.msra.mxu0 0.0
    %4758 = vmatprep.subr.mxu0 0.0
    %4759 = vmatpush1.msra.mxu0 0.0
    %4760 = vmatprep.subr.mxu0 0.0
    %4761 = vmatpush1.msra.mxu0 0.0
    %4762 = vmatprep.subr.mxu0 0.0
    %4763 = vmatpush1.msra.mxu0 0.0
    %4764 = vmatprep.subr.mxu0 0.0
    %4765 = vmatpush1.msra.mxu0 0.0
    %4766 = vmatprep.subr.mxu0 0.0
    %4767 = vmatpush1.msra.mxu0 0.0
    %4768 = vmatprep.subr.mxu0 0.0
    %4769 = vmatpush1.msra.mxu0 0.0
    %4770 = vmatprep.subr.mxu0 0.0
    %4771 = vmatpush1.msra.mxu0 0.0
    %4772 = vmatprep.subr.mxu0 0.0
    %4773 = vmatpush1.msra.mxu0 0.0
    %4774 = vmatprep.subr.mxu0 0.0
    %4775 = vmatpush1.msra.mxu0 0.0
    %4776 = vmatprep.subr.mxu0 0.0
    %4777 = vmatpush1.msra.mxu0 0.0
    %4778 = vmatprep.subr.mxu0 0.0
    %4779 = vmatpush1.msra.mxu0 0.0
    %4780 = vmatprep.subr.mxu0 0.0
    %4781 = vmatpush1.msra.mxu0 0.0
    %4782 = vmatprep.subr.mxu0 0.0
    %4783 = vmatpush1.msra.mxu0 0.0
    %4784 = vmatprep.subr.mxu0 0.0
    %4785 = vmatpush1.msra.mxu0 0.0
    %4786 = vmatprep.mubr.f32.mxu0 0.0
    %4787 = vmatmul.mubr.f32.gmra.mrb[0].mxu0 %v4720
    %v4788 = vpop.f32.mrb[0].mxu0
    %v4789 = vadd.f32 %v2366, %v4788
    %v4790 = vpop.f32.mrb[0].mxu0
    %4791 = vdwg.mxu0
    %v4793 = vrot.slane %v4789, 4
    %v4794 = vrot.slane %v4789, 5
    %v4797 = vadd.f32 %v1958, %v4793
    %v4798 = vadd.f32 %v1963, %v4794
    %v4799 = vxor.u32 %v4797, 2147483648
    %v4800 = vxor.u32 %v4798, 2147483648
    %v4801 = vmul.f32 %v4799, 1.442695
    %v4802 = vpow.pop %v4801
    %v4803 = vmul.f32 %v4800, 1.442695
    %v4804 = vpow.pop %v4803
    %v4805 = vadd.f32 %v4802, 1.0
    %v4806 = vadd.f32 %v4804, 1.0
    %v4807 = vrcp.pop %v4805
    %v4808 = vmul.f32 1.0, %v4807
    %v4809 = vrcp.pop %v4806
    %v4810 = vmul.f32 1.0, %v4809
    %4811 = vrot.lane.b32.xlu0 %v4793, 96
    %v4812 = vpop.permute.xlu0 %4811
    %4813 = vrot.lane.b32.xlu0 %v4794, 96
    %v4814 = vpop.permute.xlu0 %4813
    %v4817 = vmul.f32 %v4808, %v4812
    %v4818 = vmul.f32 %v4810, %v4814
    %4821 = vrot.lane.b32.xlu0 %v4817, 32
    %v4822 = vpop.permute.xlu0 %4821
    %4823 = vrot.lane.b32.xlu0 %v4818, 32
    %v4824 = vpop.permute.xlu0 %4823
    %v4827 = vadd.f32 %v1958, %v4822
    %v4828 = vadd.f32 %v1963, %v4824
    %v4829 = vtanh.pop %v4827
    %v4830 = vtanh.pop %v4828
    %v4831 = vsub.f32 1.0, %v4808
    %v4832 = vsub.f32 1.0, %v4810
    %4835 = vrot.lane.b32.xlu0 %v4829, 112
    %v4836 = vpop.permute.xlu0 %4835
    %4837 = vrot.lane.b32.xlu0 %v4830, 112
    %v4838 = vpop.permute.xlu0 %4837
    %v4841 = vmul.f32 %v4831, %v4836
    %v4842 = vmul.f32 %v4832, %v4838
    %v4843 = vrot.slane %v4269, 4
    %v4844 = vrot.slane %v4269, 5
    %4845 = vrot.lane.b32.xlu0 %v4843, 16
    %v4846 = vpop.permute.xlu0 %4845
    %4847 = vrot.lane.b32.xlu0 %v4844, 16
    %v4848 = vpop.permute.xlu0 %4847
    %v4851 = vmul.f32 %v4808, %v4846
    %v4852 = vmul.f32 %v4810, %v4848
    %v4853 = vadd.f32 %v4841, %v4851
    %v4854 = vadd.f32 %v4842, %v4852
    %v4857 = vrot.slane %v4853, 4
    %v4858 = vrot.slane %v4854, 3
    %v4859 = vsel %vm2210, %v4858, %v4857
    %4860 = vrot.lane.b32.xlu0 %v4859, 112
    %v4861 = vpop.permute.xlu0 %4860
    %v4863 = vmul.f32 %v4555, %v4861
    %v4864 = vmul.f32 %v4568, %v4269
    %v4865 = vadd.f32 %v4863, %v4864
    %v4867 = vsel %vm67, %v4416, 0
    %4869 = vmatprep.subr.mxu0 0.0
    %4870 = vmatpush1.msra.mxu0 %v2063
    %4871 = vmatprep.subr.mxu0 0.0
    %4872 = vmatpush1.msra.mxu0 %v2064
    %4873 = vmatprep.subr.mxu0 0.0
    %4874 = vmatpush1.msra.mxu0 %v2065
    %4875 = vmatprep.subr.mxu0 0.0
    %4876 = vmatpush1.msra.mxu0 %v2066
    %4877 = vmatprep.subr.mxu0 0.0
    %4878 = vmatpush1.msra.mxu0 0.0
    %4879 = vmatprep.subr.mxu0 0.0
    %4880 = vmatpush1.msra.mxu0 0.0
    %4881 = vmatprep.subr.mxu0 0.0
    %4882 = vmatpush1.msra.mxu0 0.0
    %4883 = vmatprep.subr.mxu0 0.0
    %4884 = vmatpush1.msra.mxu0 0.0
    %4885 = vmatprep.subr.mxu0 0.0
    %4886 = vmatpush1.msra.mxu0 0.0
    %4887 = vmatprep.subr.mxu0 0.0
    %4888 = vmatpush1.msra.mxu0 0.0
    %4889 = vmatprep.subr.mxu0 0.0
    %4890 = vmatpush1.msra.mxu0 0.0
    %4891 = vmatprep.subr.mxu0 0.0
    %4892 = vmatpush1.msra.mxu0 0.0
    %4893 = vmatprep.subr.mxu0 0.0
    %4894 = vmatpush1.msra.mxu0 0.0
    %4895 = vmatprep.subr.mxu0 0.0
    %4896 = vmatpush1.msra.mxu0 0.0
    %4897 = vmatprep.subr.mxu0 0.0
    %4898 = vmatpush1.msra.mxu0 0.0
    %4899 = vmatprep.subr.mxu0 0.0
    %4900 = vmatpush1.msra.mxu0 0.0
    %4901 = vmatprep.subr.mxu0 0.0
    %4902 = vmatpush1.msra.mxu0 0.0
    %4903 = vmatprep.subr.mxu0 0.0
    %4904 = vmatpush1.msra.mxu0 0.0
    %4905 = vmatprep.subr.mxu0 0.0
    %4906 = vmatpush1.msra.mxu0 0.0
    %4907 = vmatprep.subr.mxu0 0.0
    %4908 = vmatpush1.msra.mxu0 0.0
    %4909 = vmatprep.subr.mxu0 0.0
    %4910 = vmatpush1.msra.mxu0 0.0
    %4911 = vmatprep.subr.mxu0 0.0
    %4912 = vmatpush1.msra.mxu0 0.0
    %4913 = vmatprep.subr.mxu0 0.0
    %4914 = vmatpush1.msra.mxu0 0.0
    %4915 = vmatprep.subr.mxu0 0.0
    %4916 = vmatpush1.msra.mxu0 0.0
    %4917 = vmatprep.subr.mxu0 0.0
    %4918 = vmatpush1.msra.mxu0 0.0
    %4919 = vmatprep.subr.mxu0 0.0
    %4920 = vmatpush1.msra.mxu0 0.0
    %4921 = vmatprep.subr.mxu0 0.0
    %4922 = vmatpush1.msra.mxu0 0.0
    %4923 = vmatprep.subr.mxu0 0.0
    %4924 = vmatpush1.msra.mxu0 0.0
    %4925 = vmatprep.subr.mxu0 0.0
    %4926 = vmatpush1.msra.mxu0 0.0
    %4927 = vmatprep.subr.mxu0 0.0
    %4928 = vmatpush1.msra.mxu0 0.0
    %4929 = vmatprep.subr.mxu0 0.0
    %4930 = vmatpush1.msra.mxu0 0.0
    %4931 = vmatprep.subr.mxu0 0.0
    %4932 = vmatpush1.msra.mxu0 0.0
    %4933 = vmatprep.mubr.f32.mxu0 0.0
    %4934 = vmatmul.mubr.f32.gmra.mrb[0].mxu0 %v4867
    %v4935 = vpop.f32.mrb[0].mxu0
    %v4936 = vadd.f32 %v2505, %v4935
    %v4937 = vpop.f32.mrb[0].mxu0
    %4938 = vdwg.mxu0
    %v4940 = vrot.slane %v4936, 4
    %v4941 = vrot.slane %v4936, 5
    %v4944 = vadd.f32 %v2055, %v4940
    %v4945 = vadd.f32 %v2060, %v4941
    %v4946 = vxor.u32 %v4944, 2147483648
    %v4947 = vxor.u32 %v4945, 2147483648
    %v4948 = vmul.f32 %v4946, 1.442695
    %v4949 = vpow.pop %v4948
    %v4950 = vmul.f32 %v4947, 1.442695
    %v4951 = vpow.pop %v4950
    %v4952 = vadd.f32 %v4949, 1.0
    %v4953 = vadd.f32 %v4951, 1.0
    %v4954 = vrcp.pop %v4952
    %v4955 = vmul.f32 1.0, %v4954
    %v4956 = vrcp.pop %v4953
    %v4957 = vmul.f32 1.0, %v4956
    %4958 = vrot.lane.b32.xlu0 %v4940, 64
    %v4959 = vpop.permute.xlu0 %4958
    %4960 = vrot.lane.b32.xlu0 %v4941, 64
    %v4961 = vpop.permute.xlu0 %4960
    %v4964 = vmul.f32 %v4955, %v4959
    %v4965 = vmul.f32 %v4957, %v4961
    %4968 = vrot.lane.b32.xlu0 %v4964, 64
    %v4969 = vpop.permute.xlu0 %4968
    %4970 = vrot.lane.b32.xlu0 %v4965, 64
    %v4971 = vpop.permute.xlu0 %4970
    %v4974 = vadd.f32 %v2055, %v4969
    %v4975 = vadd.f32 %v2060, %v4971
    %v4976 = vtanh.pop %v4974
    %v4977 = vtanh.pop %v4975
    %v4978 = vsub.f32 1.0, %v4955
    %v4979 = vsub.f32 1.0, %v4957
    %4982 = vrot.lane.b32.xlu0 %v4976, 96
    %v4983 = vpop.permute.xlu0 %4982
    %4984 = vrot.lane.b32.xlu0 %v4977, 96
    %v4985 = vpop.permute.xlu0 %4984
    %v4988 = vmul.f32 %v4978, %v4983
    %v4989 = vmul.f32 %v4979, %v4985
    %v4990 = vrot.slane %v4416, 4
    %v4991 = vrot.slane %v4416, 5
    %4992 = vrot.lane.b32.xlu0 %v4990, 32
    %v4993 = vpop.permute.xlu0 %4992
    %4994 = vrot.lane.b32.xlu0 %v4991, 32
    %v4995 = vpop.permute.xlu0 %4994
    %v4998 = vmul.f32 %v4955, %v4993
    %v4999 = vmul.f32 %v4957, %v4995
    %v5000 = vadd.f32 %v4988, %v4998
    %v5001 = vadd.f32 %v4989, %v4999
    %v5004 = vrot.slane %v5000, 4
    %v5005 = vrot.slane %v5001, 3
    %v5006 = vsel %vm2210, %v5005, %v5004
    %5007 = vrot.lane.b32.xlu0 %v5006, 96
    %v5008 = vpop.permute.xlu0 %5007
    %v5010 = vmul.f32 %v4555, %v5008
    %v5011 = vmul.f32 %v4568, %v4416
    %v5012 = vadd.f32 %v5010, %v5011
    %v5014 = vsel %vm230, %v4571, 0
    %5016 = vmatprep.subr.mxu0 0.0
    %5017 = vmatpush1.msra.mxu0 %v2076
    %5018 = vmatprep.subr.mxu0 0.0
    %5019 = vmatpush1.msra.mxu0 0.0
    %5020 = vmatprep.subr.mxu0 0.0
    %5021 = vmatpush1.msra.mxu0 0.0
    %5022 = vmatprep.subr.mxu0 0.0
    %5023 = vmatpush1.msra.mxu0 0.0
    %5024 = vmatprep.subr.mxu0 0.0
    %5025 = vmatpush1.msra.mxu0 0.0
    %5026 = vmatprep.subr.mxu0 0.0
    %5027 = vmatpush1.msra.mxu0 0.0
    %5028 = vmatprep.subr.mxu0 0.0
    %5029 = vmatpush1.msra.mxu0 0.0
    %5030 = vmatprep.subr.mxu0 0.0
    %5031 = vmatpush1.msra.mxu0 0.0
    %5032 = vmatprep.subr.mxu0 0.0
    %5033 = vmatpush1.msra.mxu0 0.0
    %5034 = vmatprep.subr.mxu0 0.0
    %5035 = vmatpush1.msra.mxu0 0.0
    %5036 = vmatprep.subr.mxu0 0.0
    %5037 = vmatpush1.msra.mxu0 0.0
    %5038 = vmatprep.subr.mxu0 0.0
    %5039 = vmatpush1.msra.mxu0 0.0
    %5040 = vmatprep.subr.mxu0 0.0
    %5041 = vmatpush1.msra.mxu0 0.0
    %5042 = vmatprep.subr.mxu0 0.0
    %5043 = vmatpush1.msra.mxu0 0.0
    %5044 = vmatprep.subr.mxu0 0.0
    %5045 = vmatpush1.msra.mxu0 0.0
    %5046 = vmatprep.subr.mxu0 0.0
    %5047 = vmatpush1.msra.mxu0 0.0
    %5048 = vmatprep.subr.mxu0 0.0
    %5049 = vmatpush1.msra.mxu0 0.0
    %5050 = vmatprep.subr.mxu0 0.0
    %5051 = vmatpush1.msra.mxu0 0.0
    %5052 = vmatprep.subr.mxu0 0.0
    %5053 = vmatpush1.msra.mxu0 0.0
    %5054 = vmatprep.subr.mxu0 0.0
    %5055 = vmatpush1.msra.mxu0 0.0
    %5056 = vmatprep.subr.mxu0 0.0
    %5057 = vmatpush1.msra.mxu0 0.0
    %5058 = vmatprep.subr.mxu0 0.0
    %5059 = vmatpush1.msra.mxu0 0.0
    %5060 = vmatprep.subr.mxu0 0.0
    %5061 = vmatpush1.msra.mxu0 0.0
    %5062 = vmatprep.subr.mxu0 0.0
    %5063 = vmatpush1.msra.mxu0 0.0
    %5064 = vmatprep.subr.mxu0 0.0
    %5065 = vmatpush1.msra.mxu0 0.0
    %5066 = vmatprep.subr.mxu0 0.0
    %5067 = vmatpush1.msra.mxu0 0.0
    %5068 = vmatprep.subr.mxu0 0.0
    %5069 = vmatpush1.msra.mxu0 0.0
    %5070 = vmatprep.subr.mxu0 0.0
    %5071 = vmatpush1.msra.mxu0 0.0
    %5072 = vmatprep.subr.mxu0 0.0
    %5073 = vmatpush1.msra.mxu0 0.0
    %5074 = vmatprep.subr.mxu0 0.0
    %5075 = vmatpush1.msra.mxu0 0.0
    %5076 = vmatprep.subr.mxu0 0.0
    %5077 = vmatpush1.msra.mxu0 0.0
    %5078 = vmatprep.subr.mxu0 0.0
    %5079 = vmatpush1.msra.mxu0 0.0
    %5080 = vmatprep.mubr.f32.mxu0 0.0
    %5081 = vmatmul.mubr.f32.gmra.mrb[0].mxu0 %v5014
    %v5082 = vpop.f32.mrb[0].mxu0
    %v5083 = vadd.f32 %v2071, %v5082
    %v5084 = vpop.f32.mrb[0].mxu0
    %5085 = vdwg.mxu0
    %v5087 = vrot.slane %v5083, 3
    %v5088 = vrot.slane %v5083, 4
    %v5091 = vadd.f32 %v1791, %v5087
    %v5092 = vadd.f32 %v1796, %v5088
    %v5093 = vxor.u32 %v5091, 2147483648
    %v5094 = vxor.u32 %v5092, 2147483648
    %v5095 = vmul.f32 %v5093, 1.442695
    %v5096 = vpow.pop %v5095
    %v5097 = vmul.f32 %v5094, 1.442695
    %v5098 = vpow.pop %v5097
    %v5099 = vadd.f32 %v5096, 1.0
    %v5100 = vadd.f32 %v5098, 1.0
    %v5101 = vrcp.pop %v5099
    %v5102 = vmul.f32 1.0, %v5101
    %v5103 = vrcp.pop %v5100
    %v5104 = vmul.f32 1.0, %v5103
    %5105 = vrot.lane.b32.xlu0 %v5087, 120
    %v5106 = vpop.permute.xlu0 %5105
    %5107 = vrot.lane.b32.xlu0 %v5088, 120
    %v5108 = vpop.permute.xlu0 %5107
    %v5111 = vmul.f32 %v5102, %v5106
    %v5112 = vmul.f32 %v5104, %v5108
    %5115 = vrot.lane.b32.xlu0 %v5111, 8
    %v5116 = vpop.permute.xlu0 %5115
    %5117 = vrot.lane.b32.xlu0 %v5112, 8
    %v5118 = vpop.permute.xlu0 %5117
    %v5121 = vadd.f32 %v1791, %v5116
    %v5122 = vadd.f32 %v1796, %v5118
    %v5123 = vtanh.pop %v5121
    %v5124 = vtanh.pop %v5122
    %v5125 = vsub.f32 1.0, %v5102
    %v5126 = vsub.f32 1.0, %v5104
    %5129 = vrot.lane.b32.xlu0 %v5123, 124
    %v5130 = vpop.permute.xlu0 %5129
    %5131 = vrot.lane.b32.xlu0 %v5124, 124
    %v5132 = vpop.permute.xlu0 %5131
    %v5135 = vmul.f32 %v5125, %v5130
    %v5136 = vmul.f32 %v5126, %v5132
    %v5137 = vrot.slane %v4571, 3
    %v5138 = vrot.slane %v4571, 4
    %5139 = vrot.lane.b32.xlu0 %v5137, 4
    %v5140 = vpop.permute.xlu0 %5139
    %5141 = vrot.lane.b32.xlu0 %v5138, 4
    %v5142 = vpop.permute.xlu0 %5141
    %v5145 = vmul.f32 %v5102, %v5140
    %v5146 = vmul.f32 %v5104, %v5142
    %v5147 = vadd.f32 %v5135, %v5145
    %v5148 = vadd.f32 %v5136, %v5146
    %5149 = vset.pattern.permute.xlu0 5
    %5150 = vperm.xlu0 %5149, %v35
    %v5151 = vpop.permute.xlu0 %5150
    %v5155 = vrot.slane %v5147, 5
    %v5156 = vrot.slane %v5148, 4
    %v5157 = vsel %vm2210, %v5156, %v5155
    %5158 = vrot.lane.b32.xlu0 %v5157, 124
    %v5159 = vpop.permute.xlu0 %5158
    %v5161 = vmul.f32 %v5151, %v5159
    %5162 = vset.pattern.permute.xlu0 5
    %5163 = vperm.xlu0 %5162, %v2216
    %v5164 = vpop.permute.xlu0 %5163
    %v5166 = vmul.f32 %v5164, %v4571
    %v5167 = vadd.f32 %v5161, %v5166
    %v5169 = vsel %vm648, %v4718, 0
    %5171 = vmatprep.subr.mxu0 0.0
    %5172 = vmatpush1.msra.mxu0 %v1882
    %5173 = vmatprep.subr.mxu0 0.0
    %5174 = vmatpush1.msra.mxu0 0.0
    %5175 = vmatprep.subr.mxu0 0.0
    %5176 = vmatpush1.msra.mxu0 0.0
    %5177 = vmatprep.subr.mxu0 0.0
    %5178 = vmatpush1.msra.mxu0 0.0
    %5179 = vmatprep.subr.mxu0 0.0
    %5180 = vmatpush1.msra.mxu0 0.0
    %5181 = vmatprep.subr.mxu0 0.0
    %5182 = vmatpush1.msra.mxu0 0.0
    %5183 = vmatprep.subr.mxu0 0.0
    %5184 = vmatpush1.msra.mxu0 0.0
    %5185 = vmatprep.subr.mxu0 0.0
    %5186 = vmatpush1.msra.mxu0 0.0
    %5187 = vmatprep.subr.mxu0 0.0
    %5188 = vmatpush1.msra.mxu0 0.0
    %5189 = vmatprep.subr.mxu0 0.0
    %5190 = vmatpush1.msra.mxu0 0.0
    %5191 = vmatprep.subr.mxu0 0.0
    %5192 = vmatpush1.msra.mxu0 0.0
    %5193 = vmatprep.subr.mxu0 0.0
    %5194 = vmatpush1.msra.mxu0 0.0
    %5195 = vmatprep.subr.mxu0 0.0
    %5196 = vmatpush1.msra.mxu0 0.0
    %5197 = vmatprep.subr.mxu0 0.0
    %5198 = vmatpush1.msra.mxu0 0.0
    %5199 = vmatprep.subr.mxu0 0.0
    %5200 = vmatpush1.msra.mxu0 0.0
    %5201 = vmatprep.subr.mxu0 0.0
    %5202 = vmatpush1.msra.mxu0 0.0
    %5203 = vmatprep.subr.mxu0 0.0
    %5204 = vmatpush1.msra.mxu0 0.0
    %5205 = vmatprep.subr.mxu0 0.0
    %5206 = vmatpush1.msra.mxu0 0.0
    %5207 = vmatprep.subr.mxu0 0.0
    %5208 = vmatpush1.msra.mxu0 0.0
    %5209 = vmatprep.subr.mxu0 0.0
    %5210 = vmatpush1.msra.mxu0 0.0
    %5211 = vmatprep.subr.mxu0 0.0
    %5212 = vmatpush1.msra.mxu0 0.0
    %5213 = vmatprep.subr.mxu0 0.0
    %5214 = vmatpush1.msra.mxu0 0.0
    %5215 = vmatprep.subr.mxu0 0.0
    %5216 = vmatpush1.msra.mxu0 0.0
    %5217 = vmatprep.subr.mxu0 0.0
    %5218 = vmatpush1.msra.mxu0 0.0
    %5219 = vmatprep.subr.mxu0 0.0
    %5220 = vmatpush1.msra.mxu0 0.0
    %5221 = vmatprep.subr.mxu0 0.0
    %5222 = vmatpush1.msra.mxu0 0.0
    %5223 = vmatprep.subr.mxu0 0.0
    %5224 = vmatpush1.msra.mxu0 0.0
    %5225 = vmatprep.subr.mxu0 0.0
    %5226 = vmatpush1.msra.mxu0 0.0
    %5227 = vmatprep.subr.mxu0 0.0
    %5228 = vmatpush1.msra.mxu0 0.0
    %5229 = vmatprep.subr.mxu0 0.0
    %5230 = vmatpush1.msra.mxu0 0.0
    %5231 = vmatprep.subr.mxu0 0.0
    %5232 = vmatpush1.msra.mxu0 0.0
    %5233 = vmatprep.subr.mxu0 0.0
    %5234 = vmatpush1.msra.mxu0 0.0
    %5235 = vmatprep.mubr.f32.mxu0 0.0
    %5236 = vmatmul.mubr.f32.gmra.mrb[0].mxu0 %v5169
    %v5237 = vpop.f32.mrb[0].mxu0
    %v5238 = vadd.f32 %v2227, %v5237
    %v5239 = vpop.f32.mrb[0].mxu0
    %5240 = vdwg.mxu0
    %v5242 = vrot.slane %v5238, 3
    %v5243 = vrot.slane %v5238, 4
    %v5246 = vadd.f32 %v1874, %v5242
    %v5247 = vadd.f32 %v1879, %v5243
    %v5248 = vxor.u32 %v5246, 2147483648
    %v5249 = vxor.u32 %v5247, 2147483648
    %v5250 = vmul.f32 %v5248, 1.442695
    %v5251 = vpow.pop %v5250
    %v5252 = vmul.f32 %v5249, 1.442695
    %v5253 = vpow.pop %v5252
    %v5254 = vadd.f32 %v5251, 1.0
    %v5255 = vadd.f32 %v5253, 1.0
    %v5256 = vrcp.pop %v5254
    %v5257 = vmul.f32 1.0, %v5256
    %v5258 = vrcp.pop %v5255
    %v5259 = vmul.f32 1.0, %v5258
    %5260 = vrot.lane.b32.xlu0 %v5242, 112
    %v5261 = vpop.permute.xlu0 %5260
    %5262 = vrot.lane.b32.xlu0 %v5243, 112
    %v5263 = vpop.permute.xlu0 %5262
    %v5266 = vmul.f32 %v5257, %v5261
    %v5267 = vmul.f32 %v5259, %v5263
    %5270 = vrot.lane.b32.xlu0 %v5266, 16
    %v5271 = vpop.permute.xlu0 %5270
    %5272 = vrot.lane.b32.xlu0 %v5267, 16
    %v5273 = vpop.permute.xlu0 %5272
    %v5276 = vadd.f32 %v1874, %v5271
    %v5277 = vadd.f32 %v1879, %v5273
    %v5278 = vtanh.pop %v5276
    %v5279 = vtanh.pop %v5277
    %v5280 = vsub.f32 1.0, %v5257
    %v5281 = vsub.f32 1.0, %v5259
    %5284 = vrot.lane.b32.xlu0 %v5278, 120
    %v5285 = vpop.permute.xlu0 %5284
    %5286 = vrot.lane.b32.xlu0 %v5279, 120
    %v5287 = vpop.permute.xlu0 %5286
    %v5290 = vmul.f32 %v5280, %v5285
    %v5291 = vmul.f32 %v5281, %v5287
    %v5292 = vrot.slane %v4718, 3
    %v5293 = vrot.slane %v4718, 4
    %5294 = vrot.lane.b32.xlu0 %v5292, 8
    %v5295 = vpop.permute.xlu0 %5294
    %5296 = vrot.lane.b32.xlu0 %v5293, 8
    %v5297 = vpop.permute.xlu0 %5296
    %v5300 = vmul.f32 %v5257, %v5295
    %v5301 = vmul.f32 %v5259, %v5297
    %v5302 = vadd.f32 %v5290, %v5300
    %v5303 = vadd.f32 %v5291, %v5301
    %v5306 = vrot.slane %v5302, 5
    %v5307 = vrot.slane %v5303, 4
    %v5308 = vsel %vm2210, %v5307, %v5306
    %5309 = vrot.lane.b32.xlu0 %v5308, 120
    %v5310 = vpop.permute.xlu0 %5309
    %v5312 = vmul.f32 %v5151, %v5310
    %v5313 = vmul.f32 %v5164, %v4718
    %v5314 = vadd.f32 %v5312, %v5313
    %v5316 = vsel %vm1060, %v4865, 0
    %5318 = vmatprep.subr.mxu0 0.0
    %5319 = vmatpush1.msra.mxu0 %v1966
    %5320 = vmatprep.subr.mxu0 0.0
    %5321 = vmatpush1.msra.mxu0 %v1967
    %5322 = vmatprep.subr.mxu0 0.0
    %5323 = vmatpush1.msra.mxu0 0.0
    %5324 = vmatprep.subr.mxu0 0.0
    %5325 = vmatpush1.msra.mxu0 0.0
    %5326 = vmatprep.subr.mxu0 0.0
    %5327 = vmatpush1.msra.mxu0 0.0
    %5328 = vmatprep.subr.mxu0 0.0
    %5329 = vmatpush1.msra.mxu0 0.0
    %5330 = vmatprep.subr.mxu0 0.0
    %5331 = vmatpush1.msra.mxu0 0.0
    %5332 = vmatprep.subr.mxu0 0.0
    %5333 = vmatpush1.msra.mxu0 0.0
    %5334 = vmatprep.subr.mxu0 0.0
    %5335 = vmatpush1.msra.mxu0 0.0
    %5336 = vmatprep.subr.mxu0 0.0
    %5337 = vmatpush1.msra.mxu0 0.0
    %5338 = vmatprep.subr.mxu0 0.0
    %5339 = vmatpush1.msra.mxu0 0.0
    %5340 = vmatprep.subr.mxu0 0.0
    %5341 = vmatpush1.msra.mxu0 0.0
    %5342 = vmatprep.subr.mxu0 0.0
    %5343 = vmatpush1.msra.mxu0 0.0
    %5344 = vmatprep.subr.mxu0 0.0
    %5345 = vmatpush1.msra.mxu0 0.0
    %5346 = vmatprep.subr.mxu0 0.0
    %5347 = vmatpush1.msra.mxu0 0.0
    %5348 = vmatprep.subr.mxu0 0.0
    %5349 = vmatpush1.msra.mxu0 0.0
    %5350 = vmatprep.subr.mxu0 0.0
    %5351 = vmatpush1.msra.mxu0 0.0
    %5352 = vmatprep.subr.mxu0 0.0
    %5353 = vmatpush1.msra.mxu0 0.0
    %5354 = vmatprep.subr.mxu0 0.0
    %5355 = vmatpush1.msra.mxu0 0.0
    %5356 = vmatprep.subr.mxu0 0.0
    %5357 = vmatpush1.msra.mxu0 0.0
    %5358 = vmatprep.subr.mxu0 0.0
    %5359 = vmatpush1.msra.mxu0 0.0
    %5360 = vmatprep.subr.mxu0 0.0
    %5361 = vmatpush1.msra.mxu0 0.0
    %5362 = vmatprep.subr.mxu0 0.0
    %5363 = vmatpush1.msra.mxu0 0.0
    %5364 = vmatprep.subr.mxu0 0.0
    %5365 = vmatpush1.msra.mxu0 0.0
    %5366 = vmatprep.subr.mxu0 0.0
    %5367 = vmatpush1.msra.mxu0 0.0
    %5368 = vmatprep.subr.mxu0 0.0
    %5369 = vmatpush1.msra.mxu0 0.0
    %5370 = vmatprep.subr.mxu0 0.0
    %5371 = vmatpush1.msra.mxu0 0.0
    %5372 = vmatprep.subr.mxu0 0.0
    %5373 = vmatpush1.msra.mxu0 0.0
    %5374 = vmatprep.subr.mxu0 0.0
    %5375 = vmatpush1.msra.mxu0 0.0
    %5376 = vmatprep.subr.mxu0 0.0
    %5377 = vmatpush1.msra.mxu0 0.0
    %5378 = vmatprep.subr.mxu0 0.0
    %5379 = vmatpush1.msra.mxu0 0.0
    %5380 = vmatprep.subr.mxu0 0.0
    %5381 = vmatpush1.msra.mxu0 0.0
    %5382 = vmatprep.mubr.f32.mxu0 0.0
    %5383 = vmatmul.mubr.f32.gmra.mrb[0].mxu0 %v5316
    %v5384 = vpop.f32.mrb[0].mxu0
    %v5385 = vadd.f32 %v2366, %v5384
    %v5386 = vpop.f32.mrb[0].mxu0
    %5387 = vdwg.mxu0
    %v5389 = vrot.slane %v5385, 3
    %v5390 = vrot.slane %v5385, 4
    %v5393 = vadd.f32 %v1958, %v5389
    %v5394 = vadd.f32 %v1963, %v5390
    %v5395 = vxor.u32 %v5393, 2147483648
    %v5396 = vxor.u32 %v5394, 2147483648
    %v5397 = vmul.f32 %v5395, 1.442695
    %v5398 = vpow.pop %v5397
    %v5399 = vmul.f32 %v5396, 1.442695
    %v5400 = vpow.pop %v5399
    %v5401 = vadd.f32 %v5398, 1.0
    %v5402 = vadd.f32 %v5400, 1.0
    %v5403 = vrcp.pop %v5401
    %v5404 = vmul.f32 1.0, %v5403
    %v5405 = vrcp.pop %v5402
    %v5406 = vmul.f32 1.0, %v5405
    %5407 = vrot.lane.b32.xlu0 %v5389, 96
    %v5408 = vpop.permute.xlu0 %5407
    %5409 = vrot.lane.b32.xlu0 %v5390, 96
    %v5410 = vpop.permute.xlu0 %5409
    %v5413 = vmul.f32 %v5404, %v5408
    %v5414 = vmul.f32 %v5406, %v5410
    %5417 = vrot.lane.b32.xlu0 %v5413, 32
    %v5418 = vpop.permute.xlu0 %5417
    %5419 = vrot.lane.b32.xlu0 %v5414, 32
    %v5420 = vpop.permute.xlu0 %5419
    %v5423 = vadd.f32 %v1958, %v5418
    %v5424 = vadd.f32 %v1963, %v5420
    %v5425 = vtanh.pop %v5423
    %v5426 = vtanh.pop %v5424
    %v5427 = vsub.f32 1.0, %v5404
    %v5428 = vsub.f32 1.0, %v5406
    %5431 = vrot.lane.b32.xlu0 %v5425, 112
    %v5432 = vpop.permute.xlu0 %5431
    %5433 = vrot.lane.b32.xlu0 %v5426, 112
    %v5434 = vpop.permute.xlu0 %5433
    %v5437 = vmul.f32 %v5427, %v5432
    %v5438 = vmul.f32 %v5428, %v5434
    %v5439 = vrot.slane %v4865, 3
    %v5440 = vrot.slane %v4865, 4
    %5441 = vrot.lane.b32.xlu0 %v5439, 16
    %v5442 = vpop.permute.xlu0 %5441
    %5443 = vrot.lane.b32.xlu0 %v5440, 16
    %v5444 = vpop.permute.xlu0 %5443
    %v5447 = vmul.f32 %v5404, %v5442
    %v5448 = vmul.f32 %v5406, %v5444
    %v5449 = vadd.f32 %v5437, %v5447
    %v5450 = vadd.f32 %v5438, %v5448
    %v5453 = vrot.slane %v5449, 5
    %v5454 = vrot.slane %v5450, 4
    %v5455 = vsel %vm2210, %v5454, %v5453
    %5456 = vrot.lane.b32.xlu0 %v5455, 112
    %v5457 = vpop.permute.xlu0 %5456
    %v5459 = vmul.f32 %v5151, %v5457
    %v5460 = vmul.f32 %v5164, %v4865
    %v5461 = vadd.f32 %v5459, %v5460
    %v5463 = vsel %vm67, %v5012, 0
    %5465 = vmatprep.subr.mxu0 0.0
    %5466 = vmatpush1.msra.mxu0 %v2063
    %5467 = vmatprep.subr.mxu0 0.0
    %5468 = vmatpush1.msra.mxu0 %v2064
    %5469 = vmatprep.subr.mxu0 0.0
    %5470 = vmatpush1.msra.mxu0 %v2065
    %5471 = vmatprep.subr.mxu0 0.0
    %5472 = vmatpush1.msra.mxu0 %v2066
    %5473 = vmatprep.subr.mxu0 0.0
    %5474 = vmatpush1.msra.mxu0 0.0
    %5475 = vmatprep.subr.mxu0 0.0
    %5476 = vmatpush1.msra.mxu0 0.0
    %5477 = vmatprep.subr.mxu0 0.0
    %5478 = vmatpush1.msra.mxu0 0.0
    %5479 = vmatprep.subr.mxu0 0.0
    %5480 = vmatpush1.msra.mxu0 0.0
    %5481 = vmatprep.subr.mxu0 0.0
    %5482 = vmatpush1.msra.mxu0 0.0
    %5483 = vmatprep.subr.mxu0 0.0
    %5484 = vmatpush1.msra.mxu0 0.0
    %5485 = vmatprep.subr.mxu0 0.0
    %5486 = vmatpush1.msra.mxu0 0.0
    %5487 = vmatprep.subr.mxu0 0.0
    %5488 = vmatpush1.msra.mxu0 0.0
    %5489 = vmatprep.subr.mxu0 0.0
    %5490 = vmatpush1.msra.mxu0 0.0
    %5491 = vmatprep.subr.mxu0 0.0
    %5492 = vmatpush1.msra.mxu0 0.0
    %5493 = vmatprep.subr.mxu0 0.0
    %5494 = vmatpush1.msra.mxu0 0.0
    %5495 = vmatprep.subr.mxu0 0.0
    %5496 = vmatpush1.msra.mxu0 0.0
    %5497 = vmatprep.subr.mxu0 0.0
    %5498 = vmatpush1.msra.mxu0 0.0
    %5499 = vmatprep.subr.mxu0 0.0
    %5500 = vmatpush1.msra.mxu0 0.0
    %5501 = vmatprep.subr.mxu0 0.0
    %5502 = vmatpush1.msra.mxu0 0.0
    %5503 = vmatprep.subr.mxu0 0.0
    %5504 = vmatpush1.msra.mxu0 0.0
    %5505 = vmatprep.subr.mxu0 0.0
    %5506 = vmatpush1.msra.mxu0 0.0
    %5507 = vmatprep.subr.mxu0 0.0
    %5508 = vmatpush1.msra.mxu0 0.0
    %5509 = vmatprep.subr.mxu0 0.0
    %5510 = vmatpush1.msra.mxu0 0.0
    %5511 = vmatprep.subr.mxu0 0.0
    %5512 = vmatpush1.msra.mxu0 0.0
    %5513 = vmatprep.subr.mxu0 0.0
    %5514 = vmatpush1.msra.mxu0 0.0
    %5515 = vmatprep.subr.mxu0 0.0
    %5516 = vmatpush1.msra.mxu0 0.0
    %5517 = vmatprep.subr.mxu0 0.0
    %5518 = vmatpush1.msra.mxu0 0.0
    %5519 = vmatprep.subr.mxu0 0.0
    %5520 = vmatpush1.msra.mxu0 0.0
    %5521 = vmatprep.subr.mxu0 0.0
    %5522 = vmatpush1.msra.mxu0 0.0
    %5523 = vmatprep.subr.mxu0 0.0
    %5524 = vmatpush1.msra.mxu0 0.0
    %5525 = vmatprep.subr.mxu0 0.0
    %5526 = vmatpush1.msra.mxu0 0.0
    %5527 = vmatprep.subr.mxu0 0.0
    %5528 = vmatpush1.msra.mxu0 0.0
    %5529 = vmatprep.mubr.f32.mxu0 0.0
    %5530 = vmatmul.mubr.f32.gmra.mrb[0].mxu0 %v5463
    %v5531 = vpop.f32.mrb[0].mxu0
    %v5532 = vadd.f32 %v2505, %v5531
    %v5533 = vpop.f32.mrb[0].mxu0
    %5534 = vdwg.mxu0
    %v5536 = vrot.slane %v5532, 3
    %v5537 = vrot.slane %v5532, 4
    %v5540 = vadd.f32 %v2055, %v5536
    %v5541 = vadd.f32 %v2060, %v5537
    %v5542 = vxor.u32 %v5540, 2147483648
    %v5543 = vxor.u32 %v5541, 2147483648
    %v5544 = vmul.f32 %v5542, 1.442695
    %v5545 = vpow.pop %v5544
    %v5546 = vmul.f32 %v5543, 1.442695
    %v5547 = vpow.pop %v5546
    %v5548 = vadd.f32 %v5545, 1.0
    %v5549 = vadd.f32 %v5547, 1.0
    %v5550 = vrcp.pop %v5548
    %v5551 = vmul.f32 1.0, %v5550
    %v5552 = vrcp.pop %v5549
    %v5553 = vmul.f32 1.0, %v5552
    %5554 = vrot.lane.b32.xlu0 %v5536, 64
    %v5555 = vpop.permute.xlu0 %5554
    %5556 = vrot.lane.b32.xlu0 %v5537, 64
    %v5557 = vpop.permute.xlu0 %5556
    %v5560 = vmul.f32 %v5551, %v5555
    %v5561 = vmul.f32 %v5553, %v5557
    %5564 = vrot.lane.b32.xlu0 %v5560, 64
    %v5565 = vpop.permute.xlu0 %5564
    %5566 = vrot.lane.b32.xlu0 %v5561, 64
    %v5567 = vpop.permute.xlu0 %5566
    %v5570 = vadd.f32 %v2055, %v5565
    %v5571 = vadd.f32 %v2060, %v5567
    %v5572 = vtanh.pop %v5570
    %v5573 = vtanh.pop %v5571
    %v5574 = vsub.f32 1.0, %v5551
    %v5575 = vsub.f32 1.0, %v5553
    %5578 = vrot.lane.b32.xlu0 %v5572, 96
    %v5579 = vpop.permute.xlu0 %5578
    %5580 = vrot.lane.b32.xlu0 %v5573, 96
    %v5581 = vpop.permute.xlu0 %5580
    %v5584 = vmul.f32 %v5574, %v5579
    %v5585 = vmul.f32 %v5575, %v5581
    %v5586 = vrot.slane %v5012, 3
    %v5587 = vrot.slane %v5012, 4
    %5588 = vrot.lane.b32.xlu0 %v5586, 32
    %v5589 = vpop.permute.xlu0 %5588
    %5590 = vrot.lane.b32.xlu0 %v5587, 32
    %v5591 = vpop.permute.xlu0 %5590
    %v5594 = vmul.f32 %v5551, %v5589
    %v5595 = vmul.f32 %v5553, %v5591
    %v5596 = vadd.f32 %v5584, %v5594
    %v5597 = vadd.f32 %v5585, %v5595
    %v5600 = vrot.slane %v5596, 5
    %v5601 = vrot.slane %v5597, 4
    %v5602 = vsel %vm2210, %v5601, %v5600
    %5603 = vrot.lane.b32.xlu0 %v5602, 96
    %v5604 = vpop.permute.xlu0 %5603
    %v5606 = vmul.f32 %v5151, %v5604
    %v5607 = vmul.f32 %v5164, %v5012
    %v5608 = vadd.f32 %v5606, %v5607
    %v5610 = vsel %vm230, %v5167, 0
    %5612 = vmatprep.subr.mxu0 0.0
    %5613 = vmatpush1.msra.mxu0 %v2076
    %5614 = vmatprep.subr.mxu0 0.0
    %5615 = vmatpush1.msra.mxu0 0.0
    %5616 = vmatprep.subr.mxu0 0.0
    %5617 = vmatpush1.msra.mxu0 0.0
    %5618 = vmatprep.subr.mxu0 0.0
    %5619 = vmatpush1.msra.mxu0 0.0
    %5620 = vmatprep.subr.mxu0 0.0
    %5621 = vmatpush1.msra.mxu0 0.0
    %5622 = vmatprep.subr.mxu0 0.0
    %5623 = vmatpush1.msra.mxu0 0.0
    %5624 = vmatprep.subr.mxu0 0.0
    %5625 = vmatpush1.msra.mxu0 0.0
    %5626 = vmatprep.subr.mxu0 0.0
    %5627 = vmatpush1.msra.mxu0 0.0
    %5628 = vmatprep.subr.mxu0 0.0
    %5629 = vmatpush1.msra.mxu0 0.0
    %5630 = vmatprep.subr.mxu0 0.0
    %5631 = vmatpush1.msra.mxu0 0.0
    %5632 = vmatprep.subr.mxu0 0.0
    %5633 = vmatpush1.msra.mxu0 0.0
    %5634 = vmatprep.subr.mxu0 0.0
    %5635 = vmatpush1.msra.mxu0 0.0
    %5636 = vmatprep.subr.mxu0 0.0
    %5637 = vmatpush1.msra.mxu0 0.0
    %5638 = vmatprep.subr.mxu0 0.0
    %5639 = vmatpush1.msra.mxu0 0.0
    %5640 = vmatprep.subr.mxu0 0.0
    %5641 = vmatpush1.msra.mxu0 0.0
    %5642 = vmatprep.subr.mxu0 0.0
    %5643 = vmatpush1.msra.mxu0 0.0
    %5644 = vmatprep.subr.mxu0 0.0
    %5645 = vmatpush1.msra.mxu0 0.0
    %5646 = vmatprep.subr.mxu0 0.0
    %5647 = vmatpush1.msra.mxu0 0.0
    %5648 = vmatprep.subr.mxu0 0.0
    %5649 = vmatpush1.msra.mxu0 0.0
    %5650 = vmatprep.subr.mxu0 0.0
    %5651 = vmatpush1.msra.mxu0 0.0
    %5652 = vmatprep.subr.mxu0 0.0
    %5653 = vmatpush1.msra.mxu0 0.0
    %5654 = vmatprep.subr.mxu0 0.0
    %5655 = vmatpush1.msra.mxu0 0.0
    %5656 = vmatprep.subr.mxu0 0.0
    %5657 = vmatpush1.msra.mxu0 0.0
    %5658 = vmatprep.subr.mxu0 0.0
    %5659 = vmatpush1.msra.mxu0 0.0
    %5660 = vmatprep.subr.mxu0 0.0
    %5661 = vmatpush1.msra.mxu0 0.0
    %5662 = vmatprep.subr.mxu0 0.0
    %5663 = vmatpush1.msra.mxu0 0.0
    %5664 = vmatprep.subr.mxu0 0.0
    %5665 = vmatpush1.msra.mxu0 0.0
    %5666 = vmatprep.subr.mxu0 0.0
    %5667 = vmatpush1.msra.mxu0 0.0
    %5668 = vmatprep.subr.mxu0 0.0
    %5669 = vmatpush1.msra.mxu0 0.0
    %5670 = vmatprep.subr.mxu0 0.0
    %5671 = vmatpush1.msra.mxu0 0.0
    %5672 = vmatprep.subr.mxu0 0.0
    %5673 = vmatpush1.msra.mxu0 0.0
    %5674 = vmatprep.subr.mxu0 0.0
    %5675 = vmatpush1.msra.mxu0 0.0
    %5676 = vmatprep.mubr.f32.mxu0 0.0
    %5677 = vmatmul.mubr.f32.gmra.mrb[0].mxu0 %v5610
    %v5678 = vpop.f32.mrb[0].mxu0
    %v5679 = vadd.f32 %v2071, %v5678
    %v5680 = vpop.f32.mrb[0].mxu0
    %5681 = vdwg.mxu0
    %v5683 = vrot.slane %v5679, 2
    %v5684 = vrot.slane %v5679, 3
    %v5687 = vadd.f32 %v1791, %v5683
    %v5688 = vadd.f32 %v1796, %v5684
    %v5689 = vxor.u32 %v5687, 2147483648
    %v5690 = vxor.u32 %v5688, 2147483648
    %v5691 = vmul.f32 %v5689, 1.442695
    %v5692 = vpow.pop %v5691
    %v5693 = vmul.f32 %v5690, 1.442695
    %v5694 = vpow.pop %v5693
    %v5695 = vadd.f32 %v5692, 1.0
    %v5696 = vadd.f32 %v5694, 1.0
    %v5697 = vrcp.pop %v5695
    %v5698 = vmul.f32 1.0, %v5697
    %v5699 = vrcp.pop %v5696
    %v5700 = vmul.f32 1.0, %v5699
    %5701 = vrot.lane.b32.xlu0 %v5683, 120
    %v5702 = vpop.permute.xlu0 %5701
    %5703 = vrot.lane.b32.xlu0 %v5684, 120
    %v5704 = vpop.permute.xlu0 %5703
    %v5707 = vmul.f32 %v5698, %v5702
    %v5708 = vmul.f32 %v5700, %v5704
    %5711 = vrot.lane.b32.xlu0 %v5707, 8
    %v5712 = vpop.permute.xlu0 %5711
    %5713 = vrot.lane.b32.xlu0 %v5708, 8
    %v5714 = vpop.permute.xlu0 %5713
    %v5717 = vadd.f32 %v1791, %v5712
    %v5718 = vadd.f32 %v1796, %v5714
    %v5719 = vtanh.pop %v5717
    %v5720 = vtanh.pop %v5718
    %v5721 = vsub.f32 1.0, %v5698
    %v5722 = vsub.f32 1.0, %v5700
    %5725 = vrot.lane.b32.xlu0 %v5719, 124
    %v5726 = vpop.permute.xlu0 %5725
    %5727 = vrot.lane.b32.xlu0 %v5720, 124
    %v5728 = vpop.permute.xlu0 %5727
    %v5731 = vmul.f32 %v5721, %v5726
    %v5732 = vmul.f32 %v5722, %v5728
    %v5733 = vrot.slane %v5167, 2
    %v5734 = vrot.slane %v5167, 3
    %5735 = vrot.lane.b32.xlu0 %v5733, 4
    %v5736 = vpop.permute.xlu0 %5735
    %5737 = vrot.lane.b32.xlu0 %v5734, 4
    %v5738 = vpop.permute.xlu0 %5737
    %v5741 = vmul.f32 %v5698, %v5736
    %v5742 = vmul.f32 %v5700, %v5738
    %v5743 = vadd.f32 %v5731, %v5741
    %v5744 = vadd.f32 %v5732, %v5742
    %5745 = vset.pattern.permute.xlu0 6
    %5746 = vperm.xlu0 %5745, %v35
    %v5747 = vpop.permute.xlu0 %5746
    %v5751 = vrot.slane %v5743, 6
    %v5752 = vrot.slane %v5744, 5
    %v5753 = vsel %vm2210, %v5752, %v5751
    %5754 = vrot.lane.b32.xlu0 %v5753, 124
    %v5755 = vpop.permute.xlu0 %5754
    %v5757 = vmul.f32 %v5747, %v5755
    %5758 = vset.pattern.permute.xlu0 6
    %5759 = vperm.xlu0 %5758, %v2216
    %v5760 = vpop.permute.xlu0 %5759
    %v5762 = vmul.f32 %v5760, %v5167
    %v5763 = vadd.f32 %v5757, %v5762
    %v5765 = vsel %vm648, %v5314, 0
    %5767 = vmatprep.subr.mxu0 0.0
    %5768 = vmatpush1.msra.mxu0 %v1882
    %5769 = vmatprep.subr.mxu0 0.0
    %5770 = vmatpush1.msra.mxu0 0.0
    %5771 = vmatprep.subr.mxu0 0.0
    %5772 = vmatpush1.msra.mxu0 0.0
    %5773 = vmatprep.subr.mxu0 0.0
    %5774 = vmatpush1.msra.mxu0 0.0
    %5775 = vmatprep.subr.mxu0 0.0
    %5776 = vmatpush1.msra.mxu0 0.0
    %5777 = vmatprep.subr.mxu0 0.0
    %5778 = vmatpush1.msra.mxu0 0.0
    %5779 = vmatprep.subr.mxu0 0.0
    %5780 = vmatpush1.msra.mxu0 0.0
    %5781 = vmatprep.subr.mxu0 0.0
    %5782 = vmatpush1.msra.mxu0 0.0
    %5783 = vmatprep.subr.mxu0 0.0
    %5784 = vmatpush1.msra.mxu0 0.0
    %5785 = vmatprep.subr.mxu0 0.0
    %5786 = vmatpush1.msra.mxu0 0.0
    %5787 = vmatprep.subr.mxu0 0.0
    %5788 = vmatpush1.msra.mxu0 0.0
    %5789 = vmatprep.subr.mxu0 0.0
    %5790 = vmatpush1.msra.mxu0 0.0
    %5791 = vmatprep.subr.mxu0 0.0
    %5792 = vmatpush1.msra.mxu0 0.0
    %5793 = vmatprep.subr.mxu0 0.0
    %5794 = vmatpush1.msra.mxu0 0.0
    %5795 = vmatprep.subr.mxu0 0.0
    %5796 = vmatpush1.msra.mxu0 0.0
    %5797 = vmatprep.subr.mxu0 0.0
    %5798 = vmatpush1.msra.mxu0 0.0
    %5799 = vmatprep.subr.mxu0 0.0
    %5800 = vmatpush1.msra.mxu0 0.0
    %5801 = vmatprep.subr.mxu0 0.0
    %5802 = vmatpush1.msra.mxu0 0.0
    %5803 = vmatprep.subr.mxu0 0.0
    %5804 = vmatpush1.msra.mxu0 0.0
    %5805 = vmatprep.subr.mxu0 0.0
    %5806 = vmatpush1.msra.mxu0 0.0
    %5807 = vmatprep.subr.mxu0 0.0
    %5808 = vmatpush1.msra.mxu0 0.0
    %5809 = vmatprep.subr.mxu0 0.0
    %5810 = vmatpush1.msra.mxu0 0.0
    %5811 = vmatprep.subr.mxu0 0.0
    %5812 = vmatpush1.msra.mxu0 0.0
    %5813 = vmatprep.subr.mxu0 0.0
    %5814 = vmatpush1.msra.mxu0 0.0
    %5815 = vmatprep.subr.mxu0 0.0
    %5816 = vmatpush1.msra.mxu0 0.0
    %5817 = vmatprep.subr.mxu0 0.0
    %5818 = vmatpush1.msra.mxu0 0.0
    %5819 = vmatprep.subr.mxu0 0.0
    %5820 = vmatpush1.msra.mxu0 0.0
    %5821 = vmatprep.subr.mxu0 0.0
    %5822 = vmatpush1.msra.mxu0 0.0
    %5823 = vmatprep.subr.mxu0 0.0
    %5824 = vmatpush1.msra.mxu0 0.0
    %5825 = vmatprep.subr.mxu0 0.0
    %5826 = vmatpush1.msra.mxu0 0.0
    %5827 = vmatprep.subr.mxu0 0.0
    %5828 = vmatpush1.msra.mxu0 0.0
    %5829 = vmatprep.subr.mxu0 0.0
    %5830 = vmatpush1.msra.mxu0 0.0
    %5831 = vmatprep.mubr.f32.mxu0 0.0
    %5832 = vmatmul.mubr.f32.gmra.mrb[0].mxu0 %v5765
    %v5833 = vpop.f32.mrb[0].mxu0
    %v5834 = vadd.f32 %v2227, %v5833
    %v5835 = vpop.f32.mrb[0].mxu0
    %5836 = vdwg.mxu0
    %v5838 = vrot.slane %v5834, 2
    %v5839 = vrot.slane %v5834, 3
    %v5842 = vadd.f32 %v1874, %v5838
    %v5843 = vadd.f32 %v1879, %v5839
    %v5844 = vxor.u32 %v5842, 2147483648
    %v5845 = vxor.u32 %v5843, 2147483648
    %v5846 = vmul.f32 %v5844, 1.442695
    %v5847 = vpow.pop %v5846
    %v5848 = vmul.f32 %v5845, 1.442695
    %v5849 = vpow.pop %v5848
    %v5850 = vadd.f32 %v5847, 1.0
    %v5851 = vadd.f32 %v5849, 1.0
    %v5852 = vrcp.pop %v5850
    %v5853 = vmul.f32 1.0, %v5852
    %v5854 = vrcp.pop %v5851
    %v5855 = vmul.f32 1.0, %v5854
    %5856 = vrot.lane.b32.xlu0 %v5838, 112
    %v5857 = vpop.permute.xlu0 %5856
    %5858 = vrot.lane.b32.xlu0 %v5839, 112
    %v5859 = vpop.permute.xlu0 %5858
    %v5862 = vmul.f32 %v5853, %v5857
    %v5863 = vmul.f32 %v5855, %v5859
    %5866 = vrot.lane.b32.xlu0 %v5862, 16
    %v5867 = vpop.permute.xlu0 %5866
    %5868 = vrot.lane.b32.xlu0 %v5863, 16
    %v5869 = vpop.permute.xlu0 %5868
    %v5872 = vadd.f32 %v1874, %v5867
    %v5873 = vadd.f32 %v1879, %v5869
    %v5874 = vtanh.pop %v5872
    %v5875 = vtanh.pop %v5873
    %v5876 = vsub.f32 1.0, %v5853
    %v5877 = vsub.f32 1.0, %v5855
    %5880 = vrot.lane.b32.xlu0 %v5874, 120
    %v5881 = vpop.permute.xlu0 %5880
    %5882 = vrot.lane.b32.xlu0 %v5875, 120
    %v5883 = vpop.permute.xlu0 %5882
    %v5886 = vmul.f32 %v5876, %v5881
    %v5887 = vmul.f32 %v5877, %v5883
    %v5888 = vrot.slane %v5314, 2
    %v5889 = vrot.slane %v5314, 3
    %5890 = vrot.lane.b32.xlu0 %v5888, 8
    %v5891 = vpop.permute.xlu0 %5890
    %5892 = vrot.lane.b32.xlu0 %v5889, 8
    %v5893 = vpop.permute.xlu0 %5892
    %v5896 = vmul.f32 %v5853, %v5891
    %v5897 = vmul.f32 %v5855, %v5893
    %v5898 = vadd.f32 %v5886, %v5896
    %v5899 = vadd.f32 %v5887, %v5897
    %v5902 = vrot.slane %v5898, 6
    %v5903 = vrot.slane %v5899, 5
    %v5904 = vsel %vm2210, %v5903, %v5902
    %5905 = vrot.lane.b32.xlu0 %v5904, 120
    %v5906 = vpop.permute.xlu0 %5905
    %v5908 = vmul.f32 %v5747, %v5906
    %v5909 = vmul.f32 %v5760, %v5314
    %v5910 = vadd.f32 %v5908, %v5909
    %v5912 = vsel %vm1060, %v5461, 0
    %5914 = vmatprep.subr.mxu0 0.0
    %5915 = vmatpush1.msra.mxu0 %v1966
    %5916 = vmatprep.subr.mxu0 0.0
    %5917 = vmatpush1.msra.mxu0 %v1967
    %5918 = vmatprep.subr.mxu0 0.0
    %5919 = vmatpush1.msra.mxu0 0.0
    %5920 = vmatprep.subr.mxu0 0.0
    %5921 = vmatpush1.msra.mxu0 0.0
    %5922 = vmatprep.subr.mxu0 0.0
    %5923 = vmatpush1.msra.mxu0 0.0
    %5924 = vmatprep.subr.mxu0 0.0
    %5925 = vmatpush1.msra.mxu0 0.0
    %5926 = vmatprep.subr.mxu0 0.0
    %5927 = vmatpush1.msra.mxu0 0.0
    %5928 = vmatprep.subr.mxu0 0.0
    %5929 = vmatpush1.msra.mxu0 0.0
    %5930 = vmatprep.subr.mxu0 0.0
    %5931 = vmatpush1.msra.mxu0 0.0
    %5932 = vmatprep.subr.mxu0 0.0
    %5933 = vmatpush1.msra.mxu0 0.0
    %5934 = vmatprep.subr.mxu0 0.0
    %5935 = vmatpush1.msra.mxu0 0.0
    %5936 = vmatprep.subr.mxu0 0.0
    %5937 = vmatpush1.msra.mxu0 0.0
    %5938 = vmatprep.subr.mxu0 0.0
    %5939 = vmatpush1.msra.mxu0 0.0
    %5940 = vmatprep.subr.mxu0 0.0
    %5941 = vmatpush1.msra.mxu0 0.0
    %5942 = vmatprep.subr.mxu0 0.0
    %5943 = vmatpush1.msra.mxu0 0.0
    %5944 = vmatprep.subr.mxu0 0.0
    %5945 = vmatpush1.msra.mxu0 0.0
    %5946 = vmatprep.subr.mxu0 0.0
    %5947 = vmatpush1.msra.mxu0 0.0
    %5948 = vmatprep.subr.mxu0 0.0
    %5949 = vmatpush1.msra.mxu0 0.0
    %5950 = vmatprep.subr.mxu0 0.0
    %5951 = vmatpush1.msra.mxu0 0.0
    %5952 = vmatprep.subr.mxu0 0.0
    %5953 = vmatpush1.msra.mxu0 0.0
    %5954 = vmatprep.subr.mxu0 0.0
    %5955 = vmatpush1.msra.mxu0 0.0
    %5956 = vmatprep.subr.mxu0 0.0
    %5957 = vmatpush1.msra.mxu0 0.0
    %5958 = vmatprep.subr.mxu0 0.0
    %5959 = vmatpush1.msra.mxu0 0.0
    %5960 = vmatprep.subr.mxu0 0.0
    %5961 = vmatpush1.msra.mxu0 0.0
    %5962 = vmatprep.subr.mxu0 0.0
    %5963 = vmatpush1.msra.mxu0 0.0
    %5964 = vmatprep.subr.mxu0 0.0
    %5965 = vmatpush1.msra.mxu0 0.0
    %5966 = vmatprep.subr.mxu0 0.0
    %5967 = vmatpush1.msra.mxu0 0.0
    %5968 = vmatprep.subr.mxu0 0.0
    %5969 = vmatpush1.msra.mxu0 0.0
    %5970 = vmatprep.subr.mxu0 0.0
    %5971 = vmatpush1.msra.mxu0 0.0
    %5972 = vmatprep.subr.mxu0 0.0
    %5973 = vmatpush1.msra.mxu0 0.0
    %5974 = vmatprep.subr.mxu0 0.0
    %5975 = vmatpush1.msra.mxu0 0.0
    %5976 = vmatprep.subr.mxu0 0.0
    %5977 = vmatpush1.msra.mxu0 0.0
    %5978 = vmatprep.mubr.f32.mxu0 0.0
    %5979 = vmatmul.mubr.f32.gmra.mrb[0].mxu0 %v5912
    %v5980 = vpop.f32.mrb[0].mxu0
    %v5981 = vadd.f32 %v2366, %v5980
    %v5982 = vpop.f32.mrb[0].mxu0
    %5983 = vdwg.mxu0
    %v5985 = vrot.slane %v5981, 2
    %v5986 = vrot.slane %v5981, 3
    %v5989 = vadd.f32 %v1958, %v5985
    %v5990 = vadd.f32 %v1963, %v5986
    %v5991 = vxor.u32 %v5989, 2147483648
    %v5992 = vxor.u32 %v5990, 2147483648
    %v5993 = vmul.f32 %v5991, 1.442695
    %v5994 = vpow.pop %v5993
    %v5995 = vmul.f32 %v5992, 1.442695
    %v5996 = vpow.pop %v5995
    %v5997 = vadd.f32 %v5994, 1.0
    %v5998 = vadd.f32 %v5996, 1.0
    %v5999 = vrcp.pop %v5997
    %v6000 = vmul.f32 1.0, %v5999
    %v6001 = vrcp.pop %v5998
    %v6002 = vmul.f32 1.0, %v6001
    %6003 = vrot.lane.b32.xlu0 %v5985, 96
    %v6004 = vpop.permute.xlu0 %6003
    %6005 = vrot.lane.b32.xlu0 %v5986, 96
    %v6006 = vpop.permute.xlu0 %6005
    %v6009 = vmul.f32 %v6000, %v6004
    %v6010 = vmul.f32 %v6002, %v6006
    %6013 = vrot.lane.b32.xlu0 %v6009, 32
    %v6014 = vpop.permute.xlu0 %6013
    %6015 = vrot.lane.b32.xlu0 %v6010, 32
    %v6016 = vpop.permute.xlu0 %6015
    %v6019 = vadd.f32 %v1958, %v6014
    %v6020 = vadd.f32 %v1963, %v6016
    %v6021 = vtanh.pop %v6019
    %v6022 = vtanh.pop %v6020
    %v6023 = vsub.f32 1.0, %v6000
    %v6024 = vsub.f32 1.0, %v6002
    %6027 = vrot.lane.b32.xlu0 %v6021, 112
    %v6028 = vpop.permute.xlu0 %6027
    %6029 = vrot.lane.b32.xlu0 %v6022, 112
    %v6030 = vpop.permute.xlu0 %6029
    %v6033 = vmul.f32 %v6023, %v6028
    %v6034 = vmul.f32 %v6024, %v6030
    %v6035 = vrot.slane %v5461, 2
    %v6036 = vrot.slane %v5461, 3
    %6037 = vrot.lane.b32.xlu0 %v6035, 16
    %v6038 = vpop.permute.xlu0 %6037
    %6039 = vrot.lane.b32.xlu0 %v6036, 16
    %v6040 = vpop.permute.xlu0 %6039
    %v6043 = vmul.f32 %v6000, %v6038
    %v6044 = vmul.f32 %v6002, %v6040
    %v6045 = vadd.f32 %v6033, %v6043
    %v6046 = vadd.f32 %v6034, %v6044
    %v6049 = vrot.slane %v6045, 6
    %v6050 = vrot.slane %v6046, 5
    %v6051 = vsel %vm2210, %v6050, %v6049
    %6052 = vrot.lane.b32.xlu0 %v6051, 112
    %v6053 = vpop.permute.xlu0 %6052
    %v6055 = vmul.f32 %v5747, %v6053
    %v6056 = vmul.f32 %v5760, %v5461
    %v6057 = vadd.f32 %v6055, %v6056
    %v6059 = vsel %vm67, %v5608, 0
    %6061 = vmatprep.subr.mxu0 0.0
    %6062 = vmatpush1.msra.mxu0 %v2063
    %6063 = vmatprep.subr.mxu0 0.0
    %6064 = vmatpush1.msra.mxu0 %v2064
    %6065 = vmatprep.subr.mxu0 0.0
    %6066 = vmatpush1.msra.mxu0 %v2065
    %6067 = vmatprep.subr.mxu0 0.0
    %6068 = vmatpush1.msra.mxu0 %v2066
    %6069 = vmatprep.subr.mxu0 0.0
    %6070 = vmatpush1.msra.mxu0 0.0
    %6071 = vmatprep.subr.mxu0 0.0
    %6072 = vmatpush1.msra.mxu0 0.0
    %6073 = vmatprep.subr.mxu0 0.0
    %6074 = vmatpush1.msra.mxu0 0.0
    %6075 = vmatprep.subr.mxu0 0.0
    %6076 = vmatpush1.msra.mxu0 0.0
    %6077 = vmatprep.subr.mxu0 0.0
    %6078 = vmatpush1.msra.mxu0 0.0
    %6079 = vmatprep.subr.mxu0 0.0
    %6080 = vmatpush1.msra.mxu0 0.0
    %6081 = vmatprep.subr.mxu0 0.0
    %6082 = vmatpush1.msra.mxu0 0.0
    %6083 = vmatprep.subr.mxu0 0.0
    %6084 = vmatpush1.msra.mxu0 0.0
    %6085 = vmatprep.subr.mxu0 0.0
    %6086 = vmatpush1.msra.mxu0 0.0
    %6087 = vmatprep.subr.mxu0 0.0
    %6088 = vmatpush1.msra.mxu0 0.0
    %6089 = vmatprep.subr.mxu0 0.0
    %6090 = vmatpush1.msra.mxu0 0.0
    %6091 = vmatprep.subr.mxu0 0.0
    %6092 = vmatpush1.msra.mxu0 0.0
    %6093 = vmatprep.subr.mxu0 0.0
    %6094 = vmatpush1.msra.mxu0 0.0
    %6095 = vmatprep.subr.mxu0 0.0
    %6096 = vmatpush1.msra.mxu0 0.0
    %6097 = vmatprep.subr.mxu0 0.0
    %6098 = vmatpush1.msra.mxu0 0.0
    %6099 = vmatprep.subr.mxu0 0.0
    %6100 = vmatpush1.msra.mxu0 0.0
    %6101 = vmatprep.subr.mxu0 0.0
    %6102 = vmatpush1.msra.mxu0 0.0
    %6103 = vmatprep.subr.mxu0 0.0
    %6104 = vmatpush1.msra.mxu0 0.0
    %6105 = vmatprep.subr.mxu0 0.0
    %6106 = vmatpush1.msra.mxu0 0.0
    %6107 = vmatprep.subr.mxu0 0.0
    %6108 = vmatpush1.msra.mxu0 0.0
    %6109 = vmatprep.subr.mxu0 0.0
    %6110 = vmatpush1.msra.mxu0 0.0
    %6111 = vmatprep.subr.mxu0 0.0
    %6112 = vmatpush1.msra.mxu0 0.0
    %6113 = vmatprep.subr.mxu0 0.0
    %6114 = vmatpush1.msra.mxu0 0.0
    %6115 = vmatprep.subr.mxu0 0.0
    %6116 = vmatpush1.msra.mxu0 0.0
    %6117 = vmatprep.subr.mxu0 0.0
    %6118 = vmatpush1.msra.mxu0 0.0
    %6119 = vmatprep.subr.mxu0 0.0
    %6120 = vmatpush1.msra.mxu0 0.0
    %6121 = vmatprep.subr.mxu0 0.0
    %6122 = vmatpush1.msra.mxu0 0.0
    %6123 = vmatprep.subr.mxu0 0.0
    %6124 = vmatpush1.msra.mxu0 0.0
    %6125 = vmatprep.mubr.f32.mxu0 0.0
    %6126 = vmatmul.mubr.f32.gmra.mrb[0].mxu0 %v6059
    %v6127 = vpop.f32.mrb[0].mxu0
    %v6128 = vadd.f32 %v2505, %v6127
    %v6129 = vpop.f32.mrb[0].mxu0
    %6130 = vdwg.mxu0
    %v6132 = vrot.slane %v6128, 2
    %v6133 = vrot.slane %v6128, 3
    %v6136 = vadd.f32 %v2055, %v6132
    %v6137 = vadd.f32 %v2060, %v6133
    %v6138 = vxor.u32 %v6136, 2147483648
    %v6139 = vxor.u32 %v6137, 2147483648
    %v6140 = vmul.f32 %v6138, 1.442695
    %v6141 = vpow.pop %v6140
    %v6142 = vmul.f32 %v6139, 1.442695
    %v6143 = vpow.pop %v6142
    %v6144 = vadd.f32 %v6141, 1.0
    %v6145 = vadd.f32 %v6143, 1.0
    %v6146 = vrcp.pop %v6144
    %v6147 = vmul.f32 1.0, %v6146
    %v6148 = vrcp.pop %v6145
    %v6149 = vmul.f32 1.0, %v6148
    %6150 = vrot.lane.b32.xlu0 %v6132, 64
    %v6151 = vpop.permute.xlu0 %6150
    %6152 = vrot.lane.b32.xlu0 %v6133, 64
    %v6153 = vpop.permute.xlu0 %6152
    %v6156 = vmul.f32 %v6147, %v6151
    %v6157 = vmul.f32 %v6149, %v6153
    %6160 = vrot.lane.b32.xlu0 %v6156, 64
    %v6161 = vpop.permute.xlu0 %6160
    %6162 = vrot.lane.b32.xlu0 %v6157, 64
    %v6163 = vpop.permute.xlu0 %6162
    %v6166 = vadd.f32 %v2055, %v6161
    %v6167 = vadd.f32 %v2060, %v6163
    %v6168 = vtanh.pop %v6166
    %v6169 = vtanh.pop %v6167
    %v6170 = vsub.f32 1.0, %v6147
    %v6171 = vsub.f32 1.0, %v6149
    %6174 = vrot.lane.b32.xlu0 %v6168, 96
    %v6175 = vpop.permute.xlu0 %6174
    %6176 = vrot.lane.b32.xlu0 %v6169, 96
    %v6177 = vpop.permute.xlu0 %6176
    %v6180 = vmul.f32 %v6170, %v6175
    %v6181 = vmul.f32 %v6171, %v6177
    %v6182 = vrot.slane %v5608, 2
    %v6183 = vrot.slane %v5608, 3
    %6184 = vrot.lane.b32.xlu0 %v6182, 32
    %v6185 = vpop.permute.xlu0 %6184
    %6186 = vrot.lane.b32.xlu0 %v6183, 32
    %v6187 = vpop.permute.xlu0 %6186
    %v6190 = vmul.f32 %v6147, %v6185
    %v6191 = vmul.f32 %v6149, %v6187
    %v6192 = vadd.f32 %v6180, %v6190
    %v6193 = vadd.f32 %v6181, %v6191
    %v6196 = vrot.slane %v6192, 6
    %v6197 = vrot.slane %v6193, 5
    %v6198 = vsel %vm2210, %v6197, %v6196
    %6199 = vrot.lane.b32.xlu0 %v6198, 96
    %v6200 = vpop.permute.xlu0 %6199
    %v6202 = vmul.f32 %v5747, %v6200
    %v6203 = vmul.f32 %v5760, %v5608
    %v6204 = vadd.f32 %v6202, %v6203
    %v6206 = vsel %vm230, %v5763, 0
    %6208 = vmatprep.subr.mxu0 0.0
    %6209 = vmatpush1.msra.mxu0 %v2076
    %6210 = vmatprep.subr.mxu0 0.0
    %6211 = vmatpush1.msra.mxu0 0.0
    %6212 = vmatprep.subr.mxu0 0.0
    %6213 = vmatpush1.msra.mxu0 0.0
    %6214 = vmatprep.subr.mxu0 0.0
    %6215 = vmatpush1.msra.mxu0 0.0
    %6216 = vmatprep.subr.mxu0 0.0
    %6217 = vmatpush1.msra.mxu0 0.0
    %6218 = vmatprep.subr.mxu0 0.0
    %6219 = vmatpush1.msra.mxu0 0.0
    %6220 = vmatprep.subr.mxu0 0.0
    %6221 = vmatpush1.msra.mxu0 0.0
    %6222 = vmatprep.subr.mxu0 0.0
    %6223 = vmatpush1.msra.mxu0 0.0
    %6224 = vmatprep.subr.mxu0 0.0
    %6225 = vmatpush1.msra.mxu0 0.0
    %6226 = vmatprep.subr.mxu0 0.0
    %6227 = vmatpush1.msra.mxu0 0.0
    %6228 = vmatprep.subr.mxu0 0.0
    %6229 = vmatpush1.msra.mxu0 0.0
    %6230 = vmatprep.subr.mxu0 0.0
    %6231 = vmatpush1.msra.mxu0 0.0
    %6232 = vmatprep.subr.mxu0 0.0
    %6233 = vmatpush1.msra.mxu0 0.0
    %6234 = vmatprep.subr.mxu0 0.0
    %6235 = vmatpush1.msra.mxu0 0.0
    %6236 = vmatprep.subr.mxu0 0.0
    %6237 = vmatpush1.msra.mxu0 0.0
    %6238 = vmatprep.subr.mxu0 0.0
    %6239 = vmatpush1.msra.mxu0 0.0
    %6240 = vmatprep.subr.mxu0 0.0
    %6241 = vmatpush1.msra.mxu0 0.0
    %6242 = vmatprep.subr.mxu0 0.0
    %6243 = vmatpush1.msra.mxu0 0.0
    %6244 = vmatprep.subr.mxu0 0.0
    %6245 = vmatpush1.msra.mxu0 0.0
    %6246 = vmatprep.subr.mxu0 0.0
    %6247 = vmatpush1.msra.mxu0 0.0
    %6248 = vmatprep.subr.mxu0 0.0
    %6249 = vmatpush1.msra.mxu0 0.0
    %6250 = vmatprep.subr.mxu0 0.0
    %6251 = vmatpush1.msra.mxu0 0.0
    %6252 = vmatprep.subr.mxu0 0.0
    %6253 = vmatpush1.msra.mxu0 0.0
    %6254 = vmatprep.subr.mxu0 0.0
    %6255 = vmatpush1.msra.mxu0 0.0
    %6256 = vmatprep.subr.mxu0 0.0
    %6257 = vmatpush1.msra.mxu0 0.0
    %6258 = vmatprep.subr.mxu0 0.0
    %6259 = vmatpush1.msra.mxu0 0.0
    %6260 = vmatprep.subr.mxu0 0.0
    %6261 = vmatpush1.msra.mxu0 0.0
    %6262 = vmatprep.subr.mxu0 0.0
    %6263 = vmatpush1.msra.mxu0 0.0
    %6264 = vmatprep.subr.mxu0 0.0
    %6265 = vmatpush1.msra.mxu0 0.0
    %6266 = vmatprep.subr.mxu0 0.0
    %6267 = vmatpush1.msra.mxu0 0.0
    %6268 = vmatprep.subr.mxu0 0.0
    %6269 = vmatpush1.msra.mxu0 0.0
    %6270 = vmatprep.subr.mxu0 0.0
    %6271 = vmatpush1.msra.mxu0 0.0
    %6272 = vmatprep.mubr.f32.mxu0 0.0
    %6273 = vmatmul.mubr.f32.gmra.mrb[0].mxu0 %v6206
    %v6274 = vpop.f32.mrb[0].mxu0
    %v6275 = vadd.f32 %v2071, %v6274
    %v6276 = vpop.f32.mrb[0].mxu0
    %6277 = vdwg.mxu0
    %v6279 = vrot.slane %v6275, 1
    %v6280 = vrot.slane %v6275, 2
    %v6283 = vadd.f32 %v1791, %v6279
    %v6284 = vadd.f32 %v1796, %v6280
    %v6285 = vxor.u32 %v6283, 2147483648
    %v6286 = vxor.u32 %v6284, 2147483648
    %v6287 = vmul.f32 %v6285, 1.442695
    %v6288 = vpow.pop %v6287
    %v6289 = vmul.f32 %v6286, 1.442695
    %v6290 = vpow.pop %v6289
    %v6291 = vadd.f32 %v6288, 1.0
    %v6292 = vadd.f32 %v6290, 1.0
    %v6293 = vrcp.pop %v6291
    %v6294 = vmul.f32 1.0, %v6293
    %v6295 = vrcp.pop %v6292
    %v6296 = vmul.f32 1.0, %v6295
    %6297 = vrot.lane.b32.xlu0 %v6279, 120
    %v6298 = vpop.permute.xlu0 %6297
    %6299 = vrot.lane.b32.xlu0 %v6280, 120
    %v6300 = vpop.permute.xlu0 %6299
    %v6303 = vmul.f32 %v6294, %v6298
    %v6304 = vmul.f32 %v6296, %v6300
    %6307 = vrot.lane.b32.xlu0 %v6303, 8
    %v6308 = vpop.permute.xlu0 %6307
    %6309 = vrot.lane.b32.xlu0 %v6304, 8
    %v6310 = vpop.permute.xlu0 %6309
    %v6313 = vadd.f32 %v1791, %v6308
    %v6314 = vadd.f32 %v1796, %v6310
    %v6315 = vtanh.pop %v6313
    %v6316 = vtanh.pop %v6314
    %v6317 = vsub.f32 1.0, %v6294
    %v6318 = vsub.f32 1.0, %v6296
    %6321 = vrot.lane.b32.xlu0 %v6315, 124
    %v6322 = vpop.permute.xlu0 %6321
    %6323 = vrot.lane.b32.xlu0 %v6316, 124
    %v6324 = vpop.permute.xlu0 %6323
    %v6327 = vmul.f32 %v6317, %v6322
    %v6328 = vmul.f32 %v6318, %v6324
    %v6329 = vrot.slane %v5763, 1
    %v6330 = vrot.slane %v5763, 2
    %6331 = vrot.lane.b32.xlu0 %v6329, 4
    %v6332 = vpop.permute.xlu0 %6331
    %6333 = vrot.lane.b32.xlu0 %v6330, 4
    %v6334 = vpop.permute.xlu0 %6333
    %v6337 = vmul.f32 %v6294, %v6332
    %v6338 = vmul.f32 %v6296, %v6334
    %v6339 = vadd.f32 %v6327, %v6337
    %v6340 = vadd.f32 %v6328, %v6338
    %6341 = vset.pattern.permute.xlu0 7
    %6342 = vperm.xlu0 %6341, %v35
    %v6343 = vpop.permute.xlu0 %6342
    %v6347 = vrot.slane %v6339, 7
    %v6348 = vrot.slane %v6340, 6
    %v6349 = vsel %vm2210, %v6348, %v6347
    %6350 = vrot.lane.b32.xlu0 %v6349, 124
    %v6351 = vpop.permute.xlu0 %6350
    %v6353 = vmul.f32 %v6343, %v6351
    %6354 = vset.pattern.permute.xlu0 7
    %6355 = vperm.xlu0 %6354, %v2216
    %v6356 = vpop.permute.xlu0 %6355
    %v6358 = vmul.f32 %v6356, %v5763
    %v6359 = vadd.f32 %v6353, %v6358
    %v6361 = vsel %vm648, %v5910, 0
    %6363 = vmatprep.subr.mxu0 0.0
    %6364 = vmatpush1.msra.mxu0 %v1882
    %6365 = vmatprep.subr.mxu0 0.0
    %6366 = vmatpush1.msra.mxu0 0.0
    %6367 = vmatprep.subr.mxu0 0.0
    %6368 = vmatpush1.msra.mxu0 0.0
    %6369 = vmatprep.subr.mxu0 0.0
    %6370 = vmatpush1.msra.mxu0 0.0
    %6371 = vmatprep.subr.mxu0 0.0
    %6372 = vmatpush1.msra.mxu0 0.0
    %6373 = vmatprep.subr.mxu0 0.0
    %6374 = vmatpush1.msra.mxu0 0.0
    %6375 = vmatprep.subr.mxu0 0.0
    %6376 = vmatpush1.msra.mxu0 0.0
    %6377 = vmatprep.subr.mxu0 0.0
    %6378 = vmatpush1.msra.mxu0 0.0
    %6379 = vmatprep.subr.mxu0 0.0
    %6380 = vmatpush1.msra.mxu0 0.0
    %6381 = vmatprep.subr.mxu0 0.0
    %6382 = vmatpush1.msra.mxu0 0.0
    %6383 = vmatprep.subr.mxu0 0.0
    %6384 = vmatpush1.msra.mxu0 0.0
    %6385 = vmatprep.subr.mxu0 0.0
    %6386 = vmatpush1.msra.mxu0 0.0
    %6387 = vmatprep.subr.mxu0 0.0
    %6388 = vmatpush1.msra.mxu0 0.0
    %6389 = vmatprep.subr.mxu0 0.0
    %6390 = vmatpush1.msra.mxu0 0.0
    %6391 = vmatprep.subr.mxu0 0.0
    %6392 = vmatpush1.msra.mxu0 0.0
    %6393 = vmatprep.subr.mxu0 0.0
    %6394 = vmatpush1.msra.mxu0 0.0
    %6395 = vmatprep.subr.mxu0 0.0
    %6396 = vmatpush1.msra.mxu0 0.0
    %6397 = vmatprep.subr.mxu0 0.0
    %6398 = vmatpush1.msra.mxu0 0.0
    %6399 = vmatprep.subr.mxu0 0.0
    %6400 = vmatpush1.msra.mxu0 0.0
    %6401 = vmatprep.subr.mxu0 0.0
    %6402 = vmatpush1.msra.mxu0 0.0
    %6403 = vmatprep.subr.mxu0 0.0
    %6404 = vmatpush1.msra.mxu0 0.0
    %6405 = vmatprep.subr.mxu0 0.0
    %6406 = vmatpush1.msra.mxu0 0.0
    %6407 = vmatprep.subr.mxu0 0.0
    %6408 = vmatpush1.msra.mxu0 0.0
    %6409 = vmatprep.subr.mxu0 0.0
    %6410 = vmatpush1.msra.mxu0 0.0
    %6411 = vmatprep.subr.mxu0 0.0
    %6412 = vmatpush1.msra.mxu0 0.0
    %6413 = vmatprep.subr.mxu0 0.0
    %6414 = vmatpush1.msra.mxu0 0.0
    %6415 = vmatprep.subr.mxu0 0.0
    %6416 = vmatpush1.msra.mxu0 0.0
    %6417 = vmatprep.subr.mxu0 0.0
    %6418 = vmatpush1.msra.mxu0 0.0
    %6419 = vmatprep.subr.mxu0 0.0
    %6420 = vmatpush1.msra.mxu0 0.0
    %6421 = vmatprep.subr.mxu0 0.0
    %6422 = vmatpush1.msra.mxu0 0.0
    %6423 = vmatprep.subr.mxu0 0.0
    %6424 = vmatpush1.msra.mxu0 0.0
    %6425 = vmatprep.subr.mxu0 0.0
    %6426 = vmatpush1.msra.mxu0 0.0
    %6427 = vmatprep.mubr.f32.mxu0 0.0
    %6428 = vmatmul.mubr.f32.gmra.mrb[0].mxu0 %v6361
    %v6429 = vpop.f32.mrb[0].mxu0
    %v6430 = vadd.f32 %v2227, %v6429
    %v6431 = vpop.f32.mrb[0].mxu0
    %6432 = vdwg.mxu0
    %v6434 = vrot.slane %v6430, 1
    %v6435 = vrot.slane %v6430, 2
    %v6438 = vadd.f32 %v1874, %v6434
    %v6439 = vadd.f32 %v1879, %v6435
    %v6440 = vxor.u32 %v6438, 2147483648
    %v6441 = vxor.u32 %v6439, 2147483648
    %v6442 = vmul.f32 %v6440, 1.442695
    %v6443 = vpow.pop %v6442
    %v6444 = vmul.f32 %v6441, 1.442695
    %v6445 = vpow.pop %v6444
    %v6446 = vadd.f32 %v6443, 1.0
    %v6447 = vadd.f32 %v6445, 1.0
    %v6448 = vrcp.pop %v6446
    %v6449 = vmul.f32 1.0, %v6448
    %v6450 = vrcp.pop %v6447
    %v6451 = vmul.f32 1.0, %v6450
    %6452 = vrot.lane.b32.xlu0 %v6434, 112
    %v6453 = vpop.permute.xlu0 %6452
    %6454 = vrot.lane.b32.xlu0 %v6435, 112
    %v6455 = vpop.permute.xlu0 %6454
    %v6458 = vmul.f32 %v6449, %v6453
    %v6459 = vmul.f32 %v6451, %v6455
    %6462 = vrot.lane.b32.xlu0 %v6458, 16
    %v6463 = vpop.permute.xlu0 %6462
    %6464 = vrot.lane.b32.xlu0 %v6459, 16
    %v6465 = vpop.permute.xlu0 %6464
    %v6468 = vadd.f32 %v1874, %v6463
    %v6469 = vadd.f32 %v1879, %v6465
    %v6470 = vtanh.pop %v6468
    %v6471 = vtanh.pop %v6469
    %v6472 = vsub.f32 1.0, %v6449
    %v6473 = vsub.f32 1.0, %v6451
    %6476 = vrot.lane.b32.xlu0 %v6470, 120
    %v6477 = vpop.permute.xlu0 %6476
    %6478 = vrot.lane.b32.xlu0 %v6471, 120
    %v6479 = vpop.permute.xlu0 %6478
    %v6482 = vmul.f32 %v6472, %v6477
    %v6483 = vmul.f32 %v6473, %v6479
    %v6484 = vrot.slane %v5910, 1
    %v6485 = vrot.slane %v5910, 2
    %6486 = vrot.lane.b32.xlu0 %v6484, 8
    %v6487 = vpop.permute.xlu0 %6486
    %6488 = vrot.lane.b32.xlu0 %v6485, 8
    %v6489 = vpop.permute.xlu0 %6488
    %v6492 = vmul.f32 %v6449, %v6487
    %v6493 = vmul.f32 %v6451, %v6489
    %v6494 = vadd.f32 %v6482, %v6492
    %v6495 = vadd.f32 %v6483, %v6493
    %v6498 = vrot.slane %v6494, 7
    %v6499 = vrot.slane %v6495, 6
    %v6500 = vsel %vm2210, %v6499, %v6498
    %6501 = vrot.lane.b32.xlu0 %v6500, 120
    %v6502 = vpop.permute.xlu0 %6501
    %v6504 = vmul.f32 %v6343, %v6502
    %v6505 = vmul.f32 %v6356, %v5910
    %v6506 = vadd.f32 %v6504, %v6505
    %v6508 = vsel %vm1060, %v6057, 0
    %6510 = vmatprep.subr.mxu0 0.0
    %6511 = vmatpush1.msra.mxu0 %v1966
    %6512 = vmatprep.subr.mxu0 0.0
    %6513 = vmatpush1.msra.mxu0 %v1967
    %6514 = vmatprep.subr.mxu0 0.0
    %6515 = vmatpush1.msra.mxu0 0.0
    %6516 = vmatprep.subr.mxu0 0.0
    %6517 = vmatpush1.msra.mxu0 0.0
    %6518 = vmatprep.subr.mxu0 0.0
    %6519 = vmatpush1.msra.mxu0 0.0
    %6520 = vmatprep.subr.mxu0 0.0
    %6521 = vmatpush1.msra.mxu0 0.0
    %6522 = vmatprep.subr.mxu0 0.0
    %6523 = vmatpush1.msra.mxu0 0.0
    %6524 = vmatprep.subr.mxu0 0.0
    %6525 = vmatpush1.msra.mxu0 0.0
    %6526 = vmatprep.subr.mxu0 0.0
    %6527 = vmatpush1.msra.mxu0 0.0
    %6528 = vmatprep.subr.mxu0 0.0
    %6529 = vmatpush1.msra.mxu0 0.0
    %6530 = vmatprep.subr.mxu0 0.0
    %6531 = vmatpush1.msra.mxu0 0.0
    %6532 = vmatprep.subr.mxu0 0.0
    %6533 = vmatpush1.msra.mxu0 0.0
    %6534 = vmatprep.subr.mxu0 0.0
    %6535 = vmatpush1.msra.mxu0 0.0
    %6536 = vmatprep.subr.mxu0 0.0
    %6537 = vmatpush1.msra.mxu0 0.0
    %6538 = vmatprep.subr.mxu0 0.0
    %6539 = vmatpush1.msra.mxu0 0.0
    %6540 = vmatprep.subr.mxu0 0.0
    %6541 = vmatpush1.msra.mxu0 0.0
    %6542 = vmatprep.subr.mxu0 0.0
    %6543 = vmatpush1.msra.mxu0 0.0
    %6544 = vmatprep.subr.mxu0 0.0
    %6545 = vmatpush1.msra.mxu0 0.0
    %6546 = vmatprep.subr.mxu0 0.0
    %6547 = vmatpush1.msra.mxu0 0.0
    %6548 = vmatprep.subr.mxu0 0.0
    %6549 = vmatpush1.msra.mxu0 0.0
    %6550 = vmatprep.subr.mxu0 0.0
    %6551 = vmatpush1.msra.mxu0 0.0
    %6552 = vmatprep.subr.mxu0 0.0
    %6553 = vmatpush1.msra.mxu0 0.0
    %6554 = vmatprep.subr.mxu0 0.0
    %6555 = vmatpush1.msra.mxu0 0.0
    %6556 = vmatprep.subr.mxu0 0.0
    %6557 = vmatpush1.msra.mxu0 0.0
    %6558 = vmatprep.subr.mxu0 0.0
    %6559 = vmatpush1.msra.mxu0 0.0
    %6560 = vmatprep.subr.mxu0 0.0
    %6561 = vmatpush1.msra.mxu0 0.0
    %6562 = vmatprep.subr.mxu0 0.0
    %6563 = vmatpush1.msra.mxu0 0.0
    %6564 = vmatprep.subr.mxu0 0.0
    %6565 = vmatpush1.msra.mxu0 0.0
    %6566 = vmatprep.subr.mxu0 0.0
    %6567 = vmatpush1.msra.mxu0 0.0
    %6568 = vmatprep.subr.mxu0 0.0
    %6569 = vmatpush1.msra.mxu0 0.0
    %6570 = vmatprep.subr.mxu0 0.0
    %6571 = vmatpush1.msra.mxu0 0.0
    %6572 = vmatprep.subr.mxu0 0.0
    %6573 = vmatpush1.msra.mxu0 0.0
    %6574 = vmatprep.mubr.f32.mxu0 0.0
    %6575 = vmatmul.mubr.f32.gmra.mrb[0].mxu0 %v6508
    %v6576 = vpop.f32.mrb[0].mxu0
    %v6577 = vadd.f32 %v2366, %v6576
    %v6578 = vpop.f32.mrb[0].mxu0
    %6579 = vdwg.mxu0
    %v6581 = vrot.slane %v6577, 1
    %v6582 = vrot.slane %v6577, 2
    %v6585 = vadd.f32 %v1958, %v6581
    %v6586 = vadd.f32 %v1963, %v6582
    %v6587 = vxor.u32 %v6585, 2147483648
    %v6588 = vxor.u32 %v6586, 2147483648
    %v6589 = vmul.f32 %v6587, 1.442695
    %v6590 = vpow.pop %v6589
    %v6591 = vmul.f32 %v6588, 1.442695
    %v6592 = vpow.pop %v6591
    %v6593 = vadd.f32 %v6590, 1.0
    %v6594 = vadd.f32 %v6592, 1.0
    %v6595 = vrcp.pop %v6593
    %v6596 = vmul.f32 1.0, %v6595
    %v6597 = vrcp.pop %v6594
    %v6598 = vmul.f32 1.0, %v6597
    %6599 = vrot.lane.b32.xlu0 %v6581, 96
    %v6600 = vpop.permute.xlu0 %6599
    %6601 = vrot.lane.b32.xlu0 %v6582, 96
    %v6602 = vpop.permute.xlu0 %6601
    %v6605 = vmul.f32 %v6596, %v6600
    %v6606 = vmul.f32 %v6598, %v6602
    %6609 = vrot.lane.b32.xlu0 %v6605, 32
    %v6610 = vpop.permute.xlu0 %6609
    %6611 = vrot.lane.b32.xlu0 %v6606, 32
    %v6612 = vpop.permute.xlu0 %6611
    %v6615 = vadd.f32 %v1958, %v6610
    %v6616 = vadd.f32 %v1963, %v6612
    %v6617 = vtanh.pop %v6615
    %v6618 = vtanh.pop %v6616
    %v6619 = vsub.f32 1.0, %v6596
    %v6620 = vsub.f32 1.0, %v6598
    %6623 = vrot.lane.b32.xlu0 %v6617, 112
    %v6624 = vpop.permute.xlu0 %6623
    %6625 = vrot.lane.b32.xlu0 %v6618, 112
    %v6626 = vpop.permute.xlu0 %6625
    %v6629 = vmul.f32 %v6619, %v6624
    %v6630 = vmul.f32 %v6620, %v6626
    %v6631 = vrot.slane %v6057, 1
    %v6632 = vrot.slane %v6057, 2
    %6633 = vrot.lane.b32.xlu0 %v6631, 16
    %v6634 = vpop.permute.xlu0 %6633
    %6635 = vrot.lane.b32.xlu0 %v6632, 16
    %v6636 = vpop.permute.xlu0 %6635
    %v6639 = vmul.f32 %v6596, %v6634
    %v6640 = vmul.f32 %v6598, %v6636
    %v6641 = vadd.f32 %v6629, %v6639
    %v6642 = vadd.f32 %v6630, %v6640
    %v6645 = vrot.slane %v6641, 7
    %v6646 = vrot.slane %v6642, 6
    %v6647 = vsel %vm2210, %v6646, %v6645
    %6648 = vrot.lane.b32.xlu0 %v6647, 112
    %v6649 = vpop.permute.xlu0 %6648
    %v6651 = vmul.f32 %v6343, %v6649
    %v6652 = vmul.f32 %v6356, %v6057
    %v6653 = vadd.f32 %v6651, %v6652
    %v6655 = vsel %vm67, %v6204, 0
    %6657 = vmatprep.subr.mxu0 0.0
    %6658 = vmatpush1.msra.mxu0 %v2063
    %6659 = vmatprep.subr.mxu0 0.0
    %6660 = vmatpush1.msra.mxu0 %v2064
    %6661 = vmatprep.subr.mxu0 0.0
    %6662 = vmatpush1.msra.mxu0 %v2065
    %6663 = vmatprep.subr.mxu0 0.0
    %6664 = vmatpush1.msra.mxu0 %v2066
    %6665 = vmatprep.subr.mxu0 0.0
    %6666 = vmatpush1.msra.mxu0 0.0
    %6667 = vmatprep.subr.mxu0 0.0
    %6668 = vmatpush1.msra.mxu0 0.0
    %6669 = vmatprep.subr.mxu0 0.0
    %6670 = vmatpush1.msra.mxu0 0.0
    %6671 = vmatprep.subr.mxu0 0.0
    %6672 = vmatpush1.msra.mxu0 0.0
    %6673 = vmatprep.subr.mxu0 0.0
    %6674 = vmatpush1.msra.mxu0 0.0
    %6675 = vmatprep.subr.mxu0 0.0
    %6676 = vmatpush1.msra.mxu0 0.0
    %6677 = vmatprep.subr.mxu0 0.0
    %6678 = vmatpush1.msra.mxu0 0.0
    %6679 = vmatprep.subr.mxu0 0.0
    %6680 = vmatpush1.msra.mxu0 0.0
    %6681 = vmatprep.subr.mxu0 0.0
    %6682 = vmatpush1.msra.mxu0 0.0
    %6683 = vmatprep.subr.mxu0 0.0
    %6684 = vmatpush1.msra.mxu0 0.0
    %6685 = vmatprep.subr.mxu0 0.0
    %6686 = vmatpush1.msra.mxu0 0.0
    %6687 = vmatprep.subr.mxu0 0.0
    %6688 = vmatpush1.msra.mxu0 0.0
    %6689 = vmatprep.subr.mxu0 0.0
    %6690 = vmatpush1.msra.mxu0 0.0
    %6691 = vmatprep.subr.mxu0 0.0
    %6692 = vmatpush1.msra.mxu0 0.0
    %6693 = vmatprep.subr.mxu0 0.0
    %6694 = vmatpush1.msra.mxu0 0.0
    %6695 = vmatprep.subr.mxu0 0.0
    %6696 = vmatpush1.msra.mxu0 0.0
    %6697 = vmatprep.subr.mxu0 0.0
    %6698 = vmatpush1.msra.mxu0 0.0
    %6699 = vmatprep.subr.mxu0 0.0
    %6700 = vmatpush1.msra.mxu0 0.0
    %6701 = vmatprep.subr.mxu0 0.0
    %6702 = vmatpush1.msra.mxu0 0.0
    %6703 = vmatprep.subr.mxu0 0.0
    %6704 = vmatpush1.msra.mxu0 0.0
    %6705 = vmatprep.subr.mxu0 0.0
    %6706 = vmatpush1.msra.mxu0 0.0
    %6707 = vmatprep.subr.mxu0 0.0
    %6708 = vmatpush1.msra.mxu0 0.0
    %6709 = vmatprep.subr.mxu0 0.0
    %6710 = vmatpush1.msra.mxu0 0.0
    %6711 = vmatprep.subr.mxu0 0.0
    %6712 = vmatpush1.msra.mxu0 0.0
    %6713 = vmatprep.subr.mxu0 0.0
    %6714 = vmatpush1.msra.mxu0 0.0
    %6715 = vmatprep.subr.mxu0 0.0
    %6716 = vmatpush1.msra.mxu0 0.0
    %6717 = vmatprep.subr.mxu0 0.0
    %6718 = vmatpush1.msra.mxu0 0.0
    %6719 = vmatprep.subr.mxu0 0.0
    %6720 = vmatpush1.msra.mxu0 0.0
    %6721 = vmatprep.mubr.f32.mxu0 0.0
    %6722 = vmatmul.mubr.f32.gmra.mrb[0].mxu0 %v6655
    %v6723 = vpop.f32.mrb[0].mxu0
    %v6724 = vadd.f32 %v2505, %v6723
    %v6725 = vpop.f32.mrb[0].mxu0
    %6726 = vdwg.mxu0
    %v6728 = vrot.slane %v6724, 1
    %v6729 = vrot.slane %v6724, 2
    %v6732 = vadd.f32 %v2055, %v6728
    %v6733 = vadd.f32 %v2060, %v6729
    %v6734 = vxor.u32 %v6732, 2147483648
    %v6735 = vxor.u32 %v6733, 2147483648
    %v6736 = vmul.f32 %v6734, 1.442695
    %v6737 = vpow.pop %v6736
    %v6738 = vmul.f32 %v6735, 1.442695
    %v6739 = vpow.pop %v6738
    %v6740 = vadd.f32 %v6737, 1.0
    %v6741 = vadd.f32 %v6739, 1.0
    %v6742 = vrcp.pop %v6740
    %v6743 = vmul.f32 1.0, %v6742
    %v6744 = vrcp.pop %v6741
    %v6745 = vmul.f32 1.0, %v6744
    %6746 = vrot.lane.b32.xlu0 %v6728, 64
    %v6747 = vpop.permute.xlu0 %6746
    %6748 = vrot.lane.b32.xlu0 %v6729, 64
    %v6749 = vpop.permute.xlu0 %6748
    %v6752 = vmul.f32 %v6743, %v6747
    %v6753 = vmul.f32 %v6745, %v6749
    %6756 = vrot.lane.b32.xlu0 %v6752, 64
    %v6757 = vpop.permute.xlu0 %6756
    %6758 = vrot.lane.b32.xlu0 %v6753, 64
    %v6759 = vpop.permute.xlu0 %6758
    %v6762 = vadd.f32 %v2055, %v6757
    %v6763 = vadd.f32 %v2060, %v6759
    %v6764 = vtanh.pop %v6762
    %v6765 = vtanh.pop %v6763
    %v6766 = vsub.f32 1.0, %v6743
    %v6767 = vsub.f32 1.0, %v6745
    %6770 = vrot.lane.b32.xlu0 %v6764, 96
    %v6771 = vpop.permute.xlu0 %6770
    %6772 = vrot.lane.b32.xlu0 %v6765, 96
    %v6773 = vpop.permute.xlu0 %6772
    %v6776 = vmul.f32 %v6766, %v6771
    %v6777 = vmul.f32 %v6767, %v6773
    %v6778 = vrot.slane %v6204, 1
    %v6779 = vrot.slane %v6204, 2
    %6780 = vrot.lane.b32.xlu0 %v6778, 32
    %v6781 = vpop.permute.xlu0 %6780
    %6782 = vrot.lane.b32.xlu0 %v6779, 32
    %v6783 = vpop.permute.xlu0 %6782
    %v6786 = vmul.f32 %v6743, %v6781
    %v6787 = vmul.f32 %v6745, %v6783
    %v6788 = vadd.f32 %v6776, %v6786
    %v6789 = vadd.f32 %v6777, %v6787
    %v6792 = vrot.slane %v6788, 7
    %v6793 = vrot.slane %v6789, 6
    %v6794 = vsel %vm2210, %v6793, %v6792
    %6795 = vrot.lane.b32.xlu0 %v6794, 96
    %v6796 = vpop.permute.xlu0 %6795
    %v6798 = vmul.f32 %v6343, %v6796
    %v6799 = vmul.f32 %v6356, %v6204
    %v6800 = vadd.f32 %v6798, %v6799
    %v6801 = vld [vmem:[#allocation2 + $0x90] sm:$0xf]
    %v6802 = vld [vmem:[#allocation2 + $0x98] sm:$0x1]
    %v6803 = vlaneseq
    %v6804 = vshrl.u32 %v6803, 7
    %v6805 = vsub.s32 0, %v6804
    %v6806 = vrot.slane %v6802, %v6805
    %v6808 = vsel %vm230, %v6359, 0
    %v6811 = vsel %vm235, %v6801, 0
    %6813 = vmatprep.subr.mxu0 0.0
    %6814 = vmatpush1.msra.mxu0 %v6811
    %6815 = vmatprep.subr.mxu0 0.0
    %6816 = vmatpush1.msra.mxu0 0.0
    %6817 = vmatprep.subr.mxu0 0.0
    %6818 = vmatpush1.msra.mxu0 0.0
    %6819 = vmatprep.subr.mxu0 0.0
    %6820 = vmatpush1.msra.mxu0 0.0
    %6821 = vmatprep.subr.mxu0 0.0
    %6822 = vmatpush1.msra.mxu0 0.0
    %6823 = vmatprep.subr.mxu0 0.0
    %6824 = vmatpush1.msra.mxu0 0.0
    %6825 = vmatprep.subr.mxu0 0.0
    %6826 = vmatpush1.msra.mxu0 0.0
    %6827 = vmatprep.subr.mxu0 0.0
    %6828 = vmatpush1.msra.mxu0 0.0
    %6829 = vmatprep.subr.mxu0 0.0
    %6830 = vmatpush1.msra.mxu0 0.0
    %6831 = vmatprep.subr.mxu0 0.0
    %6832 = vmatpush1.msra.mxu0 0.0
    %6833 = vmatprep.subr.mxu0 0.0
    %6834 = vmatpush1.msra.mxu0 0.0
    %6835 = vmatprep.subr.mxu0 0.0
    %6836 = vmatpush1.msra.mxu0 0.0
    %6837 = vmatprep.subr.mxu0 0.0
    %6838 = vmatpush1.msra.mxu0 0.0
    %6839 = vmatprep.subr.mxu0 0.0
    %6840 = vmatpush1.msra.mxu0 0.0
    %6841 = vmatprep.subr.mxu0 0.0
    %6842 = vmatpush1.msra.mxu0 0.0
    %6843 = vmatprep.subr.mxu0 0.0
    %6844 = vmatpush1.msra.mxu0 0.0
    %6845 = vmatprep.subr.mxu0 0.0
    %6846 = vmatpush1.msra.mxu0 0.0
    %6847 = vmatprep.subr.mxu0 0.0
    %6848 = vmatpush1.msra.mxu0 0.0
    %6849 = vmatprep.subr.mxu0 0.0
    %6850 = vmatpush1.msra.mxu0 0.0
    %6851 = vmatprep.subr.mxu0 0.0
    %6852 = vmatpush1.msra.mxu0 0.0
    %6853 = vmatprep.subr.mxu0 0.0
    %6854 = vmatpush1.msra.mxu0 0.0
    %6855 = vmatprep.subr.mxu0 0.0
    %6856 = vmatpush1.msra.mxu0 0.0
    %6857 = vmatprep.subr.mxu0 0.0
    %6858 = vmatpush1.msra.mxu0 0.0
    %6859 = vmatprep.subr.mxu0 0.0
    %6860 = vmatpush1.msra.mxu0 0.0
    %6861 = vmatprep.subr.mxu0 0.0
    %6862 = vmatpush1.msra.mxu0 0.0
    %6863 = vmatprep.subr.mxu0 0.0
    %6864 = vmatpush1.msra.mxu0 0.0
    %6865 = vmatprep.subr.mxu0 0.0
    %6866 = vmatpush1.msra.mxu0 0.0
    %6867 = vmatprep.subr.mxu0 0.0
    %6868 = vmatpush1.msra.mxu0 0.0
    %6869 = vmatprep.subr.mxu0 0.0
    %6870 = vmatpush1.msra.mxu0 0.0
    %6871 = vmatprep.subr.mxu0 0.0
    %6872 = vmatpush1.msra.mxu0 0.0
    %6873 = vmatprep.subr.mxu0 0.0
    %6874 = vmatpush1.msra.mxu0 0.0
    %6875 = vmatprep.subr.mxu0 0.0
    %6876 = vmatpush1.msra.mxu0 0.0
    %6877 = vmatprep.mubr.f32.mxu0 0.0
    %6878 = vmatmul.mubr.f32.gmra.mrb[0].mxu0 %v6808
    %v6879 = vpop.f32.mrb[0].mxu0
    %v6880 = vadd.f32 %v6806, %v6879
    %v6881 = vpop.f32.mrb[0].mxu0
    %6882 = vdwg.mxu0
    %v6883 = vld [vmem:[#allocation2 + $0xa0] sm:$0xf]
    %v6884 = vld [vmem:[#allocation2 + $0xa8] sm:$0x1]
    %v6885 = vlaneseq
    %v6886 = vshrl.u32 %v6885, 7
    %v6887 = vsub.s32 0, %v6886
    %v6888 = vrot.slane %v6884, %v6887
    %v6890 = vsel %vm235, %v6883, 0
    %6892 = vmatprep.subr.mxu0 0.0
    %6893 = vmatpush1.msra.mxu0 %v6890
    %6894 = vmatprep.subr.mxu0 0.0
    %6895 = vmatpush1.msra.mxu0 0.0
    %6896 = vmatprep.subr.mxu0 0.0
    %6897 = vmatpush1.msra.mxu0 0.0
    %6898 = vmatprep.subr.mxu0 0.0
    %6899 = vmatpush1.msra.mxu0 0.0
    %6900 = vmatprep.subr.mxu0 0.0
    %6901 = vmatpush1.msra.mxu0 0.0
    %6902 = vmatprep.subr.mxu0 0.0
    %6903 = vmatpush1.msra.mxu0 0.0
    %6904 = vmatprep.subr.mxu0 0.0
    %6905 = vmatpush1.msra.mxu0 0.0
    %6906 = vmatprep.subr.mxu0 0.0
    %6907 = vmatpush1.msra.mxu0 0.0
    %6908 = vmatprep.subr.mxu0 0.0
    %6909 = vmatpush1.msra.mxu0 0.0
    %6910 = vmatprep.subr.mxu0 0.0
    %6911 = vmatpush1.msra.mxu0 0.0
    %6912 = vmatprep.subr.mxu0 0.0
    %6913 = vmatpush1.msra.mxu0 0.0
    %6914 = vmatprep.subr.mxu0 0.0
    %6915 = vmatpush1.msra.mxu0 0.0
    %6916 = vmatprep.subr.mxu0 0.0
    %6917 = vmatpush1.msra.mxu0 0.0
    %6918 = vmatprep.subr.mxu0 0.0
    %6919 = vmatpush1.msra.mxu0 0.0
    %6920 = vmatprep.subr.mxu0 0.0
    %6921 = vmatpush1.msra.mxu0 0.0
    %6922 = vmatprep.subr.mxu0 0.0
    %6923 = vmatpush1.msra.mxu0 0.0
    %6924 = vmatprep.subr.mxu0 0.0
    %6925 = vmatpush1.msra.mxu0 0.0
    %6926 = vmatprep.subr.mxu0 0.0
    %6927 = vmatpush1.msra.mxu0 0.0
    %6928 = vmatprep.subr.mxu0 0.0
    %6929 = vmatpush1.msra.mxu0 0.0
    %6930 = vmatprep.subr.mxu0 0.0
    %6931 = vmatpush1.msra.mxu0 0.0
    %6932 = vmatprep.subr.mxu0 0.0
    %6933 = vmatpush1.msra.mxu0 0.0
    %6934 = vmatprep.subr.mxu0 0.0
    %6935 = vmatpush1.msra.mxu0 0.0
    %6936 = vmatprep.subr.mxu0 0.0
    %6937 = vmatpush1.msra.mxu0 0.0
    %6938 = vmatprep.subr.mxu0 0.0
    %6939 = vmatpush1.msra.mxu0 0.0
    %6940 = vmatprep.subr.mxu0 0.0
    %6941 = vmatpush1.msra.mxu0 0.0
    %6942 = vmatprep.subr.mxu0 0.0
    %6943 = vmatpush1.msra.mxu0 0.0
    %6944 = vmatprep.subr.mxu0 0.0
    %6945 = vmatpush1.msra.mxu0 0.0
    %6946 = vmatprep.subr.mxu0 0.0
    %6947 = vmatpush1.msra.mxu0 0.0
    %6948 = vmatprep.subr.mxu0 0.0
    %6949 = vmatpush1.msra.mxu0 0.0
    %6950 = vmatprep.subr.mxu0 0.0
    %6951 = vmatpush1.msra.mxu0 0.0
    %6952 = vmatprep.subr.mxu0 0.0
    %6953 = vmatpush1.msra.mxu0 0.0
    %6954 = vmatprep.subr.mxu0 0.0
    %6955 = vmatpush1.msra.mxu0 0.0
    %6956 = vmatprep.mubr.f32.mxu0 0.0
    %6957 = vmatmul.mubr.f32.gmra.mrb[0].mxu0 %v488
    %v6958 = vpop.f32.mrb[0].mxu0
    %v6959 = vadd.f32 %v6888, %v6958
    %v6960 = vpop.f32.mrb[0].mxu0
    %6961 = vmatprep.mubr.f32.mxu0 0.0
    %6962 = vmatmul.mubr.f32.gmra.mrb[0].mxu0 %v490
    %v6963 = vpop.f32.mrb[0].mxu0
    %v6964 = vadd.f32 %v6888, %v6963
    %v6965 = vpop.f32.mrb[0].mxu0
    %6966 = vdwg.mxu0
    %v6969 = vunpack.c.l.s4 1966171168
    %v6970 = vunpack.c.0.s8 %v6969
    %v6971 = vlaneseq
    %v6972 = vshrl.u32 %v6971, 7
    %v6973 = vsub.s32 %v6970, %v6972
    %v6974 = vrot.slane %v6880, %v6973
    %v6975 = vcombine.high %v6974, %v6974
    %v6977 = vunpack.c.l.s4 1966171168
    %v6978 = vunpack.c.0.s8 %v6977
    %v6979 = vlaneseq
    %v6980 = vshrl.u32 %v6979, 7
    %v6981 = vsub.s32 %v6978, %v6980
    %v6982 = vrot.slane %v6974, %v6981
    %v6984 = vunpack.c.l.s4 1966171168
    %v6985 = vunpack.c.0.s8 %v6984
    %v6986 = vlaneseq
    %v6987 = vshrl.u32 %v6986, 7
    %v6988 = vsub.s32 %v6985, %v6987
    %v6989 = vrot.slane %v6975, %v6988
    %v6990 = vlaneseq
    %v6991 = vshrl.u32 %v6990, 7
    %v6992 = vsub.s32 0, %v6991
    %v6993 = vrot.slane %v6982, %v6992
    %v6994 = vlaneseq
    %v6995 = vshrl.u32 %v6994, 7
    %v6996 = vsub.s32 0, %v6995
    %v6997 = vrot.slane %v6989, %v6996
    %v7000 = vmul.f32 %v6993, %v6959
    %v7001 = vmul.f32 %v6997, %v6964
    %v7002 = vsel %vm67, %v7000, 0.0
    %7003 = vadd.xlane.f32.xlu0 %v7002
    %v7004 = vpop.xlane.xlu0 %7003
    %v7005 = vsel %vm67, %v7001, 0.0
    %7006 = vadd.xlane.f32.xlu0 %v7005
    %v7007 = vpop.xlane.xlu0 %7006
    %v7008 = vmul.f32 %v7004, 0.17677669
    %v7009 = vmul.f32 %v7007, 0.17677669
    %vm7010 = vcmp.gt.f32.partialorder %v34, 0.5
    %v7013 = vlaneseq
    %v7014 = vand.u32 %v7013, 127
    %v7015 = vlaneseq
    %v7016 = vshrl.u32 %v7015, 7
    %v7017 = vsub.s32 %v7014, %v7016
    %v7018 = vrot.slane %v7008, %v7017
    %v7019 = vlaneseq
    %v7020 = vshrl.u32 %v7019, 7
    %v7021 = vsub.s32 %v7014, %v7020
    %v7022 = vrot.slane %v7009, %v7021
    %v7023 = vsel %vm2210, %v7022, %v7018
    %v7025 = vsel %vm7010, -1e+09, %v7023
    %vm7026 = vcmask 58368
    %v7027 = vsel %vm7026, %v7025, -inf
    %7028 = vmax.xlane.f32.xlu0 %v7027
    %v7029 = vpop.xlane.xlu0 %7028
    %v7030 = vsub.f32 %v7025, %v7029
    %v7031 = vmul.f32 %v7030, 1.442695
    %v7032 = vpow.pop %v7031
    %v7033 = vsel %vm7026, %v7032, 0.0
    %7034 = vadd.xlane.f32.xlu0 %v7033
    %v7035 = vpop.xlane.xlu0 %7034
    %v7036 = vrcp.pop %v7035
    %v7037 = vmul.f32 %v7032, %v7036
    %v7038 = vlaneseq
    %v7039 = vshrl.u32 %v7038, 7
    %v7040 = vsub.s32 0, %v7039
    %v7041 = vrot.slane %v7037, %v7040
    %7043 = vbcast.lane.b32.xlu0 %v7041, 256
    %v7044 = vpop.permute.xlu0 %7043
    %v7045 = vlaneseq
    %v7046 = vshrl.u32 %v7045, 7
    %v7047 = vsub.s32 1, %v7046
    %v7048 = vrot.slane %v7037, %v7047
    %7050 = vbcast.lane.b32.xlu0 %v7048, 256
    %v7051 = vpop.permute.xlu0 %7050
    %v7052 = vmul.f32 %v7044, %v478
    %v7053 = vmul.f32 %v7051, %v479
    %vm7054 = vcmask 130144
    %v7055 = vsel %vm7054, %v7052, 0.0
    %v7056 = vrot.slane %v7055, 4
    %v7057 = vadd.f32 %v7055, %v7056
    %v7058 = vrot.slane %v7057, 2
    %v7059 = vadd.f32 %v7057, %v7058
    %v7060 = vrot.slane %v7059, 1
    %v7061 = vadd.f32 %v7059, %v7060
    %v7062 = vsel %vm7054, %v7053, 0.0
    %v7063 = vrot.slane %v7062, 4
    %v7064 = vadd.f32 %v7062, %v7063
    %v7065 = vrot.slane %v7064, 2
    %v7066 = vadd.f32 %v7064, %v7065
    %v7067 = vrot.slane %v7066, 1
    %v7068 = vadd.f32 %v7066, %v7067
    %v7069 = vld [vmem:[#allocation2 + $0xb0] sm:$0xf]
    %v7070 = vld [vmem:[#allocation2 + $0xb8] sm:$0x1]
    %v7071 = vlaneseq
    %v7072 = vshrl.u32 %v7071, 7
    %v7073 = vsub.s32 0, %v7072
    %v7074 = vrot.slane %v7070, %v7073
    %v7077 = vsel %vm2210, %v7068, %v7061
    %7078 = vrot.lane.b32.xlu0 %v7077, 116
    %v7079 = vpop.permute.xlu0 %7078
    %v7080 = vsel %vm230, %v7079, 0
    %v7083 = vsel %vm235, %v7069, 0
    %7085 = vmatprep.subr.mxu0 0.0
    %7086 = vmatpush1.msra.mxu0 %v7083
    %7087 = vmatprep.subr.mxu0 0.0
    %7088 = vmatpush1.msra.mxu0 0.0
    %7089 = vmatprep.subr.mxu0 0.0
    %7090 = vmatpush1.msra.mxu0 0.0
    %7091 = vmatprep.subr.mxu0 0.0
    %7092 = vmatpush1.msra.mxu0 0.0
    %7093 = vmatprep.subr.mxu0 0.0
    %7094 = vmatpush1.msra.mxu0 0.0
    %7095 = vmatprep.subr.mxu0 0.0
    %7096 = vmatpush1.msra.mxu0 0.0
    %7097 = vmatprep.subr.mxu0 0.0
    %7098 = vmatpush1.msra.mxu0 0.0
    %7099 = vmatprep.subr.mxu0 0.0
    %7100 = vmatpush1.msra.mxu0 0.0
    %7101 = vmatprep.subr.mxu0 0.0
    %7102 = vmatpush1.msra.mxu0 0.0
    %7103 = vmatprep.subr.mxu0 0.0
    %7104 = vmatpush1.msra.mxu0 0.0
    %7105 = vmatprep.subr.mxu0 0.0
    %7106 = vmatpush1.msra.mxu0 0.0
    %7107 = vmatprep.subr.mxu0 0.0
    %7108 = vmatpush1.msra.mxu0 0.0
    %7109 = vmatprep.subr.mxu0 0.0
    %7110 = vmatpush1.msra.mxu0 0.0
    %7111 = vmatprep.subr.mxu0 0.0
    %7112 = vmatpush1.msra.mxu0 0.0
    %7113 = vmatprep.subr.mxu0 0.0
    %7114 = vmatpush1.msra.mxu0 0.0
    %7115 = vmatprep.subr.mxu0 0.0
    %7116 = vmatpush1.msra.mxu0 0.0
    %7117 = vmatprep.subr.mxu0 0.0
    %7118 = vmatpush1.msra.mxu0 0.0
    %7119 = vmatprep.subr.mxu0 0.0
    %7120 = vmatpush1.msra.mxu0 0.0
    %7121 = vmatprep.subr.mxu0 0.0
    %7122 = vmatpush1.msra.mxu0 0.0
    %7123 = vmatprep.subr.mxu0 0.0
    %7124 = vmatpush1.msra.mxu0 0.0
    %7125 = vmatprep.subr.mxu0 0.0
    %7126 = vmatpush1.msra.mxu0 0.0
    %7127 = vmatprep.subr.mxu0 0.0
    %7128 = vmatpush1.msra.mxu0 0.0
    %7129 = vmatprep.subr.mxu0 0.0
    %7130 = vmatpush1.msra.mxu0 0.0
    %7131 = vmatprep.subr.mxu0 0.0
    %7132 = vmatpush1.msra.mxu0 0.0
    %7133 = vmatprep.subr.mxu0 0.0
    %7134 = vmatpush1.msra.mxu0 0.0
    %7135 = vmatprep.subr.mxu0 0.0
    %7136 = vmatpush1.msra.mxu0 0.0
    %7137 = vmatprep.subr.mxu0 0.0
    %7138 = vmatpush1.msra.mxu0 0.0
    %7139 = vmatprep.subr.mxu0 0.0
    %7140 = vmatpush1.msra.mxu0 0.0
    %7141 = vmatprep.subr.mxu0 0.0
    %7142 = vmatpush1.msra.mxu0 0.0
    %7143 = vmatprep.subr.mxu0 0.0
    %7144 = vmatpush1.msra.mxu0 0.0
    %7145 = vmatprep.subr.mxu0 0.0
    %7146 = vmatpush1.msra.mxu0 0.0
    %7147 = vmatprep.subr.mxu0 0.0
    %7148 = vmatpush1.msra.mxu0 0.0
    %7149 = vmatprep.mubr.f32.mxu0 0.0
    %7150 = vmatmul.mubr.f32.gmra.mrb[0].mxu0 %v7080
    %v7151 = vpop.f32.mrb[0].mxu0
    %v7152 = vadd.f32 %v7074, %v7151
    %v7153 = vpop.f32.mrb[0].mxu0
    %7154 = vdwg.mxu0
    %v7155 = vld [vmem:[#allocation2 + $0x110] sm:$0xff]
    %v7156 = vld [vmem:[#allocation2 + $0x118] sm:$0x1]
    %v7157 = vlaneseq
    %v7158 = vshrl.u32 %v7157, 7
    %v7159 = vsub.s32 0, %v7158
    %v7160 = vrot.slane %v7156, %v7159
    %v7162 = vsel %vm648, %v6506, 0
    %7164 = vmatprep.subr.mxu0 0.0
    %7165 = vmatpush1.msra.mxu0 %v7155
    %7166 = vmatprep.subr.mxu0 0.0
    %7167 = vmatpush1.msra.mxu0 0.0
    %7168 = vmatprep.subr.mxu0 0.0
    %7169 = vmatpush1.msra.mxu0 0.0
    %7170 = vmatprep.subr.mxu0 0.0
    %7171 = vmatpush1.msra.mxu0 0.0
    %7172 = vmatprep.subr.mxu0 0.0
    %7173 = vmatpush1.msra.mxu0 0.0
    %7174 = vmatprep.subr.mxu0 0.0
    %7175 = vmatpush1.msra.mxu0 0.0
    %7176 = vmatprep.subr.mxu0 0.0
    %7177 = vmatpush1.msra.mxu0 0.0
    %7178 = vmatprep.subr.mxu0 0.0
    %7179 = vmatpush1.msra.mxu0 0.0
    %7180 = vmatprep.subr.mxu0 0.0
    %7181 = vmatpush1.msra.mxu0 0.0
    %7182 = vmatprep.subr.mxu0 0.0
    %7183 = vmatpush1.msra.mxu0 0.0
    %7184 = vmatprep.subr.mxu0 0.0
    %7185 = vmatpush1.msra.mxu0 0.0
    %7186 = vmatprep.subr.mxu0 0.0
    %7187 = vmatpush1.msra.mxu0 0.0
    %7188 = vmatprep.subr.mxu0 0.0
    %7189 = vmatpush1.msra.mxu0 0.0
    %7190 = vmatprep.subr.mxu0 0.0
    %7191 = vmatpush1.msra.mxu0 0.0
    %7192 = vmatprep.subr.mxu0 0.0
    %7193 = vmatpush1.msra.mxu0 0.0
    %7194 = vmatprep.subr.mxu0 0.0
    %7195 = vmatpush1.msra.mxu0 0.0
    %7196 = vmatprep.subr.mxu0 0.0
    %7197 = vmatpush1.msra.mxu0 0.0
    %7198 = vmatprep.subr.mxu0 0.0
    %7199 = vmatpush1.msra.mxu0 0.0
    %7200 = vmatprep.subr.mxu0 0.0
    %7201 = vmatpush1.msra.mxu0 0.0
    %7202 = vmatprep.subr.mxu0 0.0
    %7203 = vmatpush1.msra.mxu0 0.0
    %7204 = vmatprep.subr.mxu0 0.0
    %7205 = vmatpush1.msra.mxu0 0.0
    %7206 = vmatprep.subr.mxu0 0.0
    %7207 = vmatpush1.msra.mxu0 0.0
    %7208 = vmatprep.subr.mxu0 0.0
    %7209 = vmatpush1.msra.mxu0 0.0
    %7210 = vmatprep.subr.mxu0 0.0
    %7211 = vmatpush1.msra.mxu0 0.0
    %7212 = vmatprep.subr.mxu0 0.0
    %7213 = vmatpush1.msra.mxu0 0.0
    %7214 = vmatprep.subr.mxu0 0.0
    %7215 = vmatpush1.msra.mxu0 0.0
    %7216 = vmatprep.subr.mxu0 0.0
    %7217 = vmatpush1.msra.mxu0 0.0
    %7218 = vmatprep.subr.mxu0 0.0
    %7219 = vmatpush1.msra.mxu0 0.0
    %7220 = vmatprep.subr.mxu0 0.0
    %7221 = vmatpush1.msra.mxu0 0.0
    %7222 = vmatprep.subr.mxu0 0.0
    %7223 = vmatpush1.msra.mxu0 0.0
    %7224 = vmatprep.subr.mxu0 0.0
    %7225 = vmatpush1.msra.mxu0 0.0
    %7226 = vmatprep.subr.mxu0 0.0
    %7227 = vmatpush1.msra.mxu0 0.0
    %7228 = vmatprep.mubr.f32.mxu0 0.0
    %7229 = vmatmul.mubr.f32.gmra.mrb[0].mxu0 %v7162
    %v7230 = vpop.f32.mrb[0].mxu0
    %v7231 = vadd.f32 %v7160, %v7230
    %v7232 = vpop.f32.mrb[0].mxu0
    %7233 = vdwg.mxu0
    %v7234 = vld [vmem:[#allocation2 + $0x120] sm:$0xff]
    %v7235 = vld [vmem:[#allocation2 + $0x128] sm:$0x1]
    %v7236 = vlaneseq
    %v7237 = vshrl.u32 %v7236, 7
    %v7238 = vsub.s32 0, %v7237
    %v7239 = vrot.slane %v7235, %v7238
    %7240 = vmatprep.subr.mxu0 0.0
    %7241 = vmatpush1.msra.mxu0 %v7234
    %7242 = vmatprep.subr.mxu0 0.0
    %7243 = vmatpush1.msra.mxu0 0.0
    %7244 = vmatprep.subr.mxu0 0.0
    %7245 = vmatpush1.msra.mxu0 0.0
    %7246 = vmatprep.subr.mxu0 0.0
    %7247 = vmatpush1.msra.mxu0 0.0
    %7248 = vmatprep.subr.mxu0 0.0
    %7249 = vmatpush1.msra.mxu0 0.0
    %7250 = vmatprep.subr.mxu0 0.0
    %7251 = vmatpush1.msra.mxu0 0.0
    %7252 = vmatprep.subr.mxu0 0.0
    %7253 = vmatpush1.msra.mxu0 0.0
    %7254 = vmatprep.subr.mxu0 0.0
    %7255 = vmatpush1.msra.mxu0 0.0
    %7256 = vmatprep.subr.mxu0 0.0
    %7257 = vmatpush1.msra.mxu0 0.0
    %7258 = vmatprep.subr.mxu0 0.0
    %7259 = vmatpush1.msra.mxu0 0.0
    %7260 = vmatprep.subr.mxu0 0.0
    %7261 = vmatpush1.msra.mxu0 0.0
    %7262 = vmatprep.subr.mxu0 0.0
    %7263 = vmatpush1.msra.mxu0 0.0
    %7264 = vmatprep.subr.mxu0 0.0
    %7265 = vmatpush1.msra.mxu0 0.0
    %7266 = vmatprep.subr.mxu0 0.0
    %7267 = vmatpush1.msra.mxu0 0.0
    %7268 = vmatprep.subr.mxu0 0.0
    %7269 = vmatpush1.msra.mxu0 0.0
    %7270 = vmatprep.subr.mxu0 0.0
    %7271 = vmatpush1.msra.mxu0 0.0
    %7272 = vmatprep.subr.mxu0 0.0
    %7273 = vmatpush1.msra.mxu0 0.0
    %7274 = vmatprep.subr.mxu0 0.0
    %7275 = vmatpush1.msra.mxu0 0.0
    %7276 = vmatprep.subr.mxu0 0.0
    %7277 = vmatpush1.msra.mxu0 0.0
    %7278 = vmatprep.subr.mxu0 0.0
    %7279 = vmatpush1.msra.mxu0 0.0
    %7280 = vmatprep.subr.mxu0 0.0
    %7281 = vmatpush1.msra.mxu0 0.0
    %7282 = vmatprep.subr.mxu0 0.0
    %7283 = vmatpush1.msra.mxu0 0.0
    %7284 = vmatprep.subr.mxu0 0.0
    %7285 = vmatpush1.msra.mxu0 0.0
    %7286 = vmatprep.subr.mxu0 0.0
    %7287 = vmatpush1.msra.mxu0 0.0
    %7288 = vmatprep.subr.mxu0 0.0
    %7289 = vmatpush1.msra.mxu0 0.0
    %7290 = vmatprep.subr.mxu0 0.0
    %7291 = vmatpush1.msra.mxu0 0.0
    %7292 = vmatprep.subr.mxu0 0.0
    %7293 = vmatpush1.msra.mxu0 0.0
    %7294 = vmatprep.subr.mxu0 0.0
    %7295 = vmatpush1.msra.mxu0 0.0
    %7296 = vmatprep.subr.mxu0 0.0
    %7297 = vmatpush1.msra.mxu0 0.0
    %7298 = vmatprep.subr.mxu0 0.0
    %7299 = vmatpush1.msra.mxu0 0.0
    %7300 = vmatprep.subr.mxu0 0.0
    %7301 = vmatpush1.msra.mxu0 0.0
    %7302 = vmatprep.subr.mxu0 0.0
    %7303 = vmatpush1.msra.mxu0 0.0
    %7304 = vmatprep.mubr.f32.mxu0 0.0
    %7305 = vmatmul.mubr.f32.gmra.mrb[0].mxu0 %v902
    %v7306 = vpop.f32.mrb[0].mxu0
    %v7307 = vadd.f32 %v7239, %v7306
    %v7308 = vpop.f32.mrb[0].mxu0
    %7309 = vmatprep.mubr.f32.mxu0 0.0
    %7310 = vmatmul.mubr.f32.gmra.mrb[0].mxu0 %v904
    %v7311 = vpop.f32.mrb[0].mxu0
    %v7312 = vadd.f32 %v7239, %v7311
    %v7313 = vpop.f32.mrb[0].mxu0
    %7314 = vdwg.mxu0
    %v7317 = vunpack.c.l.s4 1966171168
    %v7318 = vunpack.c.0.s8 %v7317
    %v7319 = vlaneseq
    %v7320 = vshrl.u32 %v7319, 7
    %v7321 = vsub.s32 %v7318, %v7320
    %v7322 = vrot.slane %v7231, %v7321
    %v7323 = vcombine.high %v7322, %v7322
    %v7325 = vunpack.c.l.s4 1966171168
    %v7326 = vunpack.c.0.s8 %v7325
    %v7327 = vlaneseq
    %v7328 = vshrl.u32 %v7327, 7
    %v7329 = vsub.s32 %v7326, %v7328
    %v7330 = vrot.slane %v7322, %v7329
    %v7332 = vunpack.c.l.s4 1966171168
    %v7333 = vunpack.c.0.s8 %v7332
    %v7334 = vlaneseq
    %v7335 = vshrl.u32 %v7334, 7
    %v7336 = vsub.s32 %v7333, %v7335
    %v7337 = vrot.slane %v7323, %v7336
    %v7338 = vlaneseq
    %v7339 = vshrl.u32 %v7338, 7
    %v7340 = vsub.s32 0, %v7339
    %v7341 = vrot.slane %v7330, %v7340
    %v7342 = vlaneseq
    %v7343 = vshrl.u32 %v7342, 7
    %v7344 = vsub.s32 0, %v7343
    %v7345 = vrot.slane %v7337, %v7344
    %v7348 = vmul.f32 %v7341, %v7307
    %v7349 = vmul.f32 %v7345, %v7312
    %v7350 = vsel %vm67, %v7348, 0.0
    %7351 = vadd.xlane.f32.xlu0 %v7350
    %v7352 = vpop.xlane.xlu0 %7351
    %v7353 = vsel %vm67, %v7349, 0.0
    %7354 = vadd.xlane.f32.xlu0 %v7353
    %v7355 = vpop.xlane.xlu0 %7354
    %v7356 = vmul.f32 %v7352, 0.17677669
    %v7357 = vmul.f32 %v7355, 0.17677669
    %v7360 = vlaneseq
    %v7361 = vshrl.u32 %v7360, 7
    %v7362 = vsub.s32 %v7014, %v7361
    %v7363 = vrot.slane %v7356, %v7362
    %v7364 = vlaneseq
    %v7365 = vshrl.u32 %v7364, 7
    %v7366 = vsub.s32 %v7014, %v7365
    %v7367 = vrot.slane %v7357, %v7366
    %v7368 = vsel %vm2210, %v7367, %v7363
    %v7370 = vsel %vm7010, -1e+09, %v7368
    %v7371 = vsel %vm7026, %v7370, -inf
    %7372 = vmax.xlane.f32.xlu0 %v7371
    %v7373 = vpop.xlane.xlu0 %7372
    %v7374 = vsub.f32 %v7370, %v7373
    %v7375 = vmul.f32 %v7374, 1.442695
    %v7376 = vpow.pop %v7375
    %v7377 = vsel %vm7026, %v7376, 0.0
    %7378 = vadd.xlane.f32.xlu0 %v7377
    %v7379 = vpop.xlane.xlu0 %7378
    %v7380 = vrcp.pop %v7379
    %v7381 = vmul.f32 %v7376, %v7380
    %v7382 = vlaneseq
    %v7383 = vshrl.u32 %v7382, 7
    %v7384 = vsub.s32 0, %v7383
    %v7385 = vrot.slane %v7381, %v7384
    %7387 = vbcast.lane.b32.xlu0 %v7385, 256
    %v7388 = vpop.permute.xlu0 %7387
    %v7389 = vlaneseq
    %v7390 = vshrl.u32 %v7389, 7
    %v7391 = vsub.s32 1, %v7390
    %v7392 = vrot.slane %v7381, %v7391
    %7394 = vbcast.lane.b32.xlu0 %v7392, 256
    %v7395 = vpop.permute.xlu0 %7394
    %v7396 = vmul.f32 %v7388, %v892
    %v7397 = vmul.f32 %v7395, %v893
    %vm7398 = vcmask 261312
    %v7399 = vsel %vm7398, %v7396, 0.0
    %v7400 = vrot.slane %v7399, 4
    %v7401 = vadd.f32 %v7399, %v7400
    %v7402 = vrot.slane %v7401, 2
    %v7403 = vadd.f32 %v7401, %v7402
    %v7404 = vrot.slane %v7403, 1
    %v7405 = vadd.f32 %v7403, %v7404
    %v7406 = vsel %vm7398, %v7397, 0.0
    %v7407 = vrot.slane %v7406, 4
    %v7408 = vadd.f32 %v7406, %v7407
    %v7409 = vrot.slane %v7408, 2
    %v7410 = vadd.f32 %v7408, %v7409
    %v7411 = vrot.slane %v7410, 1
    %v7412 = vadd.f32 %v7410, %v7411
    %v7413 = vld [vmem:[#allocation2 + $0x130] sm:$0xff]
    %v7414 = vld [vmem:[#allocation2 + $0x138] sm:$0x1]
    %v7415 = vlaneseq
    %v7416 = vshrl.u32 %v7415, 7
    %v7417 = vsub.s32 0, %v7416
    %v7418 = vrot.slane %v7414, %v7417
    %v7421 = vsel %vm2210, %v7412, %v7405
    %7422 = vrot.lane.b32.xlu0 %v7421, 104
    %v7423 = vpop.permute.xlu0 %7422
    %v7424 = vsel %vm648, %v7423, 0
    %7426 = vmatprep.subr.mxu0 0.0
    %7427 = vmatpush1.msra.mxu0 %v7413
    %7428 = vmatprep.subr.mxu0 0.0
    %7429 = vmatpush1.msra.mxu0 0.0
    %7430 = vmatprep.subr.mxu0 0.0
    %7431 = vmatpush1.msra.mxu0 0.0
    %7432 = vmatprep.subr.mxu0 0.0
    %7433 = vmatpush1.msra.mxu0 0.0
    %7434 = vmatprep.subr.mxu0 0.0
    %7435 = vmatpush1.msra.mxu0 0.0
    %7436 = vmatprep.subr.mxu0 0.0
    %7437 = vmatpush1.msra.mxu0 0.0
    %7438 = vmatprep.subr.mxu0 0.0
    %7439 = vmatpush1.msra.mxu0 0.0
    %7440 = vmatprep.subr.mxu0 0.0
    %7441 = vmatpush1.msra.mxu0 0.0
    %7442 = vmatprep.subr.mxu0 0.0
    %7443 = vmatpush1.msra.mxu0 0.0
    %7444 = vmatprep.subr.mxu0 0.0
    %7445 = vmatpush1.msra.mxu0 0.0
    %7446 = vmatprep.subr.mxu0 0.0
    %7447 = vmatpush1.msra.mxu0 0.0
    %7448 = vmatprep.subr.mxu0 0.0
    %7449 = vmatpush1.msra.mxu0 0.0
    %7450 = vmatprep.subr.mxu0 0.0
    %7451 = vmatpush1.msra.mxu0 0.0
    %7452 = vmatprep.subr.mxu0 0.0
    %7453 = vmatpush1.msra.mxu0 0.0
    %7454 = vmatprep.subr.mxu0 0.0
    %7455 = vmatpush1.msra.mxu0 0.0
    %7456 = vmatprep.subr.mxu0 0.0
    %7457 = vmatpush1.msra.mxu0 0.0
    %7458 = vmatprep.subr.mxu0 0.0
    %7459 = vmatpush1.msra.mxu0 0.0
    %7460 = vmatprep.subr.mxu0 0.0
    %7461 = vmatpush1.msra.mxu0 0.0
    %7462 = vmatprep.subr.mxu0 0.0
    %7463 = vmatpush1.msra.mxu0 0.0
    %7464 = vmatprep.subr.mxu0 0.0
    %7465 = vmatpush1.msra.mxu0 0.0
    %7466 = vmatprep.subr.mxu0 0.0
    %7467 = vmatpush1.msra.mxu0 0.0
    %7468 = vmatprep.subr.mxu0 0.0
    %7469 = vmatpush1.msra.mxu0 0.0
    %7470 = vmatprep.subr.mxu0 0.0
    %7471 = vmatpush1.msra.mxu0 0.0
    %7472 = vmatprep.subr.mxu0 0.0
    %7473 = vmatpush1.msra.mxu0 0.0
    %7474 = vmatprep.subr.mxu0 0.0
    %7475 = vmatpush1.msra.mxu0 0.0
    %7476 = vmatprep.subr.mxu0 0.0
    %7477 = vmatpush1.msra.mxu0 0.0
    %7478 = vmatprep.subr.mxu0 0.0
    %7479 = vmatpush1.msra.mxu0 0.0
    %7480 = vmatprep.subr.mxu0 0.0
    %7481 = vmatpush1.msra.mxu0 0.0
    %7482 = vmatprep.subr.mxu0 0.0
    %7483 = vmatpush1.msra.mxu0 0.0
    %7484 = vmatprep.subr.mxu0 0.0
    %7485 = vmatpush1.msra.mxu0 0.0
    %7486 = vmatprep.subr.mxu0 0.0
    %7487 = vmatpush1.msra.mxu0 0.0
    %7488 = vmatprep.subr.mxu0 0.0
    %7489 = vmatpush1.msra.mxu0 0.0
    %7490 = vmatprep.mubr.f32.mxu0 0.0
    %7491 = vmatmul.mubr.f32.gmra.mrb[0].mxu0 %v7424
    %v7492 = vpop.f32.mrb[0].mxu0
    %v7493 = vadd.f32 %v7418, %v7492
    %v7494 = vpop.f32.mrb[0].mxu0
    %7495 = vdwg.mxu0
    %v7496 = vld [vmem:[#allocation2 + $0x1a8] sm:$0xff]
    %v7497 = vld [vmem:[#allocation2 + $0x1b0] sm:$0xff]
    %v7498 = vld [vmem:[#allocation2 + $0x1b8] sm:$0x1]
    %v7499 = vlaneseq
    %v7500 = vshrl.u32 %v7499, 7
    %v7501 = vsub.s32 0, %v7500
    %v7502 = vrot.slane %v7498, %v7501
    %v7504 = vsel %vm1060, %v6653, 0
    %7506 = vmatprep.subr.mxu0 0.0
    %7507 = vmatpush1.msra.mxu0 %v7496
    %7508 = vmatprep.subr.mxu0 0.0
    %7509 = vmatpush1.msra.mxu0 %v7497
    %7510 = vmatprep.subr.mxu0 0.0
    %7511 = vmatpush1.msra.mxu0 0.0
    %7512 = vmatprep.subr.mxu0 0.0
    %7513 = vmatpush1.msra.mxu0 0.0
    %7514 = vmatprep.subr.mxu0 0.0
    %7515 = vmatpush1.msra.mxu0 0.0
    %7516 = vmatprep.subr.mxu0 0.0
    %7517 = vmatpush1.msra.mxu0 0.0
    %7518 = vmatprep.subr.mxu0 0.0
    %7519 = vmatpush1.msra.mxu0 0.0
    %7520 = vmatprep.subr.mxu0 0.0
    %7521 = vmatpush1.msra.mxu0 0.0
    %7522 = vmatprep.subr.mxu0 0.0
    %7523 = vmatpush1.msra.mxu0 0.0
    %7524 = vmatprep.subr.mxu0 0.0
    %7525 = vmatpush1.msra.mxu0 0.0
    %7526 = vmatprep.subr.mxu0 0.0
    %7527 = vmatpush1.msra.mxu0 0.0
    %7528 = vmatprep.subr.mxu0 0.0
    %7529 = vmatpush1.msra.mxu0 0.0
    %7530 = vmatprep.subr.mxu0 0.0
    %7531 = vmatpush1.msra.mxu0 0.0
    %7532 = vmatprep.subr.mxu0 0.0
    %7533 = vmatpush1.msra.mxu0 0.0
    %7534 = vmatprep.subr.mxu0 0.0
    %7535 = vmatpush1.msra.mxu0 0.0
    %7536 = vmatprep.subr.mxu0 0.0
    %7537 = vmatpush1.msra.mxu0 0.0
    %7538 = vmatprep.subr.mxu0 0.0
    %7539 = vmatpush1.msra.mxu0 0.0
    %7540 = vmatprep.subr.mxu0 0.0
    %7541 = vmatpush1.msra.mxu0 0.0
    %7542 = vmatprep.subr.mxu0 0.0
    %7543 = vmatpush1.msra.mxu0 0.0
    %7544 = vmatprep.subr.mxu0 0.0
    %7545 = vmatpush1.msra.mxu0 0.0
    %7546 = vmatprep.subr.mxu0 0.0
    %7547 = vmatpush1.msra.mxu0 0.0
    %7548 = vmatprep.subr.mxu0 0.0
    %7549 = vmatpush1.msra.mxu0 0.0
    %7550 = vmatprep.subr.mxu0 0.0
    %7551 = vmatpush1.msra.mxu0 0.0
    %7552 = vmatprep.subr.mxu0 0.0
    %7553 = vmatpush1.msra.mxu0 0.0
    %7554 = vmatprep.subr.mxu0 0.0
    %7555 = vmatpush1.msra.mxu0 0.0
    %7556 = vmatprep.subr.mxu0 0.0
    %7557 = vmatpush1.msra.mxu0 0.0
    %7558 = vmatprep.subr.mxu0 0.0
    %7559 = vmatpush1.msra.mxu0 0.0
    %7560 = vmatprep.subr.mxu0 0.0
    %7561 = vmatpush1.msra.mxu0 0.0
    %7562 = vmatprep.subr.mxu0 0.0
    %7563 = vmatpush1.msra.mxu0 0.0
    %7564 = vmatprep.subr.mxu0 0.0
    %7565 = vmatpush1.msra.mxu0 0.0
    %7566 = vmatprep.subr.mxu0 0.0
    %7567 = vmatpush1.msra.mxu0 0.0
    %7568 = vmatprep.subr.mxu0 0.0
    %7569 = vmatpush1.msra.mxu0 0.0
    %7570 = vmatprep.mubr.f32.mxu0 0.0
    %7571 = vmatmul.mubr.f32.gmra.mrb[0].mxu0 %v7504
    %v7572 = vpop.f32.mrb[0].mxu0
    %v7573 = vadd.f32 %v7502, %v7572
    %v7574 = vpop.f32.mrb[0].mxu0
    %7575 = vdwg.mxu0
    %v7576 = vld [vmem:[#allocation2 + $0x1c0] sm:$0xff]
    %v7577 = vld [vmem:[#allocation2 + $0x1c8] sm:$0xff]
    %v7578 = vld [vmem:[#allocation2 + $0x1d0] sm:$0x1]
    %v7579 = vlaneseq
    %v7580 = vshrl.u32 %v7579, 7
    %v7581 = vsub.s32 0, %v7580
    %v7582 = vrot.slane %v7578, %v7581
    %7583 = vmatprep.subr.mxu0 0.0
    %7584 = vmatpush1.msra.mxu0 %v7576
    %7585 = vmatprep.subr.mxu0 0.0
    %7586 = vmatpush1.msra.mxu0 %v7577
    %7587 = vmatprep.subr.mxu0 0.0
    %7588 = vmatpush1.msra.mxu0 0.0
    %7589 = vmatprep.subr.mxu0 0.0
    %7590 = vmatpush1.msra.mxu0 0.0
    %7591 = vmatprep.subr.mxu0 0.0
    %7592 = vmatpush1.msra.mxu0 0.0
    %7593 = vmatprep.subr.mxu0 0.0
    %7594 = vmatpush1.msra.mxu0 0.0
    %7595 = vmatprep.subr.mxu0 0.0
    %7596 = vmatpush1.msra.mxu0 0.0
    %7597 = vmatprep.subr.mxu0 0.0
    %7598 = vmatpush1.msra.mxu0 0.0
    %7599 = vmatprep.subr.mxu0 0.0
    %7600 = vmatpush1.msra.mxu0 0.0
    %7601 = vmatprep.subr.mxu0 0.0
    %7602 = vmatpush1.msra.mxu0 0.0
    %7603 = vmatprep.subr.mxu0 0.0
    %7604 = vmatpush1.msra.mxu0 0.0
    %7605 = vmatprep.subr.mxu0 0.0
    %7606 = vmatpush1.msra.mxu0 0.0
    %7607 = vmatprep.subr.mxu0 0.0
    %7608 = vmatpush1.msra.mxu0 0.0
    %7609 = vmatprep.subr.mxu0 0.0
    %7610 = vmatpush1.msra.mxu0 0.0
    %7611 = vmatprep.subr.mxu0 0.0
    %7612 = vmatpush1.msra.mxu0 0.0
    %7613 = vmatprep.subr.mxu0 0.0
    %7614 = vmatpush1.msra.mxu0 0.0
    %7615 = vmatprep.subr.mxu0 0.0
    %7616 = vmatpush1.msra.mxu0 0.0
    %7617 = vmatprep.subr.mxu0 0.0
    %7618 = vmatpush1.msra.mxu0 0.0
    %7619 = vmatprep.subr.mxu0 0.0
    %7620 = vmatpush1.msra.mxu0 0.0
    %7621 = vmatprep.subr.mxu0 0.0
    %7622 = vmatpush1.msra.mxu0 0.0
    %7623 = vmatprep.subr.mxu0 0.0
    %7624 = vmatpush1.msra.mxu0 0.0
    %7625 = vmatprep.subr.mxu0 0.0
    %7626 = vmatpush1.msra.mxu0 0.0
    %7627 = vmatprep.subr.mxu0 0.0
    %7628 = vmatpush1.msra.mxu0 0.0
    %7629 = vmatprep.subr.mxu0 0.0
    %7630 = vmatpush1.msra.mxu0 0.0
    %7631 = vmatprep.subr.mxu0 0.0
    %7632 = vmatpush1.msra.mxu0 0.0
    %7633 = vmatprep.subr.mxu0 0.0
    %7634 = vmatpush1.msra.mxu0 0.0
    %7635 = vmatprep.subr.mxu0 0.0
    %7636 = vmatpush1.msra.mxu0 0.0
    %7637 = vmatprep.subr.mxu0 0.0
    %7638 = vmatpush1.msra.mxu0 0.0
    %7639 = vmatprep.subr.mxu0 0.0
    %7640 = vmatpush1.msra.mxu0 0.0
    %7641 = vmatprep.subr.mxu0 0.0
    %7642 = vmatpush1.msra.mxu0 0.0
    %7643 = vmatprep.subr.mxu0 0.0
    %7644 = vmatpush1.msra.mxu0 0.0
    %7645 = vmatprep.subr.mxu0 0.0
    %7646 = vmatpush1.msra.mxu0 0.0
    %7647 = vmatprep.mubr.f32.mxu0 0.0
    %7648 = vmatmul.mubr.f32.gmra.mrb[0].mxu0 %v1312
    %v7649 = vpop.f32.mrb[0].mxu0
    %v7650 = vadd.f32 %v7582, %v7649
    %v7651 = vpop.f32.mrb[0].mxu0
    %7652 = vmatprep.mubr.f32.mxu0 0.0
    %7653 = vmatmul.mubr.f32.gmra.mrb[0].mxu0 %v1314
    %v7654 = vpop.f32.mrb[0].mxu0
    %v7655 = vadd.f32 %v7582, %v7654
    %v7656 = vpop.f32.mrb[0].mxu0
    %7657 = vdwg.mxu0
    %v7660 = vunpack.c.l.s4 1966171168
    %v7661 = vunpack.c.0.s8 %v7660
    %v7662 = vlaneseq
    %v7663 = vshrl.u32 %v7662, 7
    %v7664 = vsub.s32 %v7661, %v7663
    %v7665 = vrot.slane %v7573, %v7664
    %v7666 = vcombine.high %v7665, %v7665
    %v7668 = vunpack.c.l.s4 1966171168
    %v7669 = vunpack.c.0.s8 %v7668
    %v7670 = vlaneseq
    %v7671 = vshrl.u32 %v7670, 7
    %v7672 = vsub.s32 %v7669, %v7671
    %v7673 = vrot.slane %v7665, %v7672
    %v7675 = vunpack.c.l.s4 1966171168
    %v7676 = vunpack.c.0.s8 %v7675
    %v7677 = vlaneseq
    %v7678 = vshrl.u32 %v7677, 7
    %v7679 = vsub.s32 %v7676, %v7678
    %v7680 = vrot.slane %v7666, %v7679
    %v7681 = vlaneseq
    %v7682 = vshrl.u32 %v7681, 7
    %v7683 = vsub.s32 0, %v7682
    %v7684 = vrot.slane %v7673, %v7683
    %v7685 = vlaneseq
    %v7686 = vshrl.u32 %v7685, 7
    %v7687 = vsub.s32 0, %v7686
    %v7688 = vrot.slane %v7680, %v7687
    %v7691 = vmul.f32 %v7684, %v7650
    %v7692 = vmul.f32 %v7688, %v7655
    %v7693 = vsel %vm67, %v7691, 0.0
    %7694 = vadd.xlane.f32.xlu0 %v7693
    %v7695 = vpop.xlane.xlu0 %7694
    %v7696 = vsel %vm67, %v7692, 0.0
    %7697 = vadd.xlane.f32.xlu0 %v7696
    %v7698 = vpop.xlane.xlu0 %7697
    %v7699 = vmul.f32 %v7695, 0.17677669
    %v7700 = vmul.f32 %v7698, 0.17677669
    %v7703 = vlaneseq
    %v7704 = vshrl.u32 %v7703, 7
    %v7705 = vsub.s32 %v7014, %v7704
    %v7706 = vrot.slane %v7699, %v7705
    %v7707 = vlaneseq
    %v7708 = vshrl.u32 %v7707, 7
    %v7709 = vsub.s32 %v7014, %v7708
    %v7710 = vrot.slane %v7700, %v7709
    %v7711 = vsel %vm2210, %v7710, %v7706
    %v7713 = vsel %vm7010, -1e+09, %v7711
    %v7714 = vsel %vm7026, %v7713, -inf
    %7715 = vmax.xlane.f32.xlu0 %v7714
    %v7716 = vpop.xlane.xlu0 %7715
    %v7717 = vsub.f32 %v7713, %v7716
    %v7718 = vmul.f32 %v7717, 1.442695
    %v7719 = vpow.pop %v7718
    %v7720 = vsel %vm7026, %v7719, 0.0
    %7721 = vadd.xlane.f32.xlu0 %v7720
    %v7722 = vpop.xlane.xlu0 %7721
    %v7723 = vrcp.pop %v7722
    %v7724 = vmul.f32 %v7719, %v7723
    %v7725 = vlaneseq
    %v7726 = vshrl.u32 %v7725, 7
    %v7727 = vsub.s32 0, %v7726
    %v7728 = vrot.slane %v7724, %v7727
    %7730 = vbcast.lane.b32.xlu0 %v7728, 256
    %v7731 = vpop.permute.xlu0 %7730
    %v7732 = vlaneseq
    %v7733 = vshrl.u32 %v7732, 7
    %v7734 = vsub.s32 1, %v7733
    %v7735 = vrot.slane %v7724, %v7734
    %7737 = vbcast.lane.b32.xlu0 %v7735, 256
    %v7738 = vpop.permute.xlu0 %7737
    %v7739 = vmul.f32 %v7731, %v1301
    %v7740 = vmul.f32 %v7738, %v1302
    %vm7741 = vcmask 523648
    %v7742 = vsel %vm7741, %v7739, 0.0
    %v7743 = vrot.slane %v7742, 4
    %v7744 = vadd.f32 %v7742, %v7743
    %v7745 = vrot.slane %v7744, 2
    %v7746 = vadd.f32 %v7744, %v7745
    %v7747 = vrot.slane %v7746, 1
    %v7748 = vadd.f32 %v7746, %v7747
    %v7749 = vsel %vm7741, %v7740, 0.0
    %v7750 = vrot.slane %v7749, 4
    %v7751 = vadd.f32 %v7749, %v7750
    %v7752 = vrot.slane %v7751, 2
    %v7753 = vadd.f32 %v7751, %v7752
    %v7754 = vrot.slane %v7753, 1
    %v7755 = vadd.f32 %v7753, %v7754
    %v7756 = vld [vmem:[#allocation2 + $0x1d8] sm:$0xff]
    %v7757 = vld [vmem:[#allocation2 + $0x1e0] sm:$0xff]
    %v7758 = vld [vmem:[#allocation2 + $0x1e8] sm:$0x1]
    %v7759 = vlaneseq
    %v7760 = vshrl.u32 %v7759, 7
    %v7761 = vsub.s32 0, %v7760
    %v7762 = vrot.slane %v7758, %v7761
    %v7765 = vsel %vm2210, %v7755, %v7748
    %7766 = vrot.lane.b32.xlu0 %v7765, 80
    %v7767 = vpop.permute.xlu0 %7766
    %v7768 = vsel %vm1060, %v7767, 0
    %7770 = vmatprep.subr.mxu0 0.0
    %7771 = vmatpush1.msra.mxu0 %v7756
    %7772 = vmatprep.subr.mxu0 0.0
    %7773 = vmatpush1.msra.mxu0 %v7757
    %7774 = vmatprep.subr.mxu0 0.0
    %7775 = vmatpush1.msra.mxu0 0.0
    %7776 = vmatprep.subr.mxu0 0.0
    %7777 = vmatpush1.msra.mxu0 0.0
    %7778 = vmatprep.subr.mxu0 0.0
    %7779 = vmatpush1.msra.mxu0 0.0
    %7780 = vmatprep.subr.mxu0 0.0
    %7781 = vmatpush1.msra.mxu0 0.0
    %7782 = vmatprep.subr.mxu0 0.0
    %7783 = vmatpush1.msra.mxu0 0.0
    %7784 = vmatprep.subr.mxu0 0.0
    %7785 = vmatpush1.msra.mxu0 0.0
    %7786 = vmatprep.subr.mxu0 0.0
    %7787 = vmatpush1.msra.mxu0 0.0
    %7788 = vmatprep.subr.mxu0 0.0
    %7789 = vmatpush1.msra.mxu0 0.0
    %7790 = vmatprep.subr.mxu0 0.0
    %7791 = vmatpush1.msra.mxu0 0.0
    %7792 = vmatprep.subr.mxu0 0.0
    %7793 = vmatpush1.msra.mxu0 0.0
    %7794 = vmatprep.subr.mxu0 0.0
    %7795 = vmatpush1.msra.mxu0 0.0
    %7796 = vmatprep.subr.mxu0 0.0
    %7797 = vmatpush1.msra.mxu0 0.0
    %7798 = vmatprep.subr.mxu0 0.0
    %7799 = vmatpush1.msra.mxu0 0.0
    %7800 = vmatprep.subr.mxu0 0.0
    %7801 = vmatpush1.msra.mxu0 0.0
    %7802 = vmatprep.subr.mxu0 0.0
    %7803 = vmatpush1.msra.mxu0 0.0
    %7804 = vmatprep.subr.mxu0 0.0
    %7805 = vmatpush1.msra.mxu0 0.0
    %7806 = vmatprep.subr.mxu0 0.0
    %7807 = vmatpush1.msra.mxu0 0.0
    %7808 = vmatprep.subr.mxu0 0.0
    %7809 = vmatpush1.msra.mxu0 0.0
    %7810 = vmatprep.subr.mxu0 0.0
    %7811 = vmatpush1.msra.mxu0 0.0
    %7812 = vmatprep.subr.mxu0 0.0
    %7813 = vmatpush1.msra.mxu0 0.0
    %7814 = vmatprep.subr.mxu0 0.0
    %7815 = vmatpush1.msra.mxu0 0.0
    %7816 = vmatprep.subr.mxu0 0.0
    %7817 = vmatpush1.msra.mxu0 0.0
    %7818 = vmatprep.subr.mxu0 0.0
    %7819 = vmatpush1.msra.mxu0 0.0
    %7820 = vmatprep.subr.mxu0 0.0
    %7821 = vmatpush1.msra.mxu0 0.0
    %7822 = vmatprep.subr.mxu0 0.0
    %7823 = vmatpush1.msra.mxu0 0.0
    %7824 = vmatprep.subr.mxu0 0.0
    %7825 = vmatpush1.msra.mxu0 0.0
    %7826 = vmatprep.subr.mxu0 0.0
    %7827 = vmatpush1.msra.mxu0 0.0
    %7828 = vmatprep.subr.mxu0 0.0
    %7829 = vmatpush1.msra.mxu0 0.0
    %7830 = vmatprep.subr.mxu0 0.0
    %7831 = vmatpush1.msra.mxu0 0.0
    %7832 = vmatprep.subr.mxu0 0.0
    %7833 = vmatpush1.msra.mxu0 0.0
    %7834 = vmatprep.mubr.f32.mxu0 0.0
    %7835 = vmatmul.mubr.f32.gmra.mrb[0].mxu0 %v7768
    %v7836 = vpop.f32.mrb[0].mxu0
    %v7837 = vadd.f32 %v7762, %v7836
    %v7838 = vpop.f32.mrb[0].mxu0
    %7839 = vdwg.mxu0
    %v7840 = vld [vmem:[#allocation2 + $0x298] sm:$0xff]
    %v7841 = vld [vmem:[#allocation2 + $0x2a0] sm:$0xff]
    %v7842 = vld [vmem:[#allocation2 + $0x2a8] sm:$0xff]
    %v7843 = vld [vmem:[#allocation2 + $0x2b0] sm:$0xff]
    %v7844 = vld [vmem:[#allocation2 + $0x2b8] sm:$0x1]
    %v7845 = vlaneseq
    %v7846 = vshrl.u32 %v7845, 7
    %v7847 = vsub.s32 0, %v7846
    %v7848 = vrot.slane %v7844, %v7847
    %v7850 = vsel %vm67, %v6800, 0
    %7852 = vmatprep.subr.mxu0 0.0
    %7853 = vmatpush1.msra.mxu0 %v7840
    %7854 = vmatprep.subr.mxu0 0.0
    %7855 = vmatpush1.msra.mxu0 %v7841
    %7856 = vmatprep.subr.mxu0 0.0
    %7857 = vmatpush1.msra.mxu0 %v7842
    %7858 = vmatprep.subr.mxu0 0.0
    %7859 = vmatpush1.msra.mxu0 %v7843
    %7860 = vmatprep.subr.mxu0 0.0
    %7861 = vmatpush1.msra.mxu0 0.0
    %7862 = vmatprep.subr.mxu0 0.0
    %7863 = vmatpush1.msra.mxu0 0.0
    %7864 = vmatprep.subr.mxu0 0.0
    %7865 = vmatpush1.msra.mxu0 0.0
    %7866 = vmatprep.subr.mxu0 0.0
    %7867 = vmatpush1.msra.mxu0 0.0
    %7868 = vmatprep.subr.mxu0 0.0
    %7869 = vmatpush1.msra.mxu0 0.0
    %7870 = vmatprep.subr.mxu0 0.0
    %7871 = vmatpush1.msra.mxu0 0.0
    %7872 = vmatprep.subr.mxu0 0.0
    %7873 = vmatpush1.msra.mxu0 0.0
    %7874 = vmatprep.subr.mxu0 0.0
    %7875 = vmatpush1.msra.mxu0 0.0
    %7876 = vmatprep.subr.mxu0 0.0
    %7877 = vmatpush1.msra.mxu0 0.0
    %7878 = vmatprep.subr.mxu0 0.0
    %7879 = vmatpush1.msra.mxu0 0.0
    %7880 = vmatprep.subr.mxu0 0.0
    %7881 = vmatpush1.msra.mxu0 0.0
    %7882 = vmatprep.subr.mxu0 0.0
    %7883 = vmatpush1.msra.mxu0 0.0
    %7884 = vmatprep.subr.mxu0 0.0
    %7885 = vmatpush1.msra.mxu0 0.0
    %7886 = vmatprep.subr.mxu0 0.0
    %7887 = vmatpush1.msra.mxu0 0.0
    %7888 = vmatprep.subr.mxu0 0.0
    %7889 = vmatpush1.msra.mxu0 0.0
    %7890 = vmatprep.subr.mxu0 0.0
    %7891 = vmatpush1.msra.mxu0 0.0
    %7892 = vmatprep.subr.mxu0 0.0
    %7893 = vmatpush1.msra.mxu0 0.0
    %7894 = vmatprep.subr.mxu0 0.0
    %7895 = vmatpush1.msra.mxu0 0.0
    %7896 = vmatprep.subr.mxu0 0.0
    %7897 = vmatpush1.msra.mxu0 0.0
    %7898 = vmatprep.subr.mxu0 0.0
    %7899 = vmatpush1.msra.mxu0 0.0
    %7900 = vmatprep.subr.mxu0 0.0
    %7901 = vmatpush1.msra.mxu0 0.0
    %7902 = vmatprep.subr.mxu0 0.0
    %7903 = vmatpush1.msra.mxu0 0.0
    %7904 = vmatprep.subr.mxu0 0.0
    %7905 = vmatpush1.msra.mxu0 0.0
    %7906 = vmatprep.subr.mxu0 0.0
    %7907 = vmatpush1.msra.mxu0 0.0
    %7908 = vmatprep.subr.mxu0 0.0
    %7909 = vmatpush1.msra.mxu0 0.0
    %7910 = vmatprep.subr.mxu0 0.0
    %7911 = vmatpush1.msra.mxu0 0.0
    %7912 = vmatprep.subr.mxu0 0.0
    %7913 = vmatpush1.msra.mxu0 0.0
    %7914 = vmatprep.subr.mxu0 0.0
    %7915 = vmatpush1.msra.mxu0 0.0
    %7916 = vmatprep.mubr.f32.mxu0 0.0
    %7917 = vmatmul.mubr.f32.gmra.mrb[0].mxu0 %v7850
    %v7918 = vpop.f32.mrb[0].mxu0
    %v7919 = vadd.f32 %v7848, %v7918
    %v7920 = vpop.f32.mrb[0].mxu0
    %7921 = vdwg.mxu0
    %v7922 = vld [vmem:[#allocation2 + $0x2c0] sm:$0xff]
    %v7923 = vld [vmem:[#allocation2 + $0x2c8] sm:$0xff]
    %v7924 = vld [vmem:[#allocation2 + $0x2d0] sm:$0xff]
    %v7925 = vld [vmem:[#allocation2 + $0x2d8] sm:$0xff]
    %v7926 = vld [vmem:[#allocation2 + $0x2e0] sm:$0x1]
    %v7927 = vlaneseq
    %v7928 = vshrl.u32 %v7927, 7
    %v7929 = vsub.s32 0, %v7928
    %v7930 = vrot.slane %v7926, %v7929
    %7931 = vmatprep.subr.mxu0 0.0
    %7932 = vmatpush1.msra.mxu0 %v7922
    %7933 = vmatprep.subr.mxu0 0.0
    %7934 = vmatpush1.msra.mxu0 %v7923
    %7935 = vmatprep.subr.mxu0 0.0
    %7936 = vmatpush1.msra.mxu0 %v7924
    %7937 = vmatprep.subr.mxu0 0.0
    %7938 = vmatpush1.msra.mxu0 %v7925
    %7939 = vmatprep.subr.mxu0 0.0
    %7940 = vmatpush1.msra.mxu0 0.0
    %7941 = vmatprep.subr.mxu0 0.0
    %7942 = vmatpush1.msra.mxu0 0.0
    %7943 = vmatprep.subr.mxu0 0.0
    %7944 = vmatpush1.msra.mxu0 0.0
    %7945 = vmatprep.subr.mxu0 0.0
    %7946 = vmatpush1.msra.mxu0 0.0
    %7947 = vmatprep.subr.mxu0 0.0
    %7948 = vmatpush1.msra.mxu0 0.0
    %7949 = vmatprep.subr.mxu0 0.0
    %7950 = vmatpush1.msra.mxu0 0.0
    %7951 = vmatprep.subr.mxu0 0.0
    %7952 = vmatpush1.msra.mxu0 0.0
    %7953 = vmatprep.subr.mxu0 0.0
    %7954 = vmatpush1.msra.mxu0 0.0
    %7955 = vmatprep.subr.mxu0 0.0
    %7956 = vmatpush1.msra.mxu0 0.0
    %7957 = vmatprep.subr.mxu0 0.0
    %7958 = vmatpush1.msra.mxu0 0.0
    %7959 = vmatprep.subr.mxu0 0.0
    %7960 = vmatpush1.msra.mxu0 0.0
    %7961 = vmatprep.subr.mxu0 0.0
    %7962 = vmatpush1.msra.mxu0 0.0
    %7963 = vmatprep.subr.mxu0 0.0
    %7964 = vmatpush1.msra.mxu0 0.0
    %7965 = vmatprep.subr.mxu0 0.0
    %7966 = vmatpush1.msra.mxu0 0.0
    %7967 = vmatprep.subr.mxu0 0.0
    %7968 = vmatpush1.msra.mxu0 0.0
    %7969 = vmatprep.subr.mxu0 0.0
    %7970 = vmatpush1.msra.mxu0 0.0
    %7971 = vmatprep.subr.mxu0 0.0
    %7972 = vmatpush1.msra.mxu0 0.0
    %7973 = vmatprep.subr.mxu0 0.0
    %7974 = vmatpush1.msra.mxu0 0.0
    %7975 = vmatprep.subr.mxu0 0.0
    %7976 = vmatpush1.msra.mxu0 0.0
    %7977 = vmatprep.subr.mxu0 0.0
    %7978 = vmatpush1.msra.mxu0 0.0
    %7979 = vmatprep.subr.mxu0 0.0
    %7980 = vmatpush1.msra.mxu0 0.0
    %7981 = vmatprep.subr.mxu0 0.0
    %7982 = vmatpush1.msra.mxu0 0.0
    %7983 = vmatprep.subr.mxu0 0.0
    %7984 = vmatpush1.msra.mxu0 0.0
    %7985 = vmatprep.subr.mxu0 0.0
    %7986 = vmatpush1.msra.mxu0 0.0
    %7987 = vmatprep.subr.mxu0 0.0
    %7988 = vmatpush1.msra.mxu0 0.0
    %7989 = vmatprep.subr.mxu0 0.0
    %7990 = vmatpush1.msra.mxu0 0.0
    %7991 = vmatprep.subr.mxu0 0.0
    %7992 = vmatpush1.msra.mxu0 0.0
    %7993 = vmatprep.subr.mxu0 0.0
    %7994 = vmatpush1.msra.mxu0 0.0
    %7995 = vmatprep.mubr.f32.mxu0 0.0
    %7996 = vmatmul.mubr.f32.gmra.mrb[0].mxu0 %v1984
    %v7997 = vpop.f32.mrb[0].mxu0
    %v7998 = vadd.f32 %v7930, %v7997
    %v7999 = vpop.f32.mrb[0].mxu0
    %8000 = vmatprep.mubr.f32.mxu0 0.0
    %8001 = vmatmul.mubr.f32.gmra.mrb[0].mxu0 %v1986
    %v8002 = vpop.f32.mrb[0].mxu0
    %v8003 = vadd.f32 %v7930, %v8002
    %v8004 = vpop.f32.mrb[0].mxu0
    %8005 = vdwg.mxu0
    %v8008 = vunpack.c.l.s4 1966171168
    %v8009 = vunpack.c.0.s8 %v8008
    %v8010 = vlaneseq
    %v8011 = vshrl.u32 %v8010, 7
    %v8012 = vsub.s32 %v8009, %v8011
    %v8013 = vrot.slane %v7919, %v8012
    %v8014 = vcombine.high %v8013, %v8013
    %v8016 = vunpack.c.l.s4 1966171168
    %v8017 = vunpack.c.0.s8 %v8016
    %v8018 = vlaneseq
    %v8019 = vshrl.u32 %v8018, 7
    %v8020 = vsub.s32 %v8017, %v8019
    %v8021 = vrot.slane %v8013, %v8020
    %v8023 = vunpack.c.l.s4 1966171168
    %v8024 = vunpack.c.0.s8 %v8023
    %v8025 = vlaneseq
    %v8026 = vshrl.u32 %v8025, 7
    %v8027 = vsub.s32 %v8024, %v8026
    %v8028 = vrot.slane %v8014, %v8027
    %v8029 = vlaneseq
    %v8030 = vshrl.u32 %v8029, 7
    %v8031 = vsub.s32 0, %v8030
    %v8032 = vrot.slane %v8021, %v8031
    %v8033 = vlaneseq
    %v8034 = vshrl.u32 %v8033, 7
    %v8035 = vsub.s32 0, %v8034
    %v8036 = vrot.slane %v8028, %v8035
    %v8039 = vmul.f32 %v8032, %v7998
    %v8040 = vmul.f32 %v8036, %v8003
    %v8041 = vsel %vm67, %v8039, 0.0
    %8042 = vadd.xlane.f32.xlu0 %v8041
    %v8043 = vpop.xlane.xlu0 %8042
    %v8044 = vsel %vm67, %v8040, 0.0
    %8045 = vadd.xlane.f32.xlu0 %v8044
    %v8046 = vpop.xlane.xlu0 %8045
    %v8047 = vmul.f32 %v8043, 0.17677669
    %v8048 = vmul.f32 %v8046, 0.17677669
    %v8051 = vlaneseq
    %v8052 = vshrl.u32 %v8051, 7
    %v8053 = vsub.s32 %v7014, %v8052
    %v8054 = vrot.slane %v8047, %v8053
    %v8055 = vlaneseq
    %v8056 = vshrl.u32 %v8055, 7
    %v8057 = vsub.s32 %v7014, %v8056
    %v8058 = vrot.slane %v8048, %v8057
    %v8059 = vsel %vm2210, %v8058, %v8054
    %v8061 = vsel %vm7010, -1e+09, %v8059
    %v8062 = vsel %vm7026, %v8061, -inf
    %8063 = vmax.xlane.f32.xlu0 %v8062
    %v8064 = vpop.xlane.xlu0 %8063
    %v8065 = vsub.f32 %v8061, %v8064
    %v8066 = vmul.f32 %v8065, 1.442695
    %v8067 = vpow.pop %v8066
    %v8068 = vsel %vm7026, %v8067, 0.0
    %8069 = vadd.xlane.f32.xlu0 %v8068
    %v8070 = vpop.xlane.xlu0 %8069
    %v8071 = vrcp.pop %v8070
    %v8072 = vmul.f32 %v8067, %v8071
    %v8073 = vlaneseq
    %v8074 = vshrl.u32 %v8073, 7
    %v8075 = vsub.s32 0, %v8074
    %v8076 = vrot.slane %v8072, %v8075
    %8078 = vbcast.lane.b32.xlu0 %v8076, 256
    %v8079 = vpop.permute.xlu0 %8078
    %v8080 = vlaneseq
    %v8081 = vshrl.u32 %v8080, 7
    %v8082 = vsub.s32 1, %v8081
    %v8083 = vrot.slane %v8072, %v8082
    %8085 = vbcast.lane.b32.xlu0 %v8083, 256
    %v8086 = vpop.permute.xlu0 %8085
    %v8087 = vmul.f32 %v8079, %v1713
    %v8088 = vmul.f32 %v8086, %v1714
    %vm8089 = vcmask 1048320
    %v8090 = vsel %vm8089, %v8087, 0.0
    %v8091 = vrot.slane %v8090, 4
    %v8092 = vadd.f32 %v8090, %v8091
    %v8093 = vrot.slane %v8092, 2
    %v8094 = vadd.f32 %v8092, %v8093
    %v8095 = vrot.slane %v8094, 1
    %v8096 = vadd.f32 %v8094, %v8095
    %v8097 = vsel %vm8089, %v8088, 0.0
    %v8098 = vrot.slane %v8097, 4
    %v8099 = vadd.f32 %v8097, %v8098
    %v8100 = vrot.slane %v8099, 2
    %v8101 = vadd.f32 %v8099, %v8100
    %v8102 = vrot.slane %v8101, 1
    %v8103 = vadd.f32 %v8101, %v8102
    %v8104 = vld [vmem:[#allocation2 + $0x2e8] sm:$0xff]
    %v8105 = vld [vmem:[#allocation2 + $0x2f0] sm:$0xff]
    %v8106 = vld [vmem:[#allocation2 + $0x2f8] sm:$0xff]
    %v8107 = vld [vmem:[#allocation2 + $0x300] sm:$0xff]
    %v8108 = vld [vmem:[#allocation2 + $0x308] sm:$0x1]
    %v8109 = vlaneseq
    %v8110 = vshrl.u32 %v8109, 7
    %v8111 = vsub.s32 0, %v8110
    %v8112 = vrot.slane %v8108, %v8111
    %v8115 = vsel %vm2210, %v8103, %v8096
    %8116 = vrot.lane.b32.xlu0 %v8115, 32
    %v8117 = vpop.permute.xlu0 %8116
    %v8118 = vsel %vm67, %v8117, 0
    %8120 = vmatprep.subr.mxu0 0.0
    %8121 = vmatpush1.msra.mxu0 %v8104
    %8122 = vmatprep.subr.mxu0 0.0
    %8123 = vmatpush1.msra.mxu0 %v8105
    %8124 = vmatprep.subr.mxu0 0.0
    %8125 = vmatpush1.msra.mxu0 %v8106
    %8126 = vmatprep.subr.mxu0 0.0
    %8127 = vmatpush1.msra.mxu0 %v8107
    %8128 = vmatprep.subr.mxu0 0.0
    %8129 = vmatpush1.msra.mxu0 0.0
    %8130 = vmatprep.subr.mxu0 0.0
    %8131 = vmatpush1.msra.mxu0 0.0
    %8132 = vmatprep.subr.mxu0 0.0
    %8133 = vmatpush1.msra.mxu0 0.0
    %8134 = vmatprep.subr.mxu0 0.0
    %8135 = vmatpush1.msra.mxu0 0.0
    %8136 = vmatprep.subr.mxu0 0.0
    %8137 = vmatpush1.msra.mxu0 0.0
    %8138 = vmatprep.subr.mxu0 0.0
    %8139 = vmatpush1.msra.mxu0 0.0
    %8140 = vmatprep.subr.mxu0 0.0
    %8141 = vmatpush1.msra.mxu0 0.0
    %8142 = vmatprep.subr.mxu0 0.0
    %8143 = vmatpush1.msra.mxu0 0.0
    %8144 = vmatprep.subr.mxu0 0.0
    %8145 = vmatpush1.msra.mxu0 0.0
    %8146 = vmatprep.subr.mxu0 0.0
    %8147 = vmatpush1.msra.mxu0 0.0
    %8148 = vmatprep.subr.mxu0 0.0
    %8149 = vmatpush1.msra.mxu0 0.0
    %8150 = vmatprep.subr.mxu0 0.0
    %8151 = vmatpush1.msra.mxu0 0.0
    %8152 = vmatprep.subr.mxu0 0.0
    %8153 = vmatpush1.msra.mxu0 0.0
    %8154 = vmatprep.subr.mxu0 0.0
    %8155 = vmatpush1.msra.mxu0 0.0
    %8156 = vmatprep.subr.mxu0 0.0
    %8157 = vmatpush1.msra.mxu0 0.0
    %8158 = vmatprep.subr.mxu0 0.0
    %8159 = vmatpush1.msra.mxu0 0.0
    %8160 = vmatprep.subr.mxu0 0.0
    %8161 = vmatpush1.msra.mxu0 0.0
    %8162 = vmatprep.subr.mxu0 0.0
    %8163 = vmatpush1.msra.mxu0 0.0
    %8164 = vmatprep.subr.mxu0 0.0
    %8165 = vmatpush1.msra.mxu0 0.0
    %8166 = vmatprep.subr.mxu0 0.0
    %8167 = vmatpush1.msra.mxu0 0.0
    %8168 = vmatprep.subr.mxu0 0.0
    %8169 = vmatpush1.msra.mxu0 0.0
    %8170 = vmatprep.subr.mxu0 0.0
    %8171 = vmatpush1.msra.mxu0 0.0
    %8172 = vmatprep.subr.mxu0 0.0
    %8173 = vmatpush1.msra.mxu0 0.0
    %8174 = vmatprep.subr.mxu0 0.0
    %8175 = vmatpush1.msra.mxu0 0.0
    %8176 = vmatprep.subr.mxu0 0.0
    %8177 = vmatpush1.msra.mxu0 0.0
    %8178 = vmatprep.subr.mxu0 0.0
    %8179 = vmatpush1.msra.mxu0 0.0
    %8180 = vmatprep.subr.mxu0 0.0
    %8181 = vmatpush1.msra.mxu0 0.0
    %8182 = vmatprep.subr.mxu0 0.0
    %8183 = vmatpush1.msra.mxu0 0.0
    %8184 = vmatprep.mubr.f32.mxu0 0.0
    %8185 = vmatmul.mubr.f32.gmra.mrb[0].mxu0 %v8118
    %v8186 = vpop.f32.mrb[0].mxu0
    %v8187 = vadd.f32 %v8112, %v8186
    %v8188 = vpop.f32.mrb[0].mxu0
    %8189 = vdwg.mxu0
    %8191 = vrot.lane.b32.xlu0 %v7493, 4
    %v8192 = vpop.permute.xlu0 %8191
    %8195 = vrot.lane.b32.xlu0 %v7837, 12
    %v8196 = vpop.permute.xlu0 %8195
    %8199 = vrot.lane.b32.xlu0 %v8187, 28
    %v8200 = vpop.permute.xlu0 %8199
    %v8202 = vsel %vm230, %v7152, %v8192
    %vm8203 = vcmask 97280
    %v8204 = vsel %vm8203, %v8202, %v8196
    %vm8205 = vcmask 228352
    %v8206 = vsel %vm8205, %v8204, %v8200
    %vm8207 = vcmask 484352
    %8208 = vst.msk [vmem:[#allocation5] sm:$0x3] %vm8207, %v8206
    %8210 = vrot.lane.b32.xlu0 %v7381, 8
    %v8211 = vpop.permute.xlu0 %8210
    %8214 = vrot.lane.b32.xlu0 %v7724, 16
    %v8215 = vpop.permute.xlu0 %8214
    %8218 = vrot.lane.b32.xlu0 %v8072, 24
    %v8219 = vpop.permute.xlu0 %8218
    %v8221 = vsel %vm648, %v7037, %v8211
    %v8222 = vsel %vm1060, %v8221, %v8215
    %vm8223 = vcmask 195584
    %v8224 = vsel %vm8223, %v8222, %v8219
    %vm8225 = vcmask 254976
    %8226 = vst.msk [vmem:[%s5] sm:$0x3] %vm8225, %v8224
    // Predicated region
    $region22: #{conv_gru_attn_forward.1} parent=1 // pred_check
      _
    $region23: #{conv_gru_attn_forward.1} parent=1 // pred_check_branch
      %8228 = sbr.rel (0) target = $region25
    $region24: #{conv_gru_attn_forward.1} parent=1 // pred_region
      %s8230 = ssub.s32 32, 32
      %8231 = vsyncadd [#allocation4], %s8230
      %s8233 = sshll.u32 [#allocation5], 4
      %s8234 = int_to_ptr.vmem [resolvable:$true] %s8233
      %8236 = dma.vmem_to_hbm [thread:$0]  %s8234, 32, %s4, [#allocation4]
    $region25: #{conv_gru_attn_forward.1} parent=1 // pred_fallthru
      _
    // Predicated region
    $region26: #{conv_gru_attn_forward.1} parent=1 // pred_check
      _
    $region27: #{conv_gru_attn_forward.1} parent=1 // pred_check_branch
      %8238 = sbr.rel (0) target = $region29
    $region28: #{conv_gru_attn_forward.1} parent=1 // pred_region
      _
    $region29: #{conv_gru_attn_forward.1} parent=1 // pred_fallthru
      _
    // Predicated region
    $region30: #{conv_gru_attn_forward.1} parent=1 // pred_check
      _
    $region31: #{conv_gru_attn_forward.1} parent=1 // pred_check_branch
      %8240 = sbr.rel (0) target = $region33
    $region32: #{conv_gru_attn_forward.1} parent=1 // pred_region
      %8241 = dma.done [#allocation4], 32
    $region33: #{conv_gru_attn_forward.1} parent=1 // pred_fallthru
      _
    // Predicated region
    $region34: #{conv_gru_attn_forward.1} parent=1 // pred_check
      _
    $region35: #{conv_gru_attn_forward.1} parent=1 // pred_check_branch
      %8243 = sbr.rel (0) target = $region37
    $region36: #{conv_gru_attn_forward.1} parent=1 // pred_region
      _
    $region37: #{conv_gru_attn_forward.1} parent=1 // pred_fallthru
      _
    %8244 = vsyncpa [#allocation3], 1
    %8245 = vsyncpa [#allocation4], 1

</llo_original>
